<compile_context>
chip_gen: v7x
topology: tpu7x:2x2x1
jax: 0.10.0
libtpu: 0.0.40
codegen_flags: <defaults>
</compile_context>

<pallas_src>
import functools

import jax
import jax.numpy as jnp
from jax.experimental import pallas as pl
from jax.experimental.pallas import tpu as pltpu

BN_EPS = 1e-5
KERNEL_SIZE = 5

VMEM = pl.BlockSpec(memory_space=pltpu.MemorySpace.VMEM)


# ----------------------------- in-kernel helpers -----------------------------

def _bn_batchstats(h, gamma, beta):
    """BatchNorm1d with batch statistics (track_running_stats=False), batch size 1.

    h: (F, C); gamma/beta: (1, C). Per-channel stats over F, biased variance."""
    n = h.shape[0]
    mean = jnp.sum(h, axis=0, keepdims=True) * (1.0 / n)
    d = h - mean
    var = jnp.sum(d * d, axis=0, keepdims=True) * (1.0 / n)
    return gamma * (d * jax.lax.rsqrt(var + BN_EPS)) + beta


def _im2col_same(h, kernel_size):
    """Build the (F, K*C) im2col slab for padding='same', dilation=1.

    Shifts go through pltpu.roll (XLU) + an edge mask; no zero-pad concatenation
    along the feature (sublane) axis."""
    pad = (kernel_size - 1) // 2
    f_len = h.shape[0]
    fidx = jax.lax.broadcasted_iota(jnp.int32, h.shape, 0)
    cols = []
    for k in range(kernel_size):                       # static unroll (K is tiny)
        off = k - pad                                  # column k holds h[f + off]
        if off == 0:
            cols.append(h)
            continue
        rolled = pltpu.roll(h, shift=(-off) % f_len, axis=0)
        valid = jnp.logical_and(fidx >= -off, fidx < f_len - off)
        cols.append(jnp.where(valid, rolled, 0.0))
    return jnp.concatenate(cols, axis=1)               # (F, K*C)


def _conv1d_same(h, w_mat, bias, kernel_size):
    """Conv1d(padding='same') as a single MXU matmul on the im2col slab.

    h: (F, Cin); w_mat: (K*Cin, Cout); bias: (1, Cout)."""
    cols = _im2col_same(h, kernel_size)
    return jnp.dot(cols, w_mat, preferred_element_type=jnp.float32) + bias


# --------------------------------- fused kernel --------------------------------

def prediction_net_kernel(x_ref, bn0_g_ref, bn0_b_ref,
                          w1a_ref, b1a_ref, g1a_ref, be1a_ref,
                          w2a_ref, b2a_ref, g2a_ref, be2a_ref,
                          wm_ref, bm_ref, gm_ref, bem_ref,
                          w1s_ref, b1s_ref, g1s_ref, be1s_ref,
                          w2s_ref, b2s_ref, g2s_ref, be2s_ref,
                          wf_ref, bf_ref,
                          probs_ref, logits_ref, *, kernel_size):
    k = kernel_size

    # initial_bn
    x = _bn_batchstats(x_ref[...], bn0_g_ref[...], bn0_b_ref[...])     # (F, Cin)

    # --- residual block 0: Cin -> H, match_dimensions = Conv1d(k=1) + BN ---
    res = jnp.dot(x, wm_ref[...], preferred_element_type=jnp.float32) + bm_ref[...]
    res = _bn_batchstats(res, gm_ref[...], bem_ref[...])
    h = _conv1d_same(x, w1a_ref[...], b1a_ref[...], k)
    h = jnp.tanh(_bn_batchstats(h, g1a_ref[...], be1a_ref[...]))
    h = _conv1d_same(h, w2a_ref[...], b2a_ref[...], k)
    h = _bn_batchstats(h, g2a_ref[...], be2a_ref[...]) + res           # (F, H)

    # --- residual blocks 1..NB-1: H -> H, identity residual (static unroll) ---
    num_extra = w1s_ref.shape[0]
    for i in range(num_extra):
        res = h
        t = _conv1d_same(h, w1s_ref[i], b1s_ref[i], k)
        t = jnp.tanh(_bn_batchstats(t, g1s_ref[i], be1s_ref[i]))
        t = _conv1d_same(t, w2s_ref[i], b2s_ref[i], k)
        h = _bn_batchstats(t, g2s_ref[i], be2s_ref[i]) + res

    # --- final conv (H -> 1, same) + sigmoid ---
    cols = _im2col_same(h, k)                                          # (F, K*H)
    logits = jnp.sum(cols * wf_ref[...], axis=1, keepdims=True) + bf_ref[...]
    logits_ref[...] = logits
    probs_ref[...] = 1.0 / (1.0 + jnp.exp(-logits))


# ------------------------------ parameter init --------------------------------

def init_params(key, in_channels, hidden_dim, kernel_size, num_res_blocks):
    assert num_res_blocks >= 2, "stacked-block layout assumes >= 2 residual blocks"
    cin, hd, k = in_channels, hidden_dim, kernel_size
    ne = num_res_blocks - 1                      # extra (H -> H) blocks
    ks = jax.random.split(key, 20)

    def nrm(kk, shape, scale):
        return scale * jax.random.normal(kk, shape, jnp.float32)

    return {
        # initial BatchNorm1d(in_channels) affine params
        "bn0_g": 1.0 + nrm(ks[0], (1, cin), 0.1),
        "bn0_b": nrm(ks[1], (1, cin), 0.1),
        # block 0: conv1 (Cin->H, k), conv2 (H->H, k), match_dimensions (1x1 conv + BN)
        "w1a": nrm(ks[2], (k * cin, hd), 1.0 / float(k * cin) ** 0.5),
        "b1a": nrm(ks[3], (1, hd), 0.05),
        "g1a": 1.0 + nrm(ks[4], (1, hd), 0.1),
        "be1a": nrm(ks[5], (1, hd), 0.1),
        "w2a": nrm(ks[6], (k * hd, hd), 1.0 / float(k * hd) ** 0.5),
        "b2a": nrm(ks[7], (1, hd), 0.05),
        "g2a": 1.0 + nrm(ks[8], (1, hd), 0.1),
        "be2a": nrm(ks[9], (1, hd), 0.1),
        "wm": nrm(ks[10], (cin, hd), 1.0 / float(cin) ** 0.5),
        "bm": nrm(ks[11], (1, hd), 0.05),
        "gm": 1.0 + nrm(ks[12], (1, hd), 0.1),
        "bem": nrm(ks[13], (1, hd), 0.1),
        # blocks 1..num_res_blocks-1, stacked on a leading axis
        "w1s": nrm(ks[14], (ne, k * hd, hd), 1.0 / float(k * hd) ** 0.5),
        "b1s": nrm(ks[15], (ne, 1, hd), 0.05),
        "g1s": jnp.ones((ne, 1, hd), jnp.float32),
        "be1s": jnp.zeros((ne, 1, hd), jnp.float32),
        "w2s": nrm(ks[16], (ne, k * hd, hd), 1.0 / float(k * hd) ** 0.5),
        "b2s": nrm(ks[17], (ne, 1, hd), 0.05),
        "g2s": jnp.ones((ne, 1, hd), jnp.float32),
        "be2s": jnp.zeros((ne, 1, hd), jnp.float32),
        # final conv (H -> 1, kernel=k); weight stored as a (1, K*H) row
        "wf": nrm(ks[18], (1, k * hd), 1.0 / float(k * hd) ** 0.5),
        "bf": nrm(ks[19], (1, 1), 0.05),
    }


# --------------------------------- wrapper -------------------------------------

def prediction_net(x, params, *, kernel_size=KERNEL_SIZE):
    """x: (1, in_channels, n_features) float32 (PyTorch NCL).

    Returns (probs, logits), each (1, n_features) — matches PredictionNet.forward."""
    n, _, n_feat = x.shape
    assert n == 1, "PredictionNet operates on a single combined-functionals tensor"
    x2d = jnp.transpose(x[0], (1, 0))                                  # (F, Cin)

    probs_col, logits_col = pl.pallas_call(
        functools.partial(prediction_net_kernel, kernel_size=kernel_size),
        out_shape=(jax.ShapeDtypeStruct((n_feat, 1), jnp.float32),
                   jax.ShapeDtypeStruct((n_feat, 1), jnp.float32)),
        in_specs=[VMEM] * 25,
        out_specs=(VMEM, VMEM),
    )(x2d,
      params["bn0_g"], params["bn0_b"],
      params["w1a"], params["b1a"], params["g1a"], params["be1a"],
      params["w2a"], params["b2a"], params["g2a"], params["be2a"],
      params["wm"], params["bm"], params["gm"], params["bem"],
      params["w1s"], params["b1s"], params["g1s"], params["be1s"],
      params["w2s"], params["b2s"], params["g2s"], params["be2s"],
      params["wf"], params["bf"])

    probs = probs_col[:, 0][None, :]
    logits = logits_col[:, 0][None, :]
    return probs, logits


# ------------------------- pure-JAX reference (checking) -----------------------

def _ref_bn(h, g, b):
    mean = jnp.mean(h, axis=0, keepdims=True)
    var = jnp.mean((h - mean) ** 2, axis=0, keepdims=True)
    return g * ((h - mean) * jax.lax.rsqrt(var + BN_EPS)) + b


def _ref_im2col(h, k):
    f_len = h.shape[0]
    pad = (k - 1) // 2
    hp = jnp.pad(h, ((pad, pad), (0, 0)))
    return jnp.concatenate([hp[i:i + f_len] for i in range(k)], axis=1)


def _ref_conv(h, w_mat, bias, k):
    return jnp.dot(_ref_im2col(h, k), w_mat,
                   precision=jax.lax.Precision.HIGHEST) + bias


def prediction_net_reference(x, params, *, kernel_size=KERNEL_SIZE):
    k = kernel_size
    h = _ref_bn(jnp.transpose(x[0], (1, 0)), params["bn0_g"], params["bn0_b"])
    res = jnp.dot(h, params["wm"], precision=jax.lax.Precision.HIGHEST) + params["bm"]
    res = _ref_bn(res, params["gm"], params["bem"])
    t = _ref_conv(h, params["w1a"], params["b1a"], k)
    t = jnp.tanh(_ref_bn(t, params["g1a"], params["be1a"]))
    t = _ref_conv(t, params["w2a"], params["b2a"], k)
    h = _ref_bn(t, params["g2a"], params["be2a"]) + res
    for i in range(params["w1s"].shape[0]):
        res = h
        t = _ref_conv(h, params["w1s"][i], params["b1s"][i], k)
        t = jnp.tanh(_ref_bn(t, params["g1s"][i], params["be1s"][i]))
        t = _ref_conv(t, params["w2s"][i], params["b2s"][i], k)
        h = _ref_bn(t, params["g2s"][i], params["be2s"][i]) + res
    cols = _ref_im2col(h, k)
    logits = jnp.sum(cols * params["wf"], axis=1, keepdims=True) + params["bf"]
    probs = 1.0 / (1.0 + jnp.exp(-logits))
    return probs[:, 0][None, :], logits[:, 0][None, :]


# ----------------------------------- main --------------------------------------

if __name__ == "__main__":
    key = jax.random.PRNGKey(0)
    kx, kp = jax.random.split(key)

    # Small test configuration consistent with the module (defaults are
    # in_channels=335, hidden_dim=64, kernel_size=5, num_res_blocks=7).
    in_channels, hidden_dim, kernel_size = 128, 64, 5
    num_res_blocks, n_features = 4, 64

    x = jax.random.normal(kx, (1, in_channels, n_features), jnp.float32)
    params = init_params(kp, in_channels, hidden_dim, kernel_size, num_res_blocks)

    probs, logits = prediction_net(x, params, kernel_size=kernel_size)
    jax.block_until_ready((probs, logits))

    assert probs.shape == (1, n_features), probs.shape
    assert logits.shape == (1, n_features), logits.shape
    assert bool(jnp.all(jnp.isfinite(probs))) and bool(jnp.all(jnp.isfinite(logits)))

    ref_probs, ref_logits = prediction_net_reference(x, params, kernel_size=kernel_size)
    err_logits = float(jnp.max(jnp.abs(logits - ref_logits)))
    err_probs = float(jnp.max(jnp.abs(probs - ref_probs)))
    assert err_logits < 5e-3 and err_probs < 5e-3, (err_logits, err_probs)

    print("KERNEL_OK")
</pallas_src>

<mosaic_0001>
module attributes {stable_mosaic.version = 11 : i64} {
  func.func @prediction_net_kernel(%arg0: memref<64x128xf32, #tpu.memory_space<vmem>>, %arg1: memref<1x128xf32, #tpu.memory_space<vmem>>, %arg2: memref<1x128xf32, #tpu.memory_space<vmem>>, %arg3: memref<640x64xf32, #tpu.memory_space<vmem>>, %arg4: memref<1x64xf32, #tpu.memory_space<vmem>>, %arg5: memref<1x64xf32, #tpu.memory_space<vmem>>, %arg6: memref<1x64xf32, #tpu.memory_space<vmem>>, %arg7: memref<320x64xf32, #tpu.memory_space<vmem>>, %arg8: memref<1x64xf32, #tpu.memory_space<vmem>>, %arg9: memref<1x64xf32, #tpu.memory_space<vmem>>, %arg10: memref<1x64xf32, #tpu.memory_space<vmem>>, %arg11: memref<128x64xf32, #tpu.memory_space<vmem>>, %arg12: memref<1x64xf32, #tpu.memory_space<vmem>>, %arg13: memref<1x64xf32, #tpu.memory_space<vmem>>, %arg14: memref<1x64xf32, #tpu.memory_space<vmem>>, %arg15: memref<3x320x64xf32, #tpu.memory_space<vmem>>, %arg16: memref<3x1x64xf32, #tpu.memory_space<vmem>>, %arg17: memref<3x1x64xf32, #tpu.memory_space<vmem>>, %arg18: memref<3x1x64xf32, #tpu.memory_space<vmem>>, %arg19: memref<3x320x64xf32, #tpu.memory_space<vmem>>, %arg20: memref<3x1x64xf32, #tpu.memory_space<vmem>>, %arg21: memref<3x1x64xf32, #tpu.memory_space<vmem>>, %arg22: memref<3x1x64xf32, #tpu.memory_space<vmem>>, %arg23: memref<1x320xf32, #tpu.memory_space<vmem>>, %arg24: memref<1x1xf32, #tpu.memory_space<vmem>>, %arg25: memref<64x1xf32, #tpu.memory_space<vmem>>, %arg26: memref<64x1xf32, #tpu.memory_space<vmem>>) attributes {dimension_semantics = [], scalar_prefetch = 0 : i64, scratch_operands = 0 : i64, tpu.core_type = #tpu.core_type<tc>} {
    %c0 = arith.constant 0 : index
    %c0_0 = arith.constant 0 : index
    %0 = vector.load %arg0[%c0, %c0_0] : memref<64x128xf32, #tpu.memory_space<vmem>>, vector<64x128xf32>
    %c0_1 = arith.constant 0 : index
    %c0_2 = arith.constant 0 : index
    %1 = vector.load %arg1[%c0_1, %c0_2] : memref<1x128xf32, #tpu.memory_space<vmem>>, vector<1x128xf32>
    %c0_3 = arith.constant 0 : index
    %c0_4 = arith.constant 0 : index
    %2 = vector.load %arg2[%c0_3, %c0_4] : memref<1x128xf32, #tpu.memory_space<vmem>>, vector<1x128xf32>
    %cst = arith.constant dense<0.000000e+00> : vector<128xf32>
    %3 = vector.multi_reduction <add>, %0, %cst [0] : vector<64x128xf32> to vector<128xf32>
    %4 = vector.shape_cast %3 : vector<128xf32> to vector<1x128xf32>
    %cst_5 = arith.constant 1.562500e-02 : f32
    %5 = vector.broadcast %cst_5 : f32 to vector<1x128xf32>
    %6 = arith.mulf %4, %5 : vector<1x128xf32>
    %7 = vector.broadcast %6 : vector<1x128xf32> to vector<64x128xf32>
    %8 = arith.subf %0, %7 : vector<64x128xf32>
    %9 = arith.mulf %8, %8 : vector<64x128xf32>
    %cst_6 = arith.constant dense<0.000000e+00> : vector<128xf32>
    %10 = vector.multi_reduction <add>, %9, %cst_6 [0] : vector<64x128xf32> to vector<128xf32>
    %11 = vector.shape_cast %10 : vector<128xf32> to vector<1x128xf32>
    %cst_7 = arith.constant 1.562500e-02 : f32
    %12 = vector.broadcast %cst_7 : f32 to vector<1x128xf32>
    %13 = arith.mulf %11, %12 : vector<1x128xf32>
    %cst_8 = arith.constant 9.99999974E-6 : f32
    %14 = vector.broadcast %cst_8 : f32 to vector<1x128xf32>
    %15 = arith.addf %13, %14 : vector<1x128xf32>
    %16 = math.rsqrt %15 : vector<1x128xf32>
    %17 = vector.broadcast %16 : vector<1x128xf32> to vector<64x128xf32>
    %18 = arith.mulf %8, %17 : vector<64x128xf32>
    %19 = vector.broadcast %1 : vector<1x128xf32> to vector<64x128xf32>
    %20 = arith.mulf %19, %18 : vector<64x128xf32>
    %21 = vector.broadcast %2 : vector<1x128xf32> to vector<64x128xf32>
    %22 = arith.addf %20, %21 : vector<64x128xf32>
    %c0_9 = arith.constant 0 : index
    %c0_10 = arith.constant 0 : index
    %23 = vector.load %arg11[%c0_9, %c0_10] : memref<128x64xf32, #tpu.memory_space<vmem>>, vector<128x64xf32>
    %cst_11 = arith.constant dense<0.000000e+00> : vector<64x64xf32>
    %24 = tpu.matmul %22, %23, %cst_11 {dimension_numbers = #tpu.dot_dimension_numbers<[1], [0], [0], [1], [0, 0, 1, 1], [], []>} : vector<64x128xf32>, vector<128x64xf32>, vector<64x64xf32> -> vector<64x64xf32>
    %c0_12 = arith.constant 0 : index
    %c0_13 = arith.constant 0 : index
    %25 = vector.load %arg12[%c0_12, %c0_13] : memref<1x64xf32, #tpu.memory_space<vmem>>, vector<1x64xf32>
    %26 = vector.broadcast %25 : vector<1x64xf32> to vector<64x64xf32>
    %27 = arith.addf %24, %26 : vector<64x64xf32>
    %c0_14 = arith.constant 0 : index
    %c0_15 = arith.constant 0 : index
    %28 = vector.load %arg13[%c0_14, %c0_15] : memref<1x64xf32, #tpu.memory_space<vmem>>, vector<1x64xf32>
    %c0_16 = arith.constant 0 : index
    %c0_17 = arith.constant 0 : index
    %29 = vector.load %arg14[%c0_16, %c0_17] : memref<1x64xf32, #tpu.memory_space<vmem>>, vector<1x64xf32>
    %cst_18 = arith.constant dense<0.000000e+00> : vector<64xf32>
    %30 = vector.multi_reduction <add>, %27, %cst_18 [0] : vector<64x64xf32> to vector<64xf32>
    %31 = vector.shape_cast %30 : vector<64xf32> to vector<1x64xf32>
    %cst_19 = arith.constant 1.562500e-02 : f32
    %32 = vector.broadcast %cst_19 : f32 to vector<1x64xf32>
    %33 = arith.mulf %31, %32 : vector<1x64xf32>
    %34 = vector.broadcast %33 : vector<1x64xf32> to vector<64x64xf32>
    %35 = arith.subf %27, %34 : vector<64x64xf32>
    %36 = arith.mulf %35, %35 : vector<64x64xf32>
    %cst_20 = arith.constant dense<0.000000e+00> : vector<64xf32>
    %37 = vector.multi_reduction <add>, %36, %cst_20 [0] : vector<64x64xf32> to vector<64xf32>
    %38 = vector.shape_cast %37 : vector<64xf32> to vector<1x64xf32>
    %cst_21 = arith.constant 1.562500e-02 : f32
    %39 = vector.broadcast %cst_21 : f32 to vector<1x64xf32>
    %40 = arith.mulf %38, %39 : vector<1x64xf32>
    %cst_22 = arith.constant 9.99999974E-6 : f32
    %41 = vector.broadcast %cst_22 : f32 to vector<1x64xf32>
    %42 = arith.addf %40, %41 : vector<1x64xf32>
    %43 = math.rsqrt %42 : vector<1x64xf32>
    %44 = vector.broadcast %43 : vector<1x64xf32> to vector<64x64xf32>
    %45 = arith.mulf %35, %44 : vector<64x64xf32>
    %46 = vector.broadcast %28 : vector<1x64xf32> to vector<64x64xf32>
    %47 = arith.mulf %46, %45 : vector<64x64xf32>
    %48 = vector.broadcast %29 : vector<1x64xf32> to vector<64x64xf32>
    %49 = arith.addf %47, %48 : vector<64x64xf32>
    %c0_23 = arith.constant 0 : index
    %c0_24 = arith.constant 0 : index
    %50 = vector.load %arg3[%c0_23, %c0_24] : memref<640x64xf32, #tpu.memory_space<vmem>>, vector<640x64xf32>
    %c0_25 = arith.constant 0 : index
    %c0_26 = arith.constant 0 : index
    %51 = vector.load %arg4[%c0_25, %c0_26] : memref<1x64xf32, #tpu.memory_space<vmem>>, vector<1x64xf32>
    %52 = tpu.iota {dimensions = array<i32: 0>} : vector<64x128xi32>
    %c2_i32 = arith.constant 2 : i32
    %53 = tpu.dynamic_rotate %22 by %c2_i32 dim 0 : vector<64x128xf32>, i32 -> vector<64x128xf32>
    %c2_i32_27 = arith.constant 2 : i32
    %54 = vector.broadcast %c2_i32_27 : i32 to vector<64x128xi32>
    %55 = arith.cmpi sge, %52, %54 : vector<64x128xi32>
    %c66_i32 = arith.constant 66 : i32
    %56 = vector.broadcast %c66_i32 : i32 to vector<64x128xi32>
    %57 = arith.cmpi slt, %52, %56 : vector<64x128xi32>
    %58 = arith.andi %55, %57 : vector<64x128xi1>
    %cst_28 = arith.constant 0.000000e+00 : f32
    %59 = vector.broadcast %cst_28 : f32 to vector<64x128xf32>
    %60 = arith.select %58, %53, %59 : vector<64x128xi1>, vector<64x128xf32>
    %c1_i32 = arith.constant 1 : i32
    %61 = tpu.dynamic_rotate %22 by %c1_i32 dim 0 : vector<64x128xf32>, i32 -> vector<64x128xf32>
    %c1_i32_29 = arith.constant 1 : i32
    %62 = vector.broadcast %c1_i32_29 : i32 to vector<64x128xi32>
    %63 = arith.cmpi sge, %52, %62 : vector<64x128xi32>
    %c65_i32 = arith.constant 65 : i32
    %64 = vector.broadcast %c65_i32 : i32 to vector<64x128xi32>
    %65 = arith.cmpi slt, %52, %64 : vector<64x128xi32>
    %66 = arith.andi %63, %65 : vector<64x128xi1>
    %cst_30 = arith.constant 0.000000e+00 : f32
    %67 = vector.broadcast %cst_30 : f32 to vector<64x128xf32>
    %68 = arith.select %66, %61, %67 : vector<64x128xi1>, vector<64x128xf32>
    %c63_i32 = arith.constant 63 : i32
    %69 = tpu.dynamic_rotate %22 by %c63_i32 dim 0 : vector<64x128xf32>, i32 -> vector<64x128xf32>
    %c-1_i32 = arith.constant -1 : i32
    %70 = vector.broadcast %c-1_i32 : i32 to vector<64x128xi32>
    %71 = arith.cmpi sge, %52, %70 : vector<64x128xi32>
    %c63_i32_31 = arith.constant 63 : i32
    %72 = vector.broadcast %c63_i32_31 : i32 to vector<64x128xi32>
    %73 = arith.cmpi slt, %52, %72 : vector<64x128xi32>
    %74 = arith.andi %71, %73 : vector<64x128xi1>
    %cst_32 = arith.constant 0.000000e+00 : f32
    %75 = vector.broadcast %cst_32 : f32 to vector<64x128xf32>
    %76 = arith.select %74, %69, %75 : vector<64x128xi1>, vector<64x128xf32>
    %c62_i32 = arith.constant 62 : i32
    %77 = tpu.dynamic_rotate %22 by %c62_i32 dim 0 : vector<64x128xf32>, i32 -> vector<64x128xf32>
    %c-2_i32 = arith.constant -2 : i32
    %78 = vector.broadcast %c-2_i32 : i32 to vector<64x128xi32>
    %79 = arith.cmpi sge, %52, %78 : vector<64x128xi32>
    %c62_i32_33 = arith.constant 62 : i32
    %80 = vector.broadcast %c62_i32_33 : i32 to vector<64x128xi32>
    %81 = arith.cmpi slt, %52, %80 : vector<64x128xi32>
    %82 = arith.andi %79, %81 : vector<64x128xi1>
    %cst_34 = arith.constant 0.000000e+00 : f32
    %83 = vector.broadcast %cst_34 : f32 to vector<64x128xf32>
    %84 = arith.select %82, %77, %83 : vector<64x128xi1>, vector<64x128xf32>
    %85 = tpu.concatenate %60, %68, %22, %76, %84 in 1 : vector<64x128xf32>, vector<64x128xf32>, vector<64x128xf32>, vector<64x128xf32>, vector<64x128xf32> -> vector<64x640xf32>
    %cst_35 = arith.constant dense<0.000000e+00> : vector<64x64xf32>
    %86 = tpu.matmul %85, %50, %cst_35 {dimension_numbers = #tpu.dot_dimension_numbers<[1], [0], [0], [1], [0, 0, 1, 1], [], []>} : vector<64x640xf32>, vector<640x64xf32>, vector<64x64xf32> -> vector<64x64xf32>
    %87 = vector.broadcast %51 : vector<1x64xf32> to vector<64x64xf32>
    %88 = arith.addf %86, %87 : vector<64x64xf32>
    %c0_36 = arith.constant 0 : index
    %c0_37 = arith.constant 0 : index
    %89 = vector.load %arg5[%c0_36, %c0_37] : memref<1x64xf32, #tpu.memory_space<vmem>>, vector<1x64xf32>
    %c0_38 = arith.constant 0 : index
    %c0_39 = arith.constant 0 : index
    %90 = vector.load %arg6[%c0_38, %c0_39] : memref<1x64xf32, #tpu.memory_space<vmem>>, vector<1x64xf32>
    %cst_40 = arith.constant dense<0.000000e+00> : vector<64xf32>
    %91 = vector.multi_reduction <add>, %88, %cst_40 [0] : vector<64x64xf32> to vector<64xf32>
    %92 = vector.shape_cast %91 : vector<64xf32> to vector<1x64xf32>
    %cst_41 = arith.constant 1.562500e-02 : f32
    %93 = vector.broadcast %cst_41 : f32 to vector<1x64xf32>
    %94 = arith.mulf %92, %93 : vector<1x64xf32>
    %95 = vector.broadcast %94 : vector<1x64xf32> to vector<64x64xf32>
    %96 = arith.subf %88, %95 : vector<64x64xf32>
    %97 = arith.mulf %96, %96 : vector<64x64xf32>
    %cst_42 = arith.constant dense<0.000000e+00> : vector<64xf32>
    %98 = vector.multi_reduction <add>, %97, %cst_42 [0] : vector<64x64xf32> to vector<64xf32>
    %99 = vector.shape_cast %98 : vector<64xf32> to vector<1x64xf32>
    %cst_43 = arith.constant 1.562500e-02 : f32
    %100 = vector.broadcast %cst_43 : f32 to vector<1x64xf32>
    %101 = arith.mulf %99, %100 : vector<1x64xf32>
    %cst_44 = arith.constant 9.99999974E-6 : f32
    %102 = vector.broadcast %cst_44 : f32 to vector<1x64xf32>
    %103 = arith.addf %101, %102 : vector<1x64xf32>
    %104 = math.rsqrt %103 : vector<1x64xf32>
    %105 = vector.broadcast %104 : vector<1x64xf32> to vector<64x64xf32>
    %106 = arith.mulf %96, %105 : vector<64x64xf32>
    %107 = vector.broadcast %89 : vector<1x64xf32> to vector<64x64xf32>
    %108 = arith.mulf %107, %106 : vector<64x64xf32>
    %109 = vector.broadcast %90 : vector<1x64xf32> to vector<64x64xf32>
    %110 = arith.addf %108, %109 : vector<64x64xf32>
    %111 = math.tanh %110 : vector<64x64xf32>
    %c0_45 = arith.constant 0 : index
    %c0_46 = arith.constant 0 : index
    %112 = vector.load %arg7[%c0_45, %c0_46] : memref<320x64xf32, #tpu.memory_space<vmem>>, vector<320x64xf32>
    %c0_47 = arith.constant 0 : index
    %c0_48 = arith.constant 0 : index
    %113 = vector.load %arg8[%c0_47, %c0_48] : memref<1x64xf32, #tpu.memory_space<vmem>>, vector<1x64xf32>
    %114 = tpu.iota {dimensions = array<i32: 0>} : vector<64x64xi32>
    %c2_i32_49 = arith.constant 2 : i32
    %115 = tpu.dynamic_rotate %111 by %c2_i32_49 dim 0 : vector<64x64xf32>, i32 -> vector<64x64xf32>
    %c2_i32_50 = arith.constant 2 : i32
    %116 = vector.broadcast %c2_i32_50 : i32 to vector<64x64xi32>
    %117 = arith.cmpi sge, %114, %116 : vector<64x64xi32>
    %c66_i32_51 = arith.constant 66 : i32
    %118 = vector.broadcast %c66_i32_51 : i32 to vector<64x64xi32>
    %119 = arith.cmpi slt, %114, %118 : vector<64x64xi32>
    %120 = arith.andi %117, %119 : vector<64x64xi1>
    %cst_52 = arith.constant 0.000000e+00 : f32
    %121 = vector.broadcast %cst_52 : f32 to vector<64x64xf32>
    %122 = arith.select %120, %115, %121 : vector<64x64xi1>, vector<64x64xf32>
    %c1_i32_53 = arith.constant 1 : i32
    %123 = tpu.dynamic_rotate %111 by %c1_i32_53 dim 0 : vector<64x64xf32>, i32 -> vector<64x64xf32>
    %c1_i32_54 = arith.constant 1 : i32
    %124 = vector.broadcast %c1_i32_54 : i32 to vector<64x64xi32>
    %125 = arith.cmpi sge, %114, %124 : vector<64x64xi32>
    %c65_i32_55 = arith.constant 65 : i32
    %126 = vector.broadcast %c65_i32_55 : i32 to vector<64x64xi32>
    %127 = arith.cmpi slt, %114, %126 : vector<64x64xi32>
    %128 = arith.andi %125, %127 : vector<64x64xi1>
    %cst_56 = arith.constant 0.000000e+00 : f32
    %129 = vector.broadcast %cst_56 : f32 to vector<64x64xf32>
    %130 = arith.select %128, %123, %129 : vector<64x64xi1>, vector<64x64xf32>
    %c63_i32_57 = arith.constant 63 : i32
    %131 = tpu.dynamic_rotate %111 by %c63_i32_57 dim 0 : vector<64x64xf32>, i32 -> vector<64x64xf32>
    %c-1_i32_58 = arith.constant -1 : i32
    %132 = vector.broadcast %c-1_i32_58 : i32 to vector<64x64xi32>
    %133 = arith.cmpi sge, %114, %132 : vector<64x64xi32>
    %c63_i32_59 = arith.constant 63 : i32
    %134 = vector.broadcast %c63_i32_59 : i32 to vector<64x64xi32>
    %135 = arith.cmpi slt, %114, %134 : vector<64x64xi32>
    %136 = arith.andi %133, %135 : vector<64x64xi1>
    %cst_60 = arith.constant 0.000000e+00 : f32
    %137 = vector.broadcast %cst_60 : f32 to vector<64x64xf32>
    %138 = arith.select %136, %131, %137 : vector<64x64xi1>, vector<64x64xf32>
    %c62_i32_61 = arith.constant 62 : i32
    %139 = tpu.dynamic_rotate %111 by %c62_i32_61 dim 0 : vector<64x64xf32>, i32 -> vector<64x64xf32>
    %c-2_i32_62 = arith.constant -2 : i32
    %140 = vector.broadcast %c-2_i32_62 : i32 to vector<64x64xi32>
    %141 = arith.cmpi sge, %114, %140 : vector<64x64xi32>
    %c62_i32_63 = arith.constant 62 : i32
    %142 = vector.broadcast %c62_i32_63 : i32 to vector<64x64xi32>
    %143 = arith.cmpi slt, %114, %142 : vector<64x64xi32>
    %144 = arith.andi %141, %143 : vector<64x64xi1>
    %cst_64 = arith.constant 0.000000e+00 : f32
    %145 = vector.broadcast %cst_64 : f32 to vector<64x64xf32>
    %146 = arith.select %144, %139, %145 : vector<64x64xi1>, vector<64x64xf32>
    %147 = tpu.concatenate %122, %130, %111, %138, %146 in 1 : vector<64x64xf32>, vector<64x64xf32>, vector<64x64xf32>, vector<64x64xf32>, vector<64x64xf32> -> vector<64x320xf32>
    %cst_65 = arith.constant dense<0.000000e+00> : vector<64x64xf32>
    %148 = tpu.matmul %147, %112, %cst_65 {dimension_numbers = #tpu.dot_dimension_numbers<[1], [0], [0], [1], [0, 0, 1, 1], [], []>} : vector<64x320xf32>, vector<320x64xf32>, vector<64x64xf32> -> vector<64x64xf32>
    %149 = vector.broadcast %113 : vector<1x64xf32> to vector<64x64xf32>
    %150 = arith.addf %148, %149 : vector<64x64xf32>
    %c0_66 = arith.constant 0 : index
    %c0_67 = arith.constant 0 : index
    %151 = vector.load %arg9[%c0_66, %c0_67] : memref<1x64xf32, #tpu.memory_space<vmem>>, vector<1x64xf32>
    %c0_68 = arith.constant 0 : index
    %c0_69 = arith.constant 0 : index
    %152 = vector.load %arg10[%c0_68, %c0_69] : memref<1x64xf32, #tpu.memory_space<vmem>>, vector<1x64xf32>
    %cst_70 = arith.constant dense<0.000000e+00> : vector<64xf32>
    %153 = vector.multi_reduction <add>, %150, %cst_70 [0] : vector<64x64xf32> to vector<64xf32>
    %154 = vector.shape_cast %153 : vector<64xf32> to vector<1x64xf32>
    %cst_71 = arith.constant 1.562500e-02 : f32
    %155 = vector.broadcast %cst_71 : f32 to vector<1x64xf32>
    %156 = arith.mulf %154, %155 : vector<1x64xf32>
    %157 = vector.broadcast %156 : vector<1x64xf32> to vector<64x64xf32>
    %158 = arith.subf %150, %157 : vector<64x64xf32>
    %159 = arith.mulf %158, %158 : vector<64x64xf32>
    %cst_72 = arith.constant dense<0.000000e+00> : vector<64xf32>
    %160 = vector.multi_reduction <add>, %159, %cst_72 [0] : vector<64x64xf32> to vector<64xf32>
    %161 = vector.shape_cast %160 : vector<64xf32> to vector<1x64xf32>
    %cst_73 = arith.constant 1.562500e-02 : f32
    %162 = vector.broadcast %cst_73 : f32 to vector<1x64xf32>
    %163 = arith.mulf %161, %162 : vector<1x64xf32>
    %cst_74 = arith.constant 9.99999974E-6 : f32
    %164 = vector.broadcast %cst_74 : f32 to vector<1x64xf32>
    %165 = arith.addf %163, %164 : vector<1x64xf32>
    %166 = math.rsqrt %165 : vector<1x64xf32>
    %167 = vector.broadcast %166 : vector<1x64xf32> to vector<64x64xf32>
    %168 = arith.mulf %158, %167 : vector<64x64xf32>
    %169 = vector.broadcast %151 : vector<1x64xf32> to vector<64x64xf32>
    %170 = arith.mulf %169, %168 : vector<64x64xf32>
    %171 = vector.broadcast %152 : vector<1x64xf32> to vector<64x64xf32>
    %172 = arith.addf %170, %171 : vector<64x64xf32>
    %173 = arith.addf %172, %49 : vector<64x64xf32>
    %c0_75 = arith.constant 0 : index
    %c0_76 = arith.constant 0 : index
    %c0_77 = arith.constant 0 : index
    %174 = vector.load %arg15[%c0_75, %c0_76, %c0_77] : memref<3x320x64xf32, #tpu.memory_space<vmem>>, vector<1x320x64xf32>
    %175 = vector.shape_cast %174 : vector<1x320x64xf32> to vector<320x64xf32>
    %c0_78 = arith.constant 0 : index
    %c0_79 = arith.constant 0 : index
    %c0_80 = arith.constant 0 : index
    %176 = vector.load %arg16[%c0_78, %c0_79, %c0_80] : memref<3x1x64xf32, #tpu.memory_space<vmem>>, vector<1x1x64xf32>
    %177 = vector.shape_cast %176 : vector<1x1x64xf32> to vector<1x64xf32>
    %178 = tpu.iota {dimensions = array<i32: 0>} : vector<64x64xi32>
    %c2_i32_81 = arith.constant 2 : i32
    %179 = tpu.dynamic_rotate %173 by %c2_i32_81 dim 0 : vector<64x64xf32>, i32 -> vector<64x64xf32>
    %c2_i32_82 = arith.constant 2 : i32
    %180 = vector.broadcast %c2_i32_82 : i32 to vector<64x64xi32>
    %181 = arith.cmpi sge, %178, %180 : vector<64x64xi32>
    %c66_i32_83 = arith.constant 66 : i32
    %182 = vector.broadcast %c66_i32_83 : i32 to vector<64x64xi32>
    %183 = arith.cmpi slt, %178, %182 : vector<64x64xi32>
    %184 = arith.andi %181, %183 : vector<64x64xi1>
    %cst_84 = arith.constant 0.000000e+00 : f32
    %185 = vector.broadcast %cst_84 : f32 to vector<64x64xf32>
    %186 = arith.select %184, %179, %185 : vector<64x64xi1>, vector<64x64xf32>
    %c1_i32_85 = arith.constant 1 : i32
    %187 = tpu.dynamic_rotate %173 by %c1_i32_85 dim 0 : vector<64x64xf32>, i32 -> vector<64x64xf32>
    %c1_i32_86 = arith.constant 1 : i32
    %188 = vector.broadcast %c1_i32_86 : i32 to vector<64x64xi32>
    %189 = arith.cmpi sge, %178, %188 : vector<64x64xi32>
    %c65_i32_87 = arith.constant 65 : i32
    %190 = vector.broadcast %c65_i32_87 : i32 to vector<64x64xi32>
    %191 = arith.cmpi slt, %178, %190 : vector<64x64xi32>
    %192 = arith.andi %189, %191 : vector<64x64xi1>
    %cst_88 = arith.constant 0.000000e+00 : f32
    %193 = vector.broadcast %cst_88 : f32 to vector<64x64xf32>
    %194 = arith.select %192, %187, %193 : vector<64x64xi1>, vector<64x64xf32>
    %c63_i32_89 = arith.constant 63 : i32
    %195 = tpu.dynamic_rotate %173 by %c63_i32_89 dim 0 : vector<64x64xf32>, i32 -> vector<64x64xf32>
    %c-1_i32_90 = arith.constant -1 : i32
    %196 = vector.broadcast %c-1_i32_90 : i32 to vector<64x64xi32>
    %197 = arith.cmpi sge, %178, %196 : vector<64x64xi32>
    %c63_i32_91 = arith.constant 63 : i32
    %198 = vector.broadcast %c63_i32_91 : i32 to vector<64x64xi32>
    %199 = arith.cmpi slt, %178, %198 : vector<64x64xi32>
    %200 = arith.andi %197, %199 : vector<64x64xi1>
    %cst_92 = arith.constant 0.000000e+00 : f32
    %201 = vector.broadcast %cst_92 : f32 to vector<64x64xf32>
    %202 = arith.select %200, %195, %201 : vector<64x64xi1>, vector<64x64xf32>
    %c62_i32_93 = arith.constant 62 : i32
    %203 = tpu.dynamic_rotate %173 by %c62_i32_93 dim 0 : vector<64x64xf32>, i32 -> vector<64x64xf32>
    %c-2_i32_94 = arith.constant -2 : i32
    %204 = vector.broadcast %c-2_i32_94 : i32 to vector<64x64xi32>
    %205 = arith.cmpi sge, %178, %204 : vector<64x64xi32>
    %c62_i32_95 = arith.constant 62 : i32
    %206 = vector.broadcast %c62_i32_95 : i32 to vector<64x64xi32>
    %207 = arith.cmpi slt, %178, %206 : vector<64x64xi32>
    %208 = arith.andi %205, %207 : vector<64x64xi1>
    %cst_96 = arith.constant 0.000000e+00 : f32
    %209 = vector.broadcast %cst_96 : f32 to vector<64x64xf32>
    %210 = arith.select %208, %203, %209 : vector<64x64xi1>, vector<64x64xf32>
    %211 = tpu.concatenate %186, %194, %173, %202, %210 in 1 : vector<64x64xf32>, vector<64x64xf32>, vector<64x64xf32>, vector<64x64xf32>, vector<64x64xf32> -> vector<64x320xf32>
    %cst_97 = arith.constant dense<0.000000e+00> : vector<64x64xf32>
    %212 = tpu.matmul %211, %175, %cst_97 {dimension_numbers = #tpu.dot_dimension_numbers<[1], [0], [0], [1], [0, 0, 1, 1], [], []>} : vector<64x320xf32>, vector<320x64xf32>, vector<64x64xf32> -> vector<64x64xf32>
    %213 = vector.broadcast %177 : vector<1x64xf32> to vector<64x64xf32>
    %214 = arith.addf %212, %213 : vector<64x64xf32>
    %c0_98 = arith.constant 0 : index
    %c0_99 = arith.constant 0 : index
    %c0_100 = arith.constant 0 : index
    %215 = vector.load %arg17[%c0_98, %c0_99, %c0_100] : memref<3x1x64xf32, #tpu.memory_space<vmem>>, vector<1x1x64xf32>
    %216 = vector.shape_cast %215 : vector<1x1x64xf32> to vector<1x64xf32>
    %c0_101 = arith.constant 0 : index
    %c0_102 = arith.constant 0 : index
    %c0_103 = arith.constant 0 : index
    %217 = vector.load %arg18[%c0_101, %c0_102, %c0_103] : memref<3x1x64xf32, #tpu.memory_space<vmem>>, vector<1x1x64xf32>
    %218 = vector.shape_cast %217 : vector<1x1x64xf32> to vector<1x64xf32>
    %cst_104 = arith.constant dense<0.000000e+00> : vector<64xf32>
    %219 = vector.multi_reduction <add>, %214, %cst_104 [0] : vector<64x64xf32> to vector<64xf32>
    %220 = vector.shape_cast %219 : vector<64xf32> to vector<1x64xf32>
    %cst_105 = arith.constant 1.562500e-02 : f32
    %221 = vector.broadcast %cst_105 : f32 to vector<1x64xf32>
    %222 = arith.mulf %220, %221 : vector<1x64xf32>
    %223 = vector.broadcast %222 : vector<1x64xf32> to vector<64x64xf32>
    %224 = arith.subf %214, %223 : vector<64x64xf32>
    %225 = arith.mulf %224, %224 : vector<64x64xf32>
    %cst_106 = arith.constant dense<0.000000e+00> : vector<64xf32>
    %226 = vector.multi_reduction <add>, %225, %cst_106 [0] : vector<64x64xf32> to vector<64xf32>
    %227 = vector.shape_cast %226 : vector<64xf32> to vector<1x64xf32>
    %cst_107 = arith.constant 1.562500e-02 : f32
    %228 = vector.broadcast %cst_107 : f32 to vector<1x64xf32>
    %229 = arith.mulf %227, %228 : vector<1x64xf32>
    %cst_108 = arith.constant 9.99999974E-6 : f32
    %230 = vector.broadcast %cst_108 : f32 to vector<1x64xf32>
    %231 = arith.addf %229, %230 : vector<1x64xf32>
    %232 = math.rsqrt %231 : vector<1x64xf32>
    %233 = vector.broadcast %232 : vector<1x64xf32> to vector<64x64xf32>
    %234 = arith.mulf %224, %233 : vector<64x64xf32>
    %235 = vector.broadcast %216 : vector<1x64xf32> to vector<64x64xf32>
    %236 = arith.mulf %235, %234 : vector<64x64xf32>
    %237 = vector.broadcast %218 : vector<1x64xf32> to vector<64x64xf32>
    %238 = arith.addf %236, %237 : vector<64x64xf32>
    %239 = math.tanh %238 : vector<64x64xf32>
    %c0_109 = arith.constant 0 : index
    %c0_110 = arith.constant 0 : index
    %c0_111 = arith.constant 0 : index
    %240 = vector.load %arg19[%c0_109, %c0_110, %c0_111] : memref<3x320x64xf32, #tpu.memory_space<vmem>>, vector<1x320x64xf32>
    %241 = vector.shape_cast %240 : vector<1x320x64xf32> to vector<320x64xf32>
    %c0_112 = arith.constant 0 : index
    %c0_113 = arith.constant 0 : index
    %c0_114 = arith.constant 0 : index
    %242 = vector.load %arg20[%c0_112, %c0_113, %c0_114] : memref<3x1x64xf32, #tpu.memory_space<vmem>>, vector<1x1x64xf32>
    %243 = vector.shape_cast %242 : vector<1x1x64xf32> to vector<1x64xf32>
    %244 = tpu.iota {dimensions = array<i32: 0>} : vector<64x64xi32>
    %c2_i32_115 = arith.constant 2 : i32
    %245 = tpu.dynamic_rotate %239 by %c2_i32_115 dim 0 : vector<64x64xf32>, i32 -> vector<64x64xf32>
    %c2_i32_116 = arith.constant 2 : i32
    %246 = vector.broadcast %c2_i32_116 : i32 to vector<64x64xi32>
    %247 = arith.cmpi sge, %244, %246 : vector<64x64xi32>
    %c66_i32_117 = arith.constant 66 : i32
    %248 = vector.broadcast %c66_i32_117 : i32 to vector<64x64xi32>
    %249 = arith.cmpi slt, %244, %248 : vector<64x64xi32>
    %250 = arith.andi %247, %249 : vector<64x64xi1>
    %cst_118 = arith.constant 0.000000e+00 : f32
    %251 = vector.broadcast %cst_118 : f32 to vector<64x64xf32>
    %252 = arith.select %250, %245, %251 : vector<64x64xi1>, vector<64x64xf32>
    %c1_i32_119 = arith.constant 1 : i32
    %253 = tpu.dynamic_rotate %239 by %c1_i32_119 dim 0 : vector<64x64xf32>, i32 -> vector<64x64xf32>
    %c1_i32_120 = arith.constant 1 : i32
    %254 = vector.broadcast %c1_i32_120 : i32 to vector<64x64xi32>
    %255 = arith.cmpi sge, %244, %254 : vector<64x64xi32>
    %c65_i32_121 = arith.constant 65 : i32
    %256 = vector.broadcast %c65_i32_121 : i32 to vector<64x64xi32>
    %257 = arith.cmpi slt, %244, %256 : vector<64x64xi32>
    %258 = arith.andi %255, %257 : vector<64x64xi1>
    %cst_122 = arith.constant 0.000000e+00 : f32
    %259 = vector.broadcast %cst_122 : f32 to vector<64x64xf32>
    %260 = arith.select %258, %253, %259 : vector<64x64xi1>, vector<64x64xf32>
    %c63_i32_123 = arith.constant 63 : i32
    %261 = tpu.dynamic_rotate %239 by %c63_i32_123 dim 0 : vector<64x64xf32>, i32 -> vector<64x64xf32>
    %c-1_i32_124 = arith.constant -1 : i32
    %262 = vector.broadcast %c-1_i32_124 : i32 to vector<64x64xi32>
    %263 = arith.cmpi sge, %244, %262 : vector<64x64xi32>
    %c63_i32_125 = arith.constant 63 : i32
    %264 = vector.broadcast %c63_i32_125 : i32 to vector<64x64xi32>
    %265 = arith.cmpi slt, %244, %264 : vector<64x64xi32>
    %266 = arith.andi %263, %265 : vector<64x64xi1>
    %cst_126 = arith.constant 0.000000e+00 : f32
    %267 = vector.broadcast %cst_126 : f32 to vector<64x64xf32>
    %268 = arith.select %266, %261, %267 : vector<64x64xi1>, vector<64x64xf32>
    %c62_i32_127 = arith.constant 62 : i32
    %269 = tpu.dynamic_rotate %239 by %c62_i32_127 dim 0 : vector<64x64xf32>, i32 -> vector<64x64xf32>
    %c-2_i32_128 = arith.constant -2 : i32
    %270 = vector.broadcast %c-2_i32_128 : i32 to vector<64x64xi32>
    %271 = arith.cmpi sge, %244, %270 : vector<64x64xi32>
    %c62_i32_129 = arith.constant 62 : i32
    %272 = vector.broadcast %c62_i32_129 : i32 to vector<64x64xi32>
    %273 = arith.cmpi slt, %244, %272 : vector<64x64xi32>
    %274 = arith.andi %271, %273 : vector<64x64xi1>
    %cst_130 = arith.constant 0.000000e+00 : f32
    %275 = vector.broadcast %cst_130 : f32 to vector<64x64xf32>
    %276 = arith.select %274, %269, %275 : vector<64x64xi1>, vector<64x64xf32>
    %277 = tpu.concatenate %252, %260, %239, %268, %276 in 1 : vector<64x64xf32>, vector<64x64xf32>, vector<64x64xf32>, vector<64x64xf32>, vector<64x64xf32> -> vector<64x320xf32>
    %cst_131 = arith.constant dense<0.000000e+00> : vector<64x64xf32>
    %278 = tpu.matmul %277, %241, %cst_131 {dimension_numbers = #tpu.dot_dimension_numbers<[1], [0], [0], [1], [0, 0, 1, 1], [], []>} : vector<64x320xf32>, vector<320x64xf32>, vector<64x64xf32> -> vector<64x64xf32>
    %279 = vector.broadcast %243 : vector<1x64xf32> to vector<64x64xf32>
    %280 = arith.addf %278, %279 : vector<64x64xf32>
    %c0_132 = arith.constant 0 : index
    %c0_133 = arith.constant 0 : index
    %c0_134 = arith.constant 0 : index
    %281 = vector.load %arg21[%c0_132, %c0_133, %c0_134] : memref<3x1x64xf32, #tpu.memory_space<vmem>>, vector<1x1x64xf32>
    %282 = vector.shape_cast %281 : vector<1x1x64xf32> to vector<1x64xf32>
    %c0_135 = arith.constant 0 : index
    %c0_136 = arith.constant 0 : index
    %c0_137 = arith.constant 0 : index
    %283 = vector.load %arg22[%c0_135, %c0_136, %c0_137] : memref<3x1x64xf32, #tpu.memory_space<vmem>>, vector<1x1x64xf32>
    %284 = vector.shape_cast %283 : vector<1x1x64xf32> to vector<1x64xf32>
    %cst_138 = arith.constant dense<0.000000e+00> : vector<64xf32>
    %285 = vector.multi_reduction <add>, %280, %cst_138 [0] : vector<64x64xf32> to vector<64xf32>
    %286 = vector.shape_cast %285 : vector<64xf32> to vector<1x64xf32>
    %cst_139 = arith.constant 1.562500e-02 : f32
    %287 = vector.broadcast %cst_139 : f32 to vector<1x64xf32>
    %288 = arith.mulf %286, %287 : vector<1x64xf32>
    %289 = vector.broadcast %288 : vector<1x64xf32> to vector<64x64xf32>
    %290 = arith.subf %280, %289 : vector<64x64xf32>
    %291 = arith.mulf %290, %290 : vector<64x64xf32>
    %cst_140 = arith.constant dense<0.000000e+00> : vector<64xf32>
    %292 = vector.multi_reduction <add>, %291, %cst_140 [0] : vector<64x64xf32> to vector<64xf32>
    %293 = vector.shape_cast %292 : vector<64xf32> to vector<1x64xf32>
    %cst_141 = arith.constant 1.562500e-02 : f32
    %294 = vector.broadcast %cst_141 : f32 to vector<1x64xf32>
    %295 = arith.mulf %293, %294 : vector<1x64xf32>
    %cst_142 = arith.constant 9.99999974E-6 : f32
    %296 = vector.broadcast %cst_142 : f32 to vector<1x64xf32>
    %297 = arith.addf %295, %296 : vector<1x64xf32>
    %298 = math.rsqrt %297 : vector<1x64xf32>
    %299 = vector.broadcast %298 : vector<1x64xf32> to vector<64x64xf32>
    %300 = arith.mulf %290, %299 : vector<64x64xf32>
    %301 = vector.broadcast %282 : vector<1x64xf32> to vector<64x64xf32>
    %302 = arith.mulf %301, %300 : vector<64x64xf32>
    %303 = vector.broadcast %284 : vector<1x64xf32> to vector<64x64xf32>
    %304 = arith.addf %302, %303 : vector<64x64xf32>
    %305 = arith.addf %304, %173 : vector<64x64xf32>
    %c1 = arith.constant 1 : index
    %c0_143 = arith.constant 0 : index
    %c0_144 = arith.constant 0 : index
    %306 = vector.load %arg15[%c1, %c0_143, %c0_144] : memref<3x320x64xf32, #tpu.memory_space<vmem>>, vector<1x320x64xf32>
    %307 = vector.shape_cast %306 : vector<1x320x64xf32> to vector<320x64xf32>
    %c1_145 = arith.constant 1 : index
    %c0_146 = arith.constant 0 : index
    %c0_147 = arith.constant 0 : index
    %308 = vector.load %arg16[%c1_145, %c0_146, %c0_147] : memref<3x1x64xf32, #tpu.memory_space<vmem>>, vector<1x1x64xf32>
    %309 = vector.shape_cast %308 : vector<1x1x64xf32> to vector<1x64xf32>
    %310 = tpu.iota {dimensions = array<i32: 0>} : vector<64x64xi32>
    %c2_i32_148 = arith.constant 2 : i32
    %311 = tpu.dynamic_rotate %305 by %c2_i32_148 dim 0 : vector<64x64xf32>, i32 -> vector<64x64xf32>
    %c2_i32_149 = arith.constant 2 : i32
    %312 = vector.broadcast %c2_i32_149 : i32 to vector<64x64xi32>
    %313 = arith.cmpi sge, %310, %312 : vector<64x64xi32>
    %c66_i32_150 = arith.constant 66 : i32
    %314 = vector.broadcast %c66_i32_150 : i32 to vector<64x64xi32>
    %315 = arith.cmpi slt, %310, %314 : vector<64x64xi32>
    %316 = arith.andi %313, %315 : vector<64x64xi1>
    %cst_151 = arith.constant 0.000000e+00 : f32
    %317 = vector.broadcast %cst_151 : f32 to vector<64x64xf32>
    %318 = arith.select %316, %311, %317 : vector<64x64xi1>, vector<64x64xf32>
    %c1_i32_152 = arith.constant 1 : i32
    %319 = tpu.dynamic_rotate %305 by %c1_i32_152 dim 0 : vector<64x64xf32>, i32 -> vector<64x64xf32>
    %c1_i32_153 = arith.constant 1 : i32
    %320 = vector.broadcast %c1_i32_153 : i32 to vector<64x64xi32>
    %321 = arith.cmpi sge, %310, %320 : vector<64x64xi32>
    %c65_i32_154 = arith.constant 65 : i32
    %322 = vector.broadcast %c65_i32_154 : i32 to vector<64x64xi32>
    %323 = arith.cmpi slt, %310, %322 : vector<64x64xi32>
    %324 = arith.andi %321, %323 : vector<64x64xi1>
    %cst_155 = arith.constant 0.000000e+00 : f32
    %325 = vector.broadcast %cst_155 : f32 to vector<64x64xf32>
    %326 = arith.select %324, %319, %325 : vector<64x64xi1>, vector<64x64xf32>
    %c63_i32_156 = arith.constant 63 : i32
    %327 = tpu.dynamic_rotate %305 by %c63_i32_156 dim 0 : vector<64x64xf32>, i32 -> vector<64x64xf32>
    %c-1_i32_157 = arith.constant -1 : i32
    %328 = vector.broadcast %c-1_i32_157 : i32 to vector<64x64xi32>
    %329 = arith.cmpi sge, %310, %328 : vector<64x64xi32>
    %c63_i32_158 = arith.constant 63 : i32
    %330 = vector.broadcast %c63_i32_158 : i32 to vector<64x64xi32>
    %331 = arith.cmpi slt, %310, %330 : vector<64x64xi32>
    %332 = arith.andi %329, %331 : vector<64x64xi1>
    %cst_159 = arith.constant 0.000000e+00 : f32
    %333 = vector.broadcast %cst_159 : f32 to vector<64x64xf32>
    %334 = arith.select %332, %327, %333 : vector<64x64xi1>, vector<64x64xf32>
    %c62_i32_160 = arith.constant 62 : i32
    %335 = tpu.dynamic_rotate %305 by %c62_i32_160 dim 0 : vector<64x64xf32>, i32 -> vector<64x64xf32>
    %c-2_i32_161 = arith.constant -2 : i32
    %336 = vector.broadcast %c-2_i32_161 : i32 to vector<64x64xi32>
    %337 = arith.cmpi sge, %310, %336 : vector<64x64xi32>
    %c62_i32_162 = arith.constant 62 : i32
    %338 = vector.broadcast %c62_i32_162 : i32 to vector<64x64xi32>
    %339 = arith.cmpi slt, %310, %338 : vector<64x64xi32>
    %340 = arith.andi %337, %339 : vector<64x64xi1>
    %cst_163 = arith.constant 0.000000e+00 : f32
    %341 = vector.broadcast %cst_163 : f32 to vector<64x64xf32>
    %342 = arith.select %340, %335, %341 : vector<64x64xi1>, vector<64x64xf32>
    %343 = tpu.concatenate %318, %326, %305, %334, %342 in 1 : vector<64x64xf32>, vector<64x64xf32>, vector<64x64xf32>, vector<64x64xf32>, vector<64x64xf32> -> vector<64x320xf32>
    %cst_164 = arith.constant dense<0.000000e+00> : vector<64x64xf32>
    %344 = tpu.matmul %343, %307, %cst_164 {dimension_numbers = #tpu.dot_dimension_numbers<[1], [0], [0], [1], [0, 0, 1, 1], [], []>} : vector<64x320xf32>, vector<320x64xf32>, vector<64x64xf32> -> vector<64x64xf32>
    %345 = vector.broadcast %309 : vector<1x64xf32> to vector<64x64xf32>
    %346 = arith.addf %344, %345 : vector<64x64xf32>
    %c1_165 = arith.constant 1 : index
    %c0_166 = arith.constant 0 : index
    %c0_167 = arith.constant 0 : index
    %347 = vector.load %arg17[%c1_165, %c0_166, %c0_167] : memref<3x1x64xf32, #tpu.memory_space<vmem>>, vector<1x1x64xf32>
    %348 = vector.shape_cast %347 : vector<1x1x64xf32> to vector<1x64xf32>
    %c1_168 = arith.constant 1 : index
    %c0_169 = arith.constant 0 : index
    %c0_170 = arith.constant 0 : index
    %349 = vector.load %arg18[%c1_168, %c0_169, %c0_170] : memref<3x1x64xf32, #tpu.memory_space<vmem>>, vector<1x1x64xf32>
    %350 = vector.shape_cast %349 : vector<1x1x64xf32> to vector<1x64xf32>
    %cst_171 = arith.constant dense<0.000000e+00> : vector<64xf32>
    %351 = vector.multi_reduction <add>, %346, %cst_171 [0] : vector<64x64xf32> to vector<64xf32>
    %352 = vector.shape_cast %351 : vector<64xf32> to vector<1x64xf32>
    %cst_172 = arith.constant 1.562500e-02 : f32
    %353 = vector.broadcast %cst_172 : f32 to vector<1x64xf32>
    %354 = arith.mulf %352, %353 : vector<1x64xf32>
    %355 = vector.broadcast %354 : vector<1x64xf32> to vector<64x64xf32>
    %356 = arith.subf %346, %355 : vector<64x64xf32>
    %357 = arith.mulf %356, %356 : vector<64x64xf32>
    %cst_173 = arith.constant dense<0.000000e+00> : vector<64xf32>
    %358 = vector.multi_reduction <add>, %357, %cst_173 [0] : vector<64x64xf32> to vector<64xf32>
    %359 = vector.shape_cast %358 : vector<64xf32> to vector<1x64xf32>
    %cst_174 = arith.constant 1.562500e-02 : f32
    %360 = vector.broadcast %cst_174 : f32 to vector<1x64xf32>
    %361 = arith.mulf %359, %360 : vector<1x64xf32>
    %cst_175 = arith.constant 9.99999974E-6 : f32
    %362 = vector.broadcast %cst_175 : f32 to vector<1x64xf32>
    %363 = arith.addf %361, %362 : vector<1x64xf32>
    %364 = math.rsqrt %363 : vector<1x64xf32>
    %365 = vector.broadcast %364 : vector<1x64xf32> to vector<64x64xf32>
    %366 = arith.mulf %356, %365 : vector<64x64xf32>
    %367 = vector.broadcast %348 : vector<1x64xf32> to vector<64x64xf32>
    %368 = arith.mulf %367, %366 : vector<64x64xf32>
    %369 = vector.broadcast %350 : vector<1x64xf32> to vector<64x64xf32>
    %370 = arith.addf %368, %369 : vector<64x64xf32>
    %371 = math.tanh %370 : vector<64x64xf32>
    %c1_176 = arith.constant 1 : index
    %c0_177 = arith.constant 0 : index
    %c0_178 = arith.constant 0 : index
    %372 = vector.load %arg19[%c1_176, %c0_177, %c0_178] : memref<3x320x64xf32, #tpu.memory_space<vmem>>, vector<1x320x64xf32>
    %373 = vector.shape_cast %372 : vector<1x320x64xf32> to vector<320x64xf32>
    %c1_179 = arith.constant 1 : index
    %c0_180 = arith.constant 0 : index
    %c0_181 = arith.constant 0 : index
    %374 = vector.load %arg20[%c1_179, %c0_180, %c0_181] : memref<3x1x64xf32, #tpu.memory_space<vmem>>, vector<1x1x64xf32>
    %375 = vector.shape_cast %374 : vector<1x1x64xf32> to vector<1x64xf32>
    %376 = tpu.iota {dimensions = array<i32: 0>} : vector<64x64xi32>
    %c2_i32_182 = arith.constant 2 : i32
    %377 = tpu.dynamic_rotate %371 by %c2_i32_182 dim 0 : vector<64x64xf32>, i32 -> vector<64x64xf32>
    %c2_i32_183 = arith.constant 2 : i32
    %378 = vector.broadcast %c2_i32_183 : i32 to vector<64x64xi32>
    %379 = arith.cmpi sge, %376, %378 : vector<64x64xi32>
    %c66_i32_184 = arith.constant 66 : i32
    %380 = vector.broadcast %c66_i32_184 : i32 to vector<64x64xi32>
    %381 = arith.cmpi slt, %376, %380 : vector<64x64xi32>
    %382 = arith.andi %379, %381 : vector<64x64xi1>
    %cst_185 = arith.constant 0.000000e+00 : f32
    %383 = vector.broadcast %cst_185 : f32 to vector<64x64xf32>
    %384 = arith.select %382, %377, %383 : vector<64x64xi1>, vector<64x64xf32>
    %c1_i32_186 = arith.constant 1 : i32
    %385 = tpu.dynamic_rotate %371 by %c1_i32_186 dim 0 : vector<64x64xf32>, i32 -> vector<64x64xf32>
    %c1_i32_187 = arith.constant 1 : i32
    %386 = vector.broadcast %c1_i32_187 : i32 to vector<64x64xi32>
    %387 = arith.cmpi sge, %376, %386 : vector<64x64xi32>
    %c65_i32_188 = arith.constant 65 : i32
    %388 = vector.broadcast %c65_i32_188 : i32 to vector<64x64xi32>
    %389 = arith.cmpi slt, %376, %388 : vector<64x64xi32>
    %390 = arith.andi %387, %389 : vector<64x64xi1>
    %cst_189 = arith.constant 0.000000e+00 : f32
    %391 = vector.broadcast %cst_189 : f32 to vector<64x64xf32>
    %392 = arith.select %390, %385, %391 : vector<64x64xi1>, vector<64x64xf32>
    %c63_i32_190 = arith.constant 63 : i32
    %393 = tpu.dynamic_rotate %371 by %c63_i32_190 dim 0 : vector<64x64xf32>, i32 -> vector<64x64xf32>
    %c-1_i32_191 = arith.constant -1 : i32
    %394 = vector.broadcast %c-1_i32_191 : i32 to vector<64x64xi32>
    %395 = arith.cmpi sge, %376, %394 : vector<64x64xi32>
    %c63_i32_192 = arith.constant 63 : i32
    %396 = vector.broadcast %c63_i32_192 : i32 to vector<64x64xi32>
    %397 = arith.cmpi slt, %376, %396 : vector<64x64xi32>
    %398 = arith.andi %395, %397 : vector<64x64xi1>
    %cst_193 = arith.constant 0.000000e+00 : f32
    %399 = vector.broadcast %cst_193 : f32 to vector<64x64xf32>
    %400 = arith.select %398, %393, %399 : vector<64x64xi1>, vector<64x64xf32>
    %c62_i32_194 = arith.constant 62 : i32
    %401 = tpu.dynamic_rotate %371 by %c62_i32_194 dim 0 : vector<64x64xf32>, i32 -> vector<64x64xf32>
    %c-2_i32_195 = arith.constant -2 : i32
    %402 = vector.broadcast %c-2_i32_195 : i32 to vector<64x64xi32>
    %403 = arith.cmpi sge, %376, %402 : vector<64x64xi32>
    %c62_i32_196 = arith.constant 62 : i32
    %404 = vector.broadcast %c62_i32_196 : i32 to vector<64x64xi32>
    %405 = arith.cmpi slt, %376, %404 : vector<64x64xi32>
    %406 = arith.andi %403, %405 : vector<64x64xi1>
    %cst_197 = arith.constant 0.000000e+00 : f32
    %407 = vector.broadcast %cst_197 : f32 to vector<64x64xf32>
    %408 = arith.select %406, %401, %407 : vector<64x64xi1>, vector<64x64xf32>
    %409 = tpu.concatenate %384, %392, %371, %400, %408 in 1 : vector<64x64xf32>, vector<64x64xf32>, vector<64x64xf32>, vector<64x64xf32>, vector<64x64xf32> -> vector<64x320xf32>
    %cst_198 = arith.constant dense<0.000000e+00> : vector<64x64xf32>
    %410 = tpu.matmul %409, %373, %cst_198 {dimension_numbers = #tpu.dot_dimension_numbers<[1], [0], [0], [1], [0, 0, 1, 1], [], []>} : vector<64x320xf32>, vector<320x64xf32>, vector<64x64xf32> -> vector<64x64xf32>
    %411 = vector.broadcast %375 : vector<1x64xf32> to vector<64x64xf32>
    %412 = arith.addf %410, %411 : vector<64x64xf32>
    %c1_199 = arith.constant 1 : index
    %c0_200 = arith.constant 0 : index
    %c0_201 = arith.constant 0 : index
    %413 = vector.load %arg21[%c1_199, %c0_200, %c0_201] : memref<3x1x64xf32, #tpu.memory_space<vmem>>, vector<1x1x64xf32>
    %414 = vector.shape_cast %413 : vector<1x1x64xf32> to vector<1x64xf32>
    %c1_202 = arith.constant 1 : index
    %c0_203 = arith.constant 0 : index
    %c0_204 = arith.constant 0 : index
    %415 = vector.load %arg22[%c1_202, %c0_203, %c0_204] : memref<3x1x64xf32, #tpu.memory_space<vmem>>, vector<1x1x64xf32>
    %416 = vector.shape_cast %415 : vector<1x1x64xf32> to vector<1x64xf32>
    %cst_205 = arith.constant dense<0.000000e+00> : vector<64xf32>
    %417 = vector.multi_reduction <add>, %412, %cst_205 [0] : vector<64x64xf32> to vector<64xf32>
    %418 = vector.shape_cast %417 : vector<64xf32> to vector<1x64xf32>
    %cst_206 = arith.constant 1.562500e-02 : f32
    %419 = vector.broadcast %cst_206 : f32 to vector<1x64xf32>
    %420 = arith.mulf %418, %419 : vector<1x64xf32>
    %421 = vector.broadcast %420 : vector<1x64xf32> to vector<64x64xf32>
    %422 = arith.subf %412, %421 : vector<64x64xf32>
    %423 = arith.mulf %422, %422 : vector<64x64xf32>
    %cst_207 = arith.constant dense<0.000000e+00> : vector<64xf32>
    %424 = vector.multi_reduction <add>, %423, %cst_207 [0] : vector<64x64xf32> to vector<64xf32>
    %425 = vector.shape_cast %424 : vector<64xf32> to vector<1x64xf32>
    %cst_208 = arith.constant 1.562500e-02 : f32
    %426 = vector.broadcast %cst_208 : f32 to vector<1x64xf32>
    %427 = arith.mulf %425, %426 : vector<1x64xf32>
    %cst_209 = arith.constant 9.99999974E-6 : f32
    %428 = vector.broadcast %cst_209 : f32 to vector<1x64xf32>
    %429 = arith.addf %427, %428 : vector<1x64xf32>
    %430 = math.rsqrt %429 : vector<1x64xf32>
    %431 = vector.broadcast %430 : vector<1x64xf32> to vector<64x64xf32>
    %432 = arith.mulf %422, %431 : vector<64x64xf32>
    %433 = vector.broadcast %414 : vector<1x64xf32> to vector<64x64xf32>
    %434 = arith.mulf %433, %432 : vector<64x64xf32>
    %435 = vector.broadcast %416 : vector<1x64xf32> to vector<64x64xf32>
    %436 = arith.addf %434, %435 : vector<64x64xf32>
    %437 = arith.addf %436, %305 : vector<64x64xf32>
    %c2 = arith.constant 2 : index
    %c0_210 = arith.constant 0 : index
    %c0_211 = arith.constant 0 : index
    %438 = vector.load %arg15[%c2, %c0_210, %c0_211] : memref<3x320x64xf32, #tpu.memory_space<vmem>>, vector<1x320x64xf32>
    %439 = vector.shape_cast %438 : vector<1x320x64xf32> to vector<320x64xf32>
    %c2_212 = arith.constant 2 : index
    %c0_213 = arith.constant 0 : index
    %c0_214 = arith.constant 0 : index
    %440 = vector.load %arg16[%c2_212, %c0_213, %c0_214] : memref<3x1x64xf32, #tpu.memory_space<vmem>>, vector<1x1x64xf32>
    %441 = vector.shape_cast %440 : vector<1x1x64xf32> to vector<1x64xf32>
    %442 = tpu.iota {dimensions = array<i32: 0>} : vector<64x64xi32>
    %c2_i32_215 = arith.constant 2 : i32
    %443 = tpu.dynamic_rotate %437 by %c2_i32_215 dim 0 : vector<64x64xf32>, i32 -> vector<64x64xf32>
    %c2_i32_216 = arith.constant 2 : i32
    %444 = vector.broadcast %c2_i32_216 : i32 to vector<64x64xi32>
    %445 = arith.cmpi sge, %442, %444 : vector<64x64xi32>
    %c66_i32_217 = arith.constant 66 : i32
    %446 = vector.broadcast %c66_i32_217 : i32 to vector<64x64xi32>
    %447 = arith.cmpi slt, %442, %446 : vector<64x64xi32>
    %448 = arith.andi %445, %447 : vector<64x64xi1>
    %cst_218 = arith.constant 0.000000e+00 : f32
    %449 = vector.broadcast %cst_218 : f32 to vector<64x64xf32>
    %450 = arith.select %448, %443, %449 : vector<64x64xi1>, vector<64x64xf32>
    %c1_i32_219 = arith.constant 1 : i32
    %451 = tpu.dynamic_rotate %437 by %c1_i32_219 dim 0 : vector<64x64xf32>, i32 -> vector<64x64xf32>
    %c1_i32_220 = arith.constant 1 : i32
    %452 = vector.broadcast %c1_i32_220 : i32 to vector<64x64xi32>
    %453 = arith.cmpi sge, %442, %452 : vector<64x64xi32>
    %c65_i32_221 = arith.constant 65 : i32
    %454 = vector.broadcast %c65_i32_221 : i32 to vector<64x64xi32>
    %455 = arith.cmpi slt, %442, %454 : vector<64x64xi32>
    %456 = arith.andi %453, %455 : vector<64x64xi1>
    %cst_222 = arith.constant 0.000000e+00 : f32
    %457 = vector.broadcast %cst_222 : f32 to vector<64x64xf32>
    %458 = arith.select %456, %451, %457 : vector<64x64xi1>, vector<64x64xf32>
    %c63_i32_223 = arith.constant 63 : i32
    %459 = tpu.dynamic_rotate %437 by %c63_i32_223 dim 0 : vector<64x64xf32>, i32 -> vector<64x64xf32>
    %c-1_i32_224 = arith.constant -1 : i32
    %460 = vector.broadcast %c-1_i32_224 : i32 to vector<64x64xi32>
    %461 = arith.cmpi sge, %442, %460 : vector<64x64xi32>
    %c63_i32_225 = arith.constant 63 : i32
    %462 = vector.broadcast %c63_i32_225 : i32 to vector<64x64xi32>
    %463 = arith.cmpi slt, %442, %462 : vector<64x64xi32>
    %464 = arith.andi %461, %463 : vector<64x64xi1>
    %cst_226 = arith.constant 0.000000e+00 : f32
    %465 = vector.broadcast %cst_226 : f32 to vector<64x64xf32>
    %466 = arith.select %464, %459, %465 : vector<64x64xi1>, vector<64x64xf32>
    %c62_i32_227 = arith.constant 62 : i32
    %467 = tpu.dynamic_rotate %437 by %c62_i32_227 dim 0 : vector<64x64xf32>, i32 -> vector<64x64xf32>
    %c-2_i32_228 = arith.constant -2 : i32
    %468 = vector.broadcast %c-2_i32_228 : i32 to vector<64x64xi32>
    %469 = arith.cmpi sge, %442, %468 : vector<64x64xi32>
    %c62_i32_229 = arith.constant 62 : i32
    %470 = vector.broadcast %c62_i32_229 : i32 to vector<64x64xi32>
    %471 = arith.cmpi slt, %442, %470 : vector<64x64xi32>
    %472 = arith.andi %469, %471 : vector<64x64xi1>
    %cst_230 = arith.constant 0.000000e+00 : f32
    %473 = vector.broadcast %cst_230 : f32 to vector<64x64xf32>
    %474 = arith.select %472, %467, %473 : vector<64x64xi1>, vector<64x64xf32>
    %475 = tpu.concatenate %450, %458, %437, %466, %474 in 1 : vector<64x64xf32>, vector<64x64xf32>, vector<64x64xf32>, vector<64x64xf32>, vector<64x64xf32> -> vector<64x320xf32>
    %cst_231 = arith.constant dense<0.000000e+00> : vector<64x64xf32>
    %476 = tpu.matmul %475, %439, %cst_231 {dimension_numbers = #tpu.dot_dimension_numbers<[1], [0], [0], [1], [0, 0, 1, 1], [], []>} : vector<64x320xf32>, vector<320x64xf32>, vector<64x64xf32> -> vector<64x64xf32>
    %477 = vector.broadcast %441 : vector<1x64xf32> to vector<64x64xf32>
    %478 = arith.addf %476, %477 : vector<64x64xf32>
    %c2_232 = arith.constant 2 : index
    %c0_233 = arith.constant 0 : index
    %c0_234 = arith.constant 0 : index
    %479 = vector.load %arg17[%c2_232, %c0_233, %c0_234] : memref<3x1x64xf32, #tpu.memory_space<vmem>>, vector<1x1x64xf32>
    %480 = vector.shape_cast %479 : vector<1x1x64xf32> to vector<1x64xf32>
    %c2_235 = arith.constant 2 : index
    %c0_236 = arith.constant 0 : index
    %c0_237 = arith.constant 0 : index
    %481 = vector.load %arg18[%c2_235, %c0_236, %c0_237] : memref<3x1x64xf32, #tpu.memory_space<vmem>>, vector<1x1x64xf32>
    %482 = vector.shape_cast %481 : vector<1x1x64xf32> to vector<1x64xf32>
    %cst_238 = arith.constant dense<0.000000e+00> : vector<64xf32>
    %483 = vector.multi_reduction <add>, %478, %cst_238 [0] : vector<64x64xf32> to vector<64xf32>
    %484 = vector.shape_cast %483 : vector<64xf32> to vector<1x64xf32>
    %cst_239 = arith.constant 1.562500e-02 : f32
    %485 = vector.broadcast %cst_239 : f32 to vector<1x64xf32>
    %486 = arith.mulf %484, %485 : vector<1x64xf32>
    %487 = vector.broadcast %486 : vector<1x64xf32> to vector<64x64xf32>
    %488 = arith.subf %478, %487 : vector<64x64xf32>
    %489 = arith.mulf %488, %488 : vector<64x64xf32>
    %cst_240 = arith.constant dense<0.000000e+00> : vector<64xf32>
    %490 = vector.multi_reduction <add>, %489, %cst_240 [0] : vector<64x64xf32> to vector<64xf32>
    %491 = vector.shape_cast %490 : vector<64xf32> to vector<1x64xf32>
    %cst_241 = arith.constant 1.562500e-02 : f32
    %492 = vector.broadcast %cst_241 : f32 to vector<1x64xf32>
    %493 = arith.mulf %491, %492 : vector<1x64xf32>
    %cst_242 = arith.constant 9.99999974E-6 : f32
    %494 = vector.broadcast %cst_242 : f32 to vector<1x64xf32>
    %495 = arith.addf %493, %494 : vector<1x64xf32>
    %496 = math.rsqrt %495 : vector<1x64xf32>
    %497 = vector.broadcast %496 : vector<1x64xf32> to vector<64x64xf32>
    %498 = arith.mulf %488, %497 : vector<64x64xf32>
    %499 = vector.broadcast %480 : vector<1x64xf32> to vector<64x64xf32>
    %500 = arith.mulf %499, %498 : vector<64x64xf32>
    %501 = vector.broadcast %482 : vector<1x64xf32> to vector<64x64xf32>
    %502 = arith.addf %500, %501 : vector<64x64xf32>
    %503 = math.tanh %502 : vector<64x64xf32>
    %c2_243 = arith.constant 2 : index
    %c0_244 = arith.constant 0 : index
    %c0_245 = arith.constant 0 : index
    %504 = vector.load %arg19[%c2_243, %c0_244, %c0_245] : memref<3x320x64xf32, #tpu.memory_space<vmem>>, vector<1x320x64xf32>
    %505 = vector.shape_cast %504 : vector<1x320x64xf32> to vector<320x64xf32>
    %c2_246 = arith.constant 2 : index
    %c0_247 = arith.constant 0 : index
    %c0_248 = arith.constant 0 : index
    %506 = vector.load %arg20[%c2_246, %c0_247, %c0_248] : memref<3x1x64xf32, #tpu.memory_space<vmem>>, vector<1x1x64xf32>
    %507 = vector.shape_cast %506 : vector<1x1x64xf32> to vector<1x64xf32>
    %508 = tpu.iota {dimensions = array<i32: 0>} : vector<64x64xi32>
    %c2_i32_249 = arith.constant 2 : i32
    %509 = tpu.dynamic_rotate %503 by %c2_i32_249 dim 0 : vector<64x64xf32>, i32 -> vector<64x64xf32>
    %c2_i32_250 = arith.constant 2 : i32
    %510 = vector.broadcast %c2_i32_250 : i32 to vector<64x64xi32>
    %511 = arith.cmpi sge, %508, %510 : vector<64x64xi32>
    %c66_i32_251 = arith.constant 66 : i32
    %512 = vector.broadcast %c66_i32_251 : i32 to vector<64x64xi32>
    %513 = arith.cmpi slt, %508, %512 : vector<64x64xi32>
    %514 = arith.andi %511, %513 : vector<64x64xi1>
    %cst_252 = arith.constant 0.000000e+00 : f32
    %515 = vector.broadcast %cst_252 : f32 to vector<64x64xf32>
    %516 = arith.select %514, %509, %515 : vector<64x64xi1>, vector<64x64xf32>
    %c1_i32_253 = arith.constant 1 : i32
    %517 = tpu.dynamic_rotate %503 by %c1_i32_253 dim 0 : vector<64x64xf32>, i32 -> vector<64x64xf32>
    %c1_i32_254 = arith.constant 1 : i32
    %518 = vector.broadcast %c1_i32_254 : i32 to vector<64x64xi32>
    %519 = arith.cmpi sge, %508, %518 : vector<64x64xi32>
    %c65_i32_255 = arith.constant 65 : i32
    %520 = vector.broadcast %c65_i32_255 : i32 to vector<64x64xi32>
    %521 = arith.cmpi slt, %508, %520 : vector<64x64xi32>
    %522 = arith.andi %519, %521 : vector<64x64xi1>
    %cst_256 = arith.constant 0.000000e+00 : f32
    %523 = vector.broadcast %cst_256 : f32 to vector<64x64xf32>
    %524 = arith.select %522, %517, %523 : vector<64x64xi1>, vector<64x64xf32>
    %c63_i32_257 = arith.constant 63 : i32
    %525 = tpu.dynamic_rotate %503 by %c63_i32_257 dim 0 : vector<64x64xf32>, i32 -> vector<64x64xf32>
    %c-1_i32_258 = arith.constant -1 : i32
    %526 = vector.broadcast %c-1_i32_258 : i32 to vector<64x64xi32>
    %527 = arith.cmpi sge, %508, %526 : vector<64x64xi32>
    %c63_i32_259 = arith.constant 63 : i32
    %528 = vector.broadcast %c63_i32_259 : i32 to vector<64x64xi32>
    %529 = arith.cmpi slt, %508, %528 : vector<64x64xi32>
    %530 = arith.andi %527, %529 : vector<64x64xi1>
    %cst_260 = arith.constant 0.000000e+00 : f32
    %531 = vector.broadcast %cst_260 : f32 to vector<64x64xf32>
    %532 = arith.select %530, %525, %531 : vector<64x64xi1>, vector<64x64xf32>
    %c62_i32_261 = arith.constant 62 : i32
    %533 = tpu.dynamic_rotate %503 by %c62_i32_261 dim 0 : vector<64x64xf32>, i32 -> vector<64x64xf32>
    %c-2_i32_262 = arith.constant -2 : i32
    %534 = vector.broadcast %c-2_i32_262 : i32 to vector<64x64xi32>
    %535 = arith.cmpi sge, %508, %534 : vector<64x64xi32>
    %c62_i32_263 = arith.constant 62 : i32
    %536 = vector.broadcast %c62_i32_263 : i32 to vector<64x64xi32>
    %537 = arith.cmpi slt, %508, %536 : vector<64x64xi32>
    %538 = arith.andi %535, %537 : vector<64x64xi1>
    %cst_264 = arith.constant 0.000000e+00 : f32
    %539 = vector.broadcast %cst_264 : f32 to vector<64x64xf32>
    %540 = arith.select %538, %533, %539 : vector<64x64xi1>, vector<64x64xf32>
    %541 = tpu.concatenate %516, %524, %503, %532, %540 in 1 : vector<64x64xf32>, vector<64x64xf32>, vector<64x64xf32>, vector<64x64xf32>, vector<64x64xf32> -> vector<64x320xf32>
    %cst_265 = arith.constant dense<0.000000e+00> : vector<64x64xf32>
    %542 = tpu.matmul %541, %505, %cst_265 {dimension_numbers = #tpu.dot_dimension_numbers<[1], [0], [0], [1], [0, 0, 1, 1], [], []>} : vector<64x320xf32>, vector<320x64xf32>, vector<64x64xf32> -> vector<64x64xf32>
    %543 = vector.broadcast %507 : vector<1x64xf32> to vector<64x64xf32>
    %544 = arith.addf %542, %543 : vector<64x64xf32>
    %c2_266 = arith.constant 2 : index
    %c0_267 = arith.constant 0 : index
    %c0_268 = arith.constant 0 : index
    %545 = vector.load %arg21[%c2_266, %c0_267, %c0_268] : memref<3x1x64xf32, #tpu.memory_space<vmem>>, vector<1x1x64xf32>
    %546 = vector.shape_cast %545 : vector<1x1x64xf32> to vector<1x64xf32>
    %c2_269 = arith.constant 2 : index
    %c0_270 = arith.constant 0 : index
    %c0_271 = arith.constant 0 : index
    %547 = vector.load %arg22[%c2_269, %c0_270, %c0_271] : memref<3x1x64xf32, #tpu.memory_space<vmem>>, vector<1x1x64xf32>
    %548 = vector.shape_cast %547 : vector<1x1x64xf32> to vector<1x64xf32>
    %cst_272 = arith.constant dense<0.000000e+00> : vector<64xf32>
    %549 = vector.multi_reduction <add>, %544, %cst_272 [0] : vector<64x64xf32> to vector<64xf32>
    %550 = vector.shape_cast %549 : vector<64xf32> to vector<1x64xf32>
    %cst_273 = arith.constant 1.562500e-02 : f32
    %551 = vector.broadcast %cst_273 : f32 to vector<1x64xf32>
    %552 = arith.mulf %550, %551 : vector<1x64xf32>
    %553 = vector.broadcast %552 : vector<1x64xf32> to vector<64x64xf32>
    %554 = arith.subf %544, %553 : vector<64x64xf32>
    %555 = arith.mulf %554, %554 : vector<64x64xf32>
    %cst_274 = arith.constant dense<0.000000e+00> : vector<64xf32>
    %556 = vector.multi_reduction <add>, %555, %cst_274 [0] : vector<64x64xf32> to vector<64xf32>
    %557 = vector.shape_cast %556 : vector<64xf32> to vector<1x64xf32>
    %cst_275 = arith.constant 1.562500e-02 : f32
    %558 = vector.broadcast %cst_275 : f32 to vector<1x64xf32>
    %559 = arith.mulf %557, %558 : vector<1x64xf32>
    %cst_276 = arith.constant 9.99999974E-6 : f32
    %560 = vector.broadcast %cst_276 : f32 to vector<1x64xf32>
    %561 = arith.addf %559, %560 : vector<1x64xf32>
    %562 = math.rsqrt %561 : vector<1x64xf32>
    %563 = vector.broadcast %562 : vector<1x64xf32> to vector<64x64xf32>
    %564 = arith.mulf %554, %563 : vector<64x64xf32>
    %565 = vector.broadcast %546 : vector<1x64xf32> to vector<64x64xf32>
    %566 = arith.mulf %565, %564 : vector<64x64xf32>
    %567 = vector.broadcast %548 : vector<1x64xf32> to vector<64x64xf32>
    %568 = arith.addf %566, %567 : vector<64x64xf32>
    %569 = arith.addf %568, %437 : vector<64x64xf32>
    %570 = tpu.iota {dimensions = array<i32: 0>} : vector<64x64xi32>
    %c2_i32_277 = arith.constant 2 : i32
    %571 = tpu.dynamic_rotate %569 by %c2_i32_277 dim 0 : vector<64x64xf32>, i32 -> vector<64x64xf32>
    %c2_i32_278 = arith.constant 2 : i32
    %572 = vector.broadcast %c2_i32_278 : i32 to vector<64x64xi32>
    %573 = arith.cmpi sge, %570, %572 : vector<64x64xi32>
    %c66_i32_279 = arith.constant 66 : i32
    %574 = vector.broadcast %c66_i32_279 : i32 to vector<64x64xi32>
    %575 = arith.cmpi slt, %570, %574 : vector<64x64xi32>
    %576 = arith.andi %573, %575 : vector<64x64xi1>
    %cst_280 = arith.constant 0.000000e+00 : f32
    %577 = vector.broadcast %cst_280 : f32 to vector<64x64xf32>
    %578 = arith.select %576, %571, %577 : vector<64x64xi1>, vector<64x64xf32>
    %c1_i32_281 = arith.constant 1 : i32
    %579 = tpu.dynamic_rotate %569 by %c1_i32_281 dim 0 : vector<64x64xf32>, i32 -> vector<64x64xf32>
    %c1_i32_282 = arith.constant 1 : i32
    %580 = vector.broadcast %c1_i32_282 : i32 to vector<64x64xi32>
    %581 = arith.cmpi sge, %570, %580 : vector<64x64xi32>
    %c65_i32_283 = arith.constant 65 : i32
    %582 = vector.broadcast %c65_i32_283 : i32 to vector<64x64xi32>
    %583 = arith.cmpi slt, %570, %582 : vector<64x64xi32>
    %584 = arith.andi %581, %583 : vector<64x64xi1>
    %cst_284 = arith.constant 0.000000e+00 : f32
    %585 = vector.broadcast %cst_284 : f32 to vector<64x64xf32>
    %586 = arith.select %584, %579, %585 : vector<64x64xi1>, vector<64x64xf32>
    %c63_i32_285 = arith.constant 63 : i32
    %587 = tpu.dynamic_rotate %569 by %c63_i32_285 dim 0 : vector<64x64xf32>, i32 -> vector<64x64xf32>
    %c-1_i32_286 = arith.constant -1 : i32
    %588 = vector.broadcast %c-1_i32_286 : i32 to vector<64x64xi32>
    %589 = arith.cmpi sge, %570, %588 : vector<64x64xi32>
    %c63_i32_287 = arith.constant 63 : i32
    %590 = vector.broadcast %c63_i32_287 : i32 to vector<64x64xi32>
    %591 = arith.cmpi slt, %570, %590 : vector<64x64xi32>
    %592 = arith.andi %589, %591 : vector<64x64xi1>
    %cst_288 = arith.constant 0.000000e+00 : f32
    %593 = vector.broadcast %cst_288 : f32 to vector<64x64xf32>
    %594 = arith.select %592, %587, %593 : vector<64x64xi1>, vector<64x64xf32>
    %c62_i32_289 = arith.constant 62 : i32
    %595 = tpu.dynamic_rotate %569 by %c62_i32_289 dim 0 : vector<64x64xf32>, i32 -> vector<64x64xf32>
    %c-2_i32_290 = arith.constant -2 : i32
    %596 = vector.broadcast %c-2_i32_290 : i32 to vector<64x64xi32>
    %597 = arith.cmpi sge, %570, %596 : vector<64x64xi32>
    %c62_i32_291 = arith.constant 62 : i32
    %598 = vector.broadcast %c62_i32_291 : i32 to vector<64x64xi32>
    %599 = arith.cmpi slt, %570, %598 : vector<64x64xi32>
    %600 = arith.andi %597, %599 : vector<64x64xi1>
    %cst_292 = arith.constant 0.000000e+00 : f32
    %601 = vector.broadcast %cst_292 : f32 to vector<64x64xf32>
    %602 = arith.select %600, %595, %601 : vector<64x64xi1>, vector<64x64xf32>
    %603 = tpu.concatenate %578, %586, %569, %594, %602 in 1 : vector<64x64xf32>, vector<64x64xf32>, vector<64x64xf32>, vector<64x64xf32>, vector<64x64xf32> -> vector<64x320xf32>
    %c0_293 = arith.constant 0 : index
    %c0_294 = arith.constant 0 : index
    %604 = vector.load %arg23[%c0_293, %c0_294] : memref<1x320xf32, #tpu.memory_space<vmem>>, vector<1x320xf32>
    %605 = vector.broadcast %604 : vector<1x320xf32> to vector<64x320xf32>
    %606 = arith.mulf %603, %605 : vector<64x320xf32>
    %cst_295 = arith.constant dense<0.000000e+00> : vector<64xf32>
    %607 = vector.multi_reduction <add>, %606, %cst_295 [1] : vector<64x320xf32> to vector<64xf32>
    %608 = vector.shape_cast %607 : vector<64xf32> to vector<64x1xf32>
    %c0_296 = arith.constant 0 : index
    %c0_297 = arith.constant 0 : index
    %609 = vector.load %arg24[%c0_296, %c0_297] : memref<1x1xf32, #tpu.memory_space<vmem>>, vector<1x1xf32>
    %610 = vector.broadcast %609 : vector<1x1xf32> to vector<64x1xf32>
    %611 = arith.addf %608, %610 : vector<64x1xf32>
    %c0_298 = arith.constant 0 : index
    %c0_299 = arith.constant 0 : index
    %612 = vector.load %arg26[%c0_298, %c0_299] : memref<64x1xf32, #tpu.memory_space<vmem>>, vector<64x1xf32>
    tpu.vector_store %arg26[%c0_298, %c0_299], %611 {strides = array<i32>} : memref<64x1xf32, #tpu.memory_space<vmem>>, vector<64x1xf32>,
    %cst_300 = arith.constant 0.000000e+00 : f32
    %613 = vector.broadcast %cst_300 : f32 to vector<64x1xf32>
    %614 = arith.subf %613, %611 : vector<64x1xf32>
    %615 = math.exp %614 : vector<64x1xf32>
    %cst_301 = arith.constant 1.000000e+00 : f32
    %616 = vector.broadcast %cst_301 : f32 to vector<64x1xf32>
    %617 = arith.addf %616, %615 : vector<64x1xf32>
    %cst_302 = arith.constant 1.000000e+00 : f32
    %618 = vector.broadcast %cst_302 : f32 to vector<64x1xf32>
    %619 = arith.divf %618, %617 : vector<64x1xf32>
    %c0_303 = arith.constant 0 : index
    %c0_304 = arith.constant 0 : index
    %620 = vector.load %arg25[%c0_303, %c0_304] : memref<64x1xf32, #tpu.memory_space<vmem>>, vector<64x1xf32>
    tpu.vector_store %arg25[%c0_303, %c0_304], %619 {strides = array<i32>} : memref<64x1xf32, #tpu.memory_space<vmem>>, vector<64x1xf32>,
    return
  }
}

</mosaic_0001>

<llo_original>
// kernel: tpu_custom_call.1
$region0: #{tpu_custom_call.1}
  #allocation0 [shape = 'u32[]', space=smem, size = 0x4, offset = 0x4, fixed_abs, tag = 'smem constant byte address 0x4 - core index']
  #allocation1 [shape = 'u32[144,128]{1,0:T(1,128)}', space=vmem, size = 0x12000, scoped, tag = 'internal scratch']
  #allocation2 [shape = 'f32[1,1]{1,0:T(1,128)S(1)}', space=vmem, size = 0x200, scoped, tag = 'scoped memory for tpu_custom_call.1']
  %s0 = inlined_call_operand.vmem [shape: f32[64,128], index: 0, kind: input, shape index: {}]
  %s1 = inlined_call_operand.vmem [shape: f32[1,128], index: 1, kind: input, shape index: {}]
  %s2 = inlined_call_operand.vmem [shape: f32[1,128], index: 2, kind: input, shape index: {}]
  %s3 = inlined_call_operand.vmem [shape: f32[640,64], index: 3, kind: input, shape index: {}]
  %s4 = inlined_call_operand.vmem [shape: f32[1,64], index: 4, kind: input, shape index: {}]
  %s5 = inlined_call_operand.vmem [shape: f32[1,64], index: 5, kind: input, shape index: {}]
  %s6 = inlined_call_operand.vmem [shape: f32[1,64], index: 6, kind: input, shape index: {}]
  %s7 = inlined_call_operand.vmem [shape: f32[320,64], index: 7, kind: input, shape index: {}]
  %s8 = inlined_call_operand.vmem [shape: f32[1,64], index: 8, kind: input, shape index: {}]
  %s9 = inlined_call_operand.vmem [shape: f32[1,64], index: 9, kind: input, shape index: {}]
  %s10 = inlined_call_operand.vmem [shape: f32[1,64], index: 10, kind: input, shape index: {}]
  %s11 = inlined_call_operand.vmem [shape: f32[128,64], index: 11, kind: input, shape index: {}]
  %s12 = inlined_call_operand.vmem [shape: f32[1,64], index: 12, kind: input, shape index: {}]
  %s13 = inlined_call_operand.vmem [shape: f32[1,64], index: 13, kind: input, shape index: {}]
  %s14 = inlined_call_operand.vmem [shape: f32[1,64], index: 14, kind: input, shape index: {}]
  %s15 = inlined_call_operand.vmem [shape: f32[3,320,64], index: 15, kind: input, shape index: {}]
  %s16 = inlined_call_operand.vmem [shape: f32[3,1,64], index: 16, kind: input, shape index: {}]
  %s17 = inlined_call_operand.vmem [shape: f32[3,1,64], index: 17, kind: input, shape index: {}]
  %s18 = inlined_call_operand.vmem [shape: f32[3,1,64], index: 18, kind: input, shape index: {}]
  %s19 = inlined_call_operand.vmem [shape: f32[3,320,64], index: 19, kind: input, shape index: {}]
  %s20 = inlined_call_operand.vmem [shape: f32[3,1,64], index: 20, kind: input, shape index: {}]
  %s21 = inlined_call_operand.vmem [shape: f32[3,1,64], index: 21, kind: input, shape index: {}]
  %s22 = inlined_call_operand.vmem [shape: f32[3,1,64], index: 22, kind: input, shape index: {}]
  %s23 = inlined_call_operand.vmem [shape: f32[1,320], index: 23, kind: input, shape index: {}]
  %s24 = inlined_call_operand.<no memory space> [shape: f32[1,1], index: 24, kind: input, shape index: {}]
  %s25 = inlined_call_operand.vmem [shape: f32[64,1], index: 25, kind: output, shape index: {0}]
  %s26 = inlined_call_operand.vmem [shape: f32[64,1], index: 26, kind: output, shape index: {1}]
  %27 = xla_tuple %s25, %s26
  %s28 = sld [smem:[#allocation0]]
  $region118: #{tpu_custom_call.1} parent=0
    _
  %s30 = ssub.s32 1, %s28
  %s31 = scalar_select 0, %s30, %s28
  %v32 = vstv %s24
  %33 = vst [vmem:[#allocation2] sm:$0x1] %v32
  // Predicated region
  $region2: #{tpu_custom_call.1} parent=0 // pred_check
    _
  $region3: #{tpu_custom_call.1} parent=0 // pred_check_branch
    %35 = sbr.rel (0) target = $region5
  $region4: #{tpu_custom_call.1} parent=0 // pred_region
    _
  $region5: #{tpu_custom_call.1} parent=0 // pred_fallthru
    _
  // Predicated region
  $region6: #{tpu_custom_call.1} parent=0 // pred_check
    _
  $region7: #{tpu_custom_call.1} parent=0 // pred_check_branch
    %37 = sbr.rel (0) target = $region9
  $region8: #{tpu_custom_call.1} parent=0 // pred_region
    _
  $region9: #{tpu_custom_call.1} parent=0 // pred_fallthru
    _
  // Predicated region
  $region10: #{tpu_custom_call.1} parent=0 // pred_check
    _
  $region11: #{tpu_custom_call.1} parent=0 // pred_check_branch
    %39 = sbr.rel (0) target = $region13
  $region12: #{tpu_custom_call.1} parent=0 // pred_region
    _
  $region13: #{tpu_custom_call.1} parent=0 // pred_fallthru
    _
  // Predicated region
  $region14: #{tpu_custom_call.1} parent=0 // pred_check
    _
  $region15: #{tpu_custom_call.1} parent=0 // pred_check_branch
    %41 = sbr.rel (0) target = $region17
  $region16: #{tpu_custom_call.1} parent=0 // pred_region
    _
  $region17: #{tpu_custom_call.1} parent=0 // pred_fallthru
    _
  // Predicated region
  $region18: #{tpu_custom_call.1} parent=0 // pred_check
    _
  $region19: #{tpu_custom_call.1} parent=0 // pred_check_branch
    %43 = sbr.rel (0) target = $region21
  $region20: #{tpu_custom_call.1} parent=0 // pred_region
    _
  $region21: #{tpu_custom_call.1} parent=0 // pred_fallthru
    _
  // Predicated region
  $region22: #{tpu_custom_call.1} parent=0 // pred_check
    _
  $region23: #{tpu_custom_call.1} parent=0 // pred_check_branch
    %45 = sbr.rel (0) target = $region25
  $region24: #{tpu_custom_call.1} parent=0 // pred_region
    _
  $region25: #{tpu_custom_call.1} parent=0 // pred_fallthru
    _
  // Predicated region
  $region26: #{tpu_custom_call.1} parent=0 // pred_check
    _
  $region27: #{tpu_custom_call.1} parent=0 // pred_check_branch
    %47 = sbr.rel (0) target = $region29
  $region28: #{tpu_custom_call.1} parent=0 // pred_region
    _
  $region29: #{tpu_custom_call.1} parent=0 // pred_fallthru
    _
  // Predicated region
  $region30: #{tpu_custom_call.1} parent=0 // pred_check
    _
  $region31: #{tpu_custom_call.1} parent=0 // pred_check_branch
    %49 = sbr.rel (0) target = $region33
  $region32: #{tpu_custom_call.1} parent=0 // pred_region
    _
  $region33: #{tpu_custom_call.1} parent=0 // pred_fallthru
    _
  // Predicated region
  $region34: #{tpu_custom_call.1} parent=0 // pred_check
    _
  $region35: #{tpu_custom_call.1} parent=0 // pred_check_branch
    %51 = sbr.rel (0) target = $region37
  $region36: #{tpu_custom_call.1} parent=0 // pred_region
    _
  $region37: #{tpu_custom_call.1} parent=0 // pred_fallthru
    _
  // Predicated region
  $region38: #{tpu_custom_call.1} parent=0 // pred_check
    _
  $region39: #{tpu_custom_call.1} parent=0 // pred_check_branch
    %53 = sbr.rel (0) target = $region41
  $region40: #{tpu_custom_call.1} parent=0 // pred_region
    _
  $region41: #{tpu_custom_call.1} parent=0 // pred_fallthru
    _
  // Predicated region
  $region42: #{tpu_custom_call.1} parent=0 // pred_check
    _
  $region43: #{tpu_custom_call.1} parent=0 // pred_check_branch
    %55 = sbr.rel (0) target = $region45
  $region44: #{tpu_custom_call.1} parent=0 // pred_region
    _
  $region45: #{tpu_custom_call.1} parent=0 // pred_fallthru
    _
  // Predicated region
  $region46: #{tpu_custom_call.1} parent=0 // pred_check
    _
  $region47: #{tpu_custom_call.1} parent=0 // pred_check_branch
    %57 = sbr.rel (0) target = $region49
  $region48: #{tpu_custom_call.1} parent=0 // pred_region
    _
  $region49: #{tpu_custom_call.1} parent=0 // pred_fallthru
    _
  // Predicated region
  $region50: #{tpu_custom_call.1} parent=0 // pred_check
    _
  $region51: #{tpu_custom_call.1} parent=0 // pred_check_branch
    %59 = sbr.rel (0) target = $region53
  $region52: #{tpu_custom_call.1} parent=0 // pred_region
    _
  $region53: #{tpu_custom_call.1} parent=0 // pred_fallthru
    _
  // Predicated region
  $region54: #{tpu_custom_call.1} parent=0 // pred_check
    _
  $region55: #{tpu_custom_call.1} parent=0 // pred_check_branch
    %61 = sbr.rel (0) target = $region57
  $region56: #{tpu_custom_call.1} parent=0 // pred_region
    _
  $region57: #{tpu_custom_call.1} parent=0 // pred_fallthru
    _
  // Predicated region
  $region58: #{tpu_custom_call.1} parent=0 // pred_check
    _
  $region59: #{tpu_custom_call.1} parent=0 // pred_check_branch
    %63 = sbr.rel (0) target = $region61
  $region60: #{tpu_custom_call.1} parent=0 // pred_region
    _
  $region61: #{tpu_custom_call.1} parent=0 // pred_fallthru
    _
  // Predicated region
  $region62: #{tpu_custom_call.1} parent=0 // pred_check
    _
  $region63: #{tpu_custom_call.1} parent=0 // pred_check_branch
    %65 = sbr.rel (0) target = $region65
  $region64: #{tpu_custom_call.1} parent=0 // pred_region
    _
  $region65: #{tpu_custom_call.1} parent=0 // pred_fallthru
    _
  // Predicated region
  $region66: #{tpu_custom_call.1} parent=0 // pred_check
    _
  $region67: #{tpu_custom_call.1} parent=0 // pred_check_branch
    %67 = sbr.rel (0) target = $region69
  $region68: #{tpu_custom_call.1} parent=0 // pred_region
    _
  $region69: #{tpu_custom_call.1} parent=0 // pred_fallthru
    _
  // Predicated region
  $region70: #{tpu_custom_call.1} parent=0 // pred_check
    _
  $region71: #{tpu_custom_call.1} parent=0 // pred_check_branch
    %69 = sbr.rel (0) target = $region73
  $region72: #{tpu_custom_call.1} parent=0 // pred_region
    _
  $region73: #{tpu_custom_call.1} parent=0 // pred_fallthru
    _
  // Predicated region
  $region74: #{tpu_custom_call.1} parent=0 // pred_check
    _
  $region75: #{tpu_custom_call.1} parent=0 // pred_check_branch
    %71 = sbr.rel (0) target = $region77
  $region76: #{tpu_custom_call.1} parent=0 // pred_region
    _
  $region77: #{tpu_custom_call.1} parent=0 // pred_fallthru
    _
  // Predicated region
  $region78: #{tpu_custom_call.1} parent=0 // pred_check
    _
  $region79: #{tpu_custom_call.1} parent=0 // pred_check_branch
    %73 = sbr.rel (0) target = $region81
  $region80: #{tpu_custom_call.1} parent=0 // pred_region
    _
  $region81: #{tpu_custom_call.1} parent=0 // pred_fallthru
    _
  // Predicated region
  $region82: #{tpu_custom_call.1} parent=0 // pred_check
    _
  $region83: #{tpu_custom_call.1} parent=0 // pred_check_branch
    %75 = sbr.rel (0) target = $region85
  $region84: #{tpu_custom_call.1} parent=0 // pred_region
    _
  $region85: #{tpu_custom_call.1} parent=0 // pred_fallthru
    _
  // Predicated region
  $region86: #{tpu_custom_call.1} parent=0 // pred_check
    _
  $region87: #{tpu_custom_call.1} parent=0 // pred_check_branch
    %77 = sbr.rel (0) target = $region89
  $region88: #{tpu_custom_call.1} parent=0 // pred_region
    _
  $region89: #{tpu_custom_call.1} parent=0 // pred_fallthru
    _
  // Predicated region
  $region90: #{tpu_custom_call.1} parent=0 // pred_check
    _
  $region91: #{tpu_custom_call.1} parent=0 // pred_check_branch
    %79 = sbr.rel (0) target = $region93
  $region92: #{tpu_custom_call.1} parent=0 // pred_region
    _
  $region93: #{tpu_custom_call.1} parent=0 // pred_fallthru
    _
  // Predicated region
  $region94: #{tpu_custom_call.1} parent=0 // pred_check
    _
  $region95: #{tpu_custom_call.1} parent=0 // pred_check_branch
    %81 = sbr.rel (0) target = $region97
  $region96: #{tpu_custom_call.1} parent=0 // pred_region
    _
  $region97: #{tpu_custom_call.1} parent=0 // pred_fallthru
    _
  // Predicated region
  $region98: #{tpu_custom_call.1} parent=0 // pred_check
    _
  $region99: #{tpu_custom_call.1} parent=0 // pred_check_branch
    %83 = sbr.rel (0) target = $region101
  $region100: #{tpu_custom_call.1} parent=0 // pred_region
    _
  $region101: #{tpu_custom_call.1} parent=0 // pred_fallthru
    _
  %v84 = vld [vmem:[%s0] sm:$0xff]
  %v85 = vld [vmem:[%s0 + $0x8] sm:$0xff]
  %v86 = vld [vmem:[%s0 + $0x10] sm:$0xff]
  %v87 = vld [vmem:[%s0 + $0x18] sm:$0xff]
  %v88 = vld [vmem:[%s0 + $0x20] sm:$0xff]
  %v89 = vld [vmem:[%s0 + $0x28] sm:$0xff]
  %v90 = vld [vmem:[%s0 + $0x30] sm:$0xff]
  %v91 = vld [vmem:[%s0 + $0x38] sm:$0xff]
  %v92 = vld [vmem:[%s1] sm:$0x1]
  %v93 = vld [vmem:[%s2] sm:$0x1]
  %v94 = vadd.f32 %v84, %v85
  %v95 = vadd.f32 %v94, %v86
  %v96 = vadd.f32 %v95, %v87
  %v97 = vadd.f32 %v96, %v88
  %v98 = vadd.f32 %v97, %v89
  %v99 = vadd.f32 %v98, %v90
  %v100 = vadd.f32 %v99, %v91
  %v101 = vrot.slane %v100, 4
  %v102 = vadd.f32 %v100, %v101
  %v103 = vrot.slane %v102, 2
  %v104 = vadd.f32 %v102, %v103
  %v105 = vrot.slane %v104, 1
  %v106 = vadd.f32 %v104, %v105
  %v107 = vmul.f32 %v106, 0.015625
  %v108 = vsub.f32 %v84, %v107
  %v109 = vsub.f32 %v85, %v107
  %v110 = vsub.f32 %v86, %v107
  %v111 = vsub.f32 %v87, %v107
  %v112 = vsub.f32 %v88, %v107
  %v113 = vsub.f32 %v89, %v107
  %v114 = vsub.f32 %v90, %v107
  %v115 = vsub.f32 %v91, %v107
  %v116 = vmul.f32 %v108, %v108
  %v117 = vmul.f32 %v109, %v109
  %v118 = vmul.f32 %v110, %v110
  %v119 = vmul.f32 %v111, %v111
  %v120 = vmul.f32 %v112, %v112
  %v121 = vmul.f32 %v113, %v113
  %v122 = vmul.f32 %v114, %v114
  %v123 = vmul.f32 %v115, %v115
  %v124 = vadd.f32 %v116, %v117
  %v125 = vadd.f32 %v124, %v118
  %v126 = vadd.f32 %v125, %v119
  %v127 = vadd.f32 %v126, %v120
  %v128 = vadd.f32 %v127, %v121
  %v129 = vadd.f32 %v128, %v122
  %v130 = vadd.f32 %v129, %v123
  %v131 = vrot.slane %v130, 4
  %v132 = vadd.f32 %v130, %v131
  %v133 = vrot.slane %v132, 2
  %v134 = vadd.f32 %v132, %v133
  %v135 = vrot.slane %v134, 1
  %v136 = vadd.f32 %v134, %v135
  %v137 = vmul.f32 %v136, 0.015625
  %v138 = vadd.f32 %v137, 1e-05
  %v139 = vrsqrt.pop %v138
  %v140 = vmul.f32 %v108, %v139
  %v141 = vmul.f32 %v109, %v139
  %v142 = vmul.f32 %v110, %v139
  %v143 = vmul.f32 %v111, %v139
  %v144 = vmul.f32 %v112, %v139
  %v145 = vmul.f32 %v113, %v139
  %v146 = vmul.f32 %v114, %v139
  %v147 = vmul.f32 %v115, %v139
  %v149 = vlaneseq
  %v150 = vshrl.u32 %v149, 7
  %v151 = vsub.s32 0, %v150
  %v152 = vrot.slane %v92, %v151
  %v154 = vmul.f32 %v152, %v140
  %v155 = vmul.f32 %v152, %v141
  %v156 = vmul.f32 %v152, %v142
  %v157 = vmul.f32 %v152, %v143
  %v158 = vmul.f32 %v152, %v144
  %v159 = vmul.f32 %v152, %v145
  %v160 = vmul.f32 %v152, %v146
  %v161 = vmul.f32 %v152, %v147
  %v163 = vlaneseq
  %v164 = vshrl.u32 %v163, 7
  %v165 = vsub.s32 0, %v164
  %v166 = vrot.slane %v93, %v165
  %v168 = vadd.f32 %v154, %v166
  %v169 = vadd.f32 %v155, %v166
  %v170 = vadd.f32 %v156, %v166
  %v171 = vadd.f32 %v157, %v166
  %v172 = vadd.f32 %v158, %v166
  %v173 = vadd.f32 %v159, %v166
  %v174 = vadd.f32 %v160, %v166
  %v175 = vadd.f32 %v161, %v166
  %v176 = vld [vmem:[%s11] sm:$0xff]
  %v177 = vld [vmem:[%s11 + $0x8] sm:$0xff]
  %v178 = vld [vmem:[%s11 + $0x10] sm:$0xff]
  %v179 = vld [vmem:[%s11 + $0x18] sm:$0xff]
  %v180 = vld [vmem:[%s11 + $0x20] sm:$0xff]
  %v181 = vld [vmem:[%s11 + $0x28] sm:$0xff]
  %v182 = vld [vmem:[%s11 + $0x30] sm:$0xff]
  %v183 = vld [vmem:[%s11 + $0x38] sm:$0xff]
  %v184 = vld [vmem:[%s11 + $0x40] sm:$0xff]
  %v185 = vld [vmem:[%s11 + $0x48] sm:$0xff]
  %v186 = vld [vmem:[%s11 + $0x50] sm:$0xff]
  %v187 = vld [vmem:[%s11 + $0x58] sm:$0xff]
  %v188 = vld [vmem:[%s11 + $0x60] sm:$0xff]
  %v189 = vld [vmem:[%s11 + $0x68] sm:$0xff]
  %v190 = vld [vmem:[%s11 + $0x70] sm:$0xff]
  %v191 = vld [vmem:[%s11 + $0x78] sm:$0xff]
  %v192 = vld [vmem:[%s12] sm:$0x1]
  %v194 = vlaneseq
  %v195 = vshrl.u32 %v194, 7
  %v196 = vsub.s32 0, %v195
  %v197 = vrot.slane %v192, %v196
  %199 = vmatprep.subr.mxu0 0.0
  %200 = vmatpush1.msra.mxu0 %v176
  %201 = vmatprep.subr.mxu0 0.0
  %202 = vmatpush1.msra.mxu0 %v177
  %203 = vmatprep.subr.mxu0 0.0
  %204 = vmatpush1.msra.mxu0 %v178
  %205 = vmatprep.subr.mxu0 0.0
  %206 = vmatpush1.msra.mxu0 %v179
  %207 = vmatprep.subr.mxu0 0.0
  %208 = vmatpush1.msra.mxu0 %v180
  %209 = vmatprep.subr.mxu0 0.0
  %210 = vmatpush1.msra.mxu0 %v181
  %211 = vmatprep.subr.mxu0 0.0
  %212 = vmatpush1.msra.mxu0 %v182
  %213 = vmatprep.subr.mxu0 0.0
  %214 = vmatpush1.msra.mxu0 %v183
  %215 = vmatprep.subr.mxu0 0.0
  %216 = vmatpush1.msra.mxu0 %v184
  %217 = vmatprep.subr.mxu0 0.0
  %218 = vmatpush1.msra.mxu0 %v185
  %219 = vmatprep.subr.mxu0 0.0
  %220 = vmatpush1.msra.mxu0 %v186
  %221 = vmatprep.subr.mxu0 0.0
  %222 = vmatpush1.msra.mxu0 %v187
  %223 = vmatprep.subr.mxu0 0.0
  %224 = vmatpush1.msra.mxu0 %v188
  %225 = vmatprep.subr.mxu0 0.0
  %226 = vmatpush1.msra.mxu0 %v189
  %227 = vmatprep.subr.mxu0 0.0
  %228 = vmatpush1.msra.mxu0 %v190
  %229 = vmatprep.subr.mxu0 0.0
  %230 = vmatpush1.msra.mxu0 %v191
  %231 = vmatprep.subr.mxu0 0.0
  %232 = vmatpush1.msra.mxu0 0.0
  %233 = vmatprep.subr.mxu0 0.0
  %234 = vmatpush1.msra.mxu0 0.0
  %235 = vmatprep.subr.mxu0 0.0
  %236 = vmatpush1.msra.mxu0 0.0
  %237 = vmatprep.subr.mxu0 0.0
  %238 = vmatpush1.msra.mxu0 0.0
  %239 = vmatprep.subr.mxu0 0.0
  %240 = vmatpush1.msra.mxu0 0.0
  %241 = vmatprep.subr.mxu0 0.0
  %242 = vmatpush1.msra.mxu0 0.0
  %243 = vmatprep.subr.mxu0 0.0
  %244 = vmatpush1.msra.mxu0 0.0
  %245 = vmatprep.subr.mxu0 0.0
  %246 = vmatpush1.msra.mxu0 0.0
  %247 = vmatprep.subr.mxu0 0.0
  %248 = vmatpush1.msra.mxu0 0.0
  %249 = vmatprep.subr.mxu0 0.0
  %250 = vmatpush1.msra.mxu0 0.0
  %251 = vmatprep.subr.mxu0 0.0
  %252 = vmatpush1.msra.mxu0 0.0
  %253 = vmatprep.subr.mxu0 0.0
  %254 = vmatpush1.msra.mxu0 0.0
  %255 = vmatprep.subr.mxu0 0.0
  %256 = vmatpush1.msra.mxu0 0.0
  %257 = vmatprep.subr.mxu0 0.0
  %258 = vmatpush1.msra.mxu0 0.0
  %259 = vmatprep.subr.mxu0 0.0
  %260 = vmatpush1.msra.mxu0 0.0
  %261 = vmatprep.subr.mxu0 0.0
  %262 = vmatpush1.msra.mxu0 0.0
  %263 = vmatprep.mubr.f32.mxu0 0.0
  %264 = vmatmul.mubr.f32.gmra.mrb[0].mxu0 %v168
  %v265 = vpop.f32.mrb[0].mxu0
  %v266 = vadd.f32 %v197, %v265
  %v267 = vpop.f32.mrb[0].mxu0
  %268 = vmatprep.mubr.f32.mxu0 0.0
  %269 = vmatmul.mubr.f32.gmra.mrb[0].mxu0 %v169
  %v270 = vpop.f32.mrb[0].mxu0
  %v271 = vadd.f32 %v197, %v270
  %v272 = vpop.f32.mrb[0].mxu0
  %273 = vmatprep.mubr.f32.mxu0 0.0
  %274 = vmatmul.mubr.f32.gmra.mrb[0].mxu0 %v170
  %v275 = vpop.f32.mrb[0].mxu0
  %v276 = vadd.f32 %v197, %v275
  %v277 = vpop.f32.mrb[0].mxu0
  %278 = vmatprep.mubr.f32.mxu0 0.0
  %279 = vmatmul.mubr.f32.gmra.mrb[0].mxu0 %v171
  %v280 = vpop.f32.mrb[0].mxu0
  %v281 = vadd.f32 %v197, %v280
  %v282 = vpop.f32.mrb[0].mxu0
  %283 = vmatprep.mubr.f32.mxu0 0.0
  %284 = vmatmul.mubr.f32.gmra.mrb[0].mxu0 %v172
  %v285 = vpop.f32.mrb[0].mxu0
  %v286 = vadd.f32 %v197, %v285
  %v287 = vpop.f32.mrb[0].mxu0
  %288 = vmatprep.mubr.f32.mxu0 0.0
  %289 = vmatmul.mubr.f32.gmra.mrb[0].mxu0 %v173
  %v290 = vpop.f32.mrb[0].mxu0
  %v291 = vadd.f32 %v197, %v290
  %v292 = vpop.f32.mrb[0].mxu0
  %293 = vmatprep.mubr.f32.mxu0 0.0
  %294 = vmatmul.mubr.f32.gmra.mrb[0].mxu0 %v174
  %v295 = vpop.f32.mrb[0].mxu0
  %v296 = vadd.f32 %v197, %v295
  %v297 = vpop.f32.mrb[0].mxu0
  %298 = vmatprep.mubr.f32.mxu0 0.0
  %299 = vmatmul.mubr.f32.gmra.mrb[0].mxu0 %v175
  %v300 = vpop.f32.mrb[0].mxu0
  %v301 = vadd.f32 %v197, %v300
  %v302 = vpop.f32.mrb[0].mxu0
  %303 = vdwg.mxu0
  %v304 = vld [vmem:[%s13] sm:$0x1]
  %v305 = vld [vmem:[%s14] sm:$0x1]
  %vm306 = vcmask 523264
  %v307 = vsel %vm306, %v266, 0.0
  %v308 = vsel %vm306, %v271, 0.0
  %v309 = vadd.f32 %v307, %v308
  %v310 = vsel %vm306, %v276, 0.0
  %v311 = vadd.f32 %v309, %v310
  %v312 = vsel %vm306, %v281, 0.0
  %v313 = vadd.f32 %v311, %v312
  %v314 = vsel %vm306, %v286, 0.0
  %v315 = vadd.f32 %v313, %v314
  %v316 = vsel %vm306, %v291, 0.0
  %v317 = vadd.f32 %v315, %v316
  %v318 = vsel %vm306, %v296, 0.0
  %v319 = vadd.f32 %v317, %v318
  %v320 = vsel %vm306, %v301, 0.0
  %v321 = vadd.f32 %v319, %v320
  %v322 = vrot.slane %v321, 4
  %v323 = vadd.f32 %v321, %v322
  %v324 = vrot.slane %v323, 2
  %v325 = vadd.f32 %v323, %v324
  %v326 = vrot.slane %v325, 1
  %v327 = vadd.f32 %v325, %v326
  %v328 = vmul.f32 %v327, 0.015625
  %v329 = vsub.f32 %v266, %v328
  %v330 = vsub.f32 %v271, %v328
  %v331 = vsub.f32 %v276, %v328
  %v332 = vsub.f32 %v281, %v328
  %v333 = vsub.f32 %v286, %v328
  %v334 = vsub.f32 %v291, %v328
  %v335 = vsub.f32 %v296, %v328
  %v336 = vsub.f32 %v301, %v328
  %v337 = vmul.f32 %v329, %v329
  %v338 = vmul.f32 %v330, %v330
  %v339 = vmul.f32 %v331, %v331
  %v340 = vmul.f32 %v332, %v332
  %v341 = vmul.f32 %v333, %v333
  %v342 = vmul.f32 %v334, %v334
  %v343 = vmul.f32 %v335, %v335
  %v344 = vmul.f32 %v336, %v336
  %v345 = vsel %vm306, %v337, 0.0
  %v346 = vsel %vm306, %v338, 0.0
  %v347 = vadd.f32 %v345, %v346
  %v348 = vsel %vm306, %v339, 0.0
  %v349 = vadd.f32 %v347, %v348
  %v350 = vsel %vm306, %v340, 0.0
  %v351 = vadd.f32 %v349, %v350
  %v352 = vsel %vm306, %v341, 0.0
  %v353 = vadd.f32 %v351, %v352
  %v354 = vsel %vm306, %v342, 0.0
  %v355 = vadd.f32 %v353, %v354
  %v356 = vsel %vm306, %v343, 0.0
  %v357 = vadd.f32 %v355, %v356
  %v358 = vsel %vm306, %v344, 0.0
  %v359 = vadd.f32 %v357, %v358
  %v360 = vrot.slane %v359, 4
  %v361 = vadd.f32 %v359, %v360
  %v362 = vrot.slane %v361, 2
  %v363 = vadd.f32 %v361, %v362
  %v364 = vrot.slane %v363, 1
  %v365 = vadd.f32 %v363, %v364
  %v366 = vmul.f32 %v365, 0.015625
  %v367 = vadd.f32 %v366, 1e-05
  %v368 = vrsqrt.pop %v367
  %v369 = vmul.f32 %v329, %v368
  %v370 = vmul.f32 %v330, %v368
  %v371 = vmul.f32 %v331, %v368
  %v372 = vmul.f32 %v332, %v368
  %v373 = vmul.f32 %v333, %v368
  %v374 = vmul.f32 %v334, %v368
  %v375 = vmul.f32 %v335, %v368
  %v376 = vmul.f32 %v336, %v368
  %v378 = vlaneseq
  %v379 = vshrl.u32 %v378, 7
  %v380 = vsub.s32 0, %v379
  %v381 = vrot.slane %v304, %v380
  %v383 = vmul.f32 %v381, %v369
  %v384 = vmul.f32 %v381, %v370
  %v385 = vmul.f32 %v381, %v371
  %v386 = vmul.f32 %v381, %v372
  %v387 = vmul.f32 %v381, %v373
  %v388 = vmul.f32 %v381, %v374
  %v389 = vmul.f32 %v381, %v375
  %v390 = vmul.f32 %v381, %v376
  %v392 = vlaneseq
  %v393 = vshrl.u32 %v392, 7
  %v394 = vsub.s32 0, %v393
  %v395 = vrot.slane %v305, %v394
  %v397 = vadd.f32 %v383, %v395
  %v398 = vadd.f32 %v384, %v395
  %v399 = vadd.f32 %v385, %v395
  %v400 = vadd.f32 %v386, %v395
  %v401 = vadd.f32 %v387, %v395
  %v402 = vadd.f32 %v388, %v395
  %v403 = vadd.f32 %v389, %v395
  %v404 = vadd.f32 %v390, %v395
  %v405 = vld [vmem:[%s3] sm:$0xff]
  %v406 = vld [vmem:[%s3 + $0x8] sm:$0xff]
  %v407 = vld [vmem:[%s3 + $0x10] sm:$0xff]
  %v408 = vld [vmem:[%s3 + $0x18] sm:$0xff]
  %v409 = vld [vmem:[%s3 + $0x20] sm:$0xff]
  %v410 = vld [vmem:[%s3 + $0x28] sm:$0xff]
  %v411 = vld [vmem:[%s3 + $0x30] sm:$0xff]
  %v412 = vld [vmem:[%s3 + $0x38] sm:$0xff]
  %v413 = vld [vmem:[%s3 + $0x40] sm:$0xff]
  %v414 = vld [vmem:[%s3 + $0x48] sm:$0xff]
  %v415 = vld [vmem:[%s3 + $0x50] sm:$0xff]
  %v416 = vld [vmem:[%s3 + $0x58] sm:$0xff]
  %v417 = vld [vmem:[%s3 + $0x60] sm:$0xff]
  %v418 = vld [vmem:[%s3 + $0x68] sm:$0xff]
  %v419 = vld [vmem:[%s3 + $0x70] sm:$0xff]
  %v420 = vld [vmem:[%s3 + $0x78] sm:$0xff]
  %v421 = vld [vmem:[%s3 + $0x80] sm:$0xff]
  %v422 = vld [vmem:[%s3 + $0x88] sm:$0xff]
  %v423 = vld [vmem:[%s3 + $0x90] sm:$0xff]
  %v424 = vld [vmem:[%s3 + $0x98] sm:$0xff]
  %v425 = vld [vmem:[%s3 + $0xa0] sm:$0xff]
  %v426 = vld [vmem:[%s3 + $0xa8] sm:$0xff]
  %v427 = vld [vmem:[%s3 + $0xb0] sm:$0xff]
  %v428 = vld [vmem:[%s3 + $0xb8] sm:$0xff]
  %v429 = vld [vmem:[%s3 + $0xc0] sm:$0xff]
  %v430 = vld [vmem:[%s3 + $0xc8] sm:$0xff]
  %v431 = vld [vmem:[%s3 + $0xd0] sm:$0xff]
  %v432 = vld [vmem:[%s3 + $0xd8] sm:$0xff]
  %v433 = vld [vmem:[%s3 + $0xe0] sm:$0xff]
  %v434 = vld [vmem:[%s3 + $0xe8] sm:$0xff]
  %v435 = vld [vmem:[%s3 + $0xf0] sm:$0xff]
  %v436 = vld [vmem:[%s3 + $0xf8] sm:$0xff]
  %v437 = vld [vmem:[%s3 + $0x100] sm:$0xff]
  %v438 = vld [vmem:[%s3 + $0x108] sm:$0xff]
  %v439 = vld [vmem:[%s3 + $0x110] sm:$0xff]
  %v440 = vld [vmem:[%s3 + $0x118] sm:$0xff]
  %v441 = vld [vmem:[%s3 + $0x120] sm:$0xff]
  %v442 = vld [vmem:[%s3 + $0x128] sm:$0xff]
  %v443 = vld [vmem:[%s3 + $0x130] sm:$0xff]
  %v444 = vld [vmem:[%s3 + $0x138] sm:$0xff]
  %v445 = vld [vmem:[%s3 + $0x140] sm:$0xff]
  %v446 = vld [vmem:[%s3 + $0x148] sm:$0xff]
  %v447 = vld [vmem:[%s3 + $0x150] sm:$0xff]
  %v448 = vld [vmem:[%s3 + $0x158] sm:$0xff]
  %v449 = vld [vmem:[%s3 + $0x160] sm:$0xff]
  %v450 = vld [vmem:[%s3 + $0x168] sm:$0xff]
  %v451 = vld [vmem:[%s3 + $0x170] sm:$0xff]
  %v452 = vld [vmem:[%s3 + $0x178] sm:$0xff]
  %v453 = vld [vmem:[%s3 + $0x180] sm:$0xff]
  %v454 = vld [vmem:[%s3 + $0x188] sm:$0xff]
  %v455 = vld [vmem:[%s3 + $0x190] sm:$0xff]
  %v456 = vld [vmem:[%s3 + $0x198] sm:$0xff]
  %v457 = vld [vmem:[%s3 + $0x1a0] sm:$0xff]
  %v458 = vld [vmem:[%s3 + $0x1a8] sm:$0xff]
  %v459 = vld [vmem:[%s3 + $0x1b0] sm:$0xff]
  %v460 = vld [vmem:[%s3 + $0x1b8] sm:$0xff]
  %v461 = vld [vmem:[%s3 + $0x1c0] sm:$0xff]
  %v462 = vld [vmem:[%s3 + $0x1c8] sm:$0xff]
  %v463 = vld [vmem:[%s3 + $0x1d0] sm:$0xff]
  %v464 = vld [vmem:[%s3 + $0x1d8] sm:$0xff]
  %v465 = vld [vmem:[%s3 + $0x1e0] sm:$0xff]
  %v466 = vld [vmem:[%s3 + $0x1e8] sm:$0xff]
  %v467 = vld [vmem:[%s3 + $0x1f0] sm:$0xff]
  %v468 = vld [vmem:[%s3 + $0x1f8] sm:$0xff]
  %v469 = vld [vmem:[%s3 + $0x200] sm:$0xff]
  %v470 = vld [vmem:[%s3 + $0x208] sm:$0xff]
  %v471 = vld [vmem:[%s3 + $0x210] sm:$0xff]
  %v472 = vld [vmem:[%s3 + $0x218] sm:$0xff]
  %v473 = vld [vmem:[%s3 + $0x220] sm:$0xff]
  %v474 = vld [vmem:[%s3 + $0x228] sm:$0xff]
  %v475 = vld [vmem:[%s3 + $0x230] sm:$0xff]
  %v476 = vld [vmem:[%s3 + $0x238] sm:$0xff]
  %v477 = vld [vmem:[%s3 + $0x240] sm:$0xff]
  %v478 = vld [vmem:[%s3 + $0x248] sm:$0xff]
  %v479 = vld [vmem:[%s3 + $0x250] sm:$0xff]
  %v480 = vld [vmem:[%s3 + $0x258] sm:$0xff]
  %v481 = vld [vmem:[%s3 + $0x260] sm:$0xff]
  %v482 = vld [vmem:[%s3 + $0x268] sm:$0xff]
  %v483 = vld [vmem:[%s3 + $0x270] sm:$0xff]
  %v484 = vld [vmem:[%s3 + $0x278] sm:$0xff]
  %v485 = vld [vmem:[%s4] sm:$0x1]
  %v486 = vlaneseq
  %v487 = vshrl.u32 %v486, 7
  %v488 = vadd.s32 %v487, 8
  %v489 = vadd.s32 %v487, 16
  %v490 = vadd.s32 %v487, 24
  %v491 = vadd.s32 %v487, 32
  %v492 = vadd.s32 %v487, 40
  %v493 = vadd.s32 %v487, 48
  %v494 = vadd.s32 %v487, 56
  %v495 = vrot.slane %v168, 6
  %v496 = vrot.slane %v169, 6
  %v497 = vrot.slane %v170, 6
  %v498 = vrot.slane %v171, 6
  %v499 = vrot.slane %v172, 6
  %v500 = vrot.slane %v173, 6
  %v501 = vrot.slane %v174, 6
  %v502 = vrot.slane %v175, 6
  %vm503 = vcmp.lt.s32.totalorder %v487, 2
  %v504 = vsel %vm503, %v501, %v502
  %v505 = vsel %vm503, %v500, %v501
  %v506 = vsel %vm503, %v499, %v500
  %v507 = vsel %vm503, %v498, %v499
  %v508 = vsel %vm503, %v497, %v498
  %v509 = vsel %vm503, %v496, %v497
  %v510 = vsel %vm503, %v495, %v496
  %v511 = vsel %vm503, %v502, %v495
  %vm512 = vcmp.ge.s32.totalorder %v487, 2
  %vm513 = vcmp.ge.s32.totalorder %v488, 2
  %vm514 = vcmp.ge.s32.totalorder %v489, 2
  %vm515 = vcmp.ge.s32.totalorder %v490, 2
  %vm516 = vcmp.ge.s32.totalorder %v491, 2
  %vm517 = vcmp.ge.s32.totalorder %v492, 2
  %vm518 = vcmp.ge.s32.totalorder %v493, 2
  %vm519 = vcmp.ge.s32.totalorder %v494, 2
  %vm520 = vcmp.lt.s32.totalorder %v487, 66
  %vm521 = vcmp.lt.s32.totalorder %v488, 66
  %vm522 = vcmp.lt.s32.totalorder %v489, 66
  %vm523 = vcmp.lt.s32.totalorder %v490, 66
  %vm524 = vcmp.lt.s32.totalorder %v491, 66
  %vm525 = vcmp.lt.s32.totalorder %v492, 66
  %vm526 = vcmp.lt.s32.totalorder %v493, 66
  %vm527 = vcmp.lt.s32.totalorder %v494, 66
  %vm528 = vmand %vm512, %vm520
  %vm529 = vmand %vm513, %vm521
  %vm530 = vmand %vm514, %vm522
  %vm531 = vmand %vm515, %vm523
  %vm532 = vmand %vm516, %vm524
  %vm533 = vmand %vm517, %vm525
  %vm534 = vmand %vm518, %vm526
  %vm535 = vmand %vm519, %vm527
  %v536 = vsel %vm528, %v511, 0.0
  %v537 = vsel %vm529, %v510, 0.0
  %v538 = vsel %vm530, %v509, 0.0
  %v539 = vsel %vm531, %v508, 0.0
  %v540 = vsel %vm532, %v507, 0.0
  %v541 = vsel %vm533, %v506, 0.0
  %v542 = vsel %vm534, %v505, 0.0
  %v543 = vsel %vm535, %v504, 0.0
  %v544 = vrot.slane %v168, 7
  %v545 = vrot.slane %v169, 7
  %v546 = vrot.slane %v170, 7
  %v547 = vrot.slane %v171, 7
  %v548 = vrot.slane %v172, 7
  %v549 = vrot.slane %v173, 7
  %v550 = vrot.slane %v174, 7
  %v551 = vrot.slane %v175, 7
  %vm552 = vcmp.lt.s32.totalorder %v487, 1
  %v553 = vsel %vm552, %v550, %v551
  %v554 = vsel %vm552, %v549, %v550
  %v555 = vsel %vm552, %v548, %v549
  %v556 = vsel %vm552, %v547, %v548
  %v557 = vsel %vm552, %v546, %v547
  %v558 = vsel %vm552, %v545, %v546
  %v559 = vsel %vm552, %v544, %v545
  %v560 = vsel %vm552, %v551, %v544
  %vm561 = vcmp.ge.s32.totalorder %v487, 1
  %vm562 = vcmp.ge.s32.totalorder %v488, 1
  %vm563 = vcmp.ge.s32.totalorder %v489, 1
  %vm564 = vcmp.ge.s32.totalorder %v490, 1
  %vm565 = vcmp.ge.s32.totalorder %v491, 1
  %vm566 = vcmp.ge.s32.totalorder %v492, 1
  %vm567 = vcmp.ge.s32.totalorder %v493, 1
  %vm568 = vcmp.ge.s32.totalorder %v494, 1
  %vm569 = vcmp.lt.s32.totalorder %v487, 65
  %vm570 = vcmp.lt.s32.totalorder %v488, 65
  %vm571 = vcmp.lt.s32.totalorder %v489, 65
  %vm572 = vcmp.lt.s32.totalorder %v490, 65
  %vm573 = vcmp.lt.s32.totalorder %v491, 65
  %vm574 = vcmp.lt.s32.totalorder %v492, 65
  %vm575 = vcmp.lt.s32.totalorder %v493, 65
  %vm576 = vcmp.lt.s32.totalorder %v494, 65
  %vm577 = vmand %vm561, %vm569
  %vm578 = vmand %vm562, %vm570
  %vm579 = vmand %vm563, %vm571
  %vm580 = vmand %vm564, %vm572
  %vm581 = vmand %vm565, %vm573
  %vm582 = vmand %vm566, %vm574
  %vm583 = vmand %vm567, %vm575
  %vm584 = vmand %vm568, %vm576
  %v585 = vsel %vm577, %v560, 0.0
  %v586 = vsel %vm578, %v559, 0.0
  %v587 = vsel %vm579, %v558, 0.0
  %v588 = vsel %vm580, %v557, 0.0
  %v589 = vsel %vm581, %v556, 0.0
  %v590 = vsel %vm582, %v555, 0.0
  %v591 = vsel %vm583, %v554, 0.0
  %v592 = vsel %vm584, %v553, 0.0
  %v593 = vrot.slane %v168, 1
  %v594 = vrot.slane %v169, 1
  %v595 = vrot.slane %v170, 1
  %v596 = vrot.slane %v171, 1
  %v597 = vrot.slane %v172, 1
  %v598 = vrot.slane %v173, 1
  %v599 = vrot.slane %v174, 1
  %v600 = vrot.slane %v175, 1
  %vm601 = vcmp.lt.s32.totalorder %v487, 7
  %v602 = vsel %vm601, %v599, %v600
  %v603 = vsel %vm601, %v598, %v599
  %v604 = vsel %vm601, %v597, %v598
  %v605 = vsel %vm601, %v596, %v597
  %v606 = vsel %vm601, %v595, %v596
  %v607 = vsel %vm601, %v594, %v595
  %v608 = vsel %vm601, %v593, %v594
  %v609 = vsel %vm601, %v600, %v593
  %vm610 = vcmp.ge.s32.totalorder %v487, 4294967295
  %vm611 = vcmp.ge.s32.totalorder %v488, 4294967295
  %vm612 = vcmp.ge.s32.totalorder %v489, 4294967295
  %vm613 = vcmp.ge.s32.totalorder %v490, 4294967295
  %vm614 = vcmp.ge.s32.totalorder %v491, 4294967295
  %vm615 = vcmp.ge.s32.totalorder %v492, 4294967295
  %vm616 = vcmp.ge.s32.totalorder %v493, 4294967295
  %vm617 = vcmp.ge.s32.totalorder %v494, 4294967295
  %vm618 = vcmp.lt.s32.totalorder %v487, 63
  %vm619 = vcmp.lt.s32.totalorder %v488, 63
  %vm620 = vcmp.lt.s32.totalorder %v489, 63
  %vm621 = vcmp.lt.s32.totalorder %v490, 63
  %vm622 = vcmp.lt.s32.totalorder %v491, 63
  %vm623 = vcmp.lt.s32.totalorder %v492, 63
  %vm624 = vcmp.lt.s32.totalorder %v493, 63
  %vm625 = vcmp.lt.s32.totalorder %v494, 63
  %vm626 = vmand %vm610, %vm618
  %vm627 = vmand %vm611, %vm619
  %vm628 = vmand %vm612, %vm620
  %vm629 = vmand %vm613, %vm621
  %vm630 = vmand %vm614, %vm622
  %vm631 = vmand %vm615, %vm623
  %vm632 = vmand %vm616, %vm624
  %vm633 = vmand %vm617, %vm625
  %v634 = vsel %vm626, %v608, 0.0
  %v635 = vsel %vm627, %v607, 0.0
  %v636 = vsel %vm628, %v606, 0.0
  %v637 = vsel %vm629, %v605, 0.0
  %v638 = vsel %vm630, %v604, 0.0
  %v639 = vsel %vm631, %v603, 0.0
  %v640 = vsel %vm632, %v602, 0.0
  %v641 = vsel %vm633, %v609, 0.0
  %v642 = vrot.slane %v168, 2
  %v643 = vrot.slane %v169, 2
  %v644 = vrot.slane %v170, 2
  %v645 = vrot.slane %v171, 2
  %v646 = vrot.slane %v172, 2
  %v647 = vrot.slane %v173, 2
  %v648 = vrot.slane %v174, 2
  %v649 = vrot.slane %v175, 2
  %vm650 = vcmp.lt.s32.totalorder %v487, 6
  %v651 = vsel %vm650, %v648, %v649
  %v652 = vsel %vm650, %v647, %v648
  %v653 = vsel %vm650, %v646, %v647
  %v654 = vsel %vm650, %v645, %v646
  %v655 = vsel %vm650, %v644, %v645
  %v656 = vsel %vm650, %v643, %v644
  %v657 = vsel %vm650, %v642, %v643
  %v658 = vsel %vm650, %v649, %v642
  %vm659 = vcmp.ge.s32.totalorder %v487, 4294967294
  %vm660 = vcmp.ge.s32.totalorder %v488, 4294967294
  %vm661 = vcmp.ge.s32.totalorder %v489, 4294967294
  %vm662 = vcmp.ge.s32.totalorder %v490, 4294967294
  %vm663 = vcmp.ge.s32.totalorder %v491, 4294967294
  %vm664 = vcmp.ge.s32.totalorder %v492, 4294967294
  %vm665 = vcmp.ge.s32.totalorder %v493, 4294967294
  %vm666 = vcmp.ge.s32.totalorder %v494, 4294967294
  %vm667 = vcmp.lt.s32.totalorder %v487, 62
  %vm668 = vcmp.lt.s32.totalorder %v488, 62
  %vm669 = vcmp.lt.s32.totalorder %v489, 62
  %vm670 = vcmp.lt.s32.totalorder %v490, 62
  %vm671 = vcmp.lt.s32.totalorder %v491, 62
  %vm672 = vcmp.lt.s32.totalorder %v492, 62
  %vm673 = vcmp.lt.s32.totalorder %v493, 62
  %vm674 = vcmp.lt.s32.totalorder %v494, 62
  %vm675 = vmand %vm659, %vm667
  %vm676 = vmand %vm660, %vm668
  %vm677 = vmand %vm661, %vm669
  %vm678 = vmand %vm662, %vm670
  %vm679 = vmand %vm663, %vm671
  %vm680 = vmand %vm664, %vm672
  %vm681 = vmand %vm665, %vm673
  %vm682 = vmand %vm666, %vm674
  %v683 = vsel %vm675, %v657, 0.0
  %v684 = vsel %vm676, %v656, 0.0
  %v685 = vsel %vm677, %v655, 0.0
  %v686 = vsel %vm678, %v654, 0.0
  %v687 = vsel %vm679, %v653, 0.0
  %v688 = vsel %vm680, %v652, 0.0
  %v689 = vsel %vm681, %v651, 0.0
  %v690 = vsel %vm682, %v658, 0.0
  %v692 = vlaneseq
  %v693 = vshrl.u32 %v692, 7
  %v694 = vsub.s32 0, %v693
  %v695 = vrot.slane %v485, %v694
  %697 = vmatprep.subr.mxu0 0.0
  %698 = vmatpush1.msra.mxu0 %v405
  %699 = vmatprep.subr.mxu0 0.0
  %700 = vmatpush1.msra.mxu0 %v406
  %701 = vmatprep.subr.mxu0 0.0
  %702 = vmatpush1.msra.mxu0 %v407
  %703 = vmatprep.subr.mxu0 0.0
  %704 = vmatpush1.msra.mxu0 %v408
  %705 = vmatprep.subr.mxu0 0.0
  %706 = vmatpush1.msra.mxu0 %v409
  %707 = vmatprep.subr.mxu0 0.0
  %708 = vmatpush1.msra.mxu0 %v410
  %709 = vmatprep.subr.mxu0 0.0
  %710 = vmatpush1.msra.mxu0 %v411
  %711 = vmatprep.subr.mxu0 0.0
  %712 = vmatpush1.msra.mxu0 %v412
  %713 = vmatprep.subr.mxu0 0.0
  %714 = vmatpush1.msra.mxu0 %v413
  %715 = vmatprep.subr.mxu0 0.0
  %716 = vmatpush1.msra.mxu0 %v414
  %717 = vmatprep.subr.mxu0 0.0
  %718 = vmatpush1.msra.mxu0 %v415
  %719 = vmatprep.subr.mxu0 0.0
  %720 = vmatpush1.msra.mxu0 %v416
  %721 = vmatprep.subr.mxu0 0.0
  %722 = vmatpush1.msra.mxu0 %v417
  %723 = vmatprep.subr.mxu0 0.0
  %724 = vmatpush1.msra.mxu0 %v418
  %725 = vmatprep.subr.mxu0 0.0
  %726 = vmatpush1.msra.mxu0 %v419
  %727 = vmatprep.subr.mxu0 0.0
  %728 = vmatpush1.msra.mxu0 %v420
  %729 = vmatprep.subr.mxu0 0.0
  %730 = vmatpush1.msra.mxu0 %v421
  %731 = vmatprep.subr.mxu0 0.0
  %732 = vmatpush1.msra.mxu0 %v422
  %733 = vmatprep.subr.mxu0 0.0
  %734 = vmatpush1.msra.mxu0 %v423
  %735 = vmatprep.subr.mxu0 0.0
  %736 = vmatpush1.msra.mxu0 %v424
  %737 = vmatprep.subr.mxu0 0.0
  %738 = vmatpush1.msra.mxu0 %v425
  %739 = vmatprep.subr.mxu0 0.0
  %740 = vmatpush1.msra.mxu0 %v426
  %741 = vmatprep.subr.mxu0 0.0
  %742 = vmatpush1.msra.mxu0 %v427
  %743 = vmatprep.subr.mxu0 0.0
  %744 = vmatpush1.msra.mxu0 %v428
  %745 = vmatprep.subr.mxu0 0.0
  %746 = vmatpush1.msra.mxu0 %v429
  %747 = vmatprep.subr.mxu0 0.0
  %748 = vmatpush1.msra.mxu0 %v430
  %749 = vmatprep.subr.mxu0 0.0
  %750 = vmatpush1.msra.mxu0 %v431
  %751 = vmatprep.subr.mxu0 0.0
  %752 = vmatpush1.msra.mxu0 %v432
  %753 = vmatprep.subr.mxu0 0.0
  %754 = vmatpush1.msra.mxu0 %v433
  %755 = vmatprep.subr.mxu0 0.0
  %756 = vmatpush1.msra.mxu0 %v434
  %757 = vmatprep.subr.mxu0 0.0
  %758 = vmatpush1.msra.mxu0 %v435
  %759 = vmatprep.subr.mxu0 0.0
  %760 = vmatpush1.msra.mxu0 %v436
  %761 = vmatprep.mubr.f32.mxu0 %v585
  %762 = vmatmul.mubr.f32.gmra.mrb[0].mxu0 %v536
  %v763 = vpop.f32.mrb[0].mxu0
  %v764 = vadd.f32 %v695, %v763
  %v765 = vpop.f32.mrb[0].mxu0
  %766 = vmatprep.mubr.f32.mxu0 %v586
  %767 = vmatmul.mubr.f32.gmra.mrb[0].mxu0 %v537
  %v768 = vpop.f32.mrb[0].mxu0
  %v769 = vadd.f32 %v695, %v768
  %v770 = vpop.f32.mrb[0].mxu0
  %771 = vmatprep.mubr.f32.mxu0 %v587
  %772 = vmatmul.mubr.f32.gmra.mrb[0].mxu0 %v538
  %v773 = vpop.f32.mrb[0].mxu0
  %v774 = vadd.f32 %v695, %v773
  %v775 = vpop.f32.mrb[0].mxu0
  %776 = vmatprep.mubr.f32.mxu0 %v588
  %777 = vmatmul.mubr.f32.gmra.mrb[0].mxu0 %v539
  %v778 = vpop.f32.mrb[0].mxu0
  %v779 = vadd.f32 %v695, %v778
  %v780 = vpop.f32.mrb[0].mxu0
  %781 = vmatprep.mubr.f32.mxu0 %v589
  %782 = vmatmul.mubr.f32.gmra.mrb[0].mxu0 %v540
  %v783 = vpop.f32.mrb[0].mxu0
  %v784 = vadd.f32 %v695, %v783
  %v785 = vpop.f32.mrb[0].mxu0
  %786 = vmatprep.mubr.f32.mxu0 %v590
  %787 = vmatmul.mubr.f32.gmra.mrb[0].mxu0 %v541
  %v788 = vpop.f32.mrb[0].mxu0
  %v789 = vadd.f32 %v695, %v788
  %v790 = vpop.f32.mrb[0].mxu0
  %791 = vmatprep.mubr.f32.mxu0 %v591
  %792 = vmatmul.mubr.f32.gmra.mrb[0].mxu0 %v542
  %v793 = vpop.f32.mrb[0].mxu0
  %v794 = vadd.f32 %v695, %v793
  %v795 = vpop.f32.mrb[0].mxu0
  %796 = vmatprep.mubr.f32.mxu0 %v592
  %797 = vmatmul.mubr.f32.gmra.mrb[0].mxu0 %v543
  %v798 = vpop.f32.mrb[0].mxu0
  %v799 = vadd.f32 %v695, %v798
  %v800 = vpop.f32.mrb[0].mxu0
  %801 = vdwg.mxu0
  %802 = vmatprep.subr.mxu0 0.0
  %803 = vmatpush1.msra.mxu0 %v437
  %804 = vmatprep.subr.mxu0 0.0
  %805 = vmatpush1.msra.mxu0 %v438
  %806 = vmatprep.subr.mxu0 0.0
  %807 = vmatpush1.msra.mxu0 %v439
  %808 = vmatprep.subr.mxu0 0.0
  %809 = vmatpush1.msra.mxu0 %v440
  %810 = vmatprep.subr.mxu0 0.0
  %811 = vmatpush1.msra.mxu0 %v441
  %812 = vmatprep.subr.mxu0 0.0
  %813 = vmatpush1.msra.mxu0 %v442
  %814 = vmatprep.subr.mxu0 0.0
  %815 = vmatpush1.msra.mxu0 %v443
  %816 = vmatprep.subr.mxu0 0.0
  %817 = vmatpush1.msra.mxu0 %v444
  %818 = vmatprep.subr.mxu0 0.0
  %819 = vmatpush1.msra.mxu0 %v445
  %820 = vmatprep.subr.mxu0 0.0
  %821 = vmatpush1.msra.mxu0 %v446
  %822 = vmatprep.subr.mxu0 0.0
  %823 = vmatpush1.msra.mxu0 %v447
  %824 = vmatprep.subr.mxu0 0.0
  %825 = vmatpush1.msra.mxu0 %v448
  %826 = vmatprep.subr.mxu0 0.0
  %827 = vmatpush1.msra.mxu0 %v449
  %828 = vmatprep.subr.mxu0 0.0
  %829 = vmatpush1.msra.mxu0 %v450
  %830 = vmatprep.subr.mxu0 0.0
  %831 = vmatpush1.msra.mxu0 %v451
  %832 = vmatprep.subr.mxu0 0.0
  %833 = vmatpush1.msra.mxu0 %v452
  %834 = vmatprep.subr.mxu0 0.0
  %835 = vmatpush1.msra.mxu0 %v453
  %836 = vmatprep.subr.mxu0 0.0
  %837 = vmatpush1.msra.mxu0 %v454
  %838 = vmatprep.subr.mxu0 0.0
  %839 = vmatpush1.msra.mxu0 %v455
  %840 = vmatprep.subr.mxu0 0.0
  %841 = vmatpush1.msra.mxu0 %v456
  %842 = vmatprep.subr.mxu0 0.0
  %843 = vmatpush1.msra.mxu0 %v457
  %844 = vmatprep.subr.mxu0 0.0
  %845 = vmatpush1.msra.mxu0 %v458
  %846 = vmatprep.subr.mxu0 0.0
  %847 = vmatpush1.msra.mxu0 %v459
  %848 = vmatprep.subr.mxu0 0.0
  %849 = vmatpush1.msra.mxu0 %v460
  %850 = vmatprep.subr.mxu0 0.0
  %851 = vmatpush1.msra.mxu0 %v461
  %852 = vmatprep.subr.mxu0 0.0
  %853 = vmatpush1.msra.mxu0 %v462
  %854 = vmatprep.subr.mxu0 0.0
  %855 = vmatpush1.msra.mxu0 %v463
  %856 = vmatprep.subr.mxu0 0.0
  %857 = vmatpush1.msra.mxu0 %v464
  %858 = vmatprep.subr.mxu0 0.0
  %859 = vmatpush1.msra.mxu0 %v465
  %860 = vmatprep.subr.mxu0 0.0
  %861 = vmatpush1.msra.mxu0 %v466
  %862 = vmatprep.subr.mxu0 0.0
  %863 = vmatpush1.msra.mxu0 %v467
  %864 = vmatprep.subr.mxu0 0.0
  %865 = vmatpush1.msra.mxu0 %v468
  %866 = vmatprep.mubr.f32.mxu0 %v634
  %867 = vmatmul.mubr.f32.gmra.mrb[0].mxu0 %v168
  %v868 = vpop.f32.mrb[0].mxu0
  %v869 = vadd.f32 %v764, %v868
  %v870 = vpop.f32.mrb[0].mxu0
  %871 = vmatprep.mubr.f32.mxu0 %v635
  %872 = vmatmul.mubr.f32.gmra.mrb[0].mxu0 %v169
  %v873 = vpop.f32.mrb[0].mxu0
  %v874 = vadd.f32 %v769, %v873
  %v875 = vpop.f32.mrb[0].mxu0
  %876 = vmatprep.mubr.f32.mxu0 %v636
  %877 = vmatmul.mubr.f32.gmra.mrb[0].mxu0 %v170
  %v878 = vpop.f32.mrb[0].mxu0
  %v879 = vadd.f32 %v774, %v878
  %v880 = vpop.f32.mrb[0].mxu0
  %881 = vmatprep.mubr.f32.mxu0 %v637
  %882 = vmatmul.mubr.f32.gmra.mrb[0].mxu0 %v171
  %v883 = vpop.f32.mrb[0].mxu0
  %v884 = vadd.f32 %v779, %v883
  %v885 = vpop.f32.mrb[0].mxu0
  %886 = vmatprep.mubr.f32.mxu0 %v638
  %887 = vmatmul.mubr.f32.gmra.mrb[0].mxu0 %v172
  %v888 = vpop.f32.mrb[0].mxu0
  %v889 = vadd.f32 %v784, %v888
  %v890 = vpop.f32.mrb[0].mxu0
  %891 = vmatprep.mubr.f32.mxu0 %v639
  %892 = vmatmul.mubr.f32.gmra.mrb[0].mxu0 %v173
  %v893 = vpop.f32.mrb[0].mxu0
  %v894 = vadd.f32 %v789, %v893
  %v895 = vpop.f32.mrb[0].mxu0
  %896 = vmatprep.mubr.f32.mxu0 %v640
  %897 = vmatmul.mubr.f32.gmra.mrb[0].mxu0 %v174
  %v898 = vpop.f32.mrb[0].mxu0
  %v899 = vadd.f32 %v794, %v898
  %v900 = vpop.f32.mrb[0].mxu0
  %901 = vmatprep.mubr.f32.mxu0 %v641
  %902 = vmatmul.mubr.f32.gmra.mrb[0].mxu0 %v175
  %v903 = vpop.f32.mrb[0].mxu0
  %v904 = vadd.f32 %v799, %v903
  %v905 = vpop.f32.mrb[0].mxu0
  %906 = vdwg.mxu0
  %907 = vmatprep.subr.mxu0 0.0
  %908 = vmatpush1.msra.mxu0 %v469
  %909 = vmatprep.subr.mxu0 0.0
  %910 = vmatpush1.msra.mxu0 %v470
  %911 = vmatprep.subr.mxu0 0.0
  %912 = vmatpush1.msra.mxu0 %v471
  %913 = vmatprep.subr.mxu0 0.0
  %914 = vmatpush1.msra.mxu0 %v472
  %915 = vmatprep.subr.mxu0 0.0
  %916 = vmatpush1.msra.mxu0 %v473
  %917 = vmatprep.subr.mxu0 0.0
  %918 = vmatpush1.msra.mxu0 %v474
  %919 = vmatprep.subr.mxu0 0.0
  %920 = vmatpush1.msra.mxu0 %v475
  %921 = vmatprep.subr.mxu0 0.0
  %922 = vmatpush1.msra.mxu0 %v476
  %923 = vmatprep.subr.mxu0 0.0
  %924 = vmatpush1.msra.mxu0 %v477
  %925 = vmatprep.subr.mxu0 0.0
  %926 = vmatpush1.msra.mxu0 %v478
  %927 = vmatprep.subr.mxu0 0.0
  %928 = vmatpush1.msra.mxu0 %v479
  %929 = vmatprep.subr.mxu0 0.0
  %930 = vmatpush1.msra.mxu0 %v480
  %931 = vmatprep.subr.mxu0 0.0
  %932 = vmatpush1.msra.mxu0 %v481
  %933 = vmatprep.subr.mxu0 0.0
  %934 = vmatpush1.msra.mxu0 %v482
  %935 = vmatprep.subr.mxu0 0.0
  %936 = vmatpush1.msra.mxu0 %v483
  %937 = vmatprep.subr.mxu0 0.0
  %938 = vmatpush1.msra.mxu0 %v484
  %939 = vmatprep.subr.mxu0 0.0
  %940 = vmatpush1.msra.mxu0 0.0
  %941 = vmatprep.subr.mxu0 0.0
  %942 = vmatpush1.msra.mxu0 0.0
  %943 = vmatprep.subr.mxu0 0.0
  %944 = vmatpush1.msra.mxu0 0.0
  %945 = vmatprep.subr.mxu0 0.0
  %946 = vmatpush1.msra.mxu0 0.0
  %947 = vmatprep.subr.mxu0 0.0
  %948 = vmatpush1.msra.mxu0 0.0
  %949 = vmatprep.subr.mxu0 0.0
  %950 = vmatpush1.msra.mxu0 0.0
  %951 = vmatprep.subr.mxu0 0.0
  %952 = vmatpush1.msra.mxu0 0.0
  %953 = vmatprep.subr.mxu0 0.0
  %954 = vmatpush1.msra.mxu0 0.0
  %955 = vmatprep.subr.mxu0 0.0
  %956 = vmatpush1.msra.mxu0 0.0
  %957 = vmatprep.subr.mxu0 0.0
  %958 = vmatpush1.msra.mxu0 0.0
  %959 = vmatprep.subr.mxu0 0.0
  %960 = vmatpush1.msra.mxu0 0.0
  %961 = vmatprep.subr.mxu0 0.0
  %962 = vmatpush1.msra.mxu0 0.0
  %963 = vmatprep.subr.mxu0 0.0
  %964 = vmatpush1.msra.mxu0 0.0
  %965 = vmatprep.subr.mxu0 0.0
  %966 = vmatpush1.msra.mxu0 0.0
  %967 = vmatprep.subr.mxu0 0.0
  %968 = vmatpush1.msra.mxu0 0.0
  %969 = vmatprep.subr.mxu0 0.0
  %970 = vmatpush1.msra.mxu0 0.0
  %971 = vmatprep.mubr.f32.mxu0 0.0
  %972 = vmatmul.mubr.f32.gmra.mrb[0].mxu0 %v683
  %v973 = vpop.f32.mrb[0].mxu0
  %v974 = vadd.f32 %v869, %v973
  %v975 = vpop.f32.mrb[0].mxu0
  %976 = vmatprep.mubr.f32.mxu0 0.0
  %977 = vmatmul.mubr.f32.gmra.mrb[0].mxu0 %v684
  %v978 = vpop.f32.mrb[0].mxu0
  %v979 = vadd.f32 %v874, %v978
  %v980 = vpop.f32.mrb[0].mxu0
  %981 = vmatprep.mubr.f32.mxu0 0.0
  %982 = vmatmul.mubr.f32.gmra.mrb[0].mxu0 %v685
  %v983 = vpop.f32.mrb[0].mxu0
  %v984 = vadd.f32 %v879, %v983
  %v985 = vpop.f32.mrb[0].mxu0
  %986 = vmatprep.mubr.f32.mxu0 0.0
  %987 = vmatmul.mubr.f32.gmra.mrb[0].mxu0 %v686
  %v988 = vpop.f32.mrb[0].mxu0
  %v989 = vadd.f32 %v884, %v988
  %v990 = vpop.f32.mrb[0].mxu0
  %991 = vmatprep.mubr.f32.mxu0 0.0
  %992 = vmatmul.mubr.f32.gmra.mrb[0].mxu0 %v687
  %v993 = vpop.f32.mrb[0].mxu0
  %v994 = vadd.f32 %v889, %v993
  %v995 = vpop.f32.mrb[0].mxu0
  %996 = vmatprep.mubr.f32.mxu0 0.0
  %997 = vmatmul.mubr.f32.gmra.mrb[0].mxu0 %v688
  %v998 = vpop.f32.mrb[0].mxu0
  %v999 = vadd.f32 %v894, %v998
  %v1000 = vpop.f32.mrb[0].mxu0
  %1001 = vmatprep.mubr.f32.mxu0 0.0
  %1002 = vmatmul.mubr.f32.gmra.mrb[0].mxu0 %v689
  %v1003 = vpop.f32.mrb[0].mxu0
  %v1004 = vadd.f32 %v899, %v1003
  %v1005 = vpop.f32.mrb[0].mxu0
  %1006 = vmatprep.mubr.f32.mxu0 0.0
  %1007 = vmatmul.mubr.f32.gmra.mrb[0].mxu0 %v690
  %v1008 = vpop.f32.mrb[0].mxu0
  %v1009 = vadd.f32 %v904, %v1008
  %v1010 = vpop.f32.mrb[0].mxu0
  %1011 = vdwg.mxu0
  %v1012 = vld [vmem:[%s5] sm:$0x1]
  %v1013 = vld [vmem:[%s6] sm:$0x1]
  %v1014 = vsel %vm306, %v974, 0.0
  %v1015 = vsel %vm306, %v979, 0.0
  %v1016 = vadd.f32 %v1014, %v1015
  %v1017 = vsel %vm306, %v984, 0.0
  %v1018 = vadd.f32 %v1016, %v1017
  %v1019 = vsel %vm306, %v989, 0.0
  %v1020 = vadd.f32 %v1018, %v1019
  %v1021 = vsel %vm306, %v994, 0.0
  %v1022 = vadd.f32 %v1020, %v1021
  %v1023 = vsel %vm306, %v999, 0.0
  %v1024 = vadd.f32 %v1022, %v1023
  %v1025 = vsel %vm306, %v1004, 0.0
  %v1026 = vadd.f32 %v1024, %v1025
  %v1027 = vsel %vm306, %v1009, 0.0
  %v1028 = vadd.f32 %v1026, %v1027
  %v1029 = vrot.slane %v1028, 4
  %v1030 = vadd.f32 %v1028, %v1029
  %v1031 = vrot.slane %v1030, 2
  %v1032 = vadd.f32 %v1030, %v1031
  %v1033 = vrot.slane %v1032, 1
  %v1034 = vadd.f32 %v1032, %v1033
  %v1035 = vmul.f32 %v1034, 0.015625
  %v1036 = vsub.f32 %v974, %v1035
  %v1037 = vsub.f32 %v979, %v1035
  %v1038 = vsub.f32 %v984, %v1035
  %v1039 = vsub.f32 %v989, %v1035
  %v1040 = vsub.f32 %v994, %v1035
  %v1041 = vsub.f32 %v999, %v1035
  %v1042 = vsub.f32 %v1004, %v1035
  %v1043 = vsub.f32 %v1009, %v1035
  %v1044 = vmul.f32 %v1036, %v1036
  %v1045 = vmul.f32 %v1037, %v1037
  %v1046 = vmul.f32 %v1038, %v1038
  %v1047 = vmul.f32 %v1039, %v1039
  %v1048 = vmul.f32 %v1040, %v1040
  %v1049 = vmul.f32 %v1041, %v1041
  %v1050 = vmul.f32 %v1042, %v1042
  %v1051 = vmul.f32 %v1043, %v1043
  %v1052 = vsel %vm306, %v1044, 0.0
  %v1053 = vsel %vm306, %v1045, 0.0
  %v1054 = vadd.f32 %v1052, %v1053
  %v1055 = vsel %vm306, %v1046, 0.0
  %v1056 = vadd.f32 %v1054, %v1055
  %v1057 = vsel %vm306, %v1047, 0.0
  %v1058 = vadd.f32 %v1056, %v1057
  %v1059 = vsel %vm306, %v1048, 0.0
  %v1060 = vadd.f32 %v1058, %v1059
  %v1061 = vsel %vm306, %v1049, 0.0
  %v1062 = vadd.f32 %v1060, %v1061
  %v1063 = vsel %vm306, %v1050, 0.0
  %v1064 = vadd.f32 %v1062, %v1063
  %v1065 = vsel %vm306, %v1051, 0.0
  %v1066 = vadd.f32 %v1064, %v1065
  %v1067 = vrot.slane %v1066, 4
  %v1068 = vadd.f32 %v1066, %v1067
  %v1069 = vrot.slane %v1068, 2
  %v1070 = vadd.f32 %v1068, %v1069
  %v1071 = vrot.slane %v1070, 1
  %v1072 = vadd.f32 %v1070, %v1071
  %v1073 = vmul.f32 %v1072, 0.015625
  %v1074 = vadd.f32 %v1073, 1e-05
  %v1075 = vrsqrt.pop %v1074
  %v1076 = vmul.f32 %v1036, %v1075
  %v1077 = vmul.f32 %v1037, %v1075
  %v1078 = vmul.f32 %v1038, %v1075
  %v1079 = vmul.f32 %v1039, %v1075
  %v1080 = vmul.f32 %v1040, %v1075
  %v1081 = vmul.f32 %v1041, %v1075
  %v1082 = vmul.f32 %v1042, %v1075
  %v1083 = vmul.f32 %v1043, %v1075
  %v1085 = vlaneseq
  %v1086 = vshrl.u32 %v1085, 7
  %v1087 = vsub.s32 0, %v1086
  %v1088 = vrot.slane %v1012, %v1087
  %v1090 = vmul.f32 %v1088, %v1076
  %v1091 = vmul.f32 %v1088, %v1077
  %v1092 = vmul.f32 %v1088, %v1078
  %v1093 = vmul.f32 %v1088, %v1079
  %v1094 = vmul.f32 %v1088, %v1080
  %v1095 = vmul.f32 %v1088, %v1081
  %v1096 = vmul.f32 %v1088, %v1082
  %v1097 = vmul.f32 %v1088, %v1083
  %v1099 = vlaneseq
  %v1100 = vshrl.u32 %v1099, 7
  %v1101 = vsub.s32 0, %v1100
  %v1102 = vrot.slane %v1013, %v1101
  %v1104 = vadd.f32 %v1090, %v1102
  %v1105 = vadd.f32 %v1091, %v1102
  %v1106 = vadd.f32 %v1092, %v1102
  %v1107 = vadd.f32 %v1093, %v1102
  %v1108 = vadd.f32 %v1094, %v1102
  %v1109 = vadd.f32 %v1095, %v1102
  %v1110 = vadd.f32 %v1096, %v1102
  %v1111 = vadd.f32 %v1097, %v1102
  %v1112 = vtanh.pop %v1104
  %v1113 = vtanh.pop %v1105
  %v1114 = vtanh.pop %v1106
  %v1115 = vtanh.pop %v1107
  %v1116 = vtanh.pop %v1108
  %v1117 = vtanh.pop %v1109
  %v1118 = vtanh.pop %v1110
  %v1119 = vtanh.pop %v1111
  %v1120 = vld [vmem:[%s7] sm:$0xff]
  %v1121 = vld [vmem:[%s7 + $0x8] sm:$0xff]
  %v1122 = vld [vmem:[%s7 + $0x10] sm:$0xff]
  %v1123 = vld [vmem:[%s7 + $0x18] sm:$0xff]
  %v1124 = vld [vmem:[%s7 + $0x20] sm:$0xff]
  %v1125 = vld [vmem:[%s7 + $0x28] sm:$0xff]
  %v1126 = vld [vmem:[%s7 + $0x30] sm:$0xff]
  %v1127 = vld [vmem:[%s7 + $0x38] sm:$0xff]
  %v1128 = vld [vmem:[%s7 + $0x40] sm:$0xff]
  %v1129 = vld [vmem:[%s7 + $0x48] sm:$0xff]
  %v1130 = vld [vmem:[%s7 + $0x50] sm:$0xff]
  %v1131 = vld [vmem:[%s7 + $0x58] sm:$0xff]
  %v1132 = vld [vmem:[%s7 + $0x60] sm:$0xff]
  %v1133 = vld [vmem:[%s7 + $0x68] sm:$0xff]
  %v1134 = vld [vmem:[%s7 + $0x70] sm:$0xff]
  %v1135 = vld [vmem:[%s7 + $0x78] sm:$0xff]
  %v1136 = vld [vmem:[%s7 + $0x80] sm:$0xff]
  %v1137 = vld [vmem:[%s7 + $0x88] sm:$0xff]
  %v1138 = vld [vmem:[%s7 + $0x90] sm:$0xff]
  %v1139 = vld [vmem:[%s7 + $0x98] sm:$0xff]
  %v1140 = vld [vmem:[%s7 + $0xa0] sm:$0xff]
  %v1141 = vld [vmem:[%s7 + $0xa8] sm:$0xff]
  %v1142 = vld [vmem:[%s7 + $0xb0] sm:$0xff]
  %v1143 = vld [vmem:[%s7 + $0xb8] sm:$0xff]
  %v1144 = vld [vmem:[%s7 + $0xc0] sm:$0xff]
  %v1145 = vld [vmem:[%s7 + $0xc8] sm:$0xff]
  %v1146 = vld [vmem:[%s7 + $0xd0] sm:$0xff]
  %v1147 = vld [vmem:[%s7 + $0xd8] sm:$0xff]
  %v1148 = vld [vmem:[%s7 + $0xe0] sm:$0xff]
  %v1149 = vld [vmem:[%s7 + $0xe8] sm:$0xff]
  %v1150 = vld [vmem:[%s7 + $0xf0] sm:$0xff]
  %v1151 = vld [vmem:[%s7 + $0xf8] sm:$0xff]
  %v1152 = vld [vmem:[%s7 + $0x100] sm:$0xff]
  %v1153 = vld [vmem:[%s7 + $0x108] sm:$0xff]
  %v1154 = vld [vmem:[%s7 + $0x110] sm:$0xff]
  %v1155 = vld [vmem:[%s7 + $0x118] sm:$0xff]
  %v1156 = vld [vmem:[%s7 + $0x120] sm:$0xff]
  %v1157 = vld [vmem:[%s7 + $0x128] sm:$0xff]
  %v1158 = vld [vmem:[%s7 + $0x130] sm:$0xff]
  %v1159 = vld [vmem:[%s7 + $0x138] sm:$0xff]
  %v1160 = vld [vmem:[%s8] sm:$0x1]
  %v1161 = vrot.slane %v1112, 6
  %v1162 = vrot.slane %v1113, 6
  %v1163 = vrot.slane %v1114, 6
  %v1164 = vrot.slane %v1115, 6
  %v1165 = vrot.slane %v1116, 6
  %v1166 = vrot.slane %v1117, 6
  %v1167 = vrot.slane %v1118, 6
  %v1168 = vrot.slane %v1119, 6
  %v1169 = vsel %vm503, %v1167, %v1168
  %v1170 = vsel %vm503, %v1166, %v1167
  %v1171 = vsel %vm503, %v1165, %v1166
  %v1172 = vsel %vm503, %v1164, %v1165
  %v1173 = vsel %vm503, %v1163, %v1164
  %v1174 = vsel %vm503, %v1162, %v1163
  %v1175 = vsel %vm503, %v1161, %v1162
  %v1176 = vsel %vm503, %v1168, %v1161
  %v1177 = vsel %vm528, %v1176, 0.0
  %v1178 = vsel %vm529, %v1175, 0.0
  %v1179 = vsel %vm530, %v1174, 0.0
  %v1180 = vsel %vm531, %v1173, 0.0
  %v1181 = vsel %vm532, %v1172, 0.0
  %v1182 = vsel %vm533, %v1171, 0.0
  %v1183 = vsel %vm534, %v1170, 0.0
  %v1184 = vsel %vm535, %v1169, 0.0
  %v1185 = vrot.slane %v1112, 7
  %v1186 = vrot.slane %v1113, 7
  %v1187 = vrot.slane %v1114, 7
  %v1188 = vrot.slane %v1115, 7
  %v1189 = vrot.slane %v1116, 7
  %v1190 = vrot.slane %v1117, 7
  %v1191 = vrot.slane %v1118, 7
  %v1192 = vrot.slane %v1119, 7
  %v1193 = vsel %vm552, %v1191, %v1192
  %v1194 = vsel %vm552, %v1190, %v1191
  %v1195 = vsel %vm552, %v1189, %v1190
  %v1196 = vsel %vm552, %v1188, %v1189
  %v1197 = vsel %vm552, %v1187, %v1188
  %v1198 = vsel %vm552, %v1186, %v1187
  %v1199 = vsel %vm552, %v1185, %v1186
  %v1200 = vsel %vm552, %v1192, %v1185
  %v1201 = vsel %vm577, %v1200, 0.0
  %v1202 = vsel %vm578, %v1199, 0.0
  %v1203 = vsel %vm579, %v1198, 0.0
  %v1204 = vsel %vm580, %v1197, 0.0
  %v1205 = vsel %vm581, %v1196, 0.0
  %v1206 = vsel %vm582, %v1195, 0.0
  %v1207 = vsel %vm583, %v1194, 0.0
  %v1208 = vsel %vm584, %v1193, 0.0
  %v1209 = vrot.slane %v1112, 1
  %v1210 = vrot.slane %v1113, 1
  %v1211 = vrot.slane %v1114, 1
  %v1212 = vrot.slane %v1115, 1
  %v1213 = vrot.slane %v1116, 1
  %v1214 = vrot.slane %v1117, 1
  %v1215 = vrot.slane %v1118, 1
  %v1216 = vrot.slane %v1119, 1
  %v1217 = vsel %vm601, %v1215, %v1216
  %v1218 = vsel %vm601, %v1214, %v1215
  %v1219 = vsel %vm601, %v1213, %v1214
  %v1220 = vsel %vm601, %v1212, %v1213
  %v1221 = vsel %vm601, %v1211, %v1212
  %v1222 = vsel %vm601, %v1210, %v1211
  %v1223 = vsel %vm601, %v1209, %v1210
  %v1224 = vsel %vm601, %v1216, %v1209
  %v1225 = vsel %vm626, %v1223, 0.0
  %v1226 = vsel %vm627, %v1222, 0.0
  %v1227 = vsel %vm628, %v1221, 0.0
  %v1228 = vsel %vm629, %v1220, 0.0
  %v1229 = vsel %vm630, %v1219, 0.0
  %v1230 = vsel %vm631, %v1218, 0.0
  %v1231 = vsel %vm632, %v1217, 0.0
  %v1232 = vsel %vm633, %v1224, 0.0
  %v1233 = vrot.slane %v1112, 2
  %v1234 = vrot.slane %v1113, 2
  %v1235 = vrot.slane %v1114, 2
  %v1236 = vrot.slane %v1115, 2
  %v1237 = vrot.slane %v1116, 2
  %v1238 = vrot.slane %v1117, 2
  %v1239 = vrot.slane %v1118, 2
  %v1240 = vrot.slane %v1119, 2
  %v1241 = vsel %vm650, %v1239, %v1240
  %v1242 = vsel %vm650, %v1238, %v1239
  %v1243 = vsel %vm650, %v1237, %v1238
  %v1244 = vsel %vm650, %v1236, %v1237
  %v1245 = vsel %vm650, %v1235, %v1236
  %v1246 = vsel %vm650, %v1234, %v1235
  %v1247 = vsel %vm650, %v1233, %v1234
  %v1248 = vsel %vm650, %v1240, %v1233
  %v1249 = vsel %vm675, %v1247, 0.0
  %v1250 = vsel %vm676, %v1246, 0.0
  %v1251 = vsel %vm677, %v1245, 0.0
  %v1252 = vsel %vm678, %v1244, 0.0
  %v1253 = vsel %vm679, %v1243, 0.0
  %v1254 = vsel %vm680, %v1242, 0.0
  %v1255 = vsel %vm681, %v1241, 0.0
  %v1256 = vsel %vm682, %v1248, 0.0
  %1265 = vrot.lane.b32.xlu0 %v1201, 64
  %v1266 = vpop.permute.xlu0 %1265
  %1267 = vrot.lane.b32.xlu0 %v1202, 64
  %v1268 = vpop.permute.xlu0 %1267
  %1269 = vrot.lane.b32.xlu0 %v1203, 64
  %v1270 = vpop.permute.xlu0 %1269
  %1271 = vrot.lane.b32.xlu0 %v1204, 64
  %v1272 = vpop.permute.xlu0 %1271
  %1273 = vrot.lane.b32.xlu0 %v1205, 64
  %v1274 = vpop.permute.xlu0 %1273
  %1275 = vrot.lane.b32.xlu0 %v1206, 64
  %v1276 = vpop.permute.xlu0 %1275
  %1277 = vrot.lane.b32.xlu0 %v1207, 64
  %v1278 = vpop.permute.xlu0 %1277
  %1279 = vrot.lane.b32.xlu0 %v1208, 64
  %v1280 = vpop.permute.xlu0 %1279
  %1297 = vrot.lane.b32.xlu0 %v1225, 64
  %v1298 = vpop.permute.xlu0 %1297
  %1299 = vrot.lane.b32.xlu0 %v1226, 64
  %v1300 = vpop.permute.xlu0 %1299
  %1301 = vrot.lane.b32.xlu0 %v1227, 64
  %v1302 = vpop.permute.xlu0 %1301
  %1303 = vrot.lane.b32.xlu0 %v1228, 64
  %v1304 = vpop.permute.xlu0 %1303
  %1305 = vrot.lane.b32.xlu0 %v1229, 64
  %v1306 = vpop.permute.xlu0 %1305
  %1307 = vrot.lane.b32.xlu0 %v1230, 64
  %v1308 = vpop.permute.xlu0 %1307
  %1309 = vrot.lane.b32.xlu0 %v1231, 64
  %v1310 = vpop.permute.xlu0 %1309
  %1311 = vrot.lane.b32.xlu0 %v1232, 64
  %v1312 = vpop.permute.xlu0 %1311
  %v1321 = vsel %vm306, %v1177, %v1266
  %v1322 = vsel %vm306, %v1178, %v1268
  %v1323 = vsel %vm306, %v1179, %v1270
  %v1324 = vsel %vm306, %v1180, %v1272
  %v1325 = vsel %vm306, %v1181, %v1274
  %v1326 = vsel %vm306, %v1182, %v1276
  %v1327 = vsel %vm306, %v1183, %v1278
  %v1328 = vsel %vm306, %v1184, %v1280
  %v1329 = vsel %vm306, %v1112, %v1298
  %v1330 = vsel %vm306, %v1113, %v1300
  %v1331 = vsel %vm306, %v1114, %v1302
  %v1332 = vsel %vm306, %v1115, %v1304
  %v1333 = vsel %vm306, %v1116, %v1306
  %v1334 = vsel %vm306, %v1117, %v1308
  %v1335 = vsel %vm306, %v1118, %v1310
  %v1336 = vsel %vm306, %v1119, %v1312
  %v1338 = vlaneseq
  %v1339 = vshrl.u32 %v1338, 7
  %v1340 = vsub.s32 0, %v1339
  %v1341 = vrot.slane %v1160, %v1340
  %v1344 = vsel %vm306, %v1249, 0
  %v1347 = vsel %vm306, %v1250, 0
  %v1350 = vsel %vm306, %v1251, 0
  %v1353 = vsel %vm306, %v1252, 0
  %v1356 = vsel %vm306, %v1253, 0
  %v1359 = vsel %vm306, %v1254, 0
  %v1362 = vsel %vm306, %v1255, 0
  %v1365 = vsel %vm306, %v1256, 0
  %1367 = vmatprep.subr.mxu0 0.0
  %1368 = vmatpush1.msra.mxu0 %v1120
  %1369 = vmatprep.subr.mxu0 0.0
  %1370 = vmatpush1.msra.mxu0 %v1121
  %1371 = vmatprep.subr.mxu0 0.0
  %1372 = vmatpush1.msra.mxu0 %v1122
  %1373 = vmatprep.subr.mxu0 0.0
  %1374 = vmatpush1.msra.mxu0 %v1123
  %1375 = vmatprep.subr.mxu0 0.0
  %1376 = vmatpush1.msra.mxu0 %v1124
  %1377 = vmatprep.subr.mxu0 0.0
  %1378 = vmatpush1.msra.mxu0 %v1125
  %1379 = vmatprep.subr.mxu0 0.0
  %1380 = vmatpush1.msra.mxu0 %v1126
  %1381 = vmatprep.subr.mxu0 0.0
  %1382 = vmatpush1.msra.mxu0 %v1127
  %1383 = vmatprep.subr.mxu0 0.0
  %1384 = vmatpush1.msra.mxu0 %v1128
  %1385 = vmatprep.subr.mxu0 0.0
  %1386 = vmatpush1.msra.mxu0 %v1129
  %1387 = vmatprep.subr.mxu0 0.0
  %1388 = vmatpush1.msra.mxu0 %v1130
  %1389 = vmatprep.subr.mxu0 0.0
  %1390 = vmatpush1.msra.mxu0 %v1131
  %1391 = vmatprep.subr.mxu0 0.0
  %1392 = vmatpush1.msra.mxu0 %v1132
  %1393 = vmatprep.subr.mxu0 0.0
  %1394 = vmatpush1.msra.mxu0 %v1133
  %1395 = vmatprep.subr.mxu0 0.0
  %1396 = vmatpush1.msra.mxu0 %v1134
  %1397 = vmatprep.subr.mxu0 0.0
  %1398 = vmatpush1.msra.mxu0 %v1135
  %1399 = vmatprep.subr.mxu0 0.0
  %1400 = vmatpush1.msra.mxu0 %v1136
  %1401 = vmatprep.subr.mxu0 0.0
  %1402 = vmatpush1.msra.mxu0 %v1137
  %1403 = vmatprep.subr.mxu0 0.0
  %1404 = vmatpush1.msra.mxu0 %v1138
  %1405 = vmatprep.subr.mxu0 0.0
  %1406 = vmatpush1.msra.mxu0 %v1139
  %1407 = vmatprep.subr.mxu0 0.0
  %1408 = vmatpush1.msra.mxu0 %v1140
  %1409 = vmatprep.subr.mxu0 0.0
  %1410 = vmatpush1.msra.mxu0 %v1141
  %1411 = vmatprep.subr.mxu0 0.0
  %1412 = vmatpush1.msra.mxu0 %v1142
  %1413 = vmatprep.subr.mxu0 0.0
  %1414 = vmatpush1.msra.mxu0 %v1143
  %1415 = vmatprep.subr.mxu0 0.0
  %1416 = vmatpush1.msra.mxu0 %v1144
  %1417 = vmatprep.subr.mxu0 0.0
  %1418 = vmatpush1.msra.mxu0 %v1145
  %1419 = vmatprep.subr.mxu0 0.0
  %1420 = vmatpush1.msra.mxu0 %v1146
  %1421 = vmatprep.subr.mxu0 0.0
  %1422 = vmatpush1.msra.mxu0 %v1147
  %1423 = vmatprep.subr.mxu0 0.0
  %1424 = vmatpush1.msra.mxu0 %v1148
  %1425 = vmatprep.subr.mxu0 0.0
  %1426 = vmatpush1.msra.mxu0 %v1149
  %1427 = vmatprep.subr.mxu0 0.0
  %1428 = vmatpush1.msra.mxu0 %v1150
  %1429 = vmatprep.subr.mxu0 0.0
  %1430 = vmatpush1.msra.mxu0 %v1151
  %1431 = vmatprep.mubr.f32.mxu0 %v1329
  %1432 = vmatmul.mubr.f32.gmra.mrb[0].mxu0 %v1321
  %v1433 = vpop.f32.mrb[0].mxu0
  %v1434 = vadd.f32 %v1341, %v1433
  %v1435 = vpop.f32.mrb[0].mxu0
  %1436 = vmatprep.mubr.f32.mxu0 %v1330
  %1437 = vmatmul.mubr.f32.gmra.mrb[0].mxu0 %v1322
  %v1438 = vpop.f32.mrb[0].mxu0
  %v1439 = vadd.f32 %v1341, %v1438
  %v1440 = vpop.f32.mrb[0].mxu0
  %1441 = vmatprep.mubr.f32.mxu0 %v1331
  %1442 = vmatmul.mubr.f32.gmra.mrb[0].mxu0 %v1323
  %v1443 = vpop.f32.mrb[0].mxu0
  %v1444 = vadd.f32 %v1341, %v1443
  %v1445 = vpop.f32.mrb[0].mxu0
  %1446 = vmatprep.mubr.f32.mxu0 %v1332
  %1447 = vmatmul.mubr.f32.gmra.mrb[0].mxu0 %v1324
  %v1448 = vpop.f32.mrb[0].mxu0
  %v1449 = vadd.f32 %v1341, %v1448
  %v1450 = vpop.f32.mrb[0].mxu0
  %1451 = vmatprep.mubr.f32.mxu0 %v1333
  %1452 = vmatmul.mubr.f32.gmra.mrb[0].mxu0 %v1325
  %v1453 = vpop.f32.mrb[0].mxu0
  %v1454 = vadd.f32 %v1341, %v1453
  %v1455 = vpop.f32.mrb[0].mxu0
  %1456 = vmatprep.mubr.f32.mxu0 %v1334
  %1457 = vmatmul.mubr.f32.gmra.mrb[0].mxu0 %v1326
  %v1458 = vpop.f32.mrb[0].mxu0
  %v1459 = vadd.f32 %v1341, %v1458
  %v1460 = vpop.f32.mrb[0].mxu0
  %1461 = vmatprep.mubr.f32.mxu0 %v1335
  %1462 = vmatmul.mubr.f32.gmra.mrb[0].mxu0 %v1327
  %v1463 = vpop.f32.mrb[0].mxu0
  %v1464 = vadd.f32 %v1341, %v1463
  %v1465 = vpop.f32.mrb[0].mxu0
  %1466 = vmatprep.mubr.f32.mxu0 %v1336
  %1467 = vmatmul.mubr.f32.gmra.mrb[0].mxu0 %v1328
  %v1468 = vpop.f32.mrb[0].mxu0
  %v1469 = vadd.f32 %v1341, %v1468
  %v1470 = vpop.f32.mrb[0].mxu0
  %1471 = vdwg.mxu0
  %1472 = vmatprep.subr.mxu0 0.0
  %1473 = vmatpush1.msra.mxu0 %v1152
  %1474 = vmatprep.subr.mxu0 0.0
  %1475 = vmatpush1.msra.mxu0 %v1153
  %1476 = vmatprep.subr.mxu0 0.0
  %1477 = vmatpush1.msra.mxu0 %v1154
  %1478 = vmatprep.subr.mxu0 0.0
  %1479 = vmatpush1.msra.mxu0 %v1155
  %1480 = vmatprep.subr.mxu0 0.0
  %1481 = vmatpush1.msra.mxu0 %v1156
  %1482 = vmatprep.subr.mxu0 0.0
  %1483 = vmatpush1.msra.mxu0 %v1157
  %1484 = vmatprep.subr.mxu0 0.0
  %1485 = vmatpush1.msra.mxu0 %v1158
  %1486 = vmatprep.subr.mxu0 0.0
  %1487 = vmatpush1.msra.mxu0 %v1159
  %1488 = vmatprep.subr.mxu0 0.0
  %1489 = vmatpush1.msra.mxu0 0.0
  %1490 = vmatprep.subr.mxu0 0.0
  %1491 = vmatpush1.msra.mxu0 0.0
  %1492 = vmatprep.subr.mxu0 0.0
  %1493 = vmatpush1.msra.mxu0 0.0
  %1494 = vmatprep.subr.mxu0 0.0
  %1495 = vmatpush1.msra.mxu0 0.0
  %1496 = vmatprep.subr.mxu0 0.0
  %1497 = vmatpush1.msra.mxu0 0.0
  %1498 = vmatprep.subr.mxu0 0.0
  %1499 = vmatpush1.msra.mxu0 0.0
  %1500 = vmatprep.subr.mxu0 0.0
  %1501 = vmatpush1.msra.mxu0 0.0
  %1502 = vmatprep.subr.mxu0 0.0
  %1503 = vmatpush1.msra.mxu0 0.0
  %1504 = vmatprep.subr.mxu0 0.0
  %1505 = vmatpush1.msra.mxu0 0.0
  %1506 = vmatprep.subr.mxu0 0.0
  %1507 = vmatpush1.msra.mxu0 0.0
  %1508 = vmatprep.subr.mxu0 0.0
  %1509 = vmatpush1.msra.mxu0 0.0
  %1510 = vmatprep.subr.mxu0 0.0
  %1511 = vmatpush1.msra.mxu0 0.0
  %1512 = vmatprep.subr.mxu0 0.0
  %1513 = vmatpush1.msra.mxu0 0.0
  %1514 = vmatprep.subr.mxu0 0.0
  %1515 = vmatpush1.msra.mxu0 0.0
  %1516 = vmatprep.subr.mxu0 0.0
  %1517 = vmatpush1.msra.mxu0 0.0
  %1518 = vmatprep.subr.mxu0 0.0
  %1519 = vmatpush1.msra.mxu0 0.0
  %1520 = vmatprep.subr.mxu0 0.0
  %1521 = vmatpush1.msra.mxu0 0.0
  %1522 = vmatprep.subr.mxu0 0.0
  %1523 = vmatpush1.msra.mxu0 0.0
  %1524 = vmatprep.subr.mxu0 0.0
  %1525 = vmatpush1.msra.mxu0 0.0
  %1526 = vmatprep.subr.mxu0 0.0
  %1527 = vmatpush1.msra.mxu0 0.0
  %1528 = vmatprep.subr.mxu0 0.0
  %1529 = vmatpush1.msra.mxu0 0.0
  %1530 = vmatprep.subr.mxu0 0.0
  %1531 = vmatpush1.msra.mxu0 0.0
  %1532 = vmatprep.subr.mxu0 0.0
  %1533 = vmatpush1.msra.mxu0 0.0
  %1534 = vmatprep.subr.mxu0 0.0
  %1535 = vmatpush1.msra.mxu0 0.0
  %1536 = vmatprep.mubr.f32.mxu0 0.0
  %1537 = vmatmul.mubr.f32.gmra.mrb[0].mxu0 %v1344
  %v1538 = vpop.f32.mrb[0].mxu0
  %v1539 = vadd.f32 %v1434, %v1538
  %v1540 = vpop.f32.mrb[0].mxu0
  %1541 = vmatprep.mubr.f32.mxu0 0.0
  %1542 = vmatmul.mubr.f32.gmra.mrb[0].mxu0 %v1347
  %v1543 = vpop.f32.mrb[0].mxu0
  %v1544 = vadd.f32 %v1439, %v1543
  %v1545 = vpop.f32.mrb[0].mxu0
  %1546 = vmatprep.mubr.f32.mxu0 0.0
  %1547 = vmatmul.mubr.f32.gmra.mrb[0].mxu0 %v1350
  %v1548 = vpop.f32.mrb[0].mxu0
  %v1549 = vadd.f32 %v1444, %v1548
  %v1550 = vpop.f32.mrb[0].mxu0
  %1551 = vmatprep.mubr.f32.mxu0 0.0
  %1552 = vmatmul.mubr.f32.gmra.mrb[0].mxu0 %v1353
  %v1553 = vpop.f32.mrb[0].mxu0
  %v1554 = vadd.f32 %v1449, %v1553
  %v1555 = vpop.f32.mrb[0].mxu0
  %1556 = vmatprep.mubr.f32.mxu0 0.0
  %1557 = vmatmul.mubr.f32.gmra.mrb[0].mxu0 %v1356
  %v1558 = vpop.f32.mrb[0].mxu0
  %v1559 = vadd.f32 %v1454, %v1558
  %v1560 = vpop.f32.mrb[0].mxu0
  %1561 = vmatprep.mubr.f32.mxu0 0.0
  %1562 = vmatmul.mubr.f32.gmra.mrb[0].mxu0 %v1359
  %v1563 = vpop.f32.mrb[0].mxu0
  %v1564 = vadd.f32 %v1459, %v1563
  %v1565 = vpop.f32.mrb[0].mxu0
  %1566 = vmatprep.mubr.f32.mxu0 0.0
  %1567 = vmatmul.mubr.f32.gmra.mrb[0].mxu0 %v1362
  %v1568 = vpop.f32.mrb[0].mxu0
  %v1569 = vadd.f32 %v1464, %v1568
  %v1570 = vpop.f32.mrb[0].mxu0
  %1571 = vmatprep.mubr.f32.mxu0 0.0
  %1572 = vmatmul.mubr.f32.gmra.mrb[0].mxu0 %v1365
  %v1573 = vpop.f32.mrb[0].mxu0
  %v1574 = vadd.f32 %v1469, %v1573
  %v1575 = vpop.f32.mrb[0].mxu0
  %1576 = vdwg.mxu0
  %v1577 = vld [vmem:[%s9] sm:$0x1]
  %v1578 = vld [vmem:[%s10] sm:$0x1]
  %v1579 = vsel %vm306, %v1539, 0.0
  %v1580 = vsel %vm306, %v1544, 0.0
  %v1581 = vadd.f32 %v1579, %v1580
  %v1582 = vsel %vm306, %v1549, 0.0
  %v1583 = vadd.f32 %v1581, %v1582
  %v1584 = vsel %vm306, %v1554, 0.0
  %v1585 = vadd.f32 %v1583, %v1584
  %v1586 = vsel %vm306, %v1559, 0.0
  %v1587 = vadd.f32 %v1585, %v1586
  %v1588 = vsel %vm306, %v1564, 0.0
  %v1589 = vadd.f32 %v1587, %v1588
  %v1590 = vsel %vm306, %v1569, 0.0
  %v1591 = vadd.f32 %v1589, %v1590
  %v1592 = vsel %vm306, %v1574, 0.0
  %v1593 = vadd.f32 %v1591, %v1592
  %v1594 = vrot.slane %v1593, 4
  %v1595 = vadd.f32 %v1593, %v1594
  %v1596 = vrot.slane %v1595, 2
  %v1597 = vadd.f32 %v1595, %v1596
  %v1598 = vrot.slane %v1597, 1
  %v1599 = vadd.f32 %v1597, %v1598
  %v1600 = vmul.f32 %v1599, 0.015625
  %v1601 = vsub.f32 %v1539, %v1600
  %v1602 = vsub.f32 %v1544, %v1600
  %v1603 = vsub.f32 %v1549, %v1600
  %v1604 = vsub.f32 %v1554, %v1600
  %v1605 = vsub.f32 %v1559, %v1600
  %v1606 = vsub.f32 %v1564, %v1600
  %v1607 = vsub.f32 %v1569, %v1600
  %v1608 = vsub.f32 %v1574, %v1600
  %v1609 = vmul.f32 %v1601, %v1601
  %v1610 = vmul.f32 %v1602, %v1602
  %v1611 = vmul.f32 %v1603, %v1603
  %v1612 = vmul.f32 %v1604, %v1604
  %v1613 = vmul.f32 %v1605, %v1605
  %v1614 = vmul.f32 %v1606, %v1606
  %v1615 = vmul.f32 %v1607, %v1607
  %v1616 = vmul.f32 %v1608, %v1608
  %v1617 = vsel %vm306, %v1609, 0.0
  %v1618 = vsel %vm306, %v1610, 0.0
  %v1619 = vadd.f32 %v1617, %v1618
  %v1620 = vsel %vm306, %v1611, 0.0
  %v1621 = vadd.f32 %v1619, %v1620
  %v1622 = vsel %vm306, %v1612, 0.0
  %v1623 = vadd.f32 %v1621, %v1622
  %v1624 = vsel %vm306, %v1613, 0.0
  %v1625 = vadd.f32 %v1623, %v1624
  %v1626 = vsel %vm306, %v1614, 0.0
  %v1627 = vadd.f32 %v1625, %v1626
  %v1628 = vsel %vm306, %v1615, 0.0
  %v1629 = vadd.f32 %v1627, %v1628
  %v1630 = vsel %vm306, %v1616, 0.0
  %v1631 = vadd.f32 %v1629, %v1630
  %v1632 = vrot.slane %v1631, 4
  %v1633 = vadd.f32 %v1631, %v1632
  %v1634 = vrot.slane %v1633, 2
  %v1635 = vadd.f32 %v1633, %v1634
  %v1636 = vrot.slane %v1635, 1
  %v1637 = vadd.f32 %v1635, %v1636
  %v1638 = vmul.f32 %v1637, 0.015625
  %v1639 = vadd.f32 %v1638, 1e-05
  %v1640 = vrsqrt.pop %v1639
  %v1641 = vmul.f32 %v1601, %v1640
  %v1642 = vmul.f32 %v1602, %v1640
  %v1643 = vmul.f32 %v1603, %v1640
  %v1644 = vmul.f32 %v1604, %v1640
  %v1645 = vmul.f32 %v1605, %v1640
  %v1646 = vmul.f32 %v1606, %v1640
  %v1647 = vmul.f32 %v1607, %v1640
  %v1648 = vmul.f32 %v1608, %v1640
  %v1650 = vlaneseq
  %v1651 = vshrl.u32 %v1650, 7
  %v1652 = vsub.s32 0, %v1651
  %v1653 = vrot.slane %v1577, %v1652
  %v1655 = vmul.f32 %v1653, %v1641
  %v1656 = vmul.f32 %v1653, %v1642
  %v1657 = vmul.f32 %v1653, %v1643
  %v1658 = vmul.f32 %v1653, %v1644
  %v1659 = vmul.f32 %v1653, %v1645
  %v1660 = vmul.f32 %v1653, %v1646
  %v1661 = vmul.f32 %v1653, %v1647
  %v1662 = vmul.f32 %v1653, %v1648
  %v1664 = vlaneseq
  %v1665 = vshrl.u32 %v1664, 7
  %v1666 = vsub.s32 0, %v1665
  %v1667 = vrot.slane %v1578, %v1666
  %v1669 = vadd.f32 %v1655, %v1667
  %v1670 = vadd.f32 %v1656, %v1667
  %v1671 = vadd.f32 %v1657, %v1667
  %v1672 = vadd.f32 %v1658, %v1667
  %v1673 = vadd.f32 %v1659, %v1667
  %v1674 = vadd.f32 %v1660, %v1667
  %v1675 = vadd.f32 %v1661, %v1667
  %v1676 = vadd.f32 %v1662, %v1667
  %v1677 = vadd.f32 %v1669, %v397
  %v1678 = vadd.f32 %v1670, %v398
  %v1679 = vadd.f32 %v1671, %v399
  %v1680 = vadd.f32 %v1672, %v400
  %v1681 = vadd.f32 %v1673, %v401
  %v1682 = vadd.f32 %v1674, %v402
  %v1683 = vadd.f32 %v1675, %v403
  %v1684 = vadd.f32 %v1676, %v404
  %v1685 = vld [vmem:[%s15] sm:$0xff]
  %v1686 = vld [vmem:[%s15 + $0x8] sm:$0xff]
  %v1687 = vld [vmem:[%s15 + $0x10] sm:$0xff]
  %v1688 = vld [vmem:[%s15 + $0x18] sm:$0xff]
  %v1689 = vld [vmem:[%s15 + $0x20] sm:$0xff]
  %v1690 = vld [vmem:[%s15 + $0x28] sm:$0xff]
  %v1691 = vld [vmem:[%s15 + $0x30] sm:$0xff]
  %v1692 = vld [vmem:[%s15 + $0x38] sm:$0xff]
  %v1693 = vld [vmem:[%s15 + $0x40] sm:$0xff]
  %v1694 = vld [vmem:[%s15 + $0x48] sm:$0xff]
  %v1695 = vld [vmem:[%s15 + $0x50] sm:$0xff]
  %v1696 = vld [vmem:[%s15 + $0x58] sm:$0xff]
  %v1697 = vld [vmem:[%s15 + $0x60] sm:$0xff]
  %v1698 = vld [vmem:[%s15 + $0x68] sm:$0xff]
  %v1699 = vld [vmem:[%s15 + $0x70] sm:$0xff]
  %v1700 = vld [vmem:[%s15 + $0x78] sm:$0xff]
  %v1701 = vld [vmem:[%s15 + $0x80] sm:$0xff]
  %v1702 = vld [vmem:[%s15 + $0x88] sm:$0xff]
  %v1703 = vld [vmem:[%s15 + $0x90] sm:$0xff]
  %v1704 = vld [vmem:[%s15 + $0x98] sm:$0xff]
  %v1705 = vld [vmem:[%s15 + $0xa0] sm:$0xff]
  %v1706 = vld [vmem:[%s15 + $0xa8] sm:$0xff]
  %v1707 = vld [vmem:[%s15 + $0xb0] sm:$0xff]
  %v1708 = vld [vmem:[%s15 + $0xb8] sm:$0xff]
  %v1709 = vld [vmem:[%s15 + $0xc0] sm:$0xff]
  %v1710 = vld [vmem:[%s15 + $0xc8] sm:$0xff]
  %v1711 = vld [vmem:[%s15 + $0xd0] sm:$0xff]
  %v1712 = vld [vmem:[%s15 + $0xd8] sm:$0xff]
  %v1713 = vld [vmem:[%s15 + $0xe0] sm:$0xff]
  %v1714 = vld [vmem:[%s15 + $0xe8] sm:$0xff]
  %v1715 = vld [vmem:[%s15 + $0xf0] sm:$0xff]
  %v1716 = vld [vmem:[%s15 + $0xf8] sm:$0xff]
  %v1717 = vld [vmem:[%s15 + $0x100] sm:$0xff]
  %v1718 = vld [vmem:[%s15 + $0x108] sm:$0xff]
  %v1719 = vld [vmem:[%s15 + $0x110] sm:$0xff]
  %v1720 = vld [vmem:[%s15 + $0x118] sm:$0xff]
  %v1721 = vld [vmem:[%s15 + $0x120] sm:$0xff]
  %v1722 = vld [vmem:[%s15 + $0x128] sm:$0xff]
  %v1723 = vld [vmem:[%s15 + $0x130] sm:$0xff]
  %v1724 = vld [vmem:[%s15 + $0x138] sm:$0xff]
  %v1725 = vld [vmem:[%s16] sm:$0x1]
  %v1726 = vrot.slane %v1677, 6
  %v1727 = vrot.slane %v1678, 6
  %v1728 = vrot.slane %v1679, 6
  %v1729 = vrot.slane %v1680, 6
  %v1730 = vrot.slane %v1681, 6
  %v1731 = vrot.slane %v1682, 6
  %v1732 = vrot.slane %v1683, 6
  %v1733 = vrot.slane %v1684, 6
  %v1734 = vsel %vm503, %v1732, %v1733
  %v1735 = vsel %vm503, %v1731, %v1732
  %v1736 = vsel %vm503, %v1730, %v1731
  %v1737 = vsel %vm503, %v1729, %v1730
  %v1738 = vsel %vm503, %v1728, %v1729
  %v1739 = vsel %vm503, %v1727, %v1728
  %v1740 = vsel %vm503, %v1726, %v1727
  %v1741 = vsel %vm503, %v1733, %v1726
  %v1742 = vsel %vm528, %v1741, 0.0
  %v1743 = vsel %vm529, %v1740, 0.0
  %v1744 = vsel %vm530, %v1739, 0.0
  %v1745 = vsel %vm531, %v1738, 0.0
  %v1746 = vsel %vm532, %v1737, 0.0
  %v1747 = vsel %vm533, %v1736, 0.0
  %v1748 = vsel %vm534, %v1735, 0.0
  %v1749 = vsel %vm535, %v1734, 0.0
  %v1750 = vrot.slane %v1677, 7
  %v1751 = vrot.slane %v1678, 7
  %v1752 = vrot.slane %v1679, 7
  %v1753 = vrot.slane %v1680, 7
  %v1754 = vrot.slane %v1681, 7
  %v1755 = vrot.slane %v1682, 7
  %v1756 = vrot.slane %v1683, 7
  %v1757 = vrot.slane %v1684, 7
  %v1758 = vsel %vm552, %v1756, %v1757
  %v1759 = vsel %vm552, %v1755, %v1756
  %v1760 = vsel %vm552, %v1754, %v1755
  %v1761 = vsel %vm552, %v1753, %v1754
  %v1762 = vsel %vm552, %v1752, %v1753
  %v1763 = vsel %vm552, %v1751, %v1752
  %v1764 = vsel %vm552, %v1750, %v1751
  %v1765 = vsel %vm552, %v1757, %v1750
  %v1766 = vsel %vm577, %v1765, 0.0
  %v1767 = vsel %vm578, %v1764, 0.0
  %v1768 = vsel %vm579, %v1763, 0.0
  %v1769 = vsel %vm580, %v1762, 0.0
  %v1770 = vsel %vm581, %v1761, 0.0
  %v1771 = vsel %vm582, %v1760, 0.0
  %v1772 = vsel %vm583, %v1759, 0.0
  %v1773 = vsel %vm584, %v1758, 0.0
  %v1774 = vrot.slane %v1677, 1
  %v1775 = vrot.slane %v1678, 1
  %v1776 = vrot.slane %v1679, 1
  %v1777 = vrot.slane %v1680, 1
  %v1778 = vrot.slane %v1681, 1
  %v1779 = vrot.slane %v1682, 1
  %v1780 = vrot.slane %v1683, 1
  %v1781 = vrot.slane %v1684, 1
  %v1782 = vsel %vm601, %v1780, %v1781
  %v1783 = vsel %vm601, %v1779, %v1780
  %v1784 = vsel %vm601, %v1778, %v1779
  %v1785 = vsel %vm601, %v1777, %v1778
  %v1786 = vsel %vm601, %v1776, %v1777
  %v1787 = vsel %vm601, %v1775, %v1776
  %v1788 = vsel %vm601, %v1774, %v1775
  %v1789 = vsel %vm601, %v1781, %v1774
  %v1790 = vsel %vm626, %v1788, 0.0
  %v1791 = vsel %vm627, %v1787, 0.0
  %v1792 = vsel %vm628, %v1786, 0.0
  %v1793 = vsel %vm629, %v1785, 0.0
  %v1794 = vsel %vm630, %v1784, 0.0
  %v1795 = vsel %vm631, %v1783, 0.0
  %v1796 = vsel %vm632, %v1782, 0.0
  %v1797 = vsel %vm633, %v1789, 0.0
  %v1798 = vrot.slane %v1677, 2
  %v1799 = vrot.slane %v1678, 2
  %v1800 = vrot.slane %v1679, 2
  %v1801 = vrot.slane %v1680, 2
  %v1802 = vrot.slane %v1681, 2
  %v1803 = vrot.slane %v1682, 2
  %v1804 = vrot.slane %v1683, 2
  %v1805 = vrot.slane %v1684, 2
  %v1806 = vsel %vm650, %v1804, %v1805
  %v1807 = vsel %vm650, %v1803, %v1804
  %v1808 = vsel %vm650, %v1802, %v1803
  %v1809 = vsel %vm650, %v1801, %v1802
  %v1810 = vsel %vm650, %v1800, %v1801
  %v1811 = vsel %vm650, %v1799, %v1800
  %v1812 = vsel %vm650, %v1798, %v1799
  %v1813 = vsel %vm650, %v1805, %v1798
  %v1814 = vsel %vm675, %v1812, 0.0
  %v1815 = vsel %vm676, %v1811, 0.0
  %v1816 = vsel %vm677, %v1810, 0.0
  %v1817 = vsel %vm678, %v1809, 0.0
  %v1818 = vsel %vm679, %v1808, 0.0
  %v1819 = vsel %vm680, %v1807, 0.0
  %v1820 = vsel %vm681, %v1806, 0.0
  %v1821 = vsel %vm682, %v1813, 0.0
  %1830 = vrot.lane.b32.xlu0 %v1766, 64
  %v1831 = vpop.permute.xlu0 %1830
  %1832 = vrot.lane.b32.xlu0 %v1767, 64
  %v1833 = vpop.permute.xlu0 %1832
  %1834 = vrot.lane.b32.xlu0 %v1768, 64
  %v1835 = vpop.permute.xlu0 %1834
  %1836 = vrot.lane.b32.xlu0 %v1769, 64
  %v1837 = vpop.permute.xlu0 %1836
  %1838 = vrot.lane.b32.xlu0 %v1770, 64
  %v1839 = vpop.permute.xlu0 %1838
  %1840 = vrot.lane.b32.xlu0 %v1771, 64
  %v1841 = vpop.permute.xlu0 %1840
  %1842 = vrot.lane.b32.xlu0 %v1772, 64
  %v1843 = vpop.permute.xlu0 %1842
  %1844 = vrot.lane.b32.xlu0 %v1773, 64
  %v1845 = vpop.permute.xlu0 %1844
  %1862 = vrot.lane.b32.xlu0 %v1790, 64
  %v1863 = vpop.permute.xlu0 %1862
  %1864 = vrot.lane.b32.xlu0 %v1791, 64
  %v1865 = vpop.permute.xlu0 %1864
  %1866 = vrot.lane.b32.xlu0 %v1792, 64
  %v1867 = vpop.permute.xlu0 %1866
  %1868 = vrot.lane.b32.xlu0 %v1793, 64
  %v1869 = vpop.permute.xlu0 %1868
  %1870 = vrot.lane.b32.xlu0 %v1794, 64
  %v1871 = vpop.permute.xlu0 %1870
  %1872 = vrot.lane.b32.xlu0 %v1795, 64
  %v1873 = vpop.permute.xlu0 %1872
  %1874 = vrot.lane.b32.xlu0 %v1796, 64
  %v1875 = vpop.permute.xlu0 %1874
  %1876 = vrot.lane.b32.xlu0 %v1797, 64
  %v1877 = vpop.permute.xlu0 %1876
  %v1886 = vsel %vm306, %v1742, %v1831
  %v1887 = vsel %vm306, %v1743, %v1833
  %v1888 = vsel %vm306, %v1744, %v1835
  %v1889 = vsel %vm306, %v1745, %v1837
  %v1890 = vsel %vm306, %v1746, %v1839
  %v1891 = vsel %vm306, %v1747, %v1841
  %v1892 = vsel %vm306, %v1748, %v1843
  %v1893 = vsel %vm306, %v1749, %v1845
  %v1894 = vsel %vm306, %v1677, %v1863
  %v1895 = vsel %vm306, %v1678, %v1865
  %v1896 = vsel %vm306, %v1679, %v1867
  %v1897 = vsel %vm306, %v1680, %v1869
  %v1898 = vsel %vm306, %v1681, %v1871
  %v1899 = vsel %vm306, %v1682, %v1873
  %v1900 = vsel %vm306, %v1683, %v1875
  %v1901 = vsel %vm306, %v1684, %v1877
  %v1903 = vlaneseq
  %v1904 = vshrl.u32 %v1903, 7
  %v1905 = vsub.s32 0, %v1904
  %v1906 = vrot.slane %v1725, %v1905
  %v1909 = vsel %vm306, %v1814, 0
  %v1912 = vsel %vm306, %v1815, 0
  %v1915 = vsel %vm306, %v1816, 0
  %v1918 = vsel %vm306, %v1817, 0
  %v1921 = vsel %vm306, %v1818, 0
  %v1924 = vsel %vm306, %v1819, 0
  %v1927 = vsel %vm306, %v1820, 0
  %v1930 = vsel %vm306, %v1821, 0
  %1932 = vmatprep.subr.mxu0 0.0
  %1933 = vmatpush1.msra.mxu0 %v1685
  %1934 = vmatprep.subr.mxu0 0.0
  %1935 = vmatpush1.msra.mxu0 %v1686
  %1936 = vmatprep.subr.mxu0 0.0
  %1937 = vmatpush1.msra.mxu0 %v1687
  %1938 = vmatprep.subr.mxu0 0.0
  %1939 = vmatpush1.msra.mxu0 %v1688
  %1940 = vmatprep.subr.mxu0 0.0
  %1941 = vmatpush1.msra.mxu0 %v1689
  %1942 = vmatprep.subr.mxu0 0.0
  %1943 = vmatpush1.msra.mxu0 %v1690
  %1944 = vmatprep.subr.mxu0 0.0
  %1945 = vmatpush1.msra.mxu0 %v1691
  %1946 = vmatprep.subr.mxu0 0.0
  %1947 = vmatpush1.msra.mxu0 %v1692
  %1948 = vmatprep.subr.mxu0 0.0
  %1949 = vmatpush1.msra.mxu0 %v1693
  %1950 = vmatprep.subr.mxu0 0.0
  %1951 = vmatpush1.msra.mxu0 %v1694
  %1952 = vmatprep.subr.mxu0 0.0
  %1953 = vmatpush1.msra.mxu0 %v1695
  %1954 = vmatprep.subr.mxu0 0.0
  %1955 = vmatpush1.msra.mxu0 %v1696
  %1956 = vmatprep.subr.mxu0 0.0
  %1957 = vmatpush1.msra.mxu0 %v1697
  %1958 = vmatprep.subr.mxu0 0.0
  %1959 = vmatpush1.msra.mxu0 %v1698
  %1960 = vmatprep.subr.mxu0 0.0
  %1961 = vmatpush1.msra.mxu0 %v1699
  %1962 = vmatprep.subr.mxu0 0.0
  %1963 = vmatpush1.msra.mxu0 %v1700
  %1964 = vmatprep.subr.mxu0 0.0
  %1965 = vmatpush1.msra.mxu0 %v1701
  %1966 = vmatprep.subr.mxu0 0.0
  %1967 = vmatpush1.msra.mxu0 %v1702
  %1968 = vmatprep.subr.mxu0 0.0
  %1969 = vmatpush1.msra.mxu0 %v1703
  %1970 = vmatprep.subr.mxu0 0.0
  %1971 = vmatpush1.msra.mxu0 %v1704
  %1972 = vmatprep.subr.mxu0 0.0
  %1973 = vmatpush1.msra.mxu0 %v1705
  %1974 = vmatprep.subr.mxu0 0.0
  %1975 = vmatpush1.msra.mxu0 %v1706
  %1976 = vmatprep.subr.mxu0 0.0
  %1977 = vmatpush1.msra.mxu0 %v1707
  %1978 = vmatprep.subr.mxu0 0.0
  %1979 = vmatpush1.msra.mxu0 %v1708
  %1980 = vmatprep.subr.mxu0 0.0
  %1981 = vmatpush1.msra.mxu0 %v1709
  %1982 = vmatprep.subr.mxu0 0.0
  %1983 = vmatpush1.msra.mxu0 %v1710
  %1984 = vmatprep.subr.mxu0 0.0
  %1985 = vmatpush1.msra.mxu0 %v1711
  %1986 = vmatprep.subr.mxu0 0.0
  %1987 = vmatpush1.msra.mxu0 %v1712
  %1988 = vmatprep.subr.mxu0 0.0
  %1989 = vmatpush1.msra.mxu0 %v1713
  %1990 = vmatprep.subr.mxu0 0.0
  %1991 = vmatpush1.msra.mxu0 %v1714
  %1992 = vmatprep.subr.mxu0 0.0
  %1993 = vmatpush1.msra.mxu0 %v1715
  %1994 = vmatprep.subr.mxu0 0.0
  %1995 = vmatpush1.msra.mxu0 %v1716
  %1996 = vmatprep.mubr.f32.mxu0 %v1894
  %1997 = vmatmul.mubr.f32.gmra.mrb[0].mxu0 %v1886
  %v1998 = vpop.f32.mrb[0].mxu0
  %v1999 = vadd.f32 %v1906, %v1998
  %v2000 = vpop.f32.mrb[0].mxu0
  %2001 = vmatprep.mubr.f32.mxu0 %v1895
  %2002 = vmatmul.mubr.f32.gmra.mrb[0].mxu0 %v1887
  %v2003 = vpop.f32.mrb[0].mxu0
  %v2004 = vadd.f32 %v1906, %v2003
  %v2005 = vpop.f32.mrb[0].mxu0
  %2006 = vmatprep.mubr.f32.mxu0 %v1896
  %2007 = vmatmul.mubr.f32.gmra.mrb[0].mxu0 %v1888
  %v2008 = vpop.f32.mrb[0].mxu0
  %v2009 = vadd.f32 %v1906, %v2008
  %v2010 = vpop.f32.mrb[0].mxu0
  %2011 = vmatprep.mubr.f32.mxu0 %v1897
  %2012 = vmatmul.mubr.f32.gmra.mrb[0].mxu0 %v1889
  %v2013 = vpop.f32.mrb[0].mxu0
  %v2014 = vadd.f32 %v1906, %v2013
  %v2015 = vpop.f32.mrb[0].mxu0
  %2016 = vmatprep.mubr.f32.mxu0 %v1898
  %2017 = vmatmul.mubr.f32.gmra.mrb[0].mxu0 %v1890
  %v2018 = vpop.f32.mrb[0].mxu0
  %v2019 = vadd.f32 %v1906, %v2018
  %v2020 = vpop.f32.mrb[0].mxu0
  %2021 = vmatprep.mubr.f32.mxu0 %v1899
  %2022 = vmatmul.mubr.f32.gmra.mrb[0].mxu0 %v1891
  %v2023 = vpop.f32.mrb[0].mxu0
  %v2024 = vadd.f32 %v1906, %v2023
  %v2025 = vpop.f32.mrb[0].mxu0
  %2026 = vmatprep.mubr.f32.mxu0 %v1900
  %2027 = vmatmul.mubr.f32.gmra.mrb[0].mxu0 %v1892
  %v2028 = vpop.f32.mrb[0].mxu0
  %v2029 = vadd.f32 %v1906, %v2028
  %v2030 = vpop.f32.mrb[0].mxu0
  %2031 = vmatprep.mubr.f32.mxu0 %v1901
  %2032 = vmatmul.mubr.f32.gmra.mrb[0].mxu0 %v1893
  %v2033 = vpop.f32.mrb[0].mxu0
  %v2034 = vadd.f32 %v1906, %v2033
  %v2035 = vpop.f32.mrb[0].mxu0
  %2036 = vdwg.mxu0
  %2037 = vmatprep.subr.mxu0 0.0
  %2038 = vmatpush1.msra.mxu0 %v1717
  %2039 = vmatprep.subr.mxu0 0.0
  %2040 = vmatpush1.msra.mxu0 %v1718
  %2041 = vmatprep.subr.mxu0 0.0
  %2042 = vmatpush1.msra.mxu0 %v1719
  %2043 = vmatprep.subr.mxu0 0.0
  %2044 = vmatpush1.msra.mxu0 %v1720
  %2045 = vmatprep.subr.mxu0 0.0
  %2046 = vmatpush1.msra.mxu0 %v1721
  %2047 = vmatprep.subr.mxu0 0.0
  %2048 = vmatpush1.msra.mxu0 %v1722
  %2049 = vmatprep.subr.mxu0 0.0
  %2050 = vmatpush1.msra.mxu0 %v1723
  %2051 = vmatprep.subr.mxu0 0.0
  %2052 = vmatpush1.msra.mxu0 %v1724
  %2053 = vmatprep.subr.mxu0 0.0
  %2054 = vmatpush1.msra.mxu0 0.0
  %2055 = vmatprep.subr.mxu0 0.0
  %2056 = vmatpush1.msra.mxu0 0.0
  %2057 = vmatprep.subr.mxu0 0.0
  %2058 = vmatpush1.msra.mxu0 0.0
  %2059 = vmatprep.subr.mxu0 0.0
  %2060 = vmatpush1.msra.mxu0 0.0
  %2061 = vmatprep.subr.mxu0 0.0
  %2062 = vmatpush1.msra.mxu0 0.0
  %2063 = vmatprep.subr.mxu0 0.0
  %2064 = vmatpush1.msra.mxu0 0.0
  %2065 = vmatprep.subr.mxu0 0.0
  %2066 = vmatpush1.msra.mxu0 0.0
  %2067 = vmatprep.subr.mxu0 0.0
  %2068 = vmatpush1.msra.mxu0 0.0
  %2069 = vmatprep.subr.mxu0 0.0
  %2070 = vmatpush1.msra.mxu0 0.0
  %2071 = vmatprep.subr.mxu0 0.0
  %2072 = vmatpush1.msra.mxu0 0.0
  %2073 = vmatprep.subr.mxu0 0.0
  %2074 = vmatpush1.msra.mxu0 0.0
  %2075 = vmatprep.subr.mxu0 0.0
  %2076 = vmatpush1.msra.mxu0 0.0
  %2077 = vmatprep.subr.mxu0 0.0
  %2078 = vmatpush1.msra.mxu0 0.0
  %2079 = vmatprep.subr.mxu0 0.0
  %2080 = vmatpush1.msra.mxu0 0.0
  %2081 = vmatprep.subr.mxu0 0.0
  %2082 = vmatpush1.msra.mxu0 0.0
  %2083 = vmatprep.subr.mxu0 0.0
  %2084 = vmatpush1.msra.mxu0 0.0
  %2085 = vmatprep.subr.mxu0 0.0
  %2086 = vmatpush1.msra.mxu0 0.0
  %2087 = vmatprep.subr.mxu0 0.0
  %2088 = vmatpush1.msra.mxu0 0.0
  %2089 = vmatprep.subr.mxu0 0.0
  %2090 = vmatpush1.msra.mxu0 0.0
  %2091 = vmatprep.subr.mxu0 0.0
  %2092 = vmatpush1.msra.mxu0 0.0
  %2093 = vmatprep.subr.mxu0 0.0
  %2094 = vmatpush1.msra.mxu0 0.0
  %2095 = vmatprep.subr.mxu0 0.0
  %2096 = vmatpush1.msra.mxu0 0.0
  %2097 = vmatprep.subr.mxu0 0.0
  %2098 = vmatpush1.msra.mxu0 0.0
  %2099 = vmatprep.subr.mxu0 0.0
  %2100 = vmatpush1.msra.mxu0 0.0
  %2101 = vmatprep.mubr.f32.mxu0 0.0
  %2102 = vmatmul.mubr.f32.gmra.mrb[0].mxu0 %v1909
  %v2103 = vpop.f32.mrb[0].mxu0
  %v2104 = vadd.f32 %v1999, %v2103
  %v2105 = vpop.f32.mrb[0].mxu0
  %2106 = vmatprep.mubr.f32.mxu0 0.0
  %2107 = vmatmul.mubr.f32.gmra.mrb[0].mxu0 %v1912
  %v2108 = vpop.f32.mrb[0].mxu0
  %v2109 = vadd.f32 %v2004, %v2108
  %v2110 = vpop.f32.mrb[0].mxu0
  %2111 = vmatprep.mubr.f32.mxu0 0.0
  %2112 = vmatmul.mubr.f32.gmra.mrb[0].mxu0 %v1915
  %v2113 = vpop.f32.mrb[0].mxu0
  %v2114 = vadd.f32 %v2009, %v2113
  %v2115 = vpop.f32.mrb[0].mxu0
  %2116 = vmatprep.mubr.f32.mxu0 0.0
  %2117 = vmatmul.mubr.f32.gmra.mrb[0].mxu0 %v1918
  %v2118 = vpop.f32.mrb[0].mxu0
  %v2119 = vadd.f32 %v2014, %v2118
  %v2120 = vpop.f32.mrb[0].mxu0
  %2121 = vmatprep.mubr.f32.mxu0 0.0
  %2122 = vmatmul.mubr.f32.gmra.mrb[0].mxu0 %v1921
  %v2123 = vpop.f32.mrb[0].mxu0
  %v2124 = vadd.f32 %v2019, %v2123
  %v2125 = vpop.f32.mrb[0].mxu0
  %2126 = vmatprep.mubr.f32.mxu0 0.0
  %2127 = vmatmul.mubr.f32.gmra.mrb[0].mxu0 %v1924
  %v2128 = vpop.f32.mrb[0].mxu0
  %v2129 = vadd.f32 %v2024, %v2128
  %v2130 = vpop.f32.mrb[0].mxu0
  %2131 = vmatprep.mubr.f32.mxu0 0.0
  %2132 = vmatmul.mubr.f32.gmra.mrb[0].mxu0 %v1927
  %v2133 = vpop.f32.mrb[0].mxu0
  %v2134 = vadd.f32 %v2029, %v2133
  %v2135 = vpop.f32.mrb[0].mxu0
  %2136 = vmatprep.mubr.f32.mxu0 0.0
  %2137 = vmatmul.mubr.f32.gmra.mrb[0].mxu0 %v1930
  %v2138 = vpop.f32.mrb[0].mxu0
  %v2139 = vadd.f32 %v2034, %v2138
  %v2140 = vpop.f32.mrb[0].mxu0
  %2141 = vdwg.mxu0
  %v2142 = vld [vmem:[%s17] sm:$0x1]
  %v2143 = vld [vmem:[%s18] sm:$0x1]
  %v2144 = vsel %vm306, %v2104, 0.0
  %v2145 = vsel %vm306, %v2109, 0.0
  %v2146 = vadd.f32 %v2144, %v2145
  %v2147 = vsel %vm306, %v2114, 0.0
  %v2148 = vadd.f32 %v2146, %v2147
  %v2149 = vsel %vm306, %v2119, 0.0
  %v2150 = vadd.f32 %v2148, %v2149
  %v2151 = vsel %vm306, %v2124, 0.0
  %v2152 = vadd.f32 %v2150, %v2151
  %v2153 = vsel %vm306, %v2129, 0.0
  %v2154 = vadd.f32 %v2152, %v2153
  %v2155 = vsel %vm306, %v2134, 0.0
  %v2156 = vadd.f32 %v2154, %v2155
  %v2157 = vsel %vm306, %v2139, 0.0
  %v2158 = vadd.f32 %v2156, %v2157
  %v2159 = vrot.slane %v2158, 4
  %v2160 = vadd.f32 %v2158, %v2159
  %v2161 = vrot.slane %v2160, 2
  %v2162 = vadd.f32 %v2160, %v2161
  %v2163 = vrot.slane %v2162, 1
  %v2164 = vadd.f32 %v2162, %v2163
  %v2165 = vmul.f32 %v2164, 0.015625
  %v2166 = vsub.f32 %v2104, %v2165
  %v2167 = vsub.f32 %v2109, %v2165
  %v2168 = vsub.f32 %v2114, %v2165
  %v2169 = vsub.f32 %v2119, %v2165
  %v2170 = vsub.f32 %v2124, %v2165
  %v2171 = vsub.f32 %v2129, %v2165
  %v2172 = vsub.f32 %v2134, %v2165
  %v2173 = vsub.f32 %v2139, %v2165
  %v2174 = vmul.f32 %v2166, %v2166
  %v2175 = vmul.f32 %v2167, %v2167
  %v2176 = vmul.f32 %v2168, %v2168
  %v2177 = vmul.f32 %v2169, %v2169
  %v2178 = vmul.f32 %v2170, %v2170
  %v2179 = vmul.f32 %v2171, %v2171
  %v2180 = vmul.f32 %v2172, %v2172
  %v2181 = vmul.f32 %v2173, %v2173
  %v2182 = vsel %vm306, %v2174, 0.0
  %v2183 = vsel %vm306, %v2175, 0.0
  %v2184 = vadd.f32 %v2182, %v2183
  %v2185 = vsel %vm306, %v2176, 0.0
  %v2186 = vadd.f32 %v2184, %v2185
  %v2187 = vsel %vm306, %v2177, 0.0
  %v2188 = vadd.f32 %v2186, %v2187
  %v2189 = vsel %vm306, %v2178, 0.0
  %v2190 = vadd.f32 %v2188, %v2189
  %v2191 = vsel %vm306, %v2179, 0.0
  %v2192 = vadd.f32 %v2190, %v2191
  %v2193 = vsel %vm306, %v2180, 0.0
  %v2194 = vadd.f32 %v2192, %v2193
  %v2195 = vsel %vm306, %v2181, 0.0
  %v2196 = vadd.f32 %v2194, %v2195
  %v2197 = vrot.slane %v2196, 4
  %v2198 = vadd.f32 %v2196, %v2197
  %v2199 = vrot.slane %v2198, 2
  %v2200 = vadd.f32 %v2198, %v2199
  %v2201 = vrot.slane %v2200, 1
  %v2202 = vadd.f32 %v2200, %v2201
  %v2203 = vmul.f32 %v2202, 0.015625
  %v2204 = vadd.f32 %v2203, 1e-05
  %v2205 = vrsqrt.pop %v2204
  %v2206 = vmul.f32 %v2166, %v2205
  %v2207 = vmul.f32 %v2167, %v2205
  %v2208 = vmul.f32 %v2168, %v2205
  %v2209 = vmul.f32 %v2169, %v2205
  %v2210 = vmul.f32 %v2170, %v2205
  %v2211 = vmul.f32 %v2171, %v2205
  %v2212 = vmul.f32 %v2172, %v2205
  %v2213 = vmul.f32 %v2173, %v2205
  %v2215 = vlaneseq
  %v2216 = vshrl.u32 %v2215, 7
  %v2217 = vsub.s32 0, %v2216
  %v2218 = vrot.slane %v2142, %v2217
  %v2220 = vmul.f32 %v2218, %v2206
  %v2221 = vmul.f32 %v2218, %v2207
  %v2222 = vmul.f32 %v2218, %v2208
  %v2223 = vmul.f32 %v2218, %v2209
  %v2224 = vmul.f32 %v2218, %v2210
  %v2225 = vmul.f32 %v2218, %v2211
  %v2226 = vmul.f32 %v2218, %v2212
  %v2227 = vmul.f32 %v2218, %v2213
  %v2229 = vlaneseq
  %v2230 = vshrl.u32 %v2229, 7
  %v2231 = vsub.s32 0, %v2230
  %v2232 = vrot.slane %v2143, %v2231
  %v2234 = vadd.f32 %v2220, %v2232
  %v2235 = vadd.f32 %v2221, %v2232
  %v2236 = vadd.f32 %v2222, %v2232
  %v2237 = vadd.f32 %v2223, %v2232
  %v2238 = vadd.f32 %v2224, %v2232
  %v2239 = vadd.f32 %v2225, %v2232
  %v2240 = vadd.f32 %v2226, %v2232
  %v2241 = vadd.f32 %v2227, %v2232
  %v2242 = vtanh.pop %v2234
  %v2243 = vtanh.pop %v2235
  %v2244 = vtanh.pop %v2236
  %v2245 = vtanh.pop %v2237
  %v2246 = vtanh.pop %v2238
  %v2247 = vtanh.pop %v2239
  %v2248 = vtanh.pop %v2240
  %v2249 = vtanh.pop %v2241
  %v2250 = vld [vmem:[%s19] sm:$0xff]
  %v2251 = vld [vmem:[%s19 + $0x8] sm:$0xff]
  %v2252 = vld [vmem:[%s19 + $0x10] sm:$0xff]
  %v2253 = vld [vmem:[%s19 + $0x18] sm:$0xff]
  %v2254 = vld [vmem:[%s19 + $0x20] sm:$0xff]
  %v2255 = vld [vmem:[%s19 + $0x28] sm:$0xff]
  %v2256 = vld [vmem:[%s19 + $0x30] sm:$0xff]
  %v2257 = vld [vmem:[%s19 + $0x38] sm:$0xff]
  %v2258 = vld [vmem:[%s19 + $0x40] sm:$0xff]
  %v2259 = vld [vmem:[%s19 + $0x48] sm:$0xff]
  %v2260 = vld [vmem:[%s19 + $0x50] sm:$0xff]
  %v2261 = vld [vmem:[%s19 + $0x58] sm:$0xff]
  %v2262 = vld [vmem:[%s19 + $0x60] sm:$0xff]
  %v2263 = vld [vmem:[%s19 + $0x68] sm:$0xff]
  %v2264 = vld [vmem:[%s19 + $0x70] sm:$0xff]
  %v2265 = vld [vmem:[%s19 + $0x78] sm:$0xff]
  %v2266 = vld [vmem:[%s19 + $0x80] sm:$0xff]
  %v2267 = vld [vmem:[%s19 + $0x88] sm:$0xff]
  %v2268 = vld [vmem:[%s19 + $0x90] sm:$0xff]
  %v2269 = vld [vmem:[%s19 + $0x98] sm:$0xff]
  %v2270 = vld [vmem:[%s19 + $0xa0] sm:$0xff]
  %v2271 = vld [vmem:[%s19 + $0xa8] sm:$0xff]
  %v2272 = vld [vmem:[%s19 + $0xb0] sm:$0xff]
  %v2273 = vld [vmem:[%s19 + $0xb8] sm:$0xff]
  %v2274 = vld [vmem:[%s19 + $0xc0] sm:$0xff]
  %v2275 = vld [vmem:[%s19 + $0xc8] sm:$0xff]
  %v2276 = vld [vmem:[%s19 + $0xd0] sm:$0xff]
  %v2277 = vld [vmem:[%s19 + $0xd8] sm:$0xff]
  %v2278 = vld [vmem:[%s19 + $0xe0] sm:$0xff]
  %v2279 = vld [vmem:[%s19 + $0xe8] sm:$0xff]
  %v2280 = vld [vmem:[%s19 + $0xf0] sm:$0xff]
  %v2281 = vld [vmem:[%s19 + $0xf8] sm:$0xff]
  %v2282 = vld [vmem:[%s19 + $0x100] sm:$0xff]
  %v2283 = vld [vmem:[%s19 + $0x108] sm:$0xff]
  %v2284 = vld [vmem:[%s19 + $0x110] sm:$0xff]
  %v2285 = vld [vmem:[%s19 + $0x118] sm:$0xff]
  %v2286 = vld [vmem:[%s19 + $0x120] sm:$0xff]
  %v2287 = vld [vmem:[%s19 + $0x128] sm:$0xff]
  %v2288 = vld [vmem:[%s19 + $0x130] sm:$0xff]
  %v2289 = vld [vmem:[%s19 + $0x138] sm:$0xff]
  %v2290 = vld [vmem:[%s20] sm:$0x1]
  %v2291 = vrot.slane %v2242, 6
  %v2292 = vrot.slane %v2243, 6
  %v2293 = vrot.slane %v2244, 6
  %v2294 = vrot.slane %v2245, 6
  %v2295 = vrot.slane %v2246, 6
  %v2296 = vrot.slane %v2247, 6
  %v2297 = vrot.slane %v2248, 6
  %v2298 = vrot.slane %v2249, 6
  %v2299 = vsel %vm503, %v2297, %v2298
  %v2300 = vsel %vm503, %v2296, %v2297
  %v2301 = vsel %vm503, %v2295, %v2296
  %v2302 = vsel %vm503, %v2294, %v2295
  %v2303 = vsel %vm503, %v2293, %v2294
  %v2304 = vsel %vm503, %v2292, %v2293
  %v2305 = vsel %vm503, %v2291, %v2292
  %v2306 = vsel %vm503, %v2298, %v2291
  %v2307 = vsel %vm528, %v2306, 0.0
  %v2308 = vsel %vm529, %v2305, 0.0
  %v2309 = vsel %vm530, %v2304, 0.0
  %v2310 = vsel %vm531, %v2303, 0.0
  %v2311 = vsel %vm532, %v2302, 0.0
  %v2312 = vsel %vm533, %v2301, 0.0
  %v2313 = vsel %vm534, %v2300, 0.0
  %v2314 = vsel %vm535, %v2299, 0.0
  %v2315 = vrot.slane %v2242, 7
  %v2316 = vrot.slane %v2243, 7
  %v2317 = vrot.slane %v2244, 7
  %v2318 = vrot.slane %v2245, 7
  %v2319 = vrot.slane %v2246, 7
  %v2320 = vrot.slane %v2247, 7
  %v2321 = vrot.slane %v2248, 7
  %v2322 = vrot.slane %v2249, 7
  %v2323 = vsel %vm552, %v2321, %v2322
  %v2324 = vsel %vm552, %v2320, %v2321
  %v2325 = vsel %vm552, %v2319, %v2320
  %v2326 = vsel %vm552, %v2318, %v2319
  %v2327 = vsel %vm552, %v2317, %v2318
  %v2328 = vsel %vm552, %v2316, %v2317
  %v2329 = vsel %vm552, %v2315, %v2316
  %v2330 = vsel %vm552, %v2322, %v2315
  %v2331 = vsel %vm577, %v2330, 0.0
  %v2332 = vsel %vm578, %v2329, 0.0
  %v2333 = vsel %vm579, %v2328, 0.0
  %v2334 = vsel %vm580, %v2327, 0.0
  %v2335 = vsel %vm581, %v2326, 0.0
  %v2336 = vsel %vm582, %v2325, 0.0
  %v2337 = vsel %vm583, %v2324, 0.0
  %v2338 = vsel %vm584, %v2323, 0.0
  %v2339 = vrot.slane %v2242, 1
  %v2340 = vrot.slane %v2243, 1
  %v2341 = vrot.slane %v2244, 1
  %v2342 = vrot.slane %v2245, 1
  %v2343 = vrot.slane %v2246, 1
  %v2344 = vrot.slane %v2247, 1
  %v2345 = vrot.slane %v2248, 1
  %v2346 = vrot.slane %v2249, 1
  %v2347 = vsel %vm601, %v2345, %v2346
  %v2348 = vsel %vm601, %v2344, %v2345
  %v2349 = vsel %vm601, %v2343, %v2344
  %v2350 = vsel %vm601, %v2342, %v2343
  %v2351 = vsel %vm601, %v2341, %v2342
  %v2352 = vsel %vm601, %v2340, %v2341
  %v2353 = vsel %vm601, %v2339, %v2340
  %v2354 = vsel %vm601, %v2346, %v2339
  %v2355 = vsel %vm626, %v2353, 0.0
  %v2356 = vsel %vm627, %v2352, 0.0
  %v2357 = vsel %vm628, %v2351, 0.0
  %v2358 = vsel %vm629, %v2350, 0.0
  %v2359 = vsel %vm630, %v2349, 0.0
  %v2360 = vsel %vm631, %v2348, 0.0
  %v2361 = vsel %vm632, %v2347, 0.0
  %v2362 = vsel %vm633, %v2354, 0.0
  %v2363 = vrot.slane %v2242, 2
  %v2364 = vrot.slane %v2243, 2
  %v2365 = vrot.slane %v2244, 2
  %v2366 = vrot.slane %v2245, 2
  %v2367 = vrot.slane %v2246, 2
  %v2368 = vrot.slane %v2247, 2
  %v2369 = vrot.slane %v2248, 2
  %v2370 = vrot.slane %v2249, 2
  %v2371 = vsel %vm650, %v2369, %v2370
  %v2372 = vsel %vm650, %v2368, %v2369
  %v2373 = vsel %vm650, %v2367, %v2368
  %v2374 = vsel %vm650, %v2366, %v2367
  %v2375 = vsel %vm650, %v2365, %v2366
  %v2376 = vsel %vm650, %v2364, %v2365
  %v2377 = vsel %vm650, %v2363, %v2364
  %v2378 = vsel %vm650, %v2370, %v2363
  %v2379 = vsel %vm675, %v2377, 0.0
  %v2380 = vsel %vm676, %v2376, 0.0
  %v2381 = vsel %vm677, %v2375, 0.0
  %v2382 = vsel %vm678, %v2374, 0.0
  %v2383 = vsel %vm679, %v2373, 0.0
  %v2384 = vsel %vm680, %v2372, 0.0
  %v2385 = vsel %vm681, %v2371, 0.0
  %v2386 = vsel %vm682, %v2378, 0.0
  %2395 = vrot.lane.b32.xlu0 %v2331, 64
  %v2396 = vpop.permute.xlu0 %2395
  %2397 = vrot.lane.b32.xlu0 %v2332, 64
  %v2398 = vpop.permute.xlu0 %2397
  %2399 = vrot.lane.b32.xlu0 %v2333, 64
  %v2400 = vpop.permute.xlu0 %2399
  %2401 = vrot.lane.b32.xlu0 %v2334, 64
  %v2402 = vpop.permute.xlu0 %2401
  %2403 = vrot.lane.b32.xlu0 %v2335, 64
  %v2404 = vpop.permute.xlu0 %2403
  %2405 = vrot.lane.b32.xlu0 %v2336, 64
  %v2406 = vpop.permute.xlu0 %2405
  %2407 = vrot.lane.b32.xlu0 %v2337, 64
  %v2408 = vpop.permute.xlu0 %2407
  %2409 = vrot.lane.b32.xlu0 %v2338, 64
  %v2410 = vpop.permute.xlu0 %2409
  %2427 = vrot.lane.b32.xlu0 %v2355, 64
  %v2428 = vpop.permute.xlu0 %2427
  %2429 = vrot.lane.b32.xlu0 %v2356, 64
  %v2430 = vpop.permute.xlu0 %2429
  %2431 = vrot.lane.b32.xlu0 %v2357, 64
  %v2432 = vpop.permute.xlu0 %2431
  %2433 = vrot.lane.b32.xlu0 %v2358, 64
  %v2434 = vpop.permute.xlu0 %2433
  %2435 = vrot.lane.b32.xlu0 %v2359, 64
  %v2436 = vpop.permute.xlu0 %2435
  %2437 = vrot.lane.b32.xlu0 %v2360, 64
  %v2438 = vpop.permute.xlu0 %2437
  %2439 = vrot.lane.b32.xlu0 %v2361, 64
  %v2440 = vpop.permute.xlu0 %2439
  %2441 = vrot.lane.b32.xlu0 %v2362, 64
  %v2442 = vpop.permute.xlu0 %2441
  %v2451 = vsel %vm306, %v2307, %v2396
  %v2452 = vsel %vm306, %v2308, %v2398
  %v2453 = vsel %vm306, %v2309, %v2400
  %v2454 = vsel %vm306, %v2310, %v2402
  %v2455 = vsel %vm306, %v2311, %v2404
  %v2456 = vsel %vm306, %v2312, %v2406
  %v2457 = vsel %vm306, %v2313, %v2408
  %v2458 = vsel %vm306, %v2314, %v2410
  %v2459 = vsel %vm306, %v2242, %v2428
  %v2460 = vsel %vm306, %v2243, %v2430
  %v2461 = vsel %vm306, %v2244, %v2432
  %v2462 = vsel %vm306, %v2245, %v2434
  %v2463 = vsel %vm306, %v2246, %v2436
  %v2464 = vsel %vm306, %v2247, %v2438
  %v2465 = vsel %vm306, %v2248, %v2440
  %v2466 = vsel %vm306, %v2249, %v2442
  %v2468 = vlaneseq
  %v2469 = vshrl.u32 %v2468, 7
  %v2470 = vsub.s32 0, %v2469
  %v2471 = vrot.slane %v2290, %v2470
  %v2474 = vsel %vm306, %v2379, 0
  %v2477 = vsel %vm306, %v2380, 0
  %v2480 = vsel %vm306, %v2381, 0
  %v2483 = vsel %vm306, %v2382, 0
  %v2486 = vsel %vm306, %v2383, 0
  %v2489 = vsel %vm306, %v2384, 0
  %v2492 = vsel %vm306, %v2385, 0
  %v2495 = vsel %vm306, %v2386, 0
  %2497 = vmatprep.subr.mxu0 0.0
  %2498 = vmatpush1.msra.mxu0 %v2250
  %2499 = vmatprep.subr.mxu0 0.0
  %2500 = vmatpush1.msra.mxu0 %v2251
  %2501 = vmatprep.subr.mxu0 0.0
  %2502 = vmatpush1.msra.mxu0 %v2252
  %2503 = vmatprep.subr.mxu0 0.0
  %2504 = vmatpush1.msra.mxu0 %v2253
  %2505 = vmatprep.subr.mxu0 0.0
  %2506 = vmatpush1.msra.mxu0 %v2254
  %2507 = vmatprep.subr.mxu0 0.0
  %2508 = vmatpush1.msra.mxu0 %v2255
  %2509 = vmatprep.subr.mxu0 0.0
  %2510 = vmatpush1.msra.mxu0 %v2256
  %2511 = vmatprep.subr.mxu0 0.0
  %2512 = vmatpush1.msra.mxu0 %v2257
  %2513 = vmatprep.subr.mxu0 0.0
  %2514 = vmatpush1.msra.mxu0 %v2258
  %2515 = vmatprep.subr.mxu0 0.0
  %2516 = vmatpush1.msra.mxu0 %v2259
  %2517 = vmatprep.subr.mxu0 0.0
  %2518 = vmatpush1.msra.mxu0 %v2260
  %2519 = vmatprep.subr.mxu0 0.0
  %2520 = vmatpush1.msra.mxu0 %v2261
  %2521 = vmatprep.subr.mxu0 0.0
  %2522 = vmatpush1.msra.mxu0 %v2262
  %2523 = vmatprep.subr.mxu0 0.0
  %2524 = vmatpush1.msra.mxu0 %v2263
  %2525 = vmatprep.subr.mxu0 0.0
  %2526 = vmatpush1.msra.mxu0 %v2264
  %2527 = vmatprep.subr.mxu0 0.0
  %2528 = vmatpush1.msra.mxu0 %v2265
  %2529 = vmatprep.subr.mxu0 0.0
  %2530 = vmatpush1.msra.mxu0 %v2266
  %2531 = vmatprep.subr.mxu0 0.0
  %2532 = vmatpush1.msra.mxu0 %v2267
  %2533 = vmatprep.subr.mxu0 0.0
  %2534 = vmatpush1.msra.mxu0 %v2268
  %2535 = vmatprep.subr.mxu0 0.0
  %2536 = vmatpush1.msra.mxu0 %v2269
  %2537 = vmatprep.subr.mxu0 0.0
  %2538 = vmatpush1.msra.mxu0 %v2270
  %2539 = vmatprep.subr.mxu0 0.0
  %2540 = vmatpush1.msra.mxu0 %v2271
  %2541 = vmatprep.subr.mxu0 0.0
  %2542 = vmatpush1.msra.mxu0 %v2272
  %2543 = vmatprep.subr.mxu0 0.0
  %2544 = vmatpush1.msra.mxu0 %v2273
  %2545 = vmatprep.subr.mxu0 0.0
  %2546 = vmatpush1.msra.mxu0 %v2274
  %2547 = vmatprep.subr.mxu0 0.0
  %2548 = vmatpush1.msra.mxu0 %v2275
  %2549 = vmatprep.subr.mxu0 0.0
  %2550 = vmatpush1.msra.mxu0 %v2276
  %2551 = vmatprep.subr.mxu0 0.0
  %2552 = vmatpush1.msra.mxu0 %v2277
  %2553 = vmatprep.subr.mxu0 0.0
  %2554 = vmatpush1.msra.mxu0 %v2278
  %2555 = vmatprep.subr.mxu0 0.0
  %2556 = vmatpush1.msra.mxu0 %v2279
  %2557 = vmatprep.subr.mxu0 0.0
  %2558 = vmatpush1.msra.mxu0 %v2280
  %2559 = vmatprep.subr.mxu0 0.0
  %2560 = vmatpush1.msra.mxu0 %v2281
  %2561 = vmatprep.mubr.f32.mxu0 %v2459
  %2562 = vmatmul.mubr.f32.gmra.mrb[0].mxu0 %v2451
  %v2563 = vpop.f32.mrb[0].mxu0
  %v2564 = vadd.f32 %v2471, %v2563
  %v2565 = vpop.f32.mrb[0].mxu0
  %2566 = vmatprep.mubr.f32.mxu0 %v2460
  %2567 = vmatmul.mubr.f32.gmra.mrb[0].mxu0 %v2452
  %v2568 = vpop.f32.mrb[0].mxu0
  %v2569 = vadd.f32 %v2471, %v2568
  %v2570 = vpop.f32.mrb[0].mxu0
  %2571 = vmatprep.mubr.f32.mxu0 %v2461
  %2572 = vmatmul.mubr.f32.gmra.mrb[0].mxu0 %v2453
  %v2573 = vpop.f32.mrb[0].mxu0
  %v2574 = vadd.f32 %v2471, %v2573
  %v2575 = vpop.f32.mrb[0].mxu0
  %2576 = vmatprep.mubr.f32.mxu0 %v2462
  %2577 = vmatmul.mubr.f32.gmra.mrb[0].mxu0 %v2454
  %v2578 = vpop.f32.mrb[0].mxu0
  %v2579 = vadd.f32 %v2471, %v2578
  %v2580 = vpop.f32.mrb[0].mxu0
  %2581 = vmatprep.mubr.f32.mxu0 %v2463
  %2582 = vmatmul.mubr.f32.gmra.mrb[0].mxu0 %v2455
  %v2583 = vpop.f32.mrb[0].mxu0
  %v2584 = vadd.f32 %v2471, %v2583
  %v2585 = vpop.f32.mrb[0].mxu0
  %2586 = vmatprep.mubr.f32.mxu0 %v2464
  %2587 = vmatmul.mubr.f32.gmra.mrb[0].mxu0 %v2456
  %v2588 = vpop.f32.mrb[0].mxu0
  %v2589 = vadd.f32 %v2471, %v2588
  %v2590 = vpop.f32.mrb[0].mxu0
  %2591 = vmatprep.mubr.f32.mxu0 %v2465
  %2592 = vmatmul.mubr.f32.gmra.mrb[0].mxu0 %v2457
  %v2593 = vpop.f32.mrb[0].mxu0
  %v2594 = vadd.f32 %v2471, %v2593
  %v2595 = vpop.f32.mrb[0].mxu0
  %2596 = vmatprep.mubr.f32.mxu0 %v2466
  %2597 = vmatmul.mubr.f32.gmra.mrb[0].mxu0 %v2458
  %v2598 = vpop.f32.mrb[0].mxu0
  %v2599 = vadd.f32 %v2471, %v2598
  %v2600 = vpop.f32.mrb[0].mxu0
  %2601 = vdwg.mxu0
  %2602 = vmatprep.subr.mxu0 0.0
  %2603 = vmatpush1.msra.mxu0 %v2282
  %2604 = vmatprep.subr.mxu0 0.0
  %2605 = vmatpush1.msra.mxu0 %v2283
  %2606 = vmatprep.subr.mxu0 0.0
  %2607 = vmatpush1.msra.mxu0 %v2284
  %2608 = vmatprep.subr.mxu0 0.0
  %2609 = vmatpush1.msra.mxu0 %v2285
  %2610 = vmatprep.subr.mxu0 0.0
  %2611 = vmatpush1.msra.mxu0 %v2286
  %2612 = vmatprep.subr.mxu0 0.0
  %2613 = vmatpush1.msra.mxu0 %v2287
  %2614 = vmatprep.subr.mxu0 0.0
  %2615 = vmatpush1.msra.mxu0 %v2288
  %2616 = vmatprep.subr.mxu0 0.0
  %2617 = vmatpush1.msra.mxu0 %v2289
  %2618 = vmatprep.subr.mxu0 0.0
  %2619 = vmatpush1.msra.mxu0 0.0
  %2620 = vmatprep.subr.mxu0 0.0
  %2621 = vmatpush1.msra.mxu0 0.0
  %2622 = vmatprep.subr.mxu0 0.0
  %2623 = vmatpush1.msra.mxu0 0.0
  %2624 = vmatprep.subr.mxu0 0.0
  %2625 = vmatpush1.msra.mxu0 0.0
  %2626 = vmatprep.subr.mxu0 0.0
  %2627 = vmatpush1.msra.mxu0 0.0
  %2628 = vmatprep.subr.mxu0 0.0
  %2629 = vmatpush1.msra.mxu0 0.0
  %2630 = vmatprep.subr.mxu0 0.0
  %2631 = vmatpush1.msra.mxu0 0.0
  %2632 = vmatprep.subr.mxu0 0.0
  %2633 = vmatpush1.msra.mxu0 0.0
  %2634 = vmatprep.subr.mxu0 0.0
  %2635 = vmatpush1.msra.mxu0 0.0
  %2636 = vmatprep.subr.mxu0 0.0
  %2637 = vmatpush1.msra.mxu0 0.0
  %2638 = vmatprep.subr.mxu0 0.0
  %2639 = vmatpush1.msra.mxu0 0.0
  %2640 = vmatprep.subr.mxu0 0.0
  %2641 = vmatpush1.msra.mxu0 0.0
  %2642 = vmatprep.subr.mxu0 0.0
  %2643 = vmatpush1.msra.mxu0 0.0
  %2644 = vmatprep.subr.mxu0 0.0
  %2645 = vmatpush1.msra.mxu0 0.0
  %2646 = vmatprep.subr.mxu0 0.0
  %2647 = vmatpush1.msra.mxu0 0.0
  %2648 = vmatprep.subr.mxu0 0.0
  %2649 = vmatpush1.msra.mxu0 0.0
  %2650 = vmatprep.subr.mxu0 0.0
  %2651 = vmatpush1.msra.mxu0 0.0
  %2652 = vmatprep.subr.mxu0 0.0
  %2653 = vmatpush1.msra.mxu0 0.0
  %2654 = vmatprep.subr.mxu0 0.0
  %2655 = vmatpush1.msra.mxu0 0.0
  %2656 = vmatprep.subr.mxu0 0.0
  %2657 = vmatpush1.msra.mxu0 0.0
  %2658 = vmatprep.subr.mxu0 0.0
  %2659 = vmatpush1.msra.mxu0 0.0
  %2660 = vmatprep.subr.mxu0 0.0
  %2661 = vmatpush1.msra.mxu0 0.0
  %2662 = vmatprep.subr.mxu0 0.0
  %2663 = vmatpush1.msra.mxu0 0.0
  %2664 = vmatprep.subr.mxu0 0.0
  %2665 = vmatpush1.msra.mxu0 0.0
  %2666 = vmatprep.mubr.f32.mxu0 0.0
  %2667 = vmatmul.mubr.f32.gmra.mrb[0].mxu0 %v2474
  %v2668 = vpop.f32.mrb[0].mxu0
  %v2669 = vadd.f32 %v2564, %v2668
  %v2670 = vpop.f32.mrb[0].mxu0
  %2671 = vmatprep.mubr.f32.mxu0 0.0
  %2672 = vmatmul.mubr.f32.gmra.mrb[0].mxu0 %v2477
  %v2673 = vpop.f32.mrb[0].mxu0
  %v2674 = vadd.f32 %v2569, %v2673
  %v2675 = vpop.f32.mrb[0].mxu0
  %2676 = vmatprep.mubr.f32.mxu0 0.0
  %2677 = vmatmul.mubr.f32.gmra.mrb[0].mxu0 %v2480
  %v2678 = vpop.f32.mrb[0].mxu0
  %v2679 = vadd.f32 %v2574, %v2678
  %v2680 = vpop.f32.mrb[0].mxu0
  %2681 = vmatprep.mubr.f32.mxu0 0.0
  %2682 = vmatmul.mubr.f32.gmra.mrb[0].mxu0 %v2483
  %v2683 = vpop.f32.mrb[0].mxu0
  %v2684 = vadd.f32 %v2579, %v2683
  %v2685 = vpop.f32.mrb[0].mxu0
  %2686 = vmatprep.mubr.f32.mxu0 0.0
  %2687 = vmatmul.mubr.f32.gmra.mrb[0].mxu0 %v2486
  %v2688 = vpop.f32.mrb[0].mxu0
  %v2689 = vadd.f32 %v2584, %v2688
  %v2690 = vpop.f32.mrb[0].mxu0
  %2691 = vmatprep.mubr.f32.mxu0 0.0
  %2692 = vmatmul.mubr.f32.gmra.mrb[0].mxu0 %v2489
  %v2693 = vpop.f32.mrb[0].mxu0
  %v2694 = vadd.f32 %v2589, %v2693
  %v2695 = vpop.f32.mrb[0].mxu0
  %2696 = vmatprep.mubr.f32.mxu0 0.0
  %2697 = vmatmul.mubr.f32.gmra.mrb[0].mxu0 %v2492
  %v2698 = vpop.f32.mrb[0].mxu0
  %v2699 = vadd.f32 %v2594, %v2698
  %v2700 = vpop.f32.mrb[0].mxu0
  %2701 = vmatprep.mubr.f32.mxu0 0.0
  %2702 = vmatmul.mubr.f32.gmra.mrb[0].mxu0 %v2495
  %v2703 = vpop.f32.mrb[0].mxu0
  %v2704 = vadd.f32 %v2599, %v2703
  %v2705 = vpop.f32.mrb[0].mxu0
  %2706 = vdwg.mxu0
  %v2707 = vld [vmem:[%s21] sm:$0x1]
  %v2708 = vld [vmem:[%s22] sm:$0x1]
  %v2709 = vsel %vm306, %v2669, 0.0
  %v2710 = vsel %vm306, %v2674, 0.0
  %v2711 = vadd.f32 %v2709, %v2710
  %v2712 = vsel %vm306, %v2679, 0.0
  %v2713 = vadd.f32 %v2711, %v2712
  %v2714 = vsel %vm306, %v2684, 0.0
  %v2715 = vadd.f32 %v2713, %v2714
  %v2716 = vsel %vm306, %v2689, 0.0
  %v2717 = vadd.f32 %v2715, %v2716
  %v2718 = vsel %vm306, %v2694, 0.0
  %v2719 = vadd.f32 %v2717, %v2718
  %v2720 = vsel %vm306, %v2699, 0.0
  %v2721 = vadd.f32 %v2719, %v2720
  %v2722 = vsel %vm306, %v2704, 0.0
  %v2723 = vadd.f32 %v2721, %v2722
  %v2724 = vrot.slane %v2723, 4
  %v2725 = vadd.f32 %v2723, %v2724
  %v2726 = vrot.slane %v2725, 2
  %v2727 = vadd.f32 %v2725, %v2726
  %v2728 = vrot.slane %v2727, 1
  %v2729 = vadd.f32 %v2727, %v2728
  %v2730 = vmul.f32 %v2729, 0.015625
  %v2731 = vsub.f32 %v2669, %v2730
  %v2732 = vsub.f32 %v2674, %v2730
  %v2733 = vsub.f32 %v2679, %v2730
  %v2734 = vsub.f32 %v2684, %v2730
  %v2735 = vsub.f32 %v2689, %v2730
  %v2736 = vsub.f32 %v2694, %v2730
  %v2737 = vsub.f32 %v2699, %v2730
  %v2738 = vsub.f32 %v2704, %v2730
  %v2739 = vmul.f32 %v2731, %v2731
  %v2740 = vmul.f32 %v2732, %v2732
  %v2741 = vmul.f32 %v2733, %v2733
  %v2742 = vmul.f32 %v2734, %v2734
  %v2743 = vmul.f32 %v2735, %v2735
  %v2744 = vmul.f32 %v2736, %v2736
  %v2745 = vmul.f32 %v2737, %v2737
  %v2746 = vmul.f32 %v2738, %v2738
  %v2747 = vsel %vm306, %v2739, 0.0
  %v2748 = vsel %vm306, %v2740, 0.0
  %v2749 = vadd.f32 %v2747, %v2748
  %v2750 = vsel %vm306, %v2741, 0.0
  %v2751 = vadd.f32 %v2749, %v2750
  %v2752 = vsel %vm306, %v2742, 0.0
  %v2753 = vadd.f32 %v2751, %v2752
  %v2754 = vsel %vm306, %v2743, 0.0
  %v2755 = vadd.f32 %v2753, %v2754
  %v2756 = vsel %vm306, %v2744, 0.0
  %v2757 = vadd.f32 %v2755, %v2756
  %v2758 = vsel %vm306, %v2745, 0.0
  %v2759 = vadd.f32 %v2757, %v2758
  %v2760 = vsel %vm306, %v2746, 0.0
  %v2761 = vadd.f32 %v2759, %v2760
  %v2762 = vrot.slane %v2761, 4
  %v2763 = vadd.f32 %v2761, %v2762
  %v2764 = vrot.slane %v2763, 2
  %v2765 = vadd.f32 %v2763, %v2764
  %v2766 = vrot.slane %v2765, 1
  %v2767 = vadd.f32 %v2765, %v2766
  %v2768 = vmul.f32 %v2767, 0.015625
  %v2769 = vadd.f32 %v2768, 1e-05
  %v2770 = vrsqrt.pop %v2769
  %v2771 = vmul.f32 %v2731, %v2770
  %v2772 = vmul.f32 %v2732, %v2770
  %v2773 = vmul.f32 %v2733, %v2770
  %v2774 = vmul.f32 %v2734, %v2770
  %v2775 = vmul.f32 %v2735, %v2770
  %v2776 = vmul.f32 %v2736, %v2770
  %v2777 = vmul.f32 %v2737, %v2770
  %v2778 = vmul.f32 %v2738, %v2770
  %v2780 = vlaneseq
  %v2781 = vshrl.u32 %v2780, 7
  %v2782 = vsub.s32 0, %v2781
  %v2783 = vrot.slane %v2707, %v2782
  %v2785 = vmul.f32 %v2783, %v2771
  %v2786 = vmul.f32 %v2783, %v2772
  %v2787 = vmul.f32 %v2783, %v2773
  %v2788 = vmul.f32 %v2783, %v2774
  %v2789 = vmul.f32 %v2783, %v2775
  %v2790 = vmul.f32 %v2783, %v2776
  %v2791 = vmul.f32 %v2783, %v2777
  %v2792 = vmul.f32 %v2783, %v2778
  %v2794 = vlaneseq
  %v2795 = vshrl.u32 %v2794, 7
  %v2796 = vsub.s32 0, %v2795
  %v2797 = vrot.slane %v2708, %v2796
  %v2799 = vadd.f32 %v2785, %v2797
  %v2800 = vadd.f32 %v2786, %v2797
  %v2801 = vadd.f32 %v2787, %v2797
  %v2802 = vadd.f32 %v2788, %v2797
  %v2803 = vadd.f32 %v2789, %v2797
  %v2804 = vadd.f32 %v2790, %v2797
  %v2805 = vadd.f32 %v2791, %v2797
  %v2806 = vadd.f32 %v2792, %v2797
  %v2807 = vadd.f32 %v2799, %v1677
  %v2808 = vadd.f32 %v2800, %v1678
  %v2809 = vadd.f32 %v2801, %v1679
  %v2810 = vadd.f32 %v2802, %v1680
  %v2811 = vadd.f32 %v2803, %v1681
  %v2812 = vadd.f32 %v2804, %v1682
  %v2813 = vadd.f32 %v2805, %v1683
  %v2814 = vadd.f32 %v2806, %v1684
  %s2815 = scalar_lea.vmem %s15, 320
  %v2816 = vld [vmem:[%s2815] sm:$0xff]
  %v2817 = vld [vmem:[%s2815 + $0x8] sm:$0xff]
  %v2818 = vld [vmem:[%s2815 + $0x10] sm:$0xff]
  %v2819 = vld [vmem:[%s2815 + $0x18] sm:$0xff]
  %v2820 = vld [vmem:[%s2815 + $0x20] sm:$0xff]
  %v2821 = vld [vmem:[%s2815 + $0x28] sm:$0xff]
  %v2822 = vld [vmem:[%s2815 + $0x30] sm:$0xff]
  %v2823 = vld [vmem:[%s2815 + $0x38] sm:$0xff]
  %v2824 = vld [vmem:[%s2815 + $0x40] sm:$0xff]
  %v2825 = vld [vmem:[%s2815 + $0x48] sm:$0xff]
  %v2826 = vld [vmem:[%s2815 + $0x50] sm:$0xff]
  %v2827 = vld [vmem:[%s2815 + $0x58] sm:$0xff]
  %v2828 = vld [vmem:[%s2815 + $0x60] sm:$0xff]
  %v2829 = vld [vmem:[%s2815 + $0x68] sm:$0xff]
  %v2830 = vld [vmem:[%s2815 + $0x70] sm:$0xff]
  %v2831 = vld [vmem:[%s2815 + $0x78] sm:$0xff]
  %v2832 = vld [vmem:[%s2815 + $0x80] sm:$0xff]
  %v2833 = vld [vmem:[%s2815 + $0x88] sm:$0xff]
  %v2834 = vld [vmem:[%s2815 + $0x90] sm:$0xff]
  %v2835 = vld [vmem:[%s2815 + $0x98] sm:$0xff]
  %v2836 = vld [vmem:[%s2815 + $0xa0] sm:$0xff]
  %v2837 = vld [vmem:[%s2815 + $0xa8] sm:$0xff]
  %v2838 = vld [vmem:[%s2815 + $0xb0] sm:$0xff]
  %v2839 = vld [vmem:[%s2815 + $0xb8] sm:$0xff]
  %v2840 = vld [vmem:[%s2815 + $0xc0] sm:$0xff]
  %v2841 = vld [vmem:[%s2815 + $0xc8] sm:$0xff]
  %v2842 = vld [vmem:[%s2815 + $0xd0] sm:$0xff]
  %v2843 = vld [vmem:[%s2815 + $0xd8] sm:$0xff]
  %v2844 = vld [vmem:[%s2815 + $0xe0] sm:$0xff]
  %v2845 = vld [vmem:[%s2815 + $0xe8] sm:$0xff]
  %v2846 = vld [vmem:[%s2815 + $0xf0] sm:$0xff]
  %v2847 = vld [vmem:[%s2815 + $0xf8] sm:$0xff]
  %v2848 = vld [vmem:[%s2815 + $0x100] sm:$0xff]
  %v2849 = vld [vmem:[%s2815 + $0x108] sm:$0xff]
  %v2850 = vld [vmem:[%s2815 + $0x110] sm:$0xff]
  %v2851 = vld [vmem:[%s2815 + $0x118] sm:$0xff]
  %v2852 = vld [vmem:[%s2815 + $0x120] sm:$0xff]
  %v2853 = vld [vmem:[%s2815 + $0x128] sm:$0xff]
  %v2854 = vld [vmem:[%s2815 + $0x130] sm:$0xff]
  %v2855 = vld [vmem:[%s2815 + $0x138] sm:$0xff]
  %s2856 = scalar_lea.vmem %s16, 1
  %v2857 = vld [vmem:[%s2856] sm:$0x1]
  %v2858 = vrot.slane %v2807, 6
  %v2859 = vrot.slane %v2808, 6
  %v2860 = vrot.slane %v2809, 6
  %v2861 = vrot.slane %v2810, 6
  %v2862 = vrot.slane %v2811, 6
  %v2863 = vrot.slane %v2812, 6
  %v2864 = vrot.slane %v2813, 6
  %v2865 = vrot.slane %v2814, 6
  %v2866 = vsel %vm503, %v2864, %v2865
  %v2867 = vsel %vm503, %v2863, %v2864
  %v2868 = vsel %vm503, %v2862, %v2863
  %v2869 = vsel %vm503, %v2861, %v2862
  %v2870 = vsel %vm503, %v2860, %v2861
  %v2871 = vsel %vm503, %v2859, %v2860
  %v2872 = vsel %vm503, %v2858, %v2859
  %v2873 = vsel %vm503, %v2865, %v2858
  %v2874 = vsel %vm528, %v2873, 0.0
  %v2875 = vsel %vm529, %v2872, 0.0
  %v2876 = vsel %vm530, %v2871, 0.0
  %v2877 = vsel %vm531, %v2870, 0.0
  %v2878 = vsel %vm532, %v2869, 0.0
  %v2879 = vsel %vm533, %v2868, 0.0
  %v2880 = vsel %vm534, %v2867, 0.0
  %v2881 = vsel %vm535, %v2866, 0.0
  %v2882 = vrot.slane %v2807, 7
  %v2883 = vrot.slane %v2808, 7
  %v2884 = vrot.slane %v2809, 7
  %v2885 = vrot.slane %v2810, 7
  %v2886 = vrot.slane %v2811, 7
  %v2887 = vrot.slane %v2812, 7
  %v2888 = vrot.slane %v2813, 7
  %v2889 = vrot.slane %v2814, 7
  %v2890 = vsel %vm552, %v2888, %v2889
  %v2891 = vsel %vm552, %v2887, %v2888
  %v2892 = vsel %vm552, %v2886, %v2887
  %v2893 = vsel %vm552, %v2885, %v2886
  %v2894 = vsel %vm552, %v2884, %v2885
  %v2895 = vsel %vm552, %v2883, %v2884
  %v2896 = vsel %vm552, %v2882, %v2883
  %v2897 = vsel %vm552, %v2889, %v2882
  %v2898 = vsel %vm577, %v2897, 0.0
  %v2899 = vsel %vm578, %v2896, 0.0
  %v2900 = vsel %vm579, %v2895, 0.0
  %v2901 = vsel %vm580, %v2894, 0.0
  %v2902 = vsel %vm581, %v2893, 0.0
  %v2903 = vsel %vm582, %v2892, 0.0
  %v2904 = vsel %vm583, %v2891, 0.0
  %v2905 = vsel %vm584, %v2890, 0.0
  %v2906 = vrot.slane %v2807, 1
  %v2907 = vrot.slane %v2808, 1
  %v2908 = vrot.slane %v2809, 1
  %v2909 = vrot.slane %v2810, 1
  %v2910 = vrot.slane %v2811, 1
  %v2911 = vrot.slane %v2812, 1
  %v2912 = vrot.slane %v2813, 1
  %v2913 = vrot.slane %v2814, 1
  %v2914 = vsel %vm601, %v2912, %v2913
  %v2915 = vsel %vm601, %v2911, %v2912
  %v2916 = vsel %vm601, %v2910, %v2911
  %v2917 = vsel %vm601, %v2909, %v2910
  %v2918 = vsel %vm601, %v2908, %v2909
  %v2919 = vsel %vm601, %v2907, %v2908
  %v2920 = vsel %vm601, %v2906, %v2907
  %v2921 = vsel %vm601, %v2913, %v2906
  %v2922 = vsel %vm626, %v2920, 0.0
  %v2923 = vsel %vm627, %v2919, 0.0
  %v2924 = vsel %vm628, %v2918, 0.0
  %v2925 = vsel %vm629, %v2917, 0.0
  %v2926 = vsel %vm630, %v2916, 0.0
  %v2927 = vsel %vm631, %v2915, 0.0
  %v2928 = vsel %vm632, %v2914, 0.0
  %v2929 = vsel %vm633, %v2921, 0.0
  %v2930 = vrot.slane %v2807, 2
  %v2931 = vrot.slane %v2808, 2
  %v2932 = vrot.slane %v2809, 2
  %v2933 = vrot.slane %v2810, 2
  %v2934 = vrot.slane %v2811, 2
  %v2935 = vrot.slane %v2812, 2
  %v2936 = vrot.slane %v2813, 2
  %v2937 = vrot.slane %v2814, 2
  %v2938 = vsel %vm650, %v2936, %v2937
  %v2939 = vsel %vm650, %v2935, %v2936
  %v2940 = vsel %vm650, %v2934, %v2935
  %v2941 = vsel %vm650, %v2933, %v2934
  %v2942 = vsel %vm650, %v2932, %v2933
  %v2943 = vsel %vm650, %v2931, %v2932
  %v2944 = vsel %vm650, %v2930, %v2931
  %v2945 = vsel %vm650, %v2937, %v2930
  %v2946 = vsel %vm675, %v2944, 0.0
  %v2947 = vsel %vm676, %v2943, 0.0
  %v2948 = vsel %vm677, %v2942, 0.0
  %v2949 = vsel %vm678, %v2941, 0.0
  %v2950 = vsel %vm679, %v2940, 0.0
  %v2951 = vsel %vm680, %v2939, 0.0
  %v2952 = vsel %vm681, %v2938, 0.0
  %v2953 = vsel %vm682, %v2945, 0.0
  %2962 = vrot.lane.b32.xlu0 %v2898, 64
  %v2963 = vpop.permute.xlu0 %2962
  %2964 = vrot.lane.b32.xlu0 %v2899, 64
  %v2965 = vpop.permute.xlu0 %2964
  %2966 = vrot.lane.b32.xlu0 %v2900, 64
  %v2967 = vpop.permute.xlu0 %2966
  %2968 = vrot.lane.b32.xlu0 %v2901, 64
  %v2969 = vpop.permute.xlu0 %2968
  %2970 = vrot.lane.b32.xlu0 %v2902, 64
  %v2971 = vpop.permute.xlu0 %2970
  %2972 = vrot.lane.b32.xlu0 %v2903, 64
  %v2973 = vpop.permute.xlu0 %2972
  %2974 = vrot.lane.b32.xlu0 %v2904, 64
  %v2975 = vpop.permute.xlu0 %2974
  %2976 = vrot.lane.b32.xlu0 %v2905, 64
  %v2977 = vpop.permute.xlu0 %2976
  %2994 = vrot.lane.b32.xlu0 %v2922, 64
  %v2995 = vpop.permute.xlu0 %2994
  %2996 = vrot.lane.b32.xlu0 %v2923, 64
  %v2997 = vpop.permute.xlu0 %2996
  %2998 = vrot.lane.b32.xlu0 %v2924, 64
  %v2999 = vpop.permute.xlu0 %2998
  %3000 = vrot.lane.b32.xlu0 %v2925, 64
  %v3001 = vpop.permute.xlu0 %3000
  %3002 = vrot.lane.b32.xlu0 %v2926, 64
  %v3003 = vpop.permute.xlu0 %3002
  %3004 = vrot.lane.b32.xlu0 %v2927, 64
  %v3005 = vpop.permute.xlu0 %3004
  %3006 = vrot.lane.b32.xlu0 %v2928, 64
  %v3007 = vpop.permute.xlu0 %3006
  %3008 = vrot.lane.b32.xlu0 %v2929, 64
  %v3009 = vpop.permute.xlu0 %3008
  %v3018 = vsel %vm306, %v2874, %v2963
  %v3019 = vsel %vm306, %v2875, %v2965
  %v3020 = vsel %vm306, %v2876, %v2967
  %v3021 = vsel %vm306, %v2877, %v2969
  %v3022 = vsel %vm306, %v2878, %v2971
  %v3023 = vsel %vm306, %v2879, %v2973
  %v3024 = vsel %vm306, %v2880, %v2975
  %v3025 = vsel %vm306, %v2881, %v2977
  %v3026 = vsel %vm306, %v2807, %v2995
  %v3027 = vsel %vm306, %v2808, %v2997
  %v3028 = vsel %vm306, %v2809, %v2999
  %v3029 = vsel %vm306, %v2810, %v3001
  %v3030 = vsel %vm306, %v2811, %v3003
  %v3031 = vsel %vm306, %v2812, %v3005
  %v3032 = vsel %vm306, %v2813, %v3007
  %v3033 = vsel %vm306, %v2814, %v3009
  %v3035 = vlaneseq
  %v3036 = vshrl.u32 %v3035, 7
  %v3037 = vsub.s32 0, %v3036
  %v3038 = vrot.slane %v2857, %v3037
  %v3041 = vsel %vm306, %v2946, 0
  %v3044 = vsel %vm306, %v2947, 0
  %v3047 = vsel %vm306, %v2948, 0
  %v3050 = vsel %vm306, %v2949, 0
  %v3053 = vsel %vm306, %v2950, 0
  %v3056 = vsel %vm306, %v2951, 0
  %v3059 = vsel %vm306, %v2952, 0
  %v3062 = vsel %vm306, %v2953, 0
  %3064 = vmatprep.subr.mxu0 0.0
  %3065 = vmatpush1.msra.mxu0 %v2816
  %3066 = vmatprep.subr.mxu0 0.0
  %3067 = vmatpush1.msra.mxu0 %v2817
  %3068 = vmatprep.subr.mxu0 0.0
  %3069 = vmatpush1.msra.mxu0 %v2818
  %3070 = vmatprep.subr.mxu0 0.0
  %3071 = vmatpush1.msra.mxu0 %v2819
  %3072 = vmatprep.subr.mxu0 0.0
  %3073 = vmatpush1.msra.mxu0 %v2820
  %3074 = vmatprep.subr.mxu0 0.0
  %3075 = vmatpush1.msra.mxu0 %v2821
  %3076 = vmatprep.subr.mxu0 0.0
  %3077 = vmatpush1.msra.mxu0 %v2822
  %3078 = vmatprep.subr.mxu0 0.0
  %3079 = vmatpush1.msra.mxu0 %v2823
  %3080 = vmatprep.subr.mxu0 0.0
  %3081 = vmatpush1.msra.mxu0 %v2824
  %3082 = vmatprep.subr.mxu0 0.0
  %3083 = vmatpush1.msra.mxu0 %v2825
  %3084 = vmatprep.subr.mxu0 0.0
  %3085 = vmatpush1.msra.mxu0 %v2826
  %3086 = vmatprep.subr.mxu0 0.0
  %3087 = vmatpush1.msra.mxu0 %v2827
  %3088 = vmatprep.subr.mxu0 0.0
  %3089 = vmatpush1.msra.mxu0 %v2828
  %3090 = vmatprep.subr.mxu0 0.0
  %3091 = vmatpush1.msra.mxu0 %v2829
  %3092 = vmatprep.subr.mxu0 0.0
  %3093 = vmatpush1.msra.mxu0 %v2830
  %3094 = vmatprep.subr.mxu0 0.0
  %3095 = vmatpush1.msra.mxu0 %v2831
  %3096 = vmatprep.subr.mxu0 0.0
  %3097 = vmatpush1.msra.mxu0 %v2832
  %3098 = vmatprep.subr.mxu0 0.0
  %3099 = vmatpush1.msra.mxu0 %v2833
  %3100 = vmatprep.subr.mxu0 0.0
  %3101 = vmatpush1.msra.mxu0 %v2834
  %3102 = vmatprep.subr.mxu0 0.0
  %3103 = vmatpush1.msra.mxu0 %v2835
  %3104 = vmatprep.subr.mxu0 0.0
  %3105 = vmatpush1.msra.mxu0 %v2836
  %3106 = vmatprep.subr.mxu0 0.0
  %3107 = vmatpush1.msra.mxu0 %v2837
  %3108 = vmatprep.subr.mxu0 0.0
  %3109 = vmatpush1.msra.mxu0 %v2838
  %3110 = vmatprep.subr.mxu0 0.0
  %3111 = vmatpush1.msra.mxu0 %v2839
  %3112 = vmatprep.subr.mxu0 0.0
  %3113 = vmatpush1.msra.mxu0 %v2840
  %3114 = vmatprep.subr.mxu0 0.0
  %3115 = vmatpush1.msra.mxu0 %v2841
  %3116 = vmatprep.subr.mxu0 0.0
  %3117 = vmatpush1.msra.mxu0 %v2842
  %3118 = vmatprep.subr.mxu0 0.0
  %3119 = vmatpush1.msra.mxu0 %v2843
  %3120 = vmatprep.subr.mxu0 0.0
  %3121 = vmatpush1.msra.mxu0 %v2844
  %3122 = vmatprep.subr.mxu0 0.0
  %3123 = vmatpush1.msra.mxu0 %v2845
  %3124 = vmatprep.subr.mxu0 0.0
  %3125 = vmatpush1.msra.mxu0 %v2846
  %3126 = vmatprep.subr.mxu0 0.0
  %3127 = vmatpush1.msra.mxu0 %v2847
  %3128 = vmatprep.mubr.f32.mxu0 %v3026
  %3129 = vmatmul.mubr.f32.gmra.mrb[0].mxu0 %v3018
  %v3130 = vpop.f32.mrb[0].mxu0
  %v3131 = vadd.f32 %v3038, %v3130
  %v3132 = vpop.f32.mrb[0].mxu0
  %3133 = vmatprep.mubr.f32.mxu0 %v3027
  %3134 = vmatmul.mubr.f32.gmra.mrb[0].mxu0 %v3019
  %v3135 = vpop.f32.mrb[0].mxu0
  %v3136 = vadd.f32 %v3038, %v3135
  %v3137 = vpop.f32.mrb[0].mxu0
  %3138 = vmatprep.mubr.f32.mxu0 %v3028
  %3139 = vmatmul.mubr.f32.gmra.mrb[0].mxu0 %v3020
  %v3140 = vpop.f32.mrb[0].mxu0
  %v3141 = vadd.f32 %v3038, %v3140
  %v3142 = vpop.f32.mrb[0].mxu0
  %3143 = vmatprep.mubr.f32.mxu0 %v3029
  %3144 = vmatmul.mubr.f32.gmra.mrb[0].mxu0 %v3021
  %v3145 = vpop.f32.mrb[0].mxu0
  %v3146 = vadd.f32 %v3038, %v3145
  %v3147 = vpop.f32.mrb[0].mxu0
  %3148 = vmatprep.mubr.f32.mxu0 %v3030
  %3149 = vmatmul.mubr.f32.gmra.mrb[0].mxu0 %v3022
  %v3150 = vpop.f32.mrb[0].mxu0
  %v3151 = vadd.f32 %v3038, %v3150
  %v3152 = vpop.f32.mrb[0].mxu0
  %3153 = vmatprep.mubr.f32.mxu0 %v3031
  %3154 = vmatmul.mubr.f32.gmra.mrb[0].mxu0 %v3023
  %v3155 = vpop.f32.mrb[0].mxu0
  %v3156 = vadd.f32 %v3038, %v3155
  %v3157 = vpop.f32.mrb[0].mxu0
  %3158 = vmatprep.mubr.f32.mxu0 %v3032
  %3159 = vmatmul.mubr.f32.gmra.mrb[0].mxu0 %v3024
  %v3160 = vpop.f32.mrb[0].mxu0
  %v3161 = vadd.f32 %v3038, %v3160
  %v3162 = vpop.f32.mrb[0].mxu0
  %3163 = vmatprep.mubr.f32.mxu0 %v3033
  %3164 = vmatmul.mubr.f32.gmra.mrb[0].mxu0 %v3025
  %v3165 = vpop.f32.mrb[0].mxu0
  %v3166 = vadd.f32 %v3038, %v3165
  %v3167 = vpop.f32.mrb[0].mxu0
  %3168 = vdwg.mxu0
  %3169 = vmatprep.subr.mxu0 0.0
  %3170 = vmatpush1.msra.mxu0 %v2848
  %3171 = vmatprep.subr.mxu0 0.0
  %3172 = vmatpush1.msra.mxu0 %v2849
  %3173 = vmatprep.subr.mxu0 0.0
  %3174 = vmatpush1.msra.mxu0 %v2850
  %3175 = vmatprep.subr.mxu0 0.0
  %3176 = vmatpush1.msra.mxu0 %v2851
  %3177 = vmatprep.subr.mxu0 0.0
  %3178 = vmatpush1.msra.mxu0 %v2852
  %3179 = vmatprep.subr.mxu0 0.0
  %3180 = vmatpush1.msra.mxu0 %v2853
  %3181 = vmatprep.subr.mxu0 0.0
  %3182 = vmatpush1.msra.mxu0 %v2854
  %3183 = vmatprep.subr.mxu0 0.0
  %3184 = vmatpush1.msra.mxu0 %v2855
  %3185 = vmatprep.subr.mxu0 0.0
  %3186 = vmatpush1.msra.mxu0 0.0
  %3187 = vmatprep.subr.mxu0 0.0
  %3188 = vmatpush1.msra.mxu0 0.0
  %3189 = vmatprep.subr.mxu0 0.0
  %3190 = vmatpush1.msra.mxu0 0.0
  %3191 = vmatprep.subr.mxu0 0.0
  %3192 = vmatpush1.msra.mxu0 0.0
  %3193 = vmatprep.subr.mxu0 0.0
  %3194 = vmatpush1.msra.mxu0 0.0
  %3195 = vmatprep.subr.mxu0 0.0
  %3196 = vmatpush1.msra.mxu0 0.0
  %3197 = vmatprep.subr.mxu0 0.0
  %3198 = vmatpush1.msra.mxu0 0.0
  %3199 = vmatprep.subr.mxu0 0.0
  %3200 = vmatpush1.msra.mxu0 0.0
  %3201 = vmatprep.subr.mxu0 0.0
  %3202 = vmatpush1.msra.mxu0 0.0
  %3203 = vmatprep.subr.mxu0 0.0
  %3204 = vmatpush1.msra.mxu0 0.0
  %3205 = vmatprep.subr.mxu0 0.0
  %3206 = vmatpush1.msra.mxu0 0.0
  %3207 = vmatprep.subr.mxu0 0.0
  %3208 = vmatpush1.msra.mxu0 0.0
  %3209 = vmatprep.subr.mxu0 0.0
  %3210 = vmatpush1.msra.mxu0 0.0
  %3211 = vmatprep.subr.mxu0 0.0
  %3212 = vmatpush1.msra.mxu0 0.0
  %3213 = vmatprep.subr.mxu0 0.0
  %3214 = vmatpush1.msra.mxu0 0.0
  %3215 = vmatprep.subr.mxu0 0.0
  %3216 = vmatpush1.msra.mxu0 0.0
  %3217 = vmatprep.subr.mxu0 0.0
  %3218 = vmatpush1.msra.mxu0 0.0
  %3219 = vmatprep.subr.mxu0 0.0
  %3220 = vmatpush1.msra.mxu0 0.0
  %3221 = vmatprep.subr.mxu0 0.0
  %3222 = vmatpush1.msra.mxu0 0.0
  %3223 = vmatprep.subr.mxu0 0.0
  %3224 = vmatpush1.msra.mxu0 0.0
  %3225 = vmatprep.subr.mxu0 0.0
  %3226 = vmatpush1.msra.mxu0 0.0
  %3227 = vmatprep.subr.mxu0 0.0
  %3228 = vmatpush1.msra.mxu0 0.0
  %3229 = vmatprep.subr.mxu0 0.0
  %3230 = vmatpush1.msra.mxu0 0.0
  %3231 = vmatprep.subr.mxu0 0.0
  %3232 = vmatpush1.msra.mxu0 0.0
  %3233 = vmatprep.mubr.f32.mxu0 0.0
  %3234 = vmatmul.mubr.f32.gmra.mrb[0].mxu0 %v3041
  %v3235 = vpop.f32.mrb[0].mxu0
  %v3236 = vadd.f32 %v3131, %v3235
  %v3237 = vpop.f32.mrb[0].mxu0
  %3238 = vmatprep.mubr.f32.mxu0 0.0
  %3239 = vmatmul.mubr.f32.gmra.mrb[0].mxu0 %v3044
  %v3240 = vpop.f32.mrb[0].mxu0
  %v3241 = vadd.f32 %v3136, %v3240
  %v3242 = vpop.f32.mrb[0].mxu0
  %3243 = vmatprep.mubr.f32.mxu0 0.0
  %3244 = vmatmul.mubr.f32.gmra.mrb[0].mxu0 %v3047
  %v3245 = vpop.f32.mrb[0].mxu0
  %v3246 = vadd.f32 %v3141, %v3245
  %v3247 = vpop.f32.mrb[0].mxu0
  %3248 = vmatprep.mubr.f32.mxu0 0.0
  %3249 = vmatmul.mubr.f32.gmra.mrb[0].mxu0 %v3050
  %v3250 = vpop.f32.mrb[0].mxu0
  %v3251 = vadd.f32 %v3146, %v3250
  %v3252 = vpop.f32.mrb[0].mxu0
  %3253 = vmatprep.mubr.f32.mxu0 0.0
  %3254 = vmatmul.mubr.f32.gmra.mrb[0].mxu0 %v3053
  %v3255 = vpop.f32.mrb[0].mxu0
  %v3256 = vadd.f32 %v3151, %v3255
  %v3257 = vpop.f32.mrb[0].mxu0
  %3258 = vmatprep.mubr.f32.mxu0 0.0
  %3259 = vmatmul.mubr.f32.gmra.mrb[0].mxu0 %v3056
  %v3260 = vpop.f32.mrb[0].mxu0
  %v3261 = vadd.f32 %v3156, %v3260
  %v3262 = vpop.f32.mrb[0].mxu0
  %3263 = vmatprep.mubr.f32.mxu0 0.0
  %3264 = vmatmul.mubr.f32.gmra.mrb[0].mxu0 %v3059
  %v3265 = vpop.f32.mrb[0].mxu0
  %v3266 = vadd.f32 %v3161, %v3265
  %v3267 = vpop.f32.mrb[0].mxu0
  %3268 = vmatprep.mubr.f32.mxu0 0.0
  %3269 = vmatmul.mubr.f32.gmra.mrb[0].mxu0 %v3062
  %v3270 = vpop.f32.mrb[0].mxu0
  %v3271 = vadd.f32 %v3166, %v3270
  %v3272 = vpop.f32.mrb[0].mxu0
  %3273 = vdwg.mxu0
  %s3274 = scalar_lea.vmem %s17, 1
  %v3275 = vld [vmem:[%s3274] sm:$0x1]
  %s3276 = scalar_lea.vmem %s18, 1
  %v3277 = vld [vmem:[%s3276] sm:$0x1]
  %v3278 = vsel %vm306, %v3236, 0.0
  %v3279 = vsel %vm306, %v3241, 0.0
  %v3280 = vadd.f32 %v3278, %v3279
  %v3281 = vsel %vm306, %v3246, 0.0
  %v3282 = vadd.f32 %v3280, %v3281
  %v3283 = vsel %vm306, %v3251, 0.0
  %v3284 = vadd.f32 %v3282, %v3283
  %v3285 = vsel %vm306, %v3256, 0.0
  %v3286 = vadd.f32 %v3284, %v3285
  %v3287 = vsel %vm306, %v3261, 0.0
  %v3288 = vadd.f32 %v3286, %v3287
  %v3289 = vsel %vm306, %v3266, 0.0
  %v3290 = vadd.f32 %v3288, %v3289
  %v3291 = vsel %vm306, %v3271, 0.0
  %v3292 = vadd.f32 %v3290, %v3291
  %v3293 = vrot.slane %v3292, 4
  %v3294 = vadd.f32 %v3292, %v3293
  %v3295 = vrot.slane %v3294, 2
  %v3296 = vadd.f32 %v3294, %v3295
  %v3297 = vrot.slane %v3296, 1
  %v3298 = vadd.f32 %v3296, %v3297
  %v3299 = vmul.f32 %v3298, 0.015625
  %v3300 = vsub.f32 %v3236, %v3299
  %v3301 = vsub.f32 %v3241, %v3299
  %v3302 = vsub.f32 %v3246, %v3299
  %v3303 = vsub.f32 %v3251, %v3299
  %v3304 = vsub.f32 %v3256, %v3299
  %v3305 = vsub.f32 %v3261, %v3299
  %v3306 = vsub.f32 %v3266, %v3299
  %v3307 = vsub.f32 %v3271, %v3299
  %v3308 = vmul.f32 %v3300, %v3300
  %v3309 = vmul.f32 %v3301, %v3301
  %v3310 = vmul.f32 %v3302, %v3302
  %v3311 = vmul.f32 %v3303, %v3303
  %v3312 = vmul.f32 %v3304, %v3304
  %v3313 = vmul.f32 %v3305, %v3305
  %v3314 = vmul.f32 %v3306, %v3306
  %v3315 = vmul.f32 %v3307, %v3307
  %v3316 = vsel %vm306, %v3308, 0.0
  %v3317 = vsel %vm306, %v3309, 0.0
  %v3318 = vadd.f32 %v3316, %v3317
  %v3319 = vsel %vm306, %v3310, 0.0
  %v3320 = vadd.f32 %v3318, %v3319
  %v3321 = vsel %vm306, %v3311, 0.0
  %v3322 = vadd.f32 %v3320, %v3321
  %v3323 = vsel %vm306, %v3312, 0.0
  %v3324 = vadd.f32 %v3322, %v3323
  %v3325 = vsel %vm306, %v3313, 0.0
  %v3326 = vadd.f32 %v3324, %v3325
  %v3327 = vsel %vm306, %v3314, 0.0
  %v3328 = vadd.f32 %v3326, %v3327
  %v3329 = vsel %vm306, %v3315, 0.0
  %v3330 = vadd.f32 %v3328, %v3329
  %v3331 = vrot.slane %v3330, 4
  %v3332 = vadd.f32 %v3330, %v3331
  %v3333 = vrot.slane %v3332, 2
  %v3334 = vadd.f32 %v3332, %v3333
  %v3335 = vrot.slane %v3334, 1
  %v3336 = vadd.f32 %v3334, %v3335
  %v3337 = vmul.f32 %v3336, 0.015625
  %v3338 = vadd.f32 %v3337, 1e-05
  %v3339 = vrsqrt.pop %v3338
  %v3340 = vmul.f32 %v3300, %v3339
  %v3341 = vmul.f32 %v3301, %v3339
  %v3342 = vmul.f32 %v3302, %v3339
  %v3343 = vmul.f32 %v3303, %v3339
  %v3344 = vmul.f32 %v3304, %v3339
  %v3345 = vmul.f32 %v3305, %v3339
  %v3346 = vmul.f32 %v3306, %v3339
  %v3347 = vmul.f32 %v3307, %v3339
  %v3349 = vlaneseq
  %v3350 = vshrl.u32 %v3349, 7
  %v3351 = vsub.s32 0, %v3350
  %v3352 = vrot.slane %v3275, %v3351
  %v3354 = vmul.f32 %v3352, %v3340
  %v3355 = vmul.f32 %v3352, %v3341
  %v3356 = vmul.f32 %v3352, %v3342
  %v3357 = vmul.f32 %v3352, %v3343
  %v3358 = vmul.f32 %v3352, %v3344
  %v3359 = vmul.f32 %v3352, %v3345
  %v3360 = vmul.f32 %v3352, %v3346
  %v3361 = vmul.f32 %v3352, %v3347
  %v3363 = vlaneseq
  %v3364 = vshrl.u32 %v3363, 7
  %v3365 = vsub.s32 0, %v3364
  %v3366 = vrot.slane %v3277, %v3365
  %v3368 = vadd.f32 %v3354, %v3366
  %v3369 = vadd.f32 %v3355, %v3366
  %v3370 = vadd.f32 %v3356, %v3366
  %v3371 = vadd.f32 %v3357, %v3366
  %v3372 = vadd.f32 %v3358, %v3366
  %v3373 = vadd.f32 %v3359, %v3366
  %v3374 = vadd.f32 %v3360, %v3366
  %v3375 = vadd.f32 %v3361, %v3366
  %v3376 = vtanh.pop %v3368
  %v3377 = vtanh.pop %v3369
  %v3378 = vtanh.pop %v3370
  %v3379 = vtanh.pop %v3371
  %v3380 = vtanh.pop %v3372
  %v3381 = vtanh.pop %v3373
  %v3382 = vtanh.pop %v3374
  %v3383 = vtanh.pop %v3375
  %s3384 = scalar_lea.vmem %s19, 320
  %v3385 = vld [vmem:[%s3384] sm:$0xff]
  %v3386 = vld [vmem:[%s3384 + $0x8] sm:$0xff]
  %v3387 = vld [vmem:[%s3384 + $0x10] sm:$0xff]
  %v3388 = vld [vmem:[%s3384 + $0x18] sm:$0xff]
  %v3389 = vld [vmem:[%s3384 + $0x20] sm:$0xff]
  %v3390 = vld [vmem:[%s3384 + $0x28] sm:$0xff]
  %v3391 = vld [vmem:[%s3384 + $0x30] sm:$0xff]
  %v3392 = vld [vmem:[%s3384 + $0x38] sm:$0xff]
  %v3393 = vld [vmem:[%s3384 + $0x40] sm:$0xff]
  %v3394 = vld [vmem:[%s3384 + $0x48] sm:$0xff]
  %v3395 = vld [vmem:[%s3384 + $0x50] sm:$0xff]
  %v3396 = vld [vmem:[%s3384 + $0x58] sm:$0xff]
  %v3397 = vld [vmem:[%s3384 + $0x60] sm:$0xff]
  %v3398 = vld [vmem:[%s3384 + $0x68] sm:$0xff]
  %v3399 = vld [vmem:[%s3384 + $0x70] sm:$0xff]
  %v3400 = vld [vmem:[%s3384 + $0x78] sm:$0xff]
  %v3401 = vld [vmem:[%s3384 + $0x80] sm:$0xff]
  %v3402 = vld [vmem:[%s3384 + $0x88] sm:$0xff]
  %v3403 = vld [vmem:[%s3384 + $0x90] sm:$0xff]
  %v3404 = vld [vmem:[%s3384 + $0x98] sm:$0xff]
  %v3405 = vld [vmem:[%s3384 + $0xa0] sm:$0xff]
  %v3406 = vld [vmem:[%s3384 + $0xa8] sm:$0xff]
  %v3407 = vld [vmem:[%s3384 + $0xb0] sm:$0xff]
  %v3408 = vld [vmem:[%s3384 + $0xb8] sm:$0xff]
  %v3409 = vld [vmem:[%s3384 + $0xc0] sm:$0xff]
  %v3410 = vld [vmem:[%s3384 + $0xc8] sm:$0xff]
  %v3411 = vld [vmem:[%s3384 + $0xd0] sm:$0xff]
  %v3412 = vld [vmem:[%s3384 + $0xd8] sm:$0xff]
  %v3413 = vld [vmem:[%s3384 + $0xe0] sm:$0xff]
  %v3414 = vld [vmem:[%s3384 + $0xe8] sm:$0xff]
  %v3415 = vld [vmem:[%s3384 + $0xf0] sm:$0xff]
  %v3416 = vld [vmem:[%s3384 + $0xf8] sm:$0xff]
  %v3417 = vld [vmem:[%s3384 + $0x100] sm:$0xff]
  %v3418 = vld [vmem:[%s3384 + $0x108] sm:$0xff]
  %v3419 = vld [vmem:[%s3384 + $0x110] sm:$0xff]
  %v3420 = vld [vmem:[%s3384 + $0x118] sm:$0xff]
  %v3421 = vld [vmem:[%s3384 + $0x120] sm:$0xff]
  %v3422 = vld [vmem:[%s3384 + $0x128] sm:$0xff]
  %v3423 = vld [vmem:[%s3384 + $0x130] sm:$0xff]
  %v3424 = vld [vmem:[%s3384 + $0x138] sm:$0xff]
  %s3425 = scalar_lea.vmem %s20, 1
  %v3426 = vld [vmem:[%s3425] sm:$0x1]
  %v3427 = vrot.slane %v3376, 6
  %v3428 = vrot.slane %v3377, 6
  %v3429 = vrot.slane %v3378, 6
  %v3430 = vrot.slane %v3379, 6
  %v3431 = vrot.slane %v3380, 6
  %v3432 = vrot.slane %v3381, 6
  %v3433 = vrot.slane %v3382, 6
  %v3434 = vrot.slane %v3383, 6
  %v3435 = vsel %vm503, %v3433, %v3434
  %v3436 = vsel %vm503, %v3432, %v3433
  %v3437 = vsel %vm503, %v3431, %v3432
  %v3438 = vsel %vm503, %v3430, %v3431
  %v3439 = vsel %vm503, %v3429, %v3430
  %v3440 = vsel %vm503, %v3428, %v3429
  %v3441 = vsel %vm503, %v3427, %v3428
  %v3442 = vsel %vm503, %v3434, %v3427
  %v3443 = vsel %vm528, %v3442, 0.0
  %v3444 = vsel %vm529, %v3441, 0.0
  %v3445 = vsel %vm530, %v3440, 0.0
  %v3446 = vsel %vm531, %v3439, 0.0
  %v3447 = vsel %vm532, %v3438, 0.0
  %v3448 = vsel %vm533, %v3437, 0.0
  %v3449 = vsel %vm534, %v3436, 0.0
  %v3450 = vsel %vm535, %v3435, 0.0
  %v3451 = vrot.slane %v3376, 7
  %v3452 = vrot.slane %v3377, 7
  %v3453 = vrot.slane %v3378, 7
  %v3454 = vrot.slane %v3379, 7
  %v3455 = vrot.slane %v3380, 7
  %v3456 = vrot.slane %v3381, 7
  %v3457 = vrot.slane %v3382, 7
  %v3458 = vrot.slane %v3383, 7
  %v3459 = vsel %vm552, %v3457, %v3458
  %v3460 = vsel %vm552, %v3456, %v3457
  %v3461 = vsel %vm552, %v3455, %v3456
  %v3462 = vsel %vm552, %v3454, %v3455
  %v3463 = vsel %vm552, %v3453, %v3454
  %v3464 = vsel %vm552, %v3452, %v3453
  %v3465 = vsel %vm552, %v3451, %v3452
  %v3466 = vsel %vm552, %v3458, %v3451
  %v3467 = vsel %vm577, %v3466, 0.0
  %v3468 = vsel %vm578, %v3465, 0.0
  %v3469 = vsel %vm579, %v3464, 0.0
  %v3470 = vsel %vm580, %v3463, 0.0
  %v3471 = vsel %vm581, %v3462, 0.0
  %v3472 = vsel %vm582, %v3461, 0.0
  %v3473 = vsel %vm583, %v3460, 0.0
  %v3474 = vsel %vm584, %v3459, 0.0
  %v3475 = vrot.slane %v3376, 1
  %v3476 = vrot.slane %v3377, 1
  %v3477 = vrot.slane %v3378, 1
  %v3478 = vrot.slane %v3379, 1
  %v3479 = vrot.slane %v3380, 1
  %v3480 = vrot.slane %v3381, 1
  %v3481 = vrot.slane %v3382, 1
  %v3482 = vrot.slane %v3383, 1
  %v3483 = vsel %vm601, %v3481, %v3482
  %v3484 = vsel %vm601, %v3480, %v3481
  %v3485 = vsel %vm601, %v3479, %v3480
  %v3486 = vsel %vm601, %v3478, %v3479
  %v3487 = vsel %vm601, %v3477, %v3478
  %v3488 = vsel %vm601, %v3476, %v3477
  %v3489 = vsel %vm601, %v3475, %v3476
  %v3490 = vsel %vm601, %v3482, %v3475
  %v3491 = vsel %vm626, %v3489, 0.0
  %v3492 = vsel %vm627, %v3488, 0.0
  %v3493 = vsel %vm628, %v3487, 0.0
  %v3494 = vsel %vm629, %v3486, 0.0
  %v3495 = vsel %vm630, %v3485, 0.0
  %v3496 = vsel %vm631, %v3484, 0.0
  %v3497 = vsel %vm632, %v3483, 0.0
  %v3498 = vsel %vm633, %v3490, 0.0
  %v3499 = vrot.slane %v3376, 2
  %v3500 = vrot.slane %v3377, 2
  %v3501 = vrot.slane %v3378, 2
  %v3502 = vrot.slane %v3379, 2
  %v3503 = vrot.slane %v3380, 2
  %v3504 = vrot.slane %v3381, 2
  %v3505 = vrot.slane %v3382, 2
  %v3506 = vrot.slane %v3383, 2
  %v3507 = vsel %vm650, %v3505, %v3506
  %v3508 = vsel %vm650, %v3504, %v3505
  %v3509 = vsel %vm650, %v3503, %v3504
  %v3510 = vsel %vm650, %v3502, %v3503
  %v3511 = vsel %vm650, %v3501, %v3502
  %v3512 = vsel %vm650, %v3500, %v3501
  %v3513 = vsel %vm650, %v3499, %v3500
  %v3514 = vsel %vm650, %v3506, %v3499
  %v3515 = vsel %vm675, %v3513, 0.0
  %v3516 = vsel %vm676, %v3512, 0.0
  %v3517 = vsel %vm677, %v3511, 0.0
  %v3518 = vsel %vm678, %v3510, 0.0
  %v3519 = vsel %vm679, %v3509, 0.0
  %v3520 = vsel %vm680, %v3508, 0.0
  %v3521 = vsel %vm681, %v3507, 0.0
  %v3522 = vsel %vm682, %v3514, 0.0
  %3531 = vrot.lane.b32.xlu0 %v3467, 64
  %v3532 = vpop.permute.xlu0 %3531
  %3533 = vrot.lane.b32.xlu0 %v3468, 64
  %v3534 = vpop.permute.xlu0 %3533
  %3535 = vrot.lane.b32.xlu0 %v3469, 64
  %v3536 = vpop.permute.xlu0 %3535
  %3537 = vrot.lane.b32.xlu0 %v3470, 64
  %v3538 = vpop.permute.xlu0 %3537
  %3539 = vrot.lane.b32.xlu0 %v3471, 64
  %v3540 = vpop.permute.xlu0 %3539
  %3541 = vrot.lane.b32.xlu0 %v3472, 64
  %v3542 = vpop.permute.xlu0 %3541
  %3543 = vrot.lane.b32.xlu0 %v3473, 64
  %v3544 = vpop.permute.xlu0 %3543
  %3545 = vrot.lane.b32.xlu0 %v3474, 64
  %v3546 = vpop.permute.xlu0 %3545
  %3563 = vrot.lane.b32.xlu0 %v3491, 64
  %v3564 = vpop.permute.xlu0 %3563
  %3565 = vrot.lane.b32.xlu0 %v3492, 64
  %v3566 = vpop.permute.xlu0 %3565
  %3567 = vrot.lane.b32.xlu0 %v3493, 64
  %v3568 = vpop.permute.xlu0 %3567
  %3569 = vrot.lane.b32.xlu0 %v3494, 64
  %v3570 = vpop.permute.xlu0 %3569
  %3571 = vrot.lane.b32.xlu0 %v3495, 64
  %v3572 = vpop.permute.xlu0 %3571
  %3573 = vrot.lane.b32.xlu0 %v3496, 64
  %v3574 = vpop.permute.xlu0 %3573
  %3575 = vrot.lane.b32.xlu0 %v3497, 64
  %v3576 = vpop.permute.xlu0 %3575
  %3577 = vrot.lane.b32.xlu0 %v3498, 64
  %v3578 = vpop.permute.xlu0 %3577
  %v3587 = vsel %vm306, %v3443, %v3532
  %v3588 = vsel %vm306, %v3444, %v3534
  %v3589 = vsel %vm306, %v3445, %v3536
  %v3590 = vsel %vm306, %v3446, %v3538
  %v3591 = vsel %vm306, %v3447, %v3540
  %v3592 = vsel %vm306, %v3448, %v3542
  %v3593 = vsel %vm306, %v3449, %v3544
  %v3594 = vsel %vm306, %v3450, %v3546
  %v3595 = vsel %vm306, %v3376, %v3564
  %v3596 = vsel %vm306, %v3377, %v3566
  %v3597 = vsel %vm306, %v3378, %v3568
  %v3598 = vsel %vm306, %v3379, %v3570
  %v3599 = vsel %vm306, %v3380, %v3572
  %v3600 = vsel %vm306, %v3381, %v3574
  %v3601 = vsel %vm306, %v3382, %v3576
  %v3602 = vsel %vm306, %v3383, %v3578
  %v3604 = vlaneseq
  %v3605 = vshrl.u32 %v3604, 7
  %v3606 = vsub.s32 0, %v3605
  %v3607 = vrot.slane %v3426, %v3606
  %v3610 = vsel %vm306, %v3515, 0
  %v3613 = vsel %vm306, %v3516, 0
  %v3616 = vsel %vm306, %v3517, 0
  %v3619 = vsel %vm306, %v3518, 0
  %v3622 = vsel %vm306, %v3519, 0
  %v3625 = vsel %vm306, %v3520, 0
  %v3628 = vsel %vm306, %v3521, 0
  %v3631 = vsel %vm306, %v3522, 0
  %3633 = vmatprep.subr.mxu0 0.0
  %3634 = vmatpush1.msra.mxu0 %v3385
  %3635 = vmatprep.subr.mxu0 0.0
  %3636 = vmatpush1.msra.mxu0 %v3386
  %3637 = vmatprep.subr.mxu0 0.0
  %3638 = vmatpush1.msra.mxu0 %v3387
  %3639 = vmatprep.subr.mxu0 0.0
  %3640 = vmatpush1.msra.mxu0 %v3388
  %3641 = vmatprep.subr.mxu0 0.0
  %3642 = vmatpush1.msra.mxu0 %v3389
  %3643 = vmatprep.subr.mxu0 0.0
  %3644 = vmatpush1.msra.mxu0 %v3390
  %3645 = vmatprep.subr.mxu0 0.0
  %3646 = vmatpush1.msra.mxu0 %v3391
  %3647 = vmatprep.subr.mxu0 0.0
  %3648 = vmatpush1.msra.mxu0 %v3392
  %3649 = vmatprep.subr.mxu0 0.0
  %3650 = vmatpush1.msra.mxu0 %v3393
  %3651 = vmatprep.subr.mxu0 0.0
  %3652 = vmatpush1.msra.mxu0 %v3394
  %3653 = vmatprep.subr.mxu0 0.0
  %3654 = vmatpush1.msra.mxu0 %v3395
  %3655 = vmatprep.subr.mxu0 0.0
  %3656 = vmatpush1.msra.mxu0 %v3396
  %3657 = vmatprep.subr.mxu0 0.0
  %3658 = vmatpush1.msra.mxu0 %v3397
  %3659 = vmatprep.subr.mxu0 0.0
  %3660 = vmatpush1.msra.mxu0 %v3398
  %3661 = vmatprep.subr.mxu0 0.0
  %3662 = vmatpush1.msra.mxu0 %v3399
  %3663 = vmatprep.subr.mxu0 0.0
  %3664 = vmatpush1.msra.mxu0 %v3400
  %3665 = vmatprep.subr.mxu0 0.0
  %3666 = vmatpush1.msra.mxu0 %v3401
  %3667 = vmatprep.subr.mxu0 0.0
  %3668 = vmatpush1.msra.mxu0 %v3402
  %3669 = vmatprep.subr.mxu0 0.0
  %3670 = vmatpush1.msra.mxu0 %v3403
  %3671 = vmatprep.subr.mxu0 0.0
  %3672 = vmatpush1.msra.mxu0 %v3404
  %3673 = vmatprep.subr.mxu0 0.0
  %3674 = vmatpush1.msra.mxu0 %v3405
  %3675 = vmatprep.subr.mxu0 0.0
  %3676 = vmatpush1.msra.mxu0 %v3406
  %3677 = vmatprep.subr.mxu0 0.0
  %3678 = vmatpush1.msra.mxu0 %v3407
  %3679 = vmatprep.subr.mxu0 0.0
  %3680 = vmatpush1.msra.mxu0 %v3408
  %3681 = vmatprep.subr.mxu0 0.0
  %3682 = vmatpush1.msra.mxu0 %v3409
  %3683 = vmatprep.subr.mxu0 0.0
  %3684 = vmatpush1.msra.mxu0 %v3410
  %3685 = vmatprep.subr.mxu0 0.0
  %3686 = vmatpush1.msra.mxu0 %v3411
  %3687 = vmatprep.subr.mxu0 0.0
  %3688 = vmatpush1.msra.mxu0 %v3412
  %3689 = vmatprep.subr.mxu0 0.0
  %3690 = vmatpush1.msra.mxu0 %v3413
  %3691 = vmatprep.subr.mxu0 0.0
  %3692 = vmatpush1.msra.mxu0 %v3414
  %3693 = vmatprep.subr.mxu0 0.0
  %3694 = vmatpush1.msra.mxu0 %v3415
  %3695 = vmatprep.subr.mxu0 0.0
  %3696 = vmatpush1.msra.mxu0 %v3416
  %3697 = vmatprep.mubr.f32.mxu0 %v3595
  %3698 = vmatmul.mubr.f32.gmra.mrb[0].mxu0 %v3587
  %v3699 = vpop.f32.mrb[0].mxu0
  %v3700 = vadd.f32 %v3607, %v3699
  %v3701 = vpop.f32.mrb[0].mxu0
  %3702 = vmatprep.mubr.f32.mxu0 %v3596
  %3703 = vmatmul.mubr.f32.gmra.mrb[0].mxu0 %v3588
  %v3704 = vpop.f32.mrb[0].mxu0
  %v3705 = vadd.f32 %v3607, %v3704
  %v3706 = vpop.f32.mrb[0].mxu0
  %3707 = vmatprep.mubr.f32.mxu0 %v3597
  %3708 = vmatmul.mubr.f32.gmra.mrb[0].mxu0 %v3589
  %v3709 = vpop.f32.mrb[0].mxu0
  %v3710 = vadd.f32 %v3607, %v3709
  %v3711 = vpop.f32.mrb[0].mxu0
  %3712 = vmatprep.mubr.f32.mxu0 %v3598
  %3713 = vmatmul.mubr.f32.gmra.mrb[0].mxu0 %v3590
  %v3714 = vpop.f32.mrb[0].mxu0
  %v3715 = vadd.f32 %v3607, %v3714
  %v3716 = vpop.f32.mrb[0].mxu0
  %3717 = vmatprep.mubr.f32.mxu0 %v3599
  %3718 = vmatmul.mubr.f32.gmra.mrb[0].mxu0 %v3591
  %v3719 = vpop.f32.mrb[0].mxu0
  %v3720 = vadd.f32 %v3607, %v3719
  %v3721 = vpop.f32.mrb[0].mxu0
  %3722 = vmatprep.mubr.f32.mxu0 %v3600
  %3723 = vmatmul.mubr.f32.gmra.mrb[0].mxu0 %v3592
  %v3724 = vpop.f32.mrb[0].mxu0
  %v3725 = vadd.f32 %v3607, %v3724
  %v3726 = vpop.f32.mrb[0].mxu0
  %3727 = vmatprep.mubr.f32.mxu0 %v3601
  %3728 = vmatmul.mubr.f32.gmra.mrb[0].mxu0 %v3593
  %v3729 = vpop.f32.mrb[0].mxu0
  %v3730 = vadd.f32 %v3607, %v3729
  %v3731 = vpop.f32.mrb[0].mxu0
  %3732 = vmatprep.mubr.f32.mxu0 %v3602
  %3733 = vmatmul.mubr.f32.gmra.mrb[0].mxu0 %v3594
  %v3734 = vpop.f32.mrb[0].mxu0
  %v3735 = vadd.f32 %v3607, %v3734
  %v3736 = vpop.f32.mrb[0].mxu0
  %3737 = vdwg.mxu0
  %3738 = vmatprep.subr.mxu0 0.0
  %3739 = vmatpush1.msra.mxu0 %v3417
  %3740 = vmatprep.subr.mxu0 0.0
  %3741 = vmatpush1.msra.mxu0 %v3418
  %3742 = vmatprep.subr.mxu0 0.0
  %3743 = vmatpush1.msra.mxu0 %v3419
  %3744 = vmatprep.subr.mxu0 0.0
  %3745 = vmatpush1.msra.mxu0 %v3420
  %3746 = vmatprep.subr.mxu0 0.0
  %3747 = vmatpush1.msra.mxu0 %v3421
  %3748 = vmatprep.subr.mxu0 0.0
  %3749 = vmatpush1.msra.mxu0 %v3422
  %3750 = vmatprep.subr.mxu0 0.0
  %3751 = vmatpush1.msra.mxu0 %v3423
  %3752 = vmatprep.subr.mxu0 0.0
  %3753 = vmatpush1.msra.mxu0 %v3424
  %3754 = vmatprep.subr.mxu0 0.0
  %3755 = vmatpush1.msra.mxu0 0.0
  %3756 = vmatprep.subr.mxu0 0.0
  %3757 = vmatpush1.msra.mxu0 0.0
  %3758 = vmatprep.subr.mxu0 0.0
  %3759 = vmatpush1.msra.mxu0 0.0
  %3760 = vmatprep.subr.mxu0 0.0
  %3761 = vmatpush1.msra.mxu0 0.0
  %3762 = vmatprep.subr.mxu0 0.0
  %3763 = vmatpush1.msra.mxu0 0.0
  %3764 = vmatprep.subr.mxu0 0.0
  %3765 = vmatpush1.msra.mxu0 0.0
  %3766 = vmatprep.subr.mxu0 0.0
  %3767 = vmatpush1.msra.mxu0 0.0
  %3768 = vmatprep.subr.mxu0 0.0
  %3769 = vmatpush1.msra.mxu0 0.0
  %3770 = vmatprep.subr.mxu0 0.0
  %3771 = vmatpush1.msra.mxu0 0.0
  %3772 = vmatprep.subr.mxu0 0.0
  %3773 = vmatpush1.msra.mxu0 0.0
  %3774 = vmatprep.subr.mxu0 0.0
  %3775 = vmatpush1.msra.mxu0 0.0
  %3776 = vmatprep.subr.mxu0 0.0
  %3777 = vmatpush1.msra.mxu0 0.0
  %3778 = vmatprep.subr.mxu0 0.0
  %3779 = vmatpush1.msra.mxu0 0.0
  %3780 = vmatprep.subr.mxu0 0.0
  %3781 = vmatpush1.msra.mxu0 0.0
  %3782 = vmatprep.subr.mxu0 0.0
  %3783 = vmatpush1.msra.mxu0 0.0
  %3784 = vmatprep.subr.mxu0 0.0
  %3785 = vmatpush1.msra.mxu0 0.0
  %3786 = vmatprep.subr.mxu0 0.0
  %3787 = vmatpush1.msra.mxu0 0.0
  %3788 = vmatprep.subr.mxu0 0.0
  %3789 = vmatpush1.msra.mxu0 0.0
  %3790 = vmatprep.subr.mxu0 0.0
  %3791 = vmatpush1.msra.mxu0 0.0
  %3792 = vmatprep.subr.mxu0 0.0
  %3793 = vmatpush1.msra.mxu0 0.0
  %3794 = vmatprep.subr.mxu0 0.0
  %3795 = vmatpush1.msra.mxu0 0.0
  %3796 = vmatprep.subr.mxu0 0.0
  %3797 = vmatpush1.msra.mxu0 0.0
  %3798 = vmatprep.subr.mxu0 0.0
  %3799 = vmatpush1.msra.mxu0 0.0
  %3800 = vmatprep.subr.mxu0 0.0
  %3801 = vmatpush1.msra.mxu0 0.0
  %3802 = vmatprep.mubr.f32.mxu0 0.0
  %3803 = vmatmul.mubr.f32.gmra.mrb[0].mxu0 %v3610
  %v3804 = vpop.f32.mrb[0].mxu0
  %v3805 = vadd.f32 %v3700, %v3804
  %v3806 = vpop.f32.mrb[0].mxu0
  %3807 = vmatprep.mubr.f32.mxu0 0.0
  %3808 = vmatmul.mubr.f32.gmra.mrb[0].mxu0 %v3613
  %v3809 = vpop.f32.mrb[0].mxu0
  %v3810 = vadd.f32 %v3705, %v3809
  %v3811 = vpop.f32.mrb[0].mxu0
  %3812 = vmatprep.mubr.f32.mxu0 0.0
  %3813 = vmatmul.mubr.f32.gmra.mrb[0].mxu0 %v3616
  %v3814 = vpop.f32.mrb[0].mxu0
  %v3815 = vadd.f32 %v3710, %v3814
  %v3816 = vpop.f32.mrb[0].mxu0
  %3817 = vmatprep.mubr.f32.mxu0 0.0
  %3818 = vmatmul.mubr.f32.gmra.mrb[0].mxu0 %v3619
  %v3819 = vpop.f32.mrb[0].mxu0
  %v3820 = vadd.f32 %v3715, %v3819
  %v3821 = vpop.f32.mrb[0].mxu0
  %3822 = vmatprep.mubr.f32.mxu0 0.0
  %3823 = vmatmul.mubr.f32.gmra.mrb[0].mxu0 %v3622
  %v3824 = vpop.f32.mrb[0].mxu0
  %v3825 = vadd.f32 %v3720, %v3824
  %v3826 = vpop.f32.mrb[0].mxu0
  %3827 = vmatprep.mubr.f32.mxu0 0.0
  %3828 = vmatmul.mubr.f32.gmra.mrb[0].mxu0 %v3625
  %v3829 = vpop.f32.mrb[0].mxu0
  %v3830 = vadd.f32 %v3725, %v3829
  %v3831 = vpop.f32.mrb[0].mxu0
  %3832 = vmatprep.mubr.f32.mxu0 0.0
  %3833 = vmatmul.mubr.f32.gmra.mrb[0].mxu0 %v3628
  %v3834 = vpop.f32.mrb[0].mxu0
  %v3835 = vadd.f32 %v3730, %v3834
  %v3836 = vpop.f32.mrb[0].mxu0
  %3837 = vmatprep.mubr.f32.mxu0 0.0
  %3838 = vmatmul.mubr.f32.gmra.mrb[0].mxu0 %v3631
  %v3839 = vpop.f32.mrb[0].mxu0
  %v3840 = vadd.f32 %v3735, %v3839
  %v3841 = vpop.f32.mrb[0].mxu0
  %3842 = vdwg.mxu0
  %s3843 = scalar_lea.vmem %s21, 1
  %v3844 = vld [vmem:[%s3843] sm:$0x1]
  %s3845 = scalar_lea.vmem %s22, 1
  %v3846 = vld [vmem:[%s3845] sm:$0x1]
  %v3847 = vsel %vm306, %v3805, 0.0
  %v3848 = vsel %vm306, %v3810, 0.0
  %v3849 = vadd.f32 %v3847, %v3848
  %v3850 = vsel %vm306, %v3815, 0.0
  %v3851 = vadd.f32 %v3849, %v3850
  %v3852 = vsel %vm306, %v3820, 0.0
  %v3853 = vadd.f32 %v3851, %v3852
  %v3854 = vsel %vm306, %v3825, 0.0
  %v3855 = vadd.f32 %v3853, %v3854
  %v3856 = vsel %vm306, %v3830, 0.0
  %v3857 = vadd.f32 %v3855, %v3856
  %v3858 = vsel %vm306, %v3835, 0.0
  %v3859 = vadd.f32 %v3857, %v3858
  %v3860 = vsel %vm306, %v3840, 0.0
  %v3861 = vadd.f32 %v3859, %v3860
  %v3862 = vrot.slane %v3861, 4
  %v3863 = vadd.f32 %v3861, %v3862
  %v3864 = vrot.slane %v3863, 2
  %v3865 = vadd.f32 %v3863, %v3864
  %v3866 = vrot.slane %v3865, 1
  %v3867 = vadd.f32 %v3865, %v3866
  %v3868 = vmul.f32 %v3867, 0.015625
  %v3869 = vsub.f32 %v3805, %v3868
  %v3870 = vsub.f32 %v3810, %v3868
  %v3871 = vsub.f32 %v3815, %v3868
  %v3872 = vsub.f32 %v3820, %v3868
  %v3873 = vsub.f32 %v3825, %v3868
  %v3874 = vsub.f32 %v3830, %v3868
  %v3875 = vsub.f32 %v3835, %v3868
  %v3876 = vsub.f32 %v3840, %v3868
  %v3877 = vmul.f32 %v3869, %v3869
  %v3878 = vmul.f32 %v3870, %v3870
  %v3879 = vmul.f32 %v3871, %v3871
  %v3880 = vmul.f32 %v3872, %v3872
  %v3881 = vmul.f32 %v3873, %v3873
  %v3882 = vmul.f32 %v3874, %v3874
  %v3883 = vmul.f32 %v3875, %v3875
  %v3884 = vmul.f32 %v3876, %v3876
  %v3885 = vsel %vm306, %v3877, 0.0
  %v3886 = vsel %vm306, %v3878, 0.0
  %v3887 = vadd.f32 %v3885, %v3886
  %v3888 = vsel %vm306, %v3879, 0.0
  %v3889 = vadd.f32 %v3887, %v3888
  %v3890 = vsel %vm306, %v3880, 0.0
  %v3891 = vadd.f32 %v3889, %v3890
  %v3892 = vsel %vm306, %v3881, 0.0
  %v3893 = vadd.f32 %v3891, %v3892
  %v3894 = vsel %vm306, %v3882, 0.0
  %v3895 = vadd.f32 %v3893, %v3894
  %v3896 = vsel %vm306, %v3883, 0.0
  %v3897 = vadd.f32 %v3895, %v3896
  %v3898 = vsel %vm306, %v3884, 0.0
  %v3899 = vadd.f32 %v3897, %v3898
  %v3900 = vrot.slane %v3899, 4
  %v3901 = vadd.f32 %v3899, %v3900
  %v3902 = vrot.slane %v3901, 2
  %v3903 = vadd.f32 %v3901, %v3902
  %v3904 = vrot.slane %v3903, 1
  %v3905 = vadd.f32 %v3903, %v3904
  %v3906 = vmul.f32 %v3905, 0.015625
  %v3907 = vadd.f32 %v3906, 1e-05
  %v3908 = vrsqrt.pop %v3907
  %v3909 = vmul.f32 %v3869, %v3908
  %v3910 = vmul.f32 %v3870, %v3908
  %v3911 = vmul.f32 %v3871, %v3908
  %v3912 = vmul.f32 %v3872, %v3908
  %v3913 = vmul.f32 %v3873, %v3908
  %v3914 = vmul.f32 %v3874, %v3908
  %v3915 = vmul.f32 %v3875, %v3908
  %v3916 = vmul.f32 %v3876, %v3908
  %v3918 = vlaneseq
  %v3919 = vshrl.u32 %v3918, 7
  %v3920 = vsub.s32 0, %v3919
  %v3921 = vrot.slane %v3844, %v3920
  %v3923 = vmul.f32 %v3921, %v3909
  %v3924 = vmul.f32 %v3921, %v3910
  %v3925 = vmul.f32 %v3921, %v3911
  %v3926 = vmul.f32 %v3921, %v3912
  %v3927 = vmul.f32 %v3921, %v3913
  %v3928 = vmul.f32 %v3921, %v3914
  %v3929 = vmul.f32 %v3921, %v3915
  %v3930 = vmul.f32 %v3921, %v3916
  %v3932 = vlaneseq
  %v3933 = vshrl.u32 %v3932, 7
  %v3934 = vsub.s32 0, %v3933
  %v3935 = vrot.slane %v3846, %v3934
  %v3937 = vadd.f32 %v3923, %v3935
  %v3938 = vadd.f32 %v3924, %v3935
  %v3939 = vadd.f32 %v3925, %v3935
  %v3940 = vadd.f32 %v3926, %v3935
  %v3941 = vadd.f32 %v3927, %v3935
  %v3942 = vadd.f32 %v3928, %v3935
  %v3943 = vadd.f32 %v3929, %v3935
  %v3944 = vadd.f32 %v3930, %v3935
  %v3945 = vadd.f32 %v3937, %v2807
  %v3946 = vadd.f32 %v3938, %v2808
  %v3947 = vadd.f32 %v3939, %v2809
  %v3948 = vadd.f32 %v3940, %v2810
  %v3949 = vadd.f32 %v3941, %v2811
  %v3950 = vadd.f32 %v3942, %v2812
  %v3951 = vadd.f32 %v3943, %v2813
  %v3952 = vadd.f32 %v3944, %v2814
  %s3953 = scalar_lea.vmem %s15, 640
  %v3954 = vld [vmem:[%s3953] sm:$0xff]
  %v3955 = vld [vmem:[%s3953 + $0x8] sm:$0xff]
  %v3956 = vld [vmem:[%s3953 + $0x10] sm:$0xff]
  %v3957 = vld [vmem:[%s3953 + $0x18] sm:$0xff]
  %v3958 = vld [vmem:[%s3953 + $0x20] sm:$0xff]
  %v3959 = vld [vmem:[%s3953 + $0x28] sm:$0xff]
  %v3960 = vld [vmem:[%s3953 + $0x30] sm:$0xff]
  %v3961 = vld [vmem:[%s3953 + $0x38] sm:$0xff]
  %v3962 = vld [vmem:[%s3953 + $0x40] sm:$0xff]
  %v3963 = vld [vmem:[%s3953 + $0x48] sm:$0xff]
  %v3964 = vld [vmem:[%s3953 + $0x50] sm:$0xff]
  %v3965 = vld [vmem:[%s3953 + $0x58] sm:$0xff]
  %v3966 = vld [vmem:[%s3953 + $0x60] sm:$0xff]
  %v3967 = vld [vmem:[%s3953 + $0x68] sm:$0xff]
  %v3968 = vld [vmem:[%s3953 + $0x70] sm:$0xff]
  %v3969 = vld [vmem:[%s3953 + $0x78] sm:$0xff]
  %v3970 = vld [vmem:[%s3953 + $0x80] sm:$0xff]
  %v3971 = vld [vmem:[%s3953 + $0x88] sm:$0xff]
  %v3972 = vld [vmem:[%s3953 + $0x90] sm:$0xff]
  %v3973 = vld [vmem:[%s3953 + $0x98] sm:$0xff]
  %v3974 = vld [vmem:[%s3953 + $0xa0] sm:$0xff]
  %v3975 = vld [vmem:[%s3953 + $0xa8] sm:$0xff]
  %v3976 = vld [vmem:[%s3953 + $0xb0] sm:$0xff]
  %v3977 = vld [vmem:[%s3953 + $0xb8] sm:$0xff]
  %v3978 = vld [vmem:[%s3953 + $0xc0] sm:$0xff]
  %v3979 = vld [vmem:[%s3953 + $0xc8] sm:$0xff]
  %v3980 = vld [vmem:[%s3953 + $0xd0] sm:$0xff]
  %v3981 = vld [vmem:[%s3953 + $0xd8] sm:$0xff]
  %v3982 = vld [vmem:[%s3953 + $0xe0] sm:$0xff]
  %v3983 = vld [vmem:[%s3953 + $0xe8] sm:$0xff]
  %v3984 = vld [vmem:[%s3953 + $0xf0] sm:$0xff]
  %v3985 = vld [vmem:[%s3953 + $0xf8] sm:$0xff]
  %v3986 = vld [vmem:[%s3953 + $0x100] sm:$0xff]
  %v3987 = vld [vmem:[%s3953 + $0x108] sm:$0xff]
  %v3988 = vld [vmem:[%s3953 + $0x110] sm:$0xff]
  %v3989 = vld [vmem:[%s3953 + $0x118] sm:$0xff]
  %v3990 = vld [vmem:[%s3953 + $0x120] sm:$0xff]
  %v3991 = vld [vmem:[%s3953 + $0x128] sm:$0xff]
  %v3992 = vld [vmem:[%s3953 + $0x130] sm:$0xff]
  %v3993 = vld [vmem:[%s3953 + $0x138] sm:$0xff]
  %s3994 = scalar_lea.vmem %s16, 2
  %v3995 = vld [vmem:[%s3994] sm:$0x1]
  %v3996 = vrot.slane %v3945, 6
  %v3997 = vrot.slane %v3946, 6
  %v3998 = vrot.slane %v3947, 6
  %v3999 = vrot.slane %v3948, 6
  %v4000 = vrot.slane %v3949, 6
  %v4001 = vrot.slane %v3950, 6
  %v4002 = vrot.slane %v3951, 6
  %v4003 = vrot.slane %v3952, 6
  %v4004 = vsel %vm503, %v4002, %v4003
  %v4005 = vsel %vm503, %v4001, %v4002
  %v4006 = vsel %vm503, %v4000, %v4001
  %v4007 = vsel %vm503, %v3999, %v4000
  %v4008 = vsel %vm503, %v3998, %v3999
  %v4009 = vsel %vm503, %v3997, %v3998
  %v4010 = vsel %vm503, %v3996, %v3997
  %v4011 = vsel %vm503, %v4003, %v3996
  %v4012 = vsel %vm528, %v4011, 0.0
  %v4013 = vsel %vm529, %v4010, 0.0
  %v4014 = vsel %vm530, %v4009, 0.0
  %v4015 = vsel %vm531, %v4008, 0.0
  %v4016 = vsel %vm532, %v4007, 0.0
  %v4017 = vsel %vm533, %v4006, 0.0
  %v4018 = vsel %vm534, %v4005, 0.0
  %v4019 = vsel %vm535, %v4004, 0.0
  %v4020 = vrot.slane %v3945, 7
  %v4021 = vrot.slane %v3946, 7
  %v4022 = vrot.slane %v3947, 7
  %v4023 = vrot.slane %v3948, 7
  %v4024 = vrot.slane %v3949, 7
  %v4025 = vrot.slane %v3950, 7
  %v4026 = vrot.slane %v3951, 7
  %v4027 = vrot.slane %v3952, 7
  %v4028 = vsel %vm552, %v4026, %v4027
  %v4029 = vsel %vm552, %v4025, %v4026
  %v4030 = vsel %vm552, %v4024, %v4025
  %v4031 = vsel %vm552, %v4023, %v4024
  %v4032 = vsel %vm552, %v4022, %v4023
  %v4033 = vsel %vm552, %v4021, %v4022
  %v4034 = vsel %vm552, %v4020, %v4021
  %v4035 = vsel %vm552, %v4027, %v4020
  %v4036 = vsel %vm577, %v4035, 0.0
  %v4037 = vsel %vm578, %v4034, 0.0
  %v4038 = vsel %vm579, %v4033, 0.0
  %v4039 = vsel %vm580, %v4032, 0.0
  %v4040 = vsel %vm581, %v4031, 0.0
  %v4041 = vsel %vm582, %v4030, 0.0
  %v4042 = vsel %vm583, %v4029, 0.0
  %v4043 = vsel %vm584, %v4028, 0.0
  %v4044 = vrot.slane %v3945, 1
  %v4045 = vrot.slane %v3946, 1
  %v4046 = vrot.slane %v3947, 1
  %v4047 = vrot.slane %v3948, 1
  %v4048 = vrot.slane %v3949, 1
  %v4049 = vrot.slane %v3950, 1
  %v4050 = vrot.slane %v3951, 1
  %v4051 = vrot.slane %v3952, 1
  %v4052 = vsel %vm601, %v4050, %v4051
  %v4053 = vsel %vm601, %v4049, %v4050
  %v4054 = vsel %vm601, %v4048, %v4049
  %v4055 = vsel %vm601, %v4047, %v4048
  %v4056 = vsel %vm601, %v4046, %v4047
  %v4057 = vsel %vm601, %v4045, %v4046
  %v4058 = vsel %vm601, %v4044, %v4045
  %v4059 = vsel %vm601, %v4051, %v4044
  %v4060 = vsel %vm626, %v4058, 0.0
  %v4061 = vsel %vm627, %v4057, 0.0
  %v4062 = vsel %vm628, %v4056, 0.0
  %v4063 = vsel %vm629, %v4055, 0.0
  %v4064 = vsel %vm630, %v4054, 0.0
  %v4065 = vsel %vm631, %v4053, 0.0
  %v4066 = vsel %vm632, %v4052, 0.0
  %v4067 = vsel %vm633, %v4059, 0.0
  %v4068 = vrot.slane %v3945, 2
  %v4069 = vrot.slane %v3946, 2
  %v4070 = vrot.slane %v3947, 2
  %v4071 = vrot.slane %v3948, 2
  %v4072 = vrot.slane %v3949, 2
  %v4073 = vrot.slane %v3950, 2
  %v4074 = vrot.slane %v3951, 2
  %v4075 = vrot.slane %v3952, 2
  %v4076 = vsel %vm650, %v4074, %v4075
  %v4077 = vsel %vm650, %v4073, %v4074
  %v4078 = vsel %vm650, %v4072, %v4073
  %v4079 = vsel %vm650, %v4071, %v4072
  %v4080 = vsel %vm650, %v4070, %v4071
  %v4081 = vsel %vm650, %v4069, %v4070
  %v4082 = vsel %vm650, %v4068, %v4069
  %v4083 = vsel %vm650, %v4075, %v4068
  %v4084 = vsel %vm675, %v4082, 0.0
  %v4085 = vsel %vm676, %v4081, 0.0
  %v4086 = vsel %vm677, %v4080, 0.0
  %v4087 = vsel %vm678, %v4079, 0.0
  %v4088 = vsel %vm679, %v4078, 0.0
  %v4089 = vsel %vm680, %v4077, 0.0
  %v4090 = vsel %vm681, %v4076, 0.0
  %v4091 = vsel %vm682, %v4083, 0.0
  %4100 = vrot.lane.b32.xlu0 %v4036, 64
  %v4101 = vpop.permute.xlu0 %4100
  %4102 = vrot.lane.b32.xlu0 %v4037, 64
  %v4103 = vpop.permute.xlu0 %4102
  %4104 = vrot.lane.b32.xlu0 %v4038, 64
  %v4105 = vpop.permute.xlu0 %4104
  %4106 = vrot.lane.b32.xlu0 %v4039, 64
  %v4107 = vpop.permute.xlu0 %4106
  %4108 = vrot.lane.b32.xlu0 %v4040, 64
  %v4109 = vpop.permute.xlu0 %4108
  %4110 = vrot.lane.b32.xlu0 %v4041, 64
  %v4111 = vpop.permute.xlu0 %4110
  %4112 = vrot.lane.b32.xlu0 %v4042, 64
  %v4113 = vpop.permute.xlu0 %4112
  %4114 = vrot.lane.b32.xlu0 %v4043, 64
  %v4115 = vpop.permute.xlu0 %4114
  %4132 = vrot.lane.b32.xlu0 %v4060, 64
  %v4133 = vpop.permute.xlu0 %4132
  %4134 = vrot.lane.b32.xlu0 %v4061, 64
  %v4135 = vpop.permute.xlu0 %4134
  %4136 = vrot.lane.b32.xlu0 %v4062, 64
  %v4137 = vpop.permute.xlu0 %4136
  %4138 = vrot.lane.b32.xlu0 %v4063, 64
  %v4139 = vpop.permute.xlu0 %4138
  %4140 = vrot.lane.b32.xlu0 %v4064, 64
  %v4141 = vpop.permute.xlu0 %4140
  %4142 = vrot.lane.b32.xlu0 %v4065, 64
  %v4143 = vpop.permute.xlu0 %4142
  %4144 = vrot.lane.b32.xlu0 %v4066, 64
  %v4145 = vpop.permute.xlu0 %4144
  %4146 = vrot.lane.b32.xlu0 %v4067, 64
  %v4147 = vpop.permute.xlu0 %4146
  %v4156 = vsel %vm306, %v4012, %v4101
  %v4157 = vsel %vm306, %v4013, %v4103
  %v4158 = vsel %vm306, %v4014, %v4105
  %v4159 = vsel %vm306, %v4015, %v4107
  %v4160 = vsel %vm306, %v4016, %v4109
  %v4161 = vsel %vm306, %v4017, %v4111
  %v4162 = vsel %vm306, %v4018, %v4113
  %v4163 = vsel %vm306, %v4019, %v4115
  %v4164 = vsel %vm306, %v3945, %v4133
  %v4165 = vsel %vm306, %v3946, %v4135
  %v4166 = vsel %vm306, %v3947, %v4137
  %v4167 = vsel %vm306, %v3948, %v4139
  %v4168 = vsel %vm306, %v3949, %v4141
  %v4169 = vsel %vm306, %v3950, %v4143
  %v4170 = vsel %vm306, %v3951, %v4145
  %v4171 = vsel %vm306, %v3952, %v4147
  %v4173 = vlaneseq
  %v4174 = vshrl.u32 %v4173, 7
  %v4175 = vsub.s32 0, %v4174
  %v4176 = vrot.slane %v3995, %v4175
  %v4179 = vsel %vm306, %v4084, 0
  %v4182 = vsel %vm306, %v4085, 0
  %v4185 = vsel %vm306, %v4086, 0
  %v4188 = vsel %vm306, %v4087, 0
  %v4191 = vsel %vm306, %v4088, 0
  %v4194 = vsel %vm306, %v4089, 0
  %v4197 = vsel %vm306, %v4090, 0
  %v4200 = vsel %vm306, %v4091, 0
  %4202 = vmatprep.subr.mxu0 0.0
  %4203 = vmatpush1.msra.mxu0 %v3954
  %4204 = vmatprep.subr.mxu0 0.0
  %4205 = vmatpush1.msra.mxu0 %v3955
  %4206 = vmatprep.subr.mxu0 0.0
  %4207 = vmatpush1.msra.mxu0 %v3956
  %4208 = vmatprep.subr.mxu0 0.0
  %4209 = vmatpush1.msra.mxu0 %v3957
  %4210 = vmatprep.subr.mxu0 0.0
  %4211 = vmatpush1.msra.mxu0 %v3958
  %4212 = vmatprep.subr.mxu0 0.0
  %4213 = vmatpush1.msra.mxu0 %v3959
  %4214 = vmatprep.subr.mxu0 0.0
  %4215 = vmatpush1.msra.mxu0 %v3960
  %4216 = vmatprep.subr.mxu0 0.0
  %4217 = vmatpush1.msra.mxu0 %v3961
  %4218 = vmatprep.subr.mxu0 0.0
  %4219 = vmatpush1.msra.mxu0 %v3962
  %4220 = vmatprep.subr.mxu0 0.0
  %4221 = vmatpush1.msra.mxu0 %v3963
  %4222 = vmatprep.subr.mxu0 0.0
  %4223 = vmatpush1.msra.mxu0 %v3964
  %4224 = vmatprep.subr.mxu0 0.0
  %4225 = vmatpush1.msra.mxu0 %v3965
  %4226 = vmatprep.subr.mxu0 0.0
  %4227 = vmatpush1.msra.mxu0 %v3966
  %4228 = vmatprep.subr.mxu0 0.0
  %4229 = vmatpush1.msra.mxu0 %v3967
  %4230 = vmatprep.subr.mxu0 0.0
  %4231 = vmatpush1.msra.mxu0 %v3968
  %4232 = vmatprep.subr.mxu0 0.0
  %4233 = vmatpush1.msra.mxu0 %v3969
  %4234 = vmatprep.subr.mxu0 0.0
  %4235 = vmatpush1.msra.mxu0 %v3970
  %4236 = vmatprep.subr.mxu0 0.0
  %4237 = vmatpush1.msra.mxu0 %v3971
  %4238 = vmatprep.subr.mxu0 0.0
  %4239 = vmatpush1.msra.mxu0 %v3972
  %4240 = vmatprep.subr.mxu0 0.0
  %4241 = vmatpush1.msra.mxu0 %v3973
  %4242 = vmatprep.subr.mxu0 0.0
  %4243 = vmatpush1.msra.mxu0 %v3974
  %4244 = vmatprep.subr.mxu0 0.0
  %4245 = vmatpush1.msra.mxu0 %v3975
  %4246 = vmatprep.subr.mxu0 0.0
  %4247 = vmatpush1.msra.mxu0 %v3976
  %4248 = vmatprep.subr.mxu0 0.0
  %4249 = vmatpush1.msra.mxu0 %v3977
  %4250 = vmatprep.subr.mxu0 0.0
  %4251 = vmatpush1.msra.mxu0 %v3978
  %4252 = vmatprep.subr.mxu0 0.0
  %4253 = vmatpush1.msra.mxu0 %v3979
  %4254 = vmatprep.subr.mxu0 0.0
  %4255 = vmatpush1.msra.mxu0 %v3980
  %4256 = vmatprep.subr.mxu0 0.0
  %4257 = vmatpush1.msra.mxu0 %v3981
  %4258 = vmatprep.subr.mxu0 0.0
  %4259 = vmatpush1.msra.mxu0 %v3982
  %4260 = vmatprep.subr.mxu0 0.0
  %4261 = vmatpush1.msra.mxu0 %v3983
  %4262 = vmatprep.subr.mxu0 0.0
  %4263 = vmatpush1.msra.mxu0 %v3984
  %4264 = vmatprep.subr.mxu0 0.0
  %4265 = vmatpush1.msra.mxu0 %v3985
  %4266 = vmatprep.mubr.f32.mxu0 %v4164
  %4267 = vmatmul.mubr.f32.gmra.mrb[0].mxu0 %v4156
  %v4268 = vpop.f32.mrb[0].mxu0
  %v4269 = vadd.f32 %v4176, %v4268
  %v4270 = vpop.f32.mrb[0].mxu0
  %4271 = vmatprep.mubr.f32.mxu0 %v4165
  %4272 = vmatmul.mubr.f32.gmra.mrb[0].mxu0 %v4157
  %v4273 = vpop.f32.mrb[0].mxu0
  %v4274 = vadd.f32 %v4176, %v4273
  %v4275 = vpop.f32.mrb[0].mxu0
  %4276 = vmatprep.mubr.f32.mxu0 %v4166
  %4277 = vmatmul.mubr.f32.gmra.mrb[0].mxu0 %v4158
  %v4278 = vpop.f32.mrb[0].mxu0
  %v4279 = vadd.f32 %v4176, %v4278
  %v4280 = vpop.f32.mrb[0].mxu0
  %4281 = vmatprep.mubr.f32.mxu0 %v4167
  %4282 = vmatmul.mubr.f32.gmra.mrb[0].mxu0 %v4159
  %v4283 = vpop.f32.mrb[0].mxu0
  %v4284 = vadd.f32 %v4176, %v4283
  %v4285 = vpop.f32.mrb[0].mxu0
  %4286 = vmatprep.mubr.f32.mxu0 %v4168
  %4287 = vmatmul.mubr.f32.gmra.mrb[0].mxu0 %v4160
  %v4288 = vpop.f32.mrb[0].mxu0
  %v4289 = vadd.f32 %v4176, %v4288
  %v4290 = vpop.f32.mrb[0].mxu0
  %4291 = vmatprep.mubr.f32.mxu0 %v4169
  %4292 = vmatmul.mubr.f32.gmra.mrb[0].mxu0 %v4161
  %v4293 = vpop.f32.mrb[0].mxu0
  %v4294 = vadd.f32 %v4176, %v4293
  %v4295 = vpop.f32.mrb[0].mxu0
  %4296 = vmatprep.mubr.f32.mxu0 %v4170
  %4297 = vmatmul.mubr.f32.gmra.mrb[0].mxu0 %v4162
  %v4298 = vpop.f32.mrb[0].mxu0
  %v4299 = vadd.f32 %v4176, %v4298
  %v4300 = vpop.f32.mrb[0].mxu0
  %4301 = vmatprep.mubr.f32.mxu0 %v4171
  %4302 = vmatmul.mubr.f32.gmra.mrb[0].mxu0 %v4163
  %v4303 = vpop.f32.mrb[0].mxu0
  %v4304 = vadd.f32 %v4176, %v4303
  %v4305 = vpop.f32.mrb[0].mxu0
  %4306 = vdwg.mxu0
  %4307 = vmatprep.subr.mxu0 0.0
  %4308 = vmatpush1.msra.mxu0 %v3986
  %4309 = vmatprep.subr.mxu0 0.0
  %4310 = vmatpush1.msra.mxu0 %v3987
  %4311 = vmatprep.subr.mxu0 0.0
  %4312 = vmatpush1.msra.mxu0 %v3988
  %4313 = vmatprep.subr.mxu0 0.0
  %4314 = vmatpush1.msra.mxu0 %v3989
  %4315 = vmatprep.subr.mxu0 0.0
  %4316 = vmatpush1.msra.mxu0 %v3990
  %4317 = vmatprep.subr.mxu0 0.0
  %4318 = vmatpush1.msra.mxu0 %v3991
  %4319 = vmatprep.subr.mxu0 0.0
  %4320 = vmatpush1.msra.mxu0 %v3992
  %4321 = vmatprep.subr.mxu0 0.0
  %4322 = vmatpush1.msra.mxu0 %v3993
  %4323 = vmatprep.subr.mxu0 0.0
  %4324 = vmatpush1.msra.mxu0 0.0
  %4325 = vmatprep.subr.mxu0 0.0
  %4326 = vmatpush1.msra.mxu0 0.0
  %4327 = vmatprep.subr.mxu0 0.0
  %4328 = vmatpush1.msra.mxu0 0.0
  %4329 = vmatprep.subr.mxu0 0.0
  %4330 = vmatpush1.msra.mxu0 0.0
  %4331 = vmatprep.subr.mxu0 0.0
  %4332 = vmatpush1.msra.mxu0 0.0
  %4333 = vmatprep.subr.mxu0 0.0
  %4334 = vmatpush1.msra.mxu0 0.0
  %4335 = vmatprep.subr.mxu0 0.0
  %4336 = vmatpush1.msra.mxu0 0.0
  %4337 = vmatprep.subr.mxu0 0.0
  %4338 = vmatpush1.msra.mxu0 0.0
  %4339 = vmatprep.subr.mxu0 0.0
  %4340 = vmatpush1.msra.mxu0 0.0
  %4341 = vmatprep.subr.mxu0 0.0
  %4342 = vmatpush1.msra.mxu0 0.0
  %4343 = vmatprep.subr.mxu0 0.0
  %4344 = vmatpush1.msra.mxu0 0.0
  %4345 = vmatprep.subr.mxu0 0.0
  %4346 = vmatpush1.msra.mxu0 0.0
  %4347 = vmatprep.subr.mxu0 0.0
  %4348 = vmatpush1.msra.mxu0 0.0
  %4349 = vmatprep.subr.mxu0 0.0
  %4350 = vmatpush1.msra.mxu0 0.0
  %4351 = vmatprep.subr.mxu0 0.0
  %4352 = vmatpush1.msra.mxu0 0.0
  %4353 = vmatprep.subr.mxu0 0.0
  %4354 = vmatpush1.msra.mxu0 0.0
  %4355 = vmatprep.subr.mxu0 0.0
  %4356 = vmatpush1.msra.mxu0 0.0
  %4357 = vmatprep.subr.mxu0 0.0
  %4358 = vmatpush1.msra.mxu0 0.0
  %4359 = vmatprep.subr.mxu0 0.0
  %4360 = vmatpush1.msra.mxu0 0.0
  %4361 = vmatprep.subr.mxu0 0.0
  %4362 = vmatpush1.msra.mxu0 0.0
  %4363 = vmatprep.subr.mxu0 0.0
  %4364 = vmatpush1.msra.mxu0 0.0
  %4365 = vmatprep.subr.mxu0 0.0
  %4366 = vmatpush1.msra.mxu0 0.0
  %4367 = vmatprep.subr.mxu0 0.0
  %4368 = vmatpush1.msra.mxu0 0.0
  %4369 = vmatprep.subr.mxu0 0.0
  %4370 = vmatpush1.msra.mxu0 0.0
  %4371 = vmatprep.mubr.f32.mxu0 0.0
  %4372 = vmatmul.mubr.f32.gmra.mrb[0].mxu0 %v4179
  %v4373 = vpop.f32.mrb[0].mxu0
  %v4374 = vadd.f32 %v4269, %v4373
  %v4375 = vpop.f32.mrb[0].mxu0
  %4376 = vmatprep.mubr.f32.mxu0 0.0
  %4377 = vmatmul.mubr.f32.gmra.mrb[0].mxu0 %v4182
  %v4378 = vpop.f32.mrb[0].mxu0
  %v4379 = vadd.f32 %v4274, %v4378
  %v4380 = vpop.f32.mrb[0].mxu0
  %4381 = vmatprep.mubr.f32.mxu0 0.0
  %4382 = vmatmul.mubr.f32.gmra.mrb[0].mxu0 %v4185
  %v4383 = vpop.f32.mrb[0].mxu0
  %v4384 = vadd.f32 %v4279, %v4383
  %v4385 = vpop.f32.mrb[0].mxu0
  %4386 = vmatprep.mubr.f32.mxu0 0.0
  %4387 = vmatmul.mubr.f32.gmra.mrb[0].mxu0 %v4188
  %v4388 = vpop.f32.mrb[0].mxu0
  %v4389 = vadd.f32 %v4284, %v4388
  %v4390 = vpop.f32.mrb[0].mxu0
  %4391 = vmatprep.mubr.f32.mxu0 0.0
  %4392 = vmatmul.mubr.f32.gmra.mrb[0].mxu0 %v4191
  %v4393 = vpop.f32.mrb[0].mxu0
  %v4394 = vadd.f32 %v4289, %v4393
  %v4395 = vpop.f32.mrb[0].mxu0
  %4396 = vmatprep.mubr.f32.mxu0 0.0
  %4397 = vmatmul.mubr.f32.gmra.mrb[0].mxu0 %v4194
  %v4398 = vpop.f32.mrb[0].mxu0
  %v4399 = vadd.f32 %v4294, %v4398
  %v4400 = vpop.f32.mrb[0].mxu0
  %4401 = vmatprep.mubr.f32.mxu0 0.0
  %4402 = vmatmul.mubr.f32.gmra.mrb[0].mxu0 %v4197
  %v4403 = vpop.f32.mrb[0].mxu0
  %v4404 = vadd.f32 %v4299, %v4403
  %v4405 = vpop.f32.mrb[0].mxu0
  %4406 = vmatprep.mubr.f32.mxu0 0.0
  %4407 = vmatmul.mubr.f32.gmra.mrb[0].mxu0 %v4200
  %v4408 = vpop.f32.mrb[0].mxu0
  %v4409 = vadd.f32 %v4304, %v4408
  %v4410 = vpop.f32.mrb[0].mxu0
  %4411 = vdwg.mxu0
  %s4412 = scalar_lea.vmem %s17, 2
  %v4413 = vld [vmem:[%s4412] sm:$0x1]
  %s4414 = scalar_lea.vmem %s18, 2
  %v4415 = vld [vmem:[%s4414] sm:$0x1]
  %v4416 = vsel %vm306, %v4374, 0.0
  %v4417 = vsel %vm306, %v4379, 0.0
  %v4418 = vadd.f32 %v4416, %v4417
  %v4419 = vsel %vm306, %v4384, 0.0
  %v4420 = vadd.f32 %v4418, %v4419
  %v4421 = vsel %vm306, %v4389, 0.0
  %v4422 = vadd.f32 %v4420, %v4421
  %v4423 = vsel %vm306, %v4394, 0.0
  %v4424 = vadd.f32 %v4422, %v4423
  %v4425 = vsel %vm306, %v4399, 0.0
  %v4426 = vadd.f32 %v4424, %v4425
  %v4427 = vsel %vm306, %v4404, 0.0
  %v4428 = vadd.f32 %v4426, %v4427
  %v4429 = vsel %vm306, %v4409, 0.0
  %v4430 = vadd.f32 %v4428, %v4429
  %v4431 = vrot.slane %v4430, 4
  %v4432 = vadd.f32 %v4430, %v4431
  %v4433 = vrot.slane %v4432, 2
  %v4434 = vadd.f32 %v4432, %v4433
  %v4435 = vrot.slane %v4434, 1
  %v4436 = vadd.f32 %v4434, %v4435
  %v4437 = vmul.f32 %v4436, 0.015625
  %v4438 = vsub.f32 %v4374, %v4437
  %v4439 = vsub.f32 %v4379, %v4437
  %v4440 = vsub.f32 %v4384, %v4437
  %v4441 = vsub.f32 %v4389, %v4437
  %v4442 = vsub.f32 %v4394, %v4437
  %v4443 = vsub.f32 %v4399, %v4437
  %v4444 = vsub.f32 %v4404, %v4437
  %v4445 = vsub.f32 %v4409, %v4437
  %v4446 = vmul.f32 %v4438, %v4438
  %v4447 = vmul.f32 %v4439, %v4439
  %v4448 = vmul.f32 %v4440, %v4440
  %v4449 = vmul.f32 %v4441, %v4441
  %v4450 = vmul.f32 %v4442, %v4442
  %v4451 = vmul.f32 %v4443, %v4443
  %v4452 = vmul.f32 %v4444, %v4444
  %v4453 = vmul.f32 %v4445, %v4445
  %v4454 = vsel %vm306, %v4446, 0.0
  %v4455 = vsel %vm306, %v4447, 0.0
  %v4456 = vadd.f32 %v4454, %v4455
  %v4457 = vsel %vm306, %v4448, 0.0
  %v4458 = vadd.f32 %v4456, %v4457
  %v4459 = vsel %vm306, %v4449, 0.0
  %v4460 = vadd.f32 %v4458, %v4459
  %v4461 = vsel %vm306, %v4450, 0.0
  %v4462 = vadd.f32 %v4460, %v4461
  %v4463 = vsel %vm306, %v4451, 0.0
  %v4464 = vadd.f32 %v4462, %v4463
  %v4465 = vsel %vm306, %v4452, 0.0
  %v4466 = vadd.f32 %v4464, %v4465
  %v4467 = vsel %vm306, %v4453, 0.0
  %v4468 = vadd.f32 %v4466, %v4467
  %v4469 = vrot.slane %v4468, 4
  %v4470 = vadd.f32 %v4468, %v4469
  %v4471 = vrot.slane %v4470, 2
  %v4472 = vadd.f32 %v4470, %v4471
  %v4473 = vrot.slane %v4472, 1
  %v4474 = vadd.f32 %v4472, %v4473
  %v4475 = vmul.f32 %v4474, 0.015625
  %v4476 = vadd.f32 %v4475, 1e-05
  %v4477 = vrsqrt.pop %v4476
  %v4478 = vmul.f32 %v4438, %v4477
  %v4479 = vmul.f32 %v4439, %v4477
  %v4480 = vmul.f32 %v4440, %v4477
  %v4481 = vmul.f32 %v4441, %v4477
  %v4482 = vmul.f32 %v4442, %v4477
  %v4483 = vmul.f32 %v4443, %v4477
  %v4484 = vmul.f32 %v4444, %v4477
  %v4485 = vmul.f32 %v4445, %v4477
  %v4487 = vlaneseq
  %v4488 = vshrl.u32 %v4487, 7
  %v4489 = vsub.s32 0, %v4488
  %v4490 = vrot.slane %v4413, %v4489
  %v4492 = vmul.f32 %v4490, %v4478
  %v4493 = vmul.f32 %v4490, %v4479
  %v4494 = vmul.f32 %v4490, %v4480
  %v4495 = vmul.f32 %v4490, %v4481
  %v4496 = vmul.f32 %v4490, %v4482
  %v4497 = vmul.f32 %v4490, %v4483
  %v4498 = vmul.f32 %v4490, %v4484
  %v4499 = vmul.f32 %v4490, %v4485
  %v4501 = vlaneseq
  %v4502 = vshrl.u32 %v4501, 7
  %v4503 = vsub.s32 0, %v4502
  %v4504 = vrot.slane %v4415, %v4503
  %v4506 = vadd.f32 %v4492, %v4504
  %v4507 = vadd.f32 %v4493, %v4504
  %v4508 = vadd.f32 %v4494, %v4504
  %v4509 = vadd.f32 %v4495, %v4504
  %v4510 = vadd.f32 %v4496, %v4504
  %v4511 = vadd.f32 %v4497, %v4504
  %v4512 = vadd.f32 %v4498, %v4504
  %v4513 = vadd.f32 %v4499, %v4504
  %v4514 = vtanh.pop %v4506
  %v4515 = vtanh.pop %v4507
  %v4516 = vtanh.pop %v4508
  %v4517 = vtanh.pop %v4509
  %v4518 = vtanh.pop %v4510
  %v4519 = vtanh.pop %v4511
  %v4520 = vtanh.pop %v4512
  %v4521 = vtanh.pop %v4513
  %s4522 = scalar_lea.vmem %s19, 640
  %v4523 = vld [vmem:[%s4522] sm:$0xff]
  %v4524 = vld [vmem:[%s4522 + $0x8] sm:$0xff]
  %v4525 = vld [vmem:[%s4522 + $0x10] sm:$0xff]
  %v4526 = vld [vmem:[%s4522 + $0x18] sm:$0xff]
  %v4527 = vld [vmem:[%s4522 + $0x20] sm:$0xff]
  %v4528 = vld [vmem:[%s4522 + $0x28] sm:$0xff]
  %v4529 = vld [vmem:[%s4522 + $0x30] sm:$0xff]
  %v4530 = vld [vmem:[%s4522 + $0x38] sm:$0xff]
  %v4531 = vld [vmem:[%s4522 + $0x40] sm:$0xff]
  %v4532 = vld [vmem:[%s4522 + $0x48] sm:$0xff]
  %v4533 = vld [vmem:[%s4522 + $0x50] sm:$0xff]
  %v4534 = vld [vmem:[%s4522 + $0x58] sm:$0xff]
  %v4535 = vld [vmem:[%s4522 + $0x60] sm:$0xff]
  %v4536 = vld [vmem:[%s4522 + $0x68] sm:$0xff]
  %v4537 = vld [vmem:[%s4522 + $0x70] sm:$0xff]
  %v4538 = vld [vmem:[%s4522 + $0x78] sm:$0xff]
  %v4539 = vld [vmem:[%s4522 + $0x80] sm:$0xff]
  %v4540 = vld [vmem:[%s4522 + $0x88] sm:$0xff]
  %v4541 = vld [vmem:[%s4522 + $0x90] sm:$0xff]
  %v4542 = vld [vmem:[%s4522 + $0x98] sm:$0xff]
  %v4543 = vld [vmem:[%s4522 + $0xa0] sm:$0xff]
  %v4544 = vld [vmem:[%s4522 + $0xa8] sm:$0xff]
  %v4545 = vld [vmem:[%s4522 + $0xb0] sm:$0xff]
  %v4546 = vld [vmem:[%s4522 + $0xb8] sm:$0xff]
  %v4547 = vld [vmem:[%s4522 + $0xc0] sm:$0xff]
  %v4548 = vld [vmem:[%s4522 + $0xc8] sm:$0xff]
  %v4549 = vld [vmem:[%s4522 + $0xd0] sm:$0xff]
  %v4550 = vld [vmem:[%s4522 + $0xd8] sm:$0xff]
  %v4551 = vld [vmem:[%s4522 + $0xe0] sm:$0xff]
  %v4552 = vld [vmem:[%s4522 + $0xe8] sm:$0xff]
  %v4553 = vld [vmem:[%s4522 + $0xf0] sm:$0xff]
  %v4554 = vld [vmem:[%s4522 + $0xf8] sm:$0xff]
  %v4555 = vld [vmem:[%s4522 + $0x100] sm:$0xff]
  %v4556 = vld [vmem:[%s4522 + $0x108] sm:$0xff]
  %v4557 = vld [vmem:[%s4522 + $0x110] sm:$0xff]
  %v4558 = vld [vmem:[%s4522 + $0x118] sm:$0xff]
  %v4559 = vld [vmem:[%s4522 + $0x120] sm:$0xff]
  %v4560 = vld [vmem:[%s4522 + $0x128] sm:$0xff]
  %v4561 = vld [vmem:[%s4522 + $0x130] sm:$0xff]
  %v4562 = vld [vmem:[%s4522 + $0x138] sm:$0xff]
  %s4563 = scalar_lea.vmem %s20, 2
  %v4564 = vld [vmem:[%s4563] sm:$0x1]
  %v4565 = vrot.slane %v4514, 6
  %v4566 = vrot.slane %v4515, 6
  %v4567 = vrot.slane %v4516, 6
  %v4568 = vrot.slane %v4517, 6
  %v4569 = vrot.slane %v4518, 6
  %v4570 = vrot.slane %v4519, 6
  %v4571 = vrot.slane %v4520, 6
  %v4572 = vrot.slane %v4521, 6
  %v4573 = vsel %vm503, %v4571, %v4572
  %v4574 = vsel %vm503, %v4570, %v4571
  %v4575 = vsel %vm503, %v4569, %v4570
  %v4576 = vsel %vm503, %v4568, %v4569
  %v4577 = vsel %vm503, %v4567, %v4568
  %v4578 = vsel %vm503, %v4566, %v4567
  %v4579 = vsel %vm503, %v4565, %v4566
  %v4580 = vsel %vm503, %v4572, %v4565
  %v4581 = vsel %vm528, %v4580, 0.0
  %v4582 = vsel %vm529, %v4579, 0.0
  %v4583 = vsel %vm530, %v4578, 0.0
  %v4584 = vsel %vm531, %v4577, 0.0
  %v4585 = vsel %vm532, %v4576, 0.0
  %v4586 = vsel %vm533, %v4575, 0.0
  %v4587 = vsel %vm534, %v4574, 0.0
  %v4588 = vsel %vm535, %v4573, 0.0
  %v4589 = vrot.slane %v4514, 7
  %v4590 = vrot.slane %v4515, 7
  %v4591 = vrot.slane %v4516, 7
  %v4592 = vrot.slane %v4517, 7
  %v4593 = vrot.slane %v4518, 7
  %v4594 = vrot.slane %v4519, 7
  %v4595 = vrot.slane %v4520, 7
  %v4596 = vrot.slane %v4521, 7
  %v4597 = vsel %vm552, %v4595, %v4596
  %v4598 = vsel %vm552, %v4594, %v4595
  %v4599 = vsel %vm552, %v4593, %v4594
  %v4600 = vsel %vm552, %v4592, %v4593
  %v4601 = vsel %vm552, %v4591, %v4592
  %v4602 = vsel %vm552, %v4590, %v4591
  %v4603 = vsel %vm552, %v4589, %v4590
  %v4604 = vsel %vm552, %v4596, %v4589
  %v4605 = vsel %vm577, %v4604, 0.0
  %v4606 = vsel %vm578, %v4603, 0.0
  %v4607 = vsel %vm579, %v4602, 0.0
  %v4608 = vsel %vm580, %v4601, 0.0
  %v4609 = vsel %vm581, %v4600, 0.0
  %v4610 = vsel %vm582, %v4599, 0.0
  %v4611 = vsel %vm583, %v4598, 0.0
  %v4612 = vsel %vm584, %v4597, 0.0
  %v4613 = vrot.slane %v4514, 1
  %v4614 = vrot.slane %v4515, 1
  %v4615 = vrot.slane %v4516, 1
  %v4616 = vrot.slane %v4517, 1
  %v4617 = vrot.slane %v4518, 1
  %v4618 = vrot.slane %v4519, 1
  %v4619 = vrot.slane %v4520, 1
  %v4620 = vrot.slane %v4521, 1
  %v4621 = vsel %vm601, %v4619, %v4620
  %v4622 = vsel %vm601, %v4618, %v4619
  %v4623 = vsel %vm601, %v4617, %v4618
  %v4624 = vsel %vm601, %v4616, %v4617
  %v4625 = vsel %vm601, %v4615, %v4616
  %v4626 = vsel %vm601, %v4614, %v4615
  %v4627 = vsel %vm601, %v4613, %v4614
  %v4628 = vsel %vm601, %v4620, %v4613
  %v4629 = vsel %vm626, %v4627, 0.0
  %v4630 = vsel %vm627, %v4626, 0.0
  %v4631 = vsel %vm628, %v4625, 0.0
  %v4632 = vsel %vm629, %v4624, 0.0
  %v4633 = vsel %vm630, %v4623, 0.0
  %v4634 = vsel %vm631, %v4622, 0.0
  %v4635 = vsel %vm632, %v4621, 0.0
  %v4636 = vsel %vm633, %v4628, 0.0
  %v4637 = vrot.slane %v4514, 2
  %v4638 = vrot.slane %v4515, 2
  %v4639 = vrot.slane %v4516, 2
  %v4640 = vrot.slane %v4517, 2
  %v4641 = vrot.slane %v4518, 2
  %v4642 = vrot.slane %v4519, 2
  %v4643 = vrot.slane %v4520, 2
  %v4644 = vrot.slane %v4521, 2
  %v4645 = vsel %vm650, %v4643, %v4644
  %v4646 = vsel %vm650, %v4642, %v4643
  %v4647 = vsel %vm650, %v4641, %v4642
  %v4648 = vsel %vm650, %v4640, %v4641
  %v4649 = vsel %vm650, %v4639, %v4640
  %v4650 = vsel %vm650, %v4638, %v4639
  %v4651 = vsel %vm650, %v4637, %v4638
  %v4652 = vsel %vm650, %v4644, %v4637
  %v4653 = vsel %vm675, %v4651, 0.0
  %v4654 = vsel %vm676, %v4650, 0.0
  %v4655 = vsel %vm677, %v4649, 0.0
  %v4656 = vsel %vm678, %v4648, 0.0
  %v4657 = vsel %vm679, %v4647, 0.0
  %v4658 = vsel %vm680, %v4646, 0.0
  %v4659 = vsel %vm681, %v4645, 0.0
  %v4660 = vsel %vm682, %v4652, 0.0
  %4669 = vrot.lane.b32.xlu0 %v4605, 64
  %v4670 = vpop.permute.xlu0 %4669
  %4671 = vrot.lane.b32.xlu0 %v4606, 64
  %v4672 = vpop.permute.xlu0 %4671
  %4673 = vrot.lane.b32.xlu0 %v4607, 64
  %v4674 = vpop.permute.xlu0 %4673
  %4675 = vrot.lane.b32.xlu0 %v4608, 64
  %v4676 = vpop.permute.xlu0 %4675
  %4677 = vrot.lane.b32.xlu0 %v4609, 64
  %v4678 = vpop.permute.xlu0 %4677
  %4679 = vrot.lane.b32.xlu0 %v4610, 64
  %v4680 = vpop.permute.xlu0 %4679
  %4681 = vrot.lane.b32.xlu0 %v4611, 64
  %v4682 = vpop.permute.xlu0 %4681
  %4683 = vrot.lane.b32.xlu0 %v4612, 64
  %v4684 = vpop.permute.xlu0 %4683
  %4701 = vrot.lane.b32.xlu0 %v4629, 64
  %v4702 = vpop.permute.xlu0 %4701
  %4703 = vrot.lane.b32.xlu0 %v4630, 64
  %v4704 = vpop.permute.xlu0 %4703
  %4705 = vrot.lane.b32.xlu0 %v4631, 64
  %v4706 = vpop.permute.xlu0 %4705
  %4707 = vrot.lane.b32.xlu0 %v4632, 64
  %v4708 = vpop.permute.xlu0 %4707
  %4709 = vrot.lane.b32.xlu0 %v4633, 64
  %v4710 = vpop.permute.xlu0 %4709
  %4711 = vrot.lane.b32.xlu0 %v4634, 64
  %v4712 = vpop.permute.xlu0 %4711
  %4713 = vrot.lane.b32.xlu0 %v4635, 64
  %v4714 = vpop.permute.xlu0 %4713
  %4715 = vrot.lane.b32.xlu0 %v4636, 64
  %v4716 = vpop.permute.xlu0 %4715
  %v4725 = vsel %vm306, %v4581, %v4670
  %v4726 = vsel %vm306, %v4582, %v4672
  %v4727 = vsel %vm306, %v4583, %v4674
  %v4728 = vsel %vm306, %v4584, %v4676
  %v4729 = vsel %vm306, %v4585, %v4678
  %v4730 = vsel %vm306, %v4586, %v4680
  %v4731 = vsel %vm306, %v4587, %v4682
  %v4732 = vsel %vm306, %v4588, %v4684
  %v4733 = vsel %vm306, %v4514, %v4702
  %v4734 = vsel %vm306, %v4515, %v4704
  %v4735 = vsel %vm306, %v4516, %v4706
  %v4736 = vsel %vm306, %v4517, %v4708
  %v4737 = vsel %vm306, %v4518, %v4710
  %v4738 = vsel %vm306, %v4519, %v4712
  %v4739 = vsel %vm306, %v4520, %v4714
  %v4740 = vsel %vm306, %v4521, %v4716
  %v4742 = vlaneseq
  %v4743 = vshrl.u32 %v4742, 7
  %v4744 = vsub.s32 0, %v4743
  %v4745 = vrot.slane %v4564, %v4744
  %v4748 = vsel %vm306, %v4653, 0
  %v4751 = vsel %vm306, %v4654, 0
  %v4754 = vsel %vm306, %v4655, 0
  %v4757 = vsel %vm306, %v4656, 0
  %v4760 = vsel %vm306, %v4657, 0
  %v4763 = vsel %vm306, %v4658, 0
  %v4766 = vsel %vm306, %v4659, 0
  %v4769 = vsel %vm306, %v4660, 0
  %4771 = vmatprep.subr.mxu0 0.0
  %4772 = vmatpush1.msra.mxu0 %v4523
  %4773 = vmatprep.subr.mxu0 0.0
  %4774 = vmatpush1.msra.mxu0 %v4524
  %4775 = vmatprep.subr.mxu0 0.0
  %4776 = vmatpush1.msra.mxu0 %v4525
  %4777 = vmatprep.subr.mxu0 0.0
  %4778 = vmatpush1.msra.mxu0 %v4526
  %4779 = vmatprep.subr.mxu0 0.0
  %4780 = vmatpush1.msra.mxu0 %v4527
  %4781 = vmatprep.subr.mxu0 0.0
  %4782 = vmatpush1.msra.mxu0 %v4528
  %4783 = vmatprep.subr.mxu0 0.0
  %4784 = vmatpush1.msra.mxu0 %v4529
  %4785 = vmatprep.subr.mxu0 0.0
  %4786 = vmatpush1.msra.mxu0 %v4530
  %4787 = vmatprep.subr.mxu0 0.0
  %4788 = vmatpush1.msra.mxu0 %v4531
  %4789 = vmatprep.subr.mxu0 0.0
  %4790 = vmatpush1.msra.mxu0 %v4532
  %4791 = vmatprep.subr.mxu0 0.0
  %4792 = vmatpush1.msra.mxu0 %v4533
  %4793 = vmatprep.subr.mxu0 0.0
  %4794 = vmatpush1.msra.mxu0 %v4534
  %4795 = vmatprep.subr.mxu0 0.0
  %4796 = vmatpush1.msra.mxu0 %v4535
  %4797 = vmatprep.subr.mxu0 0.0
  %4798 = vmatpush1.msra.mxu0 %v4536
  %4799 = vmatprep.subr.mxu0 0.0
  %4800 = vmatpush1.msra.mxu0 %v4537
  %4801 = vmatprep.subr.mxu0 0.0
  %4802 = vmatpush1.msra.mxu0 %v4538
  %4803 = vmatprep.subr.mxu0 0.0
  %4804 = vmatpush1.msra.mxu0 %v4539
  %4805 = vmatprep.subr.mxu0 0.0
  %4806 = vmatpush1.msra.mxu0 %v4540
  %4807 = vmatprep.subr.mxu0 0.0
  %4808 = vmatpush1.msra.mxu0 %v4541
  %4809 = vmatprep.subr.mxu0 0.0
  %4810 = vmatpush1.msra.mxu0 %v4542
  %4811 = vmatprep.subr.mxu0 0.0
  %4812 = vmatpush1.msra.mxu0 %v4543
  %4813 = vmatprep.subr.mxu0 0.0
  %4814 = vmatpush1.msra.mxu0 %v4544
  %4815 = vmatprep.subr.mxu0 0.0
  %4816 = vmatpush1.msra.mxu0 %v4545
  %4817 = vmatprep.subr.mxu0 0.0
  %4818 = vmatpush1.msra.mxu0 %v4546
  %4819 = vmatprep.subr.mxu0 0.0
  %4820 = vmatpush1.msra.mxu0 %v4547
  %4821 = vmatprep.subr.mxu0 0.0
  %4822 = vmatpush1.msra.mxu0 %v4548
  %4823 = vmatprep.subr.mxu0 0.0
  %4824 = vmatpush1.msra.mxu0 %v4549
  %4825 = vmatprep.subr.mxu0 0.0
  %4826 = vmatpush1.msra.mxu0 %v4550
  %4827 = vmatprep.subr.mxu0 0.0
  %4828 = vmatpush1.msra.mxu0 %v4551
  %4829 = vmatprep.subr.mxu0 0.0
  %4830 = vmatpush1.msra.mxu0 %v4552
  %4831 = vmatprep.subr.mxu0 0.0
  %4832 = vmatpush1.msra.mxu0 %v4553
  %4833 = vmatprep.subr.mxu0 0.0
  %4834 = vmatpush1.msra.mxu0 %v4554
  %4835 = vmatprep.mubr.f32.mxu0 %v4733
  %4836 = vmatmul.mubr.f32.gmra.mrb[0].mxu0 %v4725
  %v4837 = vpop.f32.mrb[0].mxu0
  %v4838 = vadd.f32 %v4745, %v4837
  %v4839 = vpop.f32.mrb[0].mxu0
  %4840 = vmatprep.mubr.f32.mxu0 %v4734
  %4841 = vmatmul.mubr.f32.gmra.mrb[0].mxu0 %v4726
  %v4842 = vpop.f32.mrb[0].mxu0
  %v4843 = vadd.f32 %v4745, %v4842
  %v4844 = vpop.f32.mrb[0].mxu0
  %4845 = vmatprep.mubr.f32.mxu0 %v4735
  %4846 = vmatmul.mubr.f32.gmra.mrb[0].mxu0 %v4727
  %v4847 = vpop.f32.mrb[0].mxu0
  %v4848 = vadd.f32 %v4745, %v4847
  %v4849 = vpop.f32.mrb[0].mxu0
  %4850 = vmatprep.mubr.f32.mxu0 %v4736
  %4851 = vmatmul.mubr.f32.gmra.mrb[0].mxu0 %v4728
  %v4852 = vpop.f32.mrb[0].mxu0
  %v4853 = vadd.f32 %v4745, %v4852
  %v4854 = vpop.f32.mrb[0].mxu0
  %4855 = vmatprep.mubr.f32.mxu0 %v4737
  %4856 = vmatmul.mubr.f32.gmra.mrb[0].mxu0 %v4729
  %v4857 = vpop.f32.mrb[0].mxu0
  %v4858 = vadd.f32 %v4745, %v4857
  %v4859 = vpop.f32.mrb[0].mxu0
  %4860 = vmatprep.mubr.f32.mxu0 %v4738
  %4861 = vmatmul.mubr.f32.gmra.mrb[0].mxu0 %v4730
  %v4862 = vpop.f32.mrb[0].mxu0
  %v4863 = vadd.f32 %v4745, %v4862
  %v4864 = vpop.f32.mrb[0].mxu0
  %4865 = vmatprep.mubr.f32.mxu0 %v4739
  %4866 = vmatmul.mubr.f32.gmra.mrb[0].mxu0 %v4731
  %v4867 = vpop.f32.mrb[0].mxu0
  %v4868 = vadd.f32 %v4745, %v4867
  %v4869 = vpop.f32.mrb[0].mxu0
  %4870 = vmatprep.mubr.f32.mxu0 %v4740
  %4871 = vmatmul.mubr.f32.gmra.mrb[0].mxu0 %v4732
  %v4872 = vpop.f32.mrb[0].mxu0
  %v4873 = vadd.f32 %v4745, %v4872
  %v4874 = vpop.f32.mrb[0].mxu0
  %4875 = vdwg.mxu0
  %4876 = vmatprep.subr.mxu0 0.0
  %4877 = vmatpush1.msra.mxu0 %v4555
  %4878 = vmatprep.subr.mxu0 0.0
  %4879 = vmatpush1.msra.mxu0 %v4556
  %4880 = vmatprep.subr.mxu0 0.0
  %4881 = vmatpush1.msra.mxu0 %v4557
  %4882 = vmatprep.subr.mxu0 0.0
  %4883 = vmatpush1.msra.mxu0 %v4558
  %4884 = vmatprep.subr.mxu0 0.0
  %4885 = vmatpush1.msra.mxu0 %v4559
  %4886 = vmatprep.subr.mxu0 0.0
  %4887 = vmatpush1.msra.mxu0 %v4560
  %4888 = vmatprep.subr.mxu0 0.0
  %4889 = vmatpush1.msra.mxu0 %v4561
  %4890 = vmatprep.subr.mxu0 0.0
  %4891 = vmatpush1.msra.mxu0 %v4562
  %4892 = vmatprep.subr.mxu0 0.0
  %4893 = vmatpush1.msra.mxu0 0.0
  %4894 = vmatprep.subr.mxu0 0.0
  %4895 = vmatpush1.msra.mxu0 0.0
  %4896 = vmatprep.subr.mxu0 0.0
  %4897 = vmatpush1.msra.mxu0 0.0
  %4898 = vmatprep.subr.mxu0 0.0
  %4899 = vmatpush1.msra.mxu0 0.0
  %4900 = vmatprep.subr.mxu0 0.0
  %4901 = vmatpush1.msra.mxu0 0.0
  %4902 = vmatprep.subr.mxu0 0.0
  %4903 = vmatpush1.msra.mxu0 0.0
  %4904 = vmatprep.subr.mxu0 0.0
  %4905 = vmatpush1.msra.mxu0 0.0
  %4906 = vmatprep.subr.mxu0 0.0
  %4907 = vmatpush1.msra.mxu0 0.0
  %4908 = vmatprep.subr.mxu0 0.0
  %4909 = vmatpush1.msra.mxu0 0.0
  %4910 = vmatprep.subr.mxu0 0.0
  %4911 = vmatpush1.msra.mxu0 0.0
  %4912 = vmatprep.subr.mxu0 0.0
  %4913 = vmatpush1.msra.mxu0 0.0
  %4914 = vmatprep.subr.mxu0 0.0
  %4915 = vmatpush1.msra.mxu0 0.0
  %4916 = vmatprep.subr.mxu0 0.0
  %4917 = vmatpush1.msra.mxu0 0.0
  %4918 = vmatprep.subr.mxu0 0.0
  %4919 = vmatpush1.msra.mxu0 0.0
  %4920 = vmatprep.subr.mxu0 0.0
  %4921 = vmatpush1.msra.mxu0 0.0
  %4922 = vmatprep.subr.mxu0 0.0
  %4923 = vmatpush1.msra.mxu0 0.0
  %4924 = vmatprep.subr.mxu0 0.0
  %4925 = vmatpush1.msra.mxu0 0.0
  %4926 = vmatprep.subr.mxu0 0.0
  %4927 = vmatpush1.msra.mxu0 0.0
  %4928 = vmatprep.subr.mxu0 0.0
  %4929 = vmatpush1.msra.mxu0 0.0
  %4930 = vmatprep.subr.mxu0 0.0
  %4931 = vmatpush1.msra.mxu0 0.0
  %4932 = vmatprep.subr.mxu0 0.0
  %4933 = vmatpush1.msra.mxu0 0.0
  %4934 = vmatprep.subr.mxu0 0.0
  %4935 = vmatpush1.msra.mxu0 0.0
  %4936 = vmatprep.subr.mxu0 0.0
  %4937 = vmatpush1.msra.mxu0 0.0
  %4938 = vmatprep.subr.mxu0 0.0
  %4939 = vmatpush1.msra.mxu0 0.0
  %4940 = vmatprep.mubr.f32.mxu0 0.0
  %4941 = vmatmul.mubr.f32.gmra.mrb[0].mxu0 %v4748
  %v4942 = vpop.f32.mrb[0].mxu0
  %v4943 = vadd.f32 %v4838, %v4942
  %v4944 = vpop.f32.mrb[0].mxu0
  %4945 = vmatprep.mubr.f32.mxu0 0.0
  %4946 = vmatmul.mubr.f32.gmra.mrb[0].mxu0 %v4751
  %v4947 = vpop.f32.mrb[0].mxu0
  %v4948 = vadd.f32 %v4843, %v4947
  %v4949 = vpop.f32.mrb[0].mxu0
  %4950 = vmatprep.mubr.f32.mxu0 0.0
  %4951 = vmatmul.mubr.f32.gmra.mrb[0].mxu0 %v4754
  %v4952 = vpop.f32.mrb[0].mxu0
  %v4953 = vadd.f32 %v4848, %v4952
  %v4954 = vpop.f32.mrb[0].mxu0
  %4955 = vmatprep.mubr.f32.mxu0 0.0
  %4956 = vmatmul.mubr.f32.gmra.mrb[0].mxu0 %v4757
  %v4957 = vpop.f32.mrb[0].mxu0
  %v4958 = vadd.f32 %v4853, %v4957
  %v4959 = vpop.f32.mrb[0].mxu0
  %4960 = vmatprep.mubr.f32.mxu0 0.0
  %4961 = vmatmul.mubr.f32.gmra.mrb[0].mxu0 %v4760
  %v4962 = vpop.f32.mrb[0].mxu0
  %v4963 = vadd.f32 %v4858, %v4962
  %v4964 = vpop.f32.mrb[0].mxu0
  %4965 = vmatprep.mubr.f32.mxu0 0.0
  %4966 = vmatmul.mubr.f32.gmra.mrb[0].mxu0 %v4763
  %v4967 = vpop.f32.mrb[0].mxu0
  %v4968 = vadd.f32 %v4863, %v4967
  %v4969 = vpop.f32.mrb[0].mxu0
  %4970 = vmatprep.mubr.f32.mxu0 0.0
  %4971 = vmatmul.mubr.f32.gmra.mrb[0].mxu0 %v4766
  %v4972 = vpop.f32.mrb[0].mxu0
  %v4973 = vadd.f32 %v4868, %v4972
  %v4974 = vpop.f32.mrb[0].mxu0
  %4975 = vmatprep.mubr.f32.mxu0 0.0
  %4976 = vmatmul.mubr.f32.gmra.mrb[0].mxu0 %v4769
  %v4977 = vpop.f32.mrb[0].mxu0
  %v4978 = vadd.f32 %v4873, %v4977
  %v4979 = vpop.f32.mrb[0].mxu0
  %4980 = vdwg.mxu0
  %s4981 = scalar_lea.vmem %s21, 2
  %v4982 = vld [vmem:[%s4981] sm:$0x1]
  %s4983 = scalar_lea.vmem %s22, 2
  %v4984 = vld [vmem:[%s4983] sm:$0x1]
  %v4985 = vsel %vm306, %v4943, 0.0
  %v4986 = vsel %vm306, %v4948, 0.0
  %v4987 = vadd.f32 %v4985, %v4986
  %v4988 = vsel %vm306, %v4953, 0.0
  %v4989 = vadd.f32 %v4987, %v4988
  %v4990 = vsel %vm306, %v4958, 0.0
  %v4991 = vadd.f32 %v4989, %v4990
  %v4992 = vsel %vm306, %v4963, 0.0
  %v4993 = vadd.f32 %v4991, %v4992
  %v4994 = vsel %vm306, %v4968, 0.0
  %v4995 = vadd.f32 %v4993, %v4994
  %v4996 = vsel %vm306, %v4973, 0.0
  %v4997 = vadd.f32 %v4995, %v4996
  %v4998 = vsel %vm306, %v4978, 0.0
  %v4999 = vadd.f32 %v4997, %v4998
  %v5000 = vrot.slane %v4999, 4
  %v5001 = vadd.f32 %v4999, %v5000
  %v5002 = vrot.slane %v5001, 2
  %v5003 = vadd.f32 %v5001, %v5002
  %v5004 = vrot.slane %v5003, 1
  %v5005 = vadd.f32 %v5003, %v5004
  %v5006 = vmul.f32 %v5005, 0.015625
  %v5007 = vsub.f32 %v4943, %v5006
  %v5008 = vsub.f32 %v4948, %v5006
  %v5009 = vsub.f32 %v4953, %v5006
  %v5010 = vsub.f32 %v4958, %v5006
  %v5011 = vsub.f32 %v4963, %v5006
  %v5012 = vsub.f32 %v4968, %v5006
  %v5013 = vsub.f32 %v4973, %v5006
  %v5014 = vsub.f32 %v4978, %v5006
  %v5015 = vmul.f32 %v5007, %v5007
  %v5016 = vmul.f32 %v5008, %v5008
  %v5017 = vmul.f32 %v5009, %v5009
  %v5018 = vmul.f32 %v5010, %v5010
  %v5019 = vmul.f32 %v5011, %v5011
  %v5020 = vmul.f32 %v5012, %v5012
  %v5021 = vmul.f32 %v5013, %v5013
  %v5022 = vmul.f32 %v5014, %v5014
  %v5023 = vsel %vm306, %v5015, 0.0
  %v5024 = vsel %vm306, %v5016, 0.0
  %v5025 = vadd.f32 %v5023, %v5024
  %v5026 = vsel %vm306, %v5017, 0.0
  %v5027 = vadd.f32 %v5025, %v5026
  %v5028 = vsel %vm306, %v5018, 0.0
  %v5029 = vadd.f32 %v5027, %v5028
  %v5030 = vsel %vm306, %v5019, 0.0
  %v5031 = vadd.f32 %v5029, %v5030
  %v5032 = vsel %vm306, %v5020, 0.0
  %v5033 = vadd.f32 %v5031, %v5032
  %v5034 = vsel %vm306, %v5021, 0.0
  %v5035 = vadd.f32 %v5033, %v5034
  %v5036 = vsel %vm306, %v5022, 0.0
  %v5037 = vadd.f32 %v5035, %v5036
  %v5038 = vrot.slane %v5037, 4
  %v5039 = vadd.f32 %v5037, %v5038
  %v5040 = vrot.slane %v5039, 2
  %v5041 = vadd.f32 %v5039, %v5040
  %v5042 = vrot.slane %v5041, 1
  %v5043 = vadd.f32 %v5041, %v5042
  %v5044 = vmul.f32 %v5043, 0.015625
  %v5045 = vadd.f32 %v5044, 1e-05
  %v5046 = vrsqrt.pop %v5045
  %v5047 = vmul.f32 %v5007, %v5046
  %v5048 = vmul.f32 %v5008, %v5046
  %v5049 = vmul.f32 %v5009, %v5046
  %v5050 = vmul.f32 %v5010, %v5046
  %v5051 = vmul.f32 %v5011, %v5046
  %v5052 = vmul.f32 %v5012, %v5046
  %v5053 = vmul.f32 %v5013, %v5046
  %v5054 = vmul.f32 %v5014, %v5046
  %v5056 = vlaneseq
  %v5057 = vshrl.u32 %v5056, 7
  %v5058 = vsub.s32 0, %v5057
  %v5059 = vrot.slane %v4982, %v5058
  %v5061 = vmul.f32 %v5059, %v5047
  %v5062 = vmul.f32 %v5059, %v5048
  %v5063 = vmul.f32 %v5059, %v5049
  %v5064 = vmul.f32 %v5059, %v5050
  %v5065 = vmul.f32 %v5059, %v5051
  %v5066 = vmul.f32 %v5059, %v5052
  %v5067 = vmul.f32 %v5059, %v5053
  %v5068 = vmul.f32 %v5059, %v5054
  %v5070 = vlaneseq
  %v5071 = vshrl.u32 %v5070, 7
  %v5072 = vsub.s32 0, %v5071
  %v5073 = vrot.slane %v4984, %v5072
  %v5075 = vadd.f32 %v5061, %v5073
  %v5076 = vadd.f32 %v5062, %v5073
  %v5077 = vadd.f32 %v5063, %v5073
  %v5078 = vadd.f32 %v5064, %v5073
  %v5079 = vadd.f32 %v5065, %v5073
  %v5080 = vadd.f32 %v5066, %v5073
  %v5081 = vadd.f32 %v5067, %v5073
  %v5082 = vadd.f32 %v5068, %v5073
  %v5083 = vadd.f32 %v5075, %v3945
  %v5084 = vadd.f32 %v5076, %v3946
  %v5085 = vadd.f32 %v5077, %v3947
  %v5086 = vadd.f32 %v5078, %v3948
  %v5087 = vadd.f32 %v5079, %v3949
  %v5088 = vadd.f32 %v5080, %v3950
  %v5089 = vadd.f32 %v5081, %v3951
  %v5090 = vadd.f32 %v5082, %v3952
  %v5091 = vrot.slane %v5083, 6
  %v5092 = vrot.slane %v5084, 6
  %v5093 = vrot.slane %v5085, 6
  %v5094 = vrot.slane %v5086, 6
  %v5095 = vrot.slane %v5087, 6
  %v5096 = vrot.slane %v5088, 6
  %v5097 = vrot.slane %v5089, 6
  %v5098 = vrot.slane %v5090, 6
  %v5099 = vsel %vm503, %v5097, %v5098
  %v5100 = vsel %vm503, %v5096, %v5097
  %v5101 = vsel %vm503, %v5095, %v5096
  %v5102 = vsel %vm503, %v5094, %v5095
  %v5103 = vsel %vm503, %v5093, %v5094
  %v5104 = vsel %vm503, %v5092, %v5093
  %v5105 = vsel %vm503, %v5091, %v5092
  %v5106 = vsel %vm503, %v5098, %v5091
  %v5107 = vsel %vm528, %v5106, 0.0
  %v5108 = vsel %vm529, %v5105, 0.0
  %v5109 = vsel %vm530, %v5104, 0.0
  %v5110 = vsel %vm531, %v5103, 0.0
  %v5111 = vsel %vm532, %v5102, 0.0
  %v5112 = vsel %vm533, %v5101, 0.0
  %v5113 = vsel %vm534, %v5100, 0.0
  %v5114 = vsel %vm535, %v5099, 0.0
  %v5115 = vrot.slane %v5083, 7
  %v5116 = vrot.slane %v5084, 7
  %v5117 = vrot.slane %v5085, 7
  %v5118 = vrot.slane %v5086, 7
  %v5119 = vrot.slane %v5087, 7
  %v5120 = vrot.slane %v5088, 7
  %v5121 = vrot.slane %v5089, 7
  %v5122 = vrot.slane %v5090, 7
  %v5123 = vsel %vm552, %v5121, %v5122
  %v5124 = vsel %vm552, %v5120, %v5121
  %v5125 = vsel %vm552, %v5119, %v5120
  %v5126 = vsel %vm552, %v5118, %v5119
  %v5127 = vsel %vm552, %v5117, %v5118
  %v5128 = vsel %vm552, %v5116, %v5117
  %v5129 = vsel %vm552, %v5115, %v5116
  %v5130 = vsel %vm552, %v5122, %v5115
  %v5131 = vsel %vm577, %v5130, 0.0
  %v5132 = vsel %vm578, %v5129, 0.0
  %v5133 = vsel %vm579, %v5128, 0.0
  %v5134 = vsel %vm580, %v5127, 0.0
  %v5135 = vsel %vm581, %v5126, 0.0
  %v5136 = vsel %vm582, %v5125, 0.0
  %v5137 = vsel %vm583, %v5124, 0.0
  %v5138 = vsel %vm584, %v5123, 0.0
  %v5139 = vrot.slane %v5083, 1
  %v5140 = vrot.slane %v5084, 1
  %v5141 = vrot.slane %v5085, 1
  %v5142 = vrot.slane %v5086, 1
  %v5143 = vrot.slane %v5087, 1
  %v5144 = vrot.slane %v5088, 1
  %v5145 = vrot.slane %v5089, 1
  %v5146 = vrot.slane %v5090, 1
  %v5147 = vsel %vm601, %v5145, %v5146
  %v5148 = vsel %vm601, %v5144, %v5145
  %v5149 = vsel %vm601, %v5143, %v5144
  %v5150 = vsel %vm601, %v5142, %v5143
  %v5151 = vsel %vm601, %v5141, %v5142
  %v5152 = vsel %vm601, %v5140, %v5141
  %v5153 = vsel %vm601, %v5139, %v5140
  %v5154 = vsel %vm601, %v5146, %v5139
  %v5155 = vsel %vm626, %v5153, 0.0
  %v5156 = vsel %vm627, %v5152, 0.0
  %v5157 = vsel %vm628, %v5151, 0.0
  %v5158 = vsel %vm629, %v5150, 0.0
  %v5159 = vsel %vm630, %v5149, 0.0
  %v5160 = vsel %vm631, %v5148, 0.0
  %v5161 = vsel %vm632, %v5147, 0.0
  %v5162 = vsel %vm633, %v5154, 0.0
  %v5163 = vrot.slane %v5083, 2
  %v5164 = vrot.slane %v5084, 2
  %v5165 = vrot.slane %v5085, 2
  %v5166 = vrot.slane %v5086, 2
  %v5167 = vrot.slane %v5087, 2
  %v5168 = vrot.slane %v5088, 2
  %v5169 = vrot.slane %v5089, 2
  %v5170 = vrot.slane %v5090, 2
  %v5171 = vsel %vm650, %v5169, %v5170
  %v5172 = vsel %vm650, %v5168, %v5169
  %v5173 = vsel %vm650, %v5167, %v5168
  %v5174 = vsel %vm650, %v5166, %v5167
  %v5175 = vsel %vm650, %v5165, %v5166
  %v5176 = vsel %vm650, %v5164, %v5165
  %v5177 = vsel %vm650, %v5163, %v5164
  %v5178 = vsel %vm650, %v5170, %v5163
  %v5179 = vsel %vm675, %v5177, 0.0
  %v5180 = vsel %vm676, %v5176, 0.0
  %v5181 = vsel %vm677, %v5175, 0.0
  %v5182 = vsel %vm678, %v5174, 0.0
  %v5183 = vsel %vm679, %v5173, 0.0
  %v5184 = vsel %vm680, %v5172, 0.0
  %v5185 = vsel %vm681, %v5171, 0.0
  %v5186 = vsel %vm682, %v5178, 0.0
  %5195 = vrot.lane.b32.xlu0 %v5131, 64
  %v5196 = vpop.permute.xlu0 %5195
  %5197 = vrot.lane.b32.xlu0 %v5132, 64
  %v5198 = vpop.permute.xlu0 %5197
  %5199 = vrot.lane.b32.xlu0 %v5133, 64
  %v5200 = vpop.permute.xlu0 %5199
  %5201 = vrot.lane.b32.xlu0 %v5134, 64
  %v5202 = vpop.permute.xlu0 %5201
  %5203 = vrot.lane.b32.xlu0 %v5135, 64
  %v5204 = vpop.permute.xlu0 %5203
  %5205 = vrot.lane.b32.xlu0 %v5136, 64
  %v5206 = vpop.permute.xlu0 %5205
  %5207 = vrot.lane.b32.xlu0 %v5137, 64
  %v5208 = vpop.permute.xlu0 %5207
  %5209 = vrot.lane.b32.xlu0 %v5138, 64
  %v5210 = vpop.permute.xlu0 %5209
  %5227 = vrot.lane.b32.xlu0 %v5155, 64
  %v5228 = vpop.permute.xlu0 %5227
  %5229 = vrot.lane.b32.xlu0 %v5156, 64
  %v5230 = vpop.permute.xlu0 %5229
  %5231 = vrot.lane.b32.xlu0 %v5157, 64
  %v5232 = vpop.permute.xlu0 %5231
  %5233 = vrot.lane.b32.xlu0 %v5158, 64
  %v5234 = vpop.permute.xlu0 %5233
  %5235 = vrot.lane.b32.xlu0 %v5159, 64
  %v5236 = vpop.permute.xlu0 %5235
  %5237 = vrot.lane.b32.xlu0 %v5160, 64
  %v5238 = vpop.permute.xlu0 %5237
  %5239 = vrot.lane.b32.xlu0 %v5161, 64
  %v5240 = vpop.permute.xlu0 %5239
  %5241 = vrot.lane.b32.xlu0 %v5162, 64
  %v5242 = vpop.permute.xlu0 %5241
  %v5251 = vsel %vm306, %v5107, %v5196
  %v5252 = vsel %vm306, %v5108, %v5198
  %v5253 = vsel %vm306, %v5109, %v5200
  %v5254 = vsel %vm306, %v5110, %v5202
  %v5255 = vsel %vm306, %v5111, %v5204
  %v5256 = vsel %vm306, %v5112, %v5206
  %v5257 = vsel %vm306, %v5113, %v5208
  %v5258 = vsel %vm306, %v5114, %v5210
  %v5259 = vsel %vm306, %v5083, %v5228
  %v5260 = vsel %vm306, %v5084, %v5230
  %v5261 = vsel %vm306, %v5085, %v5232
  %v5262 = vsel %vm306, %v5086, %v5234
  %v5263 = vsel %vm306, %v5087, %v5236
  %v5264 = vsel %vm306, %v5088, %v5238
  %v5265 = vsel %vm306, %v5089, %v5240
  %v5266 = vsel %vm306, %v5090, %v5242
  %v5267 = vld [vmem:[%s23] sm:$0x7]
  %v5269 = vlaneseq
  %v5270 = vshrl.u32 %v5269, 7
  %v5271 = vsub.s32 0, %v5270
  %v5272 = vrot.slane %v5267, %v5271
  %v5273 = vlaneseq
  %v5274 = vshrl.u32 %v5273, 7
  %v5275 = vsub.s32 1, %v5274
  %v5276 = vrot.slane %v5267, %v5275
  %v5277 = vlaneseq
  %v5278 = vshrl.u32 %v5277, 7
  %v5279 = vsub.s32 2, %v5278
  %v5280 = vrot.slane %v5267, %v5279
  %v5284 = vmul.f32 %v5251, %v5272
  %v5285 = vmul.f32 %v5259, %v5276
  %v5286 = vmul.f32 %v5179, %v5280
  %v5287 = vmul.f32 %v5252, %v5272
  %v5288 = vmul.f32 %v5260, %v5276
  %v5289 = vmul.f32 %v5180, %v5280
  %v5290 = vmul.f32 %v5253, %v5272
  %v5291 = vmul.f32 %v5261, %v5276
  %v5292 = vmul.f32 %v5181, %v5280
  %v5293 = vmul.f32 %v5254, %v5272
  %v5294 = vmul.f32 %v5262, %v5276
  %v5295 = vmul.f32 %v5182, %v5280
  %v5296 = vmul.f32 %v5255, %v5272
  %v5297 = vmul.f32 %v5263, %v5276
  %v5298 = vmul.f32 %v5183, %v5280
  %v5299 = vmul.f32 %v5256, %v5272
  %v5300 = vmul.f32 %v5264, %v5276
  %v5301 = vmul.f32 %v5184, %v5280
  %v5302 = vmul.f32 %v5257, %v5272
  %v5303 = vmul.f32 %v5265, %v5276
  %v5304 = vmul.f32 %v5185, %v5280
  %v5305 = vmul.f32 %v5258, %v5272
  %v5306 = vmul.f32 %v5266, %v5276
  %v5307 = vmul.f32 %v5186, %v5280
  %v5308 = vadd.f32 %v5284, %v5285
  %v5309 = vsel %vm306, %v5286, 0.0
  %v5310 = vadd.f32 %v5308, %v5309
  %5311 = vadd.xlane.f32.xlu0 %v5310
  %v5312 = vpop.xlane.xlu0 %5311
  %v5313 = vadd.f32 %v5287, %v5288
  %v5314 = vsel %vm306, %v5289, 0.0
  %v5315 = vadd.f32 %v5313, %v5314
  %5316 = vadd.xlane.f32.xlu0 %v5315
  %v5317 = vpop.xlane.xlu0 %5316
  %v5318 = vadd.f32 %v5290, %v5291
  %v5319 = vsel %vm306, %v5292, 0.0
  %v5320 = vadd.f32 %v5318, %v5319
  %5321 = vadd.xlane.f32.xlu0 %v5320
  %v5322 = vpop.xlane.xlu0 %5321
  %v5323 = vadd.f32 %v5293, %v5294
  %v5324 = vsel %vm306, %v5295, 0.0
  %v5325 = vadd.f32 %v5323, %v5324
  %5326 = vadd.xlane.f32.xlu0 %v5325
  %v5327 = vpop.xlane.xlu0 %5326
  %v5328 = vadd.f32 %v5296, %v5297
  %v5329 = vsel %vm306, %v5298, 0.0
  %v5330 = vadd.f32 %v5328, %v5329
  %5331 = vadd.xlane.f32.xlu0 %v5330
  %v5332 = vpop.xlane.xlu0 %5331
  %v5333 = vadd.f32 %v5299, %v5300
  %v5334 = vsel %vm306, %v5301, 0.0
  %v5335 = vadd.f32 %v5333, %v5334
  %5336 = vadd.xlane.f32.xlu0 %v5335
  %v5337 = vpop.xlane.xlu0 %5336
  %v5338 = vadd.f32 %v5302, %v5303
  %v5339 = vsel %vm306, %v5304, 0.0
  %v5340 = vadd.f32 %v5338, %v5339
  %5341 = vadd.xlane.f32.xlu0 %v5340
  %v5342 = vpop.xlane.xlu0 %5341
  %v5343 = vadd.f32 %v5305, %v5306
  %v5344 = vsel %vm306, %v5307, 0.0
  %v5345 = vadd.f32 %v5343, %v5344
  %5346 = vadd.xlane.f32.xlu0 %v5345
  %v5347 = vpop.xlane.xlu0 %5346
  %v5348 = vld [vmem:[#allocation2] sm:$0x1]
  %v5350 = vlaneseq
  %v5351 = vshrl.u32 %v5350, 7
  %v5352 = vsub.s32 0, %v5351
  %v5353 = vrot.slane %v5348, %v5352
  %v5355 = vadd.f32 %v5312, %v5353
  %v5356 = vadd.f32 %v5317, %v5353
  %v5357 = vadd.f32 %v5322, %v5353
  %v5358 = vadd.f32 %v5327, %v5353
  %v5359 = vadd.f32 %v5332, %v5353
  %v5360 = vadd.f32 %v5337, %v5353
  %v5361 = vadd.f32 %v5342, %v5353
  %v5362 = vadd.f32 %v5347, %v5353
  %vm5363 = vcmask 7168
  %5364 = vst.msk [vmem:[%s26] sm:$0xff] %vm5363, %v5355
  %5365 = vst.msk [vmem:[%s26 + $0x8] sm:$0xff] %vm5363, %v5356
  %5366 = vst.msk [vmem:[%s26 + $0x10] sm:$0xff] %vm5363, %v5357
  %5367 = vst.msk [vmem:[%s26 + $0x18] sm:$0xff] %vm5363, %v5358
  %5368 = vst.msk [vmem:[%s26 + $0x20] sm:$0xff] %vm5363, %v5359
  %5369 = vst.msk [vmem:[%s26 + $0x28] sm:$0xff] %vm5363, %v5360
  %5370 = vst.msk [vmem:[%s26 + $0x30] sm:$0xff] %vm5363, %v5361
  %5371 = vst.msk [vmem:[%s26 + $0x38] sm:$0xff] %vm5363, %v5362
  %v5372 = vsub.f32 0.0, %v5355
  %v5373 = vsub.f32 0.0, %v5356
  %v5374 = vsub.f32 0.0, %v5357
  %v5375 = vsub.f32 0.0, %v5358
  %v5376 = vsub.f32 0.0, %v5359
  %v5377 = vsub.f32 0.0, %v5360
  %v5378 = vsub.f32 0.0, %v5361
  %v5379 = vsub.f32 0.0, %v5362
  %v5380 = vmul.f32 %v5372, 1.442695
  %v5381 = vpow.pop %v5380
  %v5382 = vmul.f32 %v5373, 1.442695
  %v5383 = vpow.pop %v5382
  %v5384 = vmul.f32 %v5374, 1.442695
  %v5385 = vpow.pop %v5384
  %v5386 = vmul.f32 %v5375, 1.442695
  %v5387 = vpow.pop %v5386
  %v5388 = vmul.f32 %v5376, 1.442695
  %v5389 = vpow.pop %v5388
  %v5390 = vmul.f32 %v5377, 1.442695
  %v5391 = vpow.pop %v5390
  %v5392 = vmul.f32 %v5378, 1.442695
  %v5393 = vpow.pop %v5392
  %v5394 = vmul.f32 %v5379, 1.442695
  %v5395 = vpow.pop %v5394
  %v5396 = vadd.f32 %v5381, 1.0
  %v5397 = vadd.f32 %v5383, 1.0
  %v5398 = vadd.f32 %v5385, 1.0
  %v5399 = vadd.f32 %v5387, 1.0
  %v5400 = vadd.f32 %v5389, 1.0
  %v5401 = vadd.f32 %v5391, 1.0
  %v5402 = vadd.f32 %v5393, 1.0
  %v5403 = vadd.f32 %v5395, 1.0
  %v5404 = vrcp.pop %v5396
  %v5405 = vmul.f32 1.0, %v5404
  %v5406 = vrcp.pop %v5397
  %v5407 = vmul.f32 1.0, %v5406
  %v5408 = vrcp.pop %v5398
  %v5409 = vmul.f32 1.0, %v5408
  %v5410 = vrcp.pop %v5399
  %v5411 = vmul.f32 1.0, %v5410
  %v5412 = vrcp.pop %v5400
  %v5413 = vmul.f32 1.0, %v5412
  %v5414 = vrcp.pop %v5401
  %v5415 = vmul.f32 1.0, %v5414
  %v5416 = vrcp.pop %v5402
  %v5417 = vmul.f32 1.0, %v5416
  %v5418 = vrcp.pop %v5403
  %v5419 = vmul.f32 1.0, %v5418
  %5420 = vst.msk [vmem:[%s25] sm:$0xff] %vm5363, %v5405
  %5421 = vst.msk [vmem:[%s25 + $0x8] sm:$0xff] %vm5363, %v5407
  %5422 = vst.msk [vmem:[%s25 + $0x10] sm:$0xff] %vm5363, %v5409
  %5423 = vst.msk [vmem:[%s25 + $0x18] sm:$0xff] %vm5363, %v5411
  %5424 = vst.msk [vmem:[%s25 + $0x20] sm:$0xff] %vm5363, %v5413
  %5425 = vst.msk [vmem:[%s25 + $0x28] sm:$0xff] %vm5363, %v5415
  %5426 = vst.msk [vmem:[%s25 + $0x30] sm:$0xff] %vm5363, %v5417
  %5427 = vst.msk [vmem:[%s25 + $0x38] sm:$0xff] %vm5363, %v5419
  // Predicated region
  $region102: #{tpu_custom_call.1} parent=0 // pred_check
    _
  $region103: #{tpu_custom_call.1} parent=0 // pred_check_branch
    %5429 = sbr.rel (0) target = $region105
  $region104: #{tpu_custom_call.1} parent=0 // pred_region
    _
  $region105: #{tpu_custom_call.1} parent=0 // pred_fallthru
    _
  // Predicated region
  $region106: #{tpu_custom_call.1} parent=0 // pred_check
    _
  $region107: #{tpu_custom_call.1} parent=0 // pred_check_branch
    %5431 = sbr.rel (0) target = $region109
  $region108: #{tpu_custom_call.1} parent=0 // pred_region
    _
  $region109: #{tpu_custom_call.1} parent=0 // pred_fallthru
    _
  // Predicated region
  $region110: #{tpu_custom_call.1} parent=0 // pred_check
    _
  $region111: #{tpu_custom_call.1} parent=0 // pred_check_branch
    %5433 = sbr.rel (0) target = $region113
  $region112: #{tpu_custom_call.1} parent=0 // pred_region
    _
  $region113: #{tpu_custom_call.1} parent=0 // pred_fallthru
    _
  // Predicated region
  $region114: #{tpu_custom_call.1} parent=0 // pred_check
    _
  $region115: #{tpu_custom_call.1} parent=0 // pred_check_branch
    %5435 = sbr.rel (0) target = $region117
  $region116: #{tpu_custom_call.1} parent=0 // pred_region
    _
  $region117: #{tpu_custom_call.1} parent=0 // pred_fallthru
    _

</llo_original>
